<compile_context>
chip_gen: v7x
topology: tpu7x:2x2x1
jax: 0.10.0
libtpu: 0.0.40
codegen_flags: <defaults>
</compile_context>

<pallas_src>
import jax
import jax.numpy as jnp
from jax.experimental import pallas as pl
from jax.experimental.pallas import tpu as pltpu

_LN_EPS = 1e-13


def _round_up(x, m):
    return (x + m - 1) // m * m


def extra_vocab_kernel(x_ref, wt_ref, bt_ref, g_ref, beta_ref, wp_ref, bp_ref,
                       out_ref, feat_ref):
    # Grid = (row_tiles ["parallel"], vocab_tiles ["arbitrary", inner]).
    # Transform + LayerNorm computed once per row tile (first vocab tile) and
    # cached in bf16 VMEM scratch; requires the vocab axis to stay sequential.
    @pl.when(pl.program_id(1) == 0)
    def _():
        x = x_ref[...].astype(jnp.bfloat16)                       # bf16 MXU input
        feat = jnp.dot(x, wt_ref[...],                            # bf16xbf16 -> f32
                       preferred_element_type=jnp.float32)
        feat = feat + bt_ref[...]                                 # f32 bias
        mu = jnp.mean(feat, axis=-1, keepdims=True)
        centered = feat - mu
        var = jnp.mean(centered * centered, axis=-1, keepdims=True)
        inv = jax.lax.rsqrt(var + _LN_EPS)                        # EUP
        normed = centered * inv * g_ref[...] + beta_ref[...]
        feat_ref[...] = normed.astype(jnp.bfloat16)

    # Vocab projection for this (row, vocab) tile — bf16 MXU, f32 accumulate.
    logits = jnp.dot(feat_ref[...], wp_ref[...],
                     preferred_element_type=jnp.float32)
    out_ref[...] = (logits + bp_ref[...]).astype(out_ref.dtype)


def _vmem_estimate(tm, tv, h, x_itemsize, out_itemsize):
    # Rough per-call VMEM footprint (bytes) for tile selection.
    return (2 * tm * h * x_itemsize        # x tile, double buffered
            + h * h * 2                    # W_t (bf16), single buffered
            + 3 * h * 4                    # b_t / gamma / beta
            + 2 * h * tv * 2               # W_p tile (bf16), double buffered
            + 2 * tv * 4                   # b_p tile, double buffered
            + 2 * tm * tv * out_itemsize   # out tile, double buffered
            + tm * h * 2)                  # feat scratch (bf16)


def extra_vocab_forward(last_hidden_states, wt, bt, gamma, beta, wp, bp, *,
                        row_tile=1024, vocab_tile=2048, out_dtype=None):
    B, S, H = last_hidden_states.shape
    V = wp.shape[1]
    N = B * S
    out_dtype = (jnp.dtype(out_dtype) if out_dtype is not None
                 else jnp.dtype(last_hidden_states.dtype))

    x = last_hidden_states.reshape(N, H)
    wt_bf = wt.astype(jnp.bfloat16)
    wp_bf = wp.astype(jnp.bfloat16)
    bt = bt.astype(jnp.float32)
    gamma = gamma.astype(jnp.float32)
    beta = beta.astype(jnp.float32)
    bp = bp.astype(jnp.float32)

    # Generation-aware VMEM budget: ~48 MiB on v7x (64 MiB phys), ~96 MiB on
    # v5e/v6e (128 MiB phys).  Fall back to the most conservative part.
    try:
        phys_vmem = int(pltpu.get_tpu_info().vmem_capacity_bytes)
    except Exception:
        phys_vmem = 64 << 20
    vmem_limit = min(phys_vmem * 3 // 4, 100 << 20)
    budget = int(vmem_limit * 0.85)

    # Row tile: cover all rows in at least two tiles (keeps both v7x TCs busy
    # on the "parallel" axis) but as large as allowed, minimizing W_p passes.
    tm = max(8, min(_round_up(row_tile, 8), _round_up(pl.cdiv(N, 2), 8)))

    # Vocab tile: wide, 128-aligned; chosen to evenly split the padded vocab.
    Vp128 = _round_up(V, 128)
    tv_cap = max(128, min(_round_up(vocab_tile, 128), Vp128))

    x_bytes = jnp.dtype(x.dtype).itemsize
    o_bytes = out_dtype.itemsize
    while _vmem_estimate(tm, tv_cap, H, x_bytes, o_bytes) > budget and tv_cap > 512:
        tv_cap //= 2
    while _vmem_estimate(tm, tv_cap, H, x_bytes, o_bytes) > budget and tm > 128:
        tm = max(8, _round_up(tm // 2, 8))

    n_vocab_tiles = pl.cdiv(Vp128, tv_cap)
    tv = _round_up(pl.cdiv(Vp128, n_vocab_tiles), 128)
    Vp = n_vocab_tiles * tv
    Np = _round_up(N, tm)
    n_row_tiles = Np // tm

    if Np != N:
        x = jnp.pad(x, ((0, Np - N), (0, 0)))
    if Vp != V:
        wp_bf = jnp.pad(wp_bf, ((0, 0), (0, Vp - V)))
        bp = jnp.pad(bp, ((0, 0), (0, Vp - V)))

    # Bytes include W_p / b_p re-streamed once per row tile (dominant term).
    cost = pl.CostEstimate(
        flops=2 * Np * H * H + 2 * Np * H * Vp + 6 * Np * H,
        transcendentals=Np,
        bytes_accessed=(Np * H * x_bytes + H * H * 2 + 3 * H * 4
                        + n_row_tiles * (H * Vp * 2 + Vp * 4)
                        + Np * Vp * o_bytes),
    )

    def _call(single_buffer_consts):
        if single_buffer_consts:
            def const(shape):
                return pl.BlockSpec(shape, lambda i, j: (0, 0),
                                    pipeline_mode=pl.Buffered(1))
        else:
            def const(shape):
                return pl.BlockSpec(shape, lambda i, j: (0, 0))

        return pl.pallas_call(
            extra_vocab_kernel,
            out_shape=jax.ShapeDtypeStruct((Np, Vp), out_dtype),
            grid_spec=pltpu.PrefetchScalarGridSpec(
                num_scalar_prefetch=0,
                grid=(n_row_tiles, Vp // tv),
                in_specs=[
                    pl.BlockSpec((tm, H), lambda i, j: (i, 0)),   # hidden rows
                    const((H, H)),                                # W_transform (bf16)
                    const((1, H)),                                # b_transform
                    const((1, H)),                                # LN gamma
                    const((1, H)),                                # LN beta
                    pl.BlockSpec((H, tv), lambda i, j: (0, j)),   # W_projector tile (bf16)
                    pl.BlockSpec((1, tv), lambda i, j: (0, j)),   # b_projector tile
                ],
                out_specs=pl.BlockSpec((tm, tv), lambda i, j: (i, j)),
                scratch_shapes=[pltpu.VMEM((tm, H), jnp.bfloat16)],  # cached LN feats
            ),
            compiler_params=pltpu.CompilerParams(
                dimension_semantics=("parallel", "arbitrary"),
                vmem_limit_bytes=vmem_limit,
            ),
            cost_estimate=cost,
        )(x, wt_bf, bt, gamma, beta, wp_bf, bp)

    try:
        out = _call(True)
    except Exception:
        # Fallback if pipeline_mode=pl.Buffered(1) is not supported.
        out = _call(False)

    return out[:N, :V].reshape(B, S, V)


def _reference_f32(last_hidden_states, wt, bt, gamma, beta, wp, bp):
    B, S, H = last_hidden_states.shape
    x = last_hidden_states.reshape(B * S, H).astype(jnp.float32)
    feat = x @ wt + bt[0]
    mu = jnp.mean(feat, axis=-1, keepdims=True)
    var = jnp.mean((feat - mu) ** 2, axis=-1, keepdims=True)
    normed = (feat - mu) * jax.lax.rsqrt(var + _LN_EPS) * gamma[0] + beta[0]
    logits = normed @ wp + bp[0]
    return logits.reshape(B, S, wp.shape[1])


def _reference_bf16_path(last_hidden_states, wt, bt, gamma, beta, wp, bp):
    # Mirrors the kernel's precision choices (bf16 MXU inputs, f32 accumulate).
    B, S, H = last_hidden_states.shape
    x = last_hidden_states.reshape(B * S, H).astype(jnp.bfloat16)
    feat = jnp.dot(x, wt.astype(jnp.bfloat16),
                   preferred_element_type=jnp.float32) + bt[0]
    mu = jnp.mean(feat, axis=-1, keepdims=True)
    var = jnp.mean((feat - mu) ** 2, axis=-1, keepdims=True)
    normed = (feat - mu) * jax.lax.rsqrt(var + _LN_EPS) * gamma[0] + beta[0]
    logits = jnp.dot(normed.astype(jnp.bfloat16), wp.astype(jnp.bfloat16),
                     preferred_element_type=jnp.float32) + bp[0]
    return logits.reshape(B, S, wp.shape[1]).astype(last_hidden_states.dtype)


if __name__ == "__main__":
    # H must be 768 (hardcoded by the module); small n_vocab for the test.
    B, S, H, V = 2, 8, 768, 1024

    key = jax.random.PRNGKey(0)
    k1, k2, k3, k4, k5, k6, k7 = jax.random.split(key, 7)

    # TODO(synk): the upstream transformer producing last_hidden_states is not
    # re-implemented; its output is synthesized as a random input.
    last_hidden_states = jax.random.normal(k1, (B, S, H), dtype=jnp.float32)

    bound = 1.0 / jnp.sqrt(jnp.float32(H))
    wt = jax.random.uniform(k2, (H, H), jnp.float32, -bound, bound)   # (in, out)
    bt = jax.random.uniform(k3, (1, H), jnp.float32, -bound, bound)
    gamma = 1.0 + 0.1 * jax.random.normal(k4, (1, H), dtype=jnp.float32)
    beta = 0.1 * jax.random.normal(k5, (1, H), dtype=jnp.float32)
    wp = jax.random.uniform(k6, (H, V), jnp.float32, -bound, bound)   # (in, out)
    bp = jax.random.uniform(k7, (1, V), jnp.float32, -bound, bound)

    # Small tiles -> 2x2 grid at toy shapes so both grid axes, the scratch
    # feat-cache path and the "parallel" row axis are all exercised.
    logits = extra_vocab_forward(last_hidden_states, wt, bt, gamma, beta, wp, bp,
                                 row_tile=8, vocab_tile=512)
    jax.block_until_ready(logits)

    assert logits.shape == (B, S, V)

    ref_bf16 = _reference_bf16_path(last_hidden_states, wt, bt, gamma, beta, wp, bp)
    ref_f32 = _reference_f32(last_hidden_states, wt, bt, gamma, beta, wp, bp)

    # Tight check vs a reference using the same bf16-MXU/f32-accumulate math.
    assert jnp.allclose(logits, ref_bf16, atol=5e-3, rtol=5e-3), (
        float(jnp.max(jnp.abs(logits - ref_bf16))))
    # Loose sanity check vs the full-f32 module semantics.
    assert float(jnp.max(jnp.abs(logits - ref_f32))) < 0.1, (
        float(jnp.max(jnp.abs(logits - ref_f32))))

    print("KERNEL_OK")
</pallas_src>

<mosaic_0001>
module attributes {stable_mosaic.version = 11 : i64} {
  func.func @extra_vocab_kernel(%arg0: i32, %arg1: i32, %arg2: memref<8x768xf32, #tpu.memory_space<vmem>>, %arg3: memref<768x768xbf16, #tpu.memory_space<vmem>>, %arg4: memref<1x768xf32, #tpu.memory_space<vmem>>, %arg5: memref<1x768xf32, #tpu.memory_space<vmem>>, %arg6: memref<1x768xf32, #tpu.memory_space<vmem>>, %arg7: memref<768x512xbf16, #tpu.memory_space<vmem>>, %arg8: memref<1x512xf32, #tpu.memory_space<vmem>>, %arg9: memref<8x512xf32, #tpu.memory_space<vmem>>, %arg10: memref<8x768xbf16, #tpu.memory_space<vmem>>) attributes {dimension_semantics = [#tpu.dimension_semantics<parallel>, #tpu.dimension_semantics<arbitrary>], iteration_bounds = array<i64: 2, 2>, scalar_prefetch = 0 : i64, scratch_operands = 1 : i64, tpu.core_type = #tpu.core_type<tc>, window_params = [{transform_indices = @transform_0, window_bounds = array<i64: 8, 768>}, {pipeline_mode = #tpu.pipeline_mode<synchronous>, transform_indices = @transform_1, window_bounds = array<i64: 768, 768>}, {pipeline_mode = #tpu.pipeline_mode<synchronous>, transform_indices = @transform_2, window_bounds = array<i64: 1, 768>}, {pipeline_mode = #tpu.pipeline_mode<synchronous>, transform_indices = @transform_3, window_bounds = array<i64: 1, 768>}, {pipeline_mode = #tpu.pipeline_mode<synchronous>, transform_indices = @transform_4, window_bounds = array<i64: 1, 768>}, {transform_indices = @transform_5, window_bounds = array<i64: 768, 512>}, {transform_indices = @transform_6, window_bounds = array<i64: 1, 512>}, {transform_indices = @transform_7, window_bounds = array<i64: 8, 512>}]} {
    %c0_i32 = arith.constant 0 : i32
    %0 = arith.cmpi eq, %arg1, %c0_i32 : i32
    %1 = arith.extui %0 : i1 to i32
    %c0_i32_0 = arith.constant 0 : i32
    %2 = arith.cmpi ne, %1, %c0_i32_0 : i32
    scf.if %2 {
      %c0_8 = arith.constant 0 : index
      %c0_9 = arith.constant 0 : index
      %10 = vector.load %arg2[%c0_8, %c0_9] : memref<8x768xf32, #tpu.memory_space<vmem>>, vector<8x768xf32>
      %11 = arith.truncf %10 : vector<8x768xf32> to vector<8x768xbf16>
      %c0_10 = arith.constant 0 : index
      %c0_11 = arith.constant 0 : index
      %12 = vector.load %arg3[%c0_10, %c0_11] : memref<768x768xbf16, #tpu.memory_space<vmem>>, vector<768x768xbf16>
      %cst_12 = arith.constant dense<0.000000e+00> : vector<8x768xf32>
      %13 = tpu.matmul %11, %12, %cst_12 {dimension_numbers = #tpu.dot_dimension_numbers<[1], [0], [0], [1], [0, 0, 1, 1], [], []>} : vector<8x768xbf16>, vector<768x768xbf16>, vector<8x768xf32> -> vector<8x768xf32>
      %c0_13 = arith.constant 0 : index
      %c0_14 = arith.constant 0 : index
      %14 = vector.load %arg4[%c0_13, %c0_14] : memref<1x768xf32, #tpu.memory_space<vmem>>, vector<1x768xf32>
      %15 = vector.broadcast %14 : vector<1x768xf32> to vector<8x768xf32>
      %16 = arith.addf %13, %15 : vector<8x768xf32>
      %cst_15 = arith.constant dense<0.000000e+00> : vector<8xf32>
      %17 = vector.multi_reduction <add>, %16, %cst_15 [1] : vector<8x768xf32> to vector<8xf32>
      %18 = vector.shape_cast %17 : vector<8xf32> to vector<8x1xf32>
      %cst_16 = arith.constant 7.680000e+02 : f32
      %19 = vector.broadcast %cst_16 : f32 to vector<8x1xf32>
      %20 = arith.divf %18, %19 : vector<8x1xf32>
      %21 = vector.broadcast %20 : vector<8x1xf32> to vector<8x768xf32>
      %22 = arith.subf %16, %21 : vector<8x768xf32>
      %23 = arith.mulf %22, %22 : vector<8x768xf32>
      %cst_17 = arith.constant dense<0.000000e+00> : vector<8xf32>
      %24 = vector.multi_reduction <add>, %23, %cst_17 [1] : vector<8x768xf32> to vector<8xf32>
      %25 = vector.shape_cast %24 : vector<8xf32> to vector<8x1xf32>
      %cst_18 = arith.constant 7.680000e+02 : f32
      %26 = vector.broadcast %cst_18 : f32 to vector<8x1xf32>
      %27 = arith.divf %25, %26 : vector<8x1xf32>
      %cst_19 = arith.constant 9.99999982E-14 : f32
      %28 = vector.broadcast %cst_19 : f32 to vector<8x1xf32>
      %29 = arith.addf %27, %28 : vector<8x1xf32>
      %30 = math.rsqrt %29 : vector<8x1xf32>
      %31 = vector.broadcast %30 : vector<8x1xf32> to vector<8x768xf32>
      %32 = arith.mulf %22, %31 : vector<8x768xf32>
      %c0_20 = arith.constant 0 : index
      %c0_21 = arith.constant 0 : index
      %33 = vector.load %arg5[%c0_20, %c0_21] : memref<1x768xf32, #tpu.memory_space<vmem>>, vector<1x768xf32>
      %34 = vector.broadcast %33 : vector<1x768xf32> to vector<8x768xf32>
      %35 = arith.mulf %32, %34 : vector<8x768xf32>
      %c0_22 = arith.constant 0 : index
      %c0_23 = arith.constant 0 : index
      %36 = vector.load %arg6[%c0_22, %c0_23] : memref<1x768xf32, #tpu.memory_space<vmem>>, vector<1x768xf32>
      %37 = vector.broadcast %36 : vector<1x768xf32> to vector<8x768xf32>
      %38 = arith.addf %35, %37 : vector<8x768xf32>
      %39 = arith.truncf %38 : vector<8x768xf32> to vector<8x768xbf16>
      %c0_24 = arith.constant 0 : index
      %c0_25 = arith.constant 0 : index
      %40 = vector.load %arg10[%c0_24, %c0_25] : memref<8x768xbf16, #tpu.memory_space<vmem>>, vector<8x768xbf16>
      tpu.vector_store %arg10[%c0_24, %c0_25], %39 {strides = array<i32>} : memref<8x768xbf16, #tpu.memory_space<vmem>>, vector<8x768xbf16>,
    } else {
    }
    %c0 = arith.constant 0 : index
    %c0_1 = arith.constant 0 : index
    %3 = vector.load %arg10[%c0, %c0_1] : memref<8x768xbf16, #tpu.memory_space<vmem>>, vector<8x768xbf16>
    %c0_2 = arith.constant 0 : index
    %c0_3 = arith.constant 0 : index
    %4 = vector.load %arg7[%c0_2, %c0_3] : memref<768x512xbf16, #tpu.memory_space<vmem>>, vector<768x512xbf16>
    %cst = arith.constant dense<0.000000e+00> : vector<8x512xf32>
    %5 = tpu.matmul %3, %4, %cst {dimension_numbers = #tpu.dot_dimension_numbers<[1], [0], [0], [1], [0, 0, 1, 1], [], []>} : vector<8x768xbf16>, vector<768x512xbf16>, vector<8x512xf32> -> vector<8x512xf32>
    %c0_4 = arith.constant 0 : index
    %c0_5 = arith.constant 0 : index
    %6 = vector.load %arg8[%c0_4, %c0_5] : memref<1x512xf32, #tpu.memory_space<vmem>>, vector<1x512xf32>
    %7 = vector.broadcast %6 : vector<1x512xf32> to vector<8x512xf32>
    %8 = arith.addf %5, %7 : vector<8x512xf32>
    %c0_6 = arith.constant 0 : index
    %c0_7 = arith.constant 0 : index
    %9 = vector.load %arg9[%c0_6, %c0_7] : memref<8x512xf32, #tpu.memory_space<vmem>>, vector<8x512xf32>
    tpu.vector_store %arg9[%c0_6, %c0_7], %8 {strides = array<i32>} : memref<8x512xf32, #tpu.memory_space<vmem>>, vector<8x512xf32>,
    return
  }
  func.func @transform_0(%arg0: i32, %arg1: i32) -> (i32, i32) {
    %c0_i32 = arith.constant 0 : i32
    %c0_i32_0 = arith.constant 0 : i32
    return %arg0, %c0_i32 : i32, i32
  }
  func.func @transform_1(%arg0: i32, %arg1: i32) -> (i32, i32) {
    %c0_i32 = arith.constant 0 : i32
    %c0_i32_0 = arith.constant 0 : i32
    %c0_i32_1 = arith.constant 0 : i32
    return %c0_i32, %c0_i32_0 : i32, i32
  }
  func.func @transform_2(%arg0: i32, %arg1: i32) -> (i32, i32) {
    %c0_i32 = arith.constant 0 : i32
    %c0_i32_0 = arith.constant 0 : i32
    %c0_i32_1 = arith.constant 0 : i32
    return %c0_i32, %c0_i32_0 : i32, i32
  }
  func.func @transform_3(%arg0: i32, %arg1: i32) -> (i32, i32) {
    %c0_i32 = arith.constant 0 : i32
    %c0_i32_0 = arith.constant 0 : i32
    %c0_i32_1 = arith.constant 0 : i32
    return %c0_i32, %c0_i32_0 : i32, i32
  }
  func.func @transform_4(%arg0: i32, %arg1: i32) -> (i32, i32) {
    %c0_i32 = arith.constant 0 : i32
    %c0_i32_0 = arith.constant 0 : i32
    %c0_i32_1 = arith.constant 0 : i32
    return %c0_i32, %c0_i32_0 : i32, i32
  }
  func.func @transform_5(%arg0: i32, %arg1: i32) -> (i32, i32) {
    %c0_i32 = arith.constant 0 : i32
    %c0_i32_0 = arith.constant 0 : i32
    return %c0_i32, %arg1 : i32, i32
  }
  func.func @transform_6(%arg0: i32, %arg1: i32) -> (i32, i32) {
    %c0_i32 = arith.constant 0 : i32
    %c0_i32_0 = arith.constant 0 : i32
    return %c0_i32, %arg1 : i32, i32
  }
  func.func @transform_7(%arg0: i32, %arg1: i32) -> (i32, i32) {
    %c0_i32 = arith.constant 0 : i32
    return %arg0, %arg1 : i32, i32
  }
}

module attributes {stable_mosaic.version = 11 : i64} {
  func.func @extra_vocab_kernel(%arg0: i32, %arg1: i32, %arg2: memref<8x768xf32, #tpu.memory_space<vmem>>, %arg3: memref<768x768xbf16, #tpu.memory_space<vmem>>, %arg4: memref<1x768xf32, #tpu.memory_space<vmem>>, %arg5: memref<1x768xf32, #tpu.memory_space<vmem>>, %arg6: memref<1x768xf32, #tpu.memory_space<vmem>>, %arg7: memref<768x512xbf16, #tpu.memory_space<vmem>>, %arg8: memref<1x512xf32, #tpu.memory_space<vmem>>, %arg9: memref<8x512xf32, #tpu.memory_space<vmem>>, %arg10: memref<8x768xbf16, #tpu.memory_space<vmem>>) attributes {dimension_semantics = [#tpu.dimension_semantics<parallel>, #tpu.dimension_semantics<arbitrary>], iteration_bounds = array<i64: 2, 2>, scalar_prefetch = 0 : i64, scratch_operands = 1 : i64, tpu.core_type = #tpu.core_type<tc>, window_params = [{transform_indices = @transform_0, window_bounds = array<i64: 8, 768>}, {pipeline_mode = #tpu.pipeline_mode<synchronous>, transform_indices = @transform_1, window_bounds = array<i64: 768, 768>}, {pipeline_mode = #tpu.pipeline_mode<synchronous>, transform_indices = @transform_2, window_bounds = array<i64: 1, 768>}, {pipeline_mode = #tpu.pipeline_mode<synchronous>, transform_indices = @transform_3, window_bounds = array<i64: 1, 768>}, {pipeline_mode = #tpu.pipeline_mode<synchronous>, transform_indices = @transform_4, window_bounds = array<i64: 1, 768>}, {transform_indices = @transform_5, window_bounds = array<i64: 768, 512>}, {transform_indices = @transform_6, window_bounds = array<i64: 1, 512>}, {transform_indices = @transform_7, window_bounds = array<i64: 8, 512>}]} {
    %c0_i32 = arith.constant 0 : i32
    %0 = arith.cmpi eq, %arg1, %c0_i32 : i32
    %1 = arith.extui %0 : i1 to i32
    %c0_i32_0 = arith.constant 0 : i32
    %2 = arith.cmpi ne, %1, %c0_i32_0 : i32
    scf.if %2 {
      %c0_8 = arith.constant 0 : index
      %c0_9 = arith.constant 0 : index
      %10 = vector.load %arg2[%c0_8, %c0_9] : memref<8x768xf32, #tpu.memory_space<vmem>>, vector<8x768xf32>
      %11 = arith.truncf %10 : vector<8x768xf32> to vector<8x768xbf16>
      %c0_10 = arith.constant 0 : index
      %c0_11 = arith.constant 0 : index
      %12 = vector.load %arg3[%c0_10, %c0_11] : memref<768x768xbf16, #tpu.memory_space<vmem>>, vector<768x768xbf16>
      %cst_12 = arith.constant dense<0.000000e+00> : vector<8x768xf32>
      %13 = tpu.matmul %11, %12, %cst_12 {dimension_numbers = #tpu.dot_dimension_numbers<[1], [0], [0], [1], [0, 0, 1, 1], [], []>} : vector<8x768xbf16>, vector<768x768xbf16>, vector<8x768xf32> -> vector<8x768xf32>
      %c0_13 = arith.constant 0 : index
      %c0_14 = arith.constant 0 : index
      %14 = vector.load %arg4[%c0_13, %c0_14] : memref<1x768xf32, #tpu.memory_space<vmem>>, vector<1x768xf32>
      %15 = vector.broadcast %14 : vector<1x768xf32> to vector<8x768xf32>
      %16 = arith.addf %13, %15 : vector<8x768xf32>
      %cst_15 = arith.constant dense<0.000000e+00> : vector<8xf32>
      %17 = vector.multi_reduction <add>, %16, %cst_15 [1] : vector<8x768xf32> to vector<8xf32>
      %18 = vector.shape_cast %17 : vector<8xf32> to vector<8x1xf32>
      %cst_16 = arith.constant 7.680000e+02 : f32
      %19 = vector.broadcast %cst_16 : f32 to vector<8x1xf32>
      %20 = arith.divf %18, %19 : vector<8x1xf32>
      %21 = vector.broadcast %20 : vector<8x1xf32> to vector<8x768xf32>
      %22 = arith.subf %16, %21 : vector<8x768xf32>
      %23 = arith.mulf %22, %22 : vector<8x768xf32>
      %cst_17 = arith.constant dense<0.000000e+00> : vector<8xf32>
      %24 = vector.multi_reduction <add>, %23, %cst_17 [1] : vector<8x768xf32> to vector<8xf32>
      %25 = vector.shape_cast %24 : vector<8xf32> to vector<8x1xf32>
      %cst_18 = arith.constant 7.680000e+02 : f32
      %26 = vector.broadcast %cst_18 : f32 to vector<8x1xf32>
      %27 = arith.divf %25, %26 : vector<8x1xf32>
      %cst_19 = arith.constant 9.99999982E-14 : f32
      %28 = vector.broadcast %cst_19 : f32 to vector<8x1xf32>
      %29 = arith.addf %27, %28 : vector<8x1xf32>
      %30 = math.rsqrt %29 : vector<8x1xf32>
      %31 = vector.broadcast %30 : vector<8x1xf32> to vector<8x768xf32>
      %32 = arith.mulf %22, %31 : vector<8x768xf32>
      %c0_20 = arith.constant 0 : index
      %c0_21 = arith.constant 0 : index
      %33 = vector.load %arg5[%c0_20, %c0_21] : memref<1x768xf32, #tpu.memory_space<vmem>>, vector<1x768xf32>
      %34 = vector.broadcast %33 : vector<1x768xf32> to vector<8x768xf32>
      %35 = arith.mulf %32, %34 : vector<8x768xf32>
      %c0_22 = arith.constant 0 : index
      %c0_23 = arith.constant 0 : index
      %36 = vector.load %arg6[%c0_22, %c0_23] : memref<1x768xf32, #tpu.memory_space<vmem>>, vector<1x768xf32>
      %37 = vector.broadcast %36 : vector<1x768xf32> to vector<8x768xf32>
      %38 = arith.addf %35, %37 : vector<8x768xf32>
      %39 = arith.truncf %38 : vector<8x768xf32> to vector<8x768xbf16>
      %c0_24 = arith.constant 0 : index
      %c0_25 = arith.constant 0 : index
      %40 = vector.load %arg10[%c0_24, %c0_25] : memref<8x768xbf16, #tpu.memory_space<vmem>>, vector<8x768xbf16>
      tpu.vector_store %arg10[%c0_24, %c0_25], %39 {strides = array<i32>} : memref<8x768xbf16, #tpu.memory_space<vmem>>, vector<8x768xbf16>,
    } else {
    }
    %c0 = arith.constant 0 : index
    %c0_1 = arith.constant 0 : index
    %3 = vector.load %arg10[%c0, %c0_1] : memref<8x768xbf16, #tpu.memory_space<vmem>>, vector<8x768xbf16>
    %c0_2 = arith.constant 0 : index
    %c0_3 = arith.constant 0 : index
    %4 = vector.load %arg7[%c0_2, %c0_3] : memref<768x512xbf16, #tpu.memory_space<vmem>>, vector<768x512xbf16>
    %cst = arith.constant dense<0.000000e+00> : vector<8x512xf32>
    %5 = tpu.matmul %3, %4, %cst {dimension_numbers = #tpu.dot_dimension_numbers<[1], [0], [0], [1], [0, 0, 1, 1], [], []>} : vector<8x768xbf16>, vector<768x512xbf16>, vector<8x512xf32> -> vector<8x512xf32>
    %c0_4 = arith.constant 0 : index
    %c0_5 = arith.constant 0 : index
    %6 = vector.load %arg8[%c0_4, %c0_5] : memref<1x512xf32, #tpu.memory_space<vmem>>, vector<1x512xf32>
    %7 = vector.broadcast %6 : vector<1x512xf32> to vector<8x512xf32>
    %8 = arith.addf %5, %7 : vector<8x512xf32>
    %c0_6 = arith.constant 0 : index
    %c0_7 = arith.constant 0 : index
    %9 = vector.load %arg9[%c0_6, %c0_7] : memref<8x512xf32, #tpu.memory_space<vmem>>, vector<8x512xf32>
    tpu.vector_store %arg9[%c0_6, %c0_7], %8 {strides = array<i32>} : memref<8x512xf32, #tpu.memory_space<vmem>>, vector<8x512xf32>,
    return
  }
  func.func @transform_0(%arg0: i32, %arg1: i32) -> (i32, i32) {
    %c0_i32 = arith.constant 0 : i32
    %c0_i32_0 = arith.constant 0 : i32
    return %arg0, %c0_i32 : i32, i32
  }
  func.func @transform_1(%arg0: i32, %arg1: i32) -> (i32, i32) {
    %c0_i32 = arith.constant 0 : i32
    %c0_i32_0 = arith.constant 0 : i32
    %c0_i32_1 = arith.constant 0 : i32
    return %c0_i32, %c0_i32_0 : i32, i32
  }
  func.func @transform_2(%arg0: i32, %arg1: i32) -> (i32, i32) {
    %c0_i32 = arith.constant 0 : i32
    %c0_i32_0 = arith.constant 0 : i32
    %c0_i32_1 = arith.constant 0 : i32
    return %c0_i32, %c0_i32_0 : i32, i32
  }
  func.func @transform_3(%arg0: i32, %arg1: i32) -> (i32, i32) {
    %c0_i32 = arith.constant 0 : i32
    %c0_i32_0 = arith.constant 0 : i32
    %c0_i32_1 = arith.constant 0 : i32
    return %c0_i32, %c0_i32_0 : i32, i32
  }
  func.func @transform_4(%arg0: i32, %arg1: i32) -> (i32, i32) {
    %c0_i32 = arith.constant 0 : i32
    %c0_i32_0 = arith.constant 0 : i32
    %c0_i32_1 = arith.constant 0 : i32
    return %c0_i32, %c0_i32_0 : i32, i32
  }
  func.func @transform_5(%arg0: i32, %arg1: i32) -> (i32, i32) {
    %c0_i32 = arith.constant 0 : i32
    %c0_i32_0 = arith.constant 0 : i32
    return %c0_i32, %arg1 : i32, i32
  }
  func.func @transform_6(%arg0: i32, %arg1: i32) -> (i32, i32) {
    %c0_i32 = arith.constant 0 : i32
    %c0_i32_0 = arith.constant 0 : i32
    return %c0_i32, %arg1 : i32, i32
  }
  func.func @transform_7(%arg0: i32, %arg1: i32) -> (i32, i32) {
    %c0_i32 = arith.constant 0 : i32
    return %arg0, %arg1 : i32, i32
  }
}

</mosaic_0001>

<llo_original>
// kernel: tpu_custom_call.1
$region0: #{tpu_custom_call.1}
  #allocation0 [shape = 'u32[]', space=smem, size = 0x4, offset = 0x4, fixed_abs, tag = 'smem constant byte address 0x4 - core index']
  #allocation1 [shape = 'u32[144,128]{1,0:T(1,128)}', space=vmem, size = 0x12000, scoped, tag = 'internal scratch']
  #allocation2 [shape = 'bf16[8,768]{1,0:T(8,128)(2,1)}', space=vmem, size = 0x3000, scoped, tag = 'scratch operand']
  %s0 = inlined_call_operand.hbm [shape: f32[16,768], index: 0, kind: input, shape index: {}]
  %s1 = inlined_call_operand.hbm [shape: bf16[768,768], index: 1, kind: input, shape index: {}]
  %s2 = inlined_call_operand.hbm [shape: f32[1,768], index: 2, kind: input, shape index: {}]
  %s3 = inlined_call_operand.hbm [shape: f32[1,768], index: 3, kind: input, shape index: {}]
  %s4 = inlined_call_operand.hbm [shape: f32[1,768], index: 4, kind: input, shape index: {}]
  %s5 = inlined_call_operand.hbm [shape: bf16[768,1024], index: 5, kind: input, shape index: {}]
  %s6 = inlined_call_operand.hbm [shape: f32[1,1024], index: 6, kind: input, shape index: {}]
  %s7 = inlined_call_operand.hbm [shape: f32[16,1024], index: 7, kind: output, shape index: {}]
  %s8 = sld [smem:[#allocation0]]
  $region93: #{tpu_custom_call.1} parent=0
    _
  %s10 = ssub.s32 1, %s8
  %s11 = scalar_select 0, %s10, %s8
  $region1: #{tpu_custom_call.1} parent=0
    #allocation3 [shape = 'u8[49152]{0}', space=vmem, size = 0xc000, scoped, tag = 'input window, operand 0']
    #allocation4 [shape = 's32[2]{0}', space=sflag, size = 0x8, scoped, tag = 'scoped memory for tpu_custom_call.1']
    #allocation5 [shape = 's32[2]{0}', space=sflag, size = 0x8, scoped, tag = 'scoped memory for tpu_custom_call.1']
    #allocation6 [shape = 'u8[1179648]{0}', space=vmem, size = 0x120000, scoped, tag = 'input window, operand 1, single buffered']
    #allocation7 [shape = 's32[1]{0}', space=sflag, size = 0x4, scoped, tag = 'scoped memory for tpu_custom_call.1']
    #allocation8 [shape = 'u8[3072]{0}', space=vmem, size = 0xc00, scoped, tag = 'input window, operand 2, single buffered']
    #allocation9 [shape = 'u8[3072]{0}', space=vmem, size = 0xc00, scoped, tag = 'input window, operand 3, single buffered']
    #allocation10 [shape = 's32[1]{0}', space=sflag, size = 0x4, scoped, tag = 'scoped memory for tpu_custom_call.1']
    #allocation11 [shape = 'u8[3072]{0}', space=vmem, size = 0xc00, scoped, tag = 'input window, operand 4, single buffered']
    #allocation12 [shape = 'u8[1572864]{0}', space=vmem, size = 0x180000, scoped, tag = 'input window, operand 5']
    #allocation13 [shape = 's32[2]{0}', space=sflag, size = 0x8, scoped, tag = 'scoped memory for tpu_custom_call.1']
    #allocation14 [shape = 'u8[4096]{0}', space=vmem, size = 0x1000, scoped, tag = 'input window, operand 6']
    #allocation15 [shape = 'u8[32768]{0}', space=vmem, size = 0x8000, scoped, tag = 'output window, operand 0']
    %12 = vsyncpa [#allocation4], 0
    %s13 = scalar_lea.sflag [#allocation4], 1
    %14 = vsyncpa %s13, 0
    %15 = vsyncpa [#allocation7], 0
    %16 = vsyncpa [#allocation10], 0
    %17 = vsyncpa [#allocation13], 0
    %s18 = scalar_lea.sflag [#allocation13], 1
    %19 = vsyncpa %s18, 0
    %20 = vsyncpa [#allocation5], 0
    %s21 = scalar_lea.sflag [#allocation5], 1
    %22 = vsyncpa %s21, 0
    loop: start=0, step=1, limit=6
    $region2: #{tpu_custom_call.1} parent=1 // loop_pre_header
      _
    $region3: #{tpu_custom_call.1} parent=1 // loop_header
      %s24 = sphi 0, %s28
      %p25 = scmp.ge.s32.totalorder %s24, 6
      %s31 = sphi 0, %s43
      %s32 = sphi 0, %s39
      %s33 = sphi 0, %s31
      %s34 = sphi 0, %s32
      %s35 = sphi 0, %s33
      %s36 = sphi 0, %s34
      %s46 = sphi 0, %s48
      %s49 = sphi 0, %s46
      %s50 = sphi 0, %s49
      %s66 = sphi 0, %s50
      %s70 = sphi 0, %s70
      %s72 = sphi 0, %s70
      %s73 = sphi 0, %s72
      %s87 = sphi 0, %s73
      %s91 = sphi 0, %s91
      %s93 = sphi 0, %s91
      %s94 = sphi 0, %s93
      %s108 = sphi 0, %s94
      %s112 = sphi 0, %s112
      %s114 = sphi 0, %s112
      %s115 = sphi 0, %s114
      %s129 = sphi 0, %s115
      %s133 = sphi 0, %s133
      %s135 = sphi 0, %s133
      %s136 = sphi 0, %s135
      %s150 = sphi 0, %s136
      %s156 = sphi 0, %s158
      %s159 = sphi 0, %s156
      %s160 = sphi 0, %s159
      %s176 = sphi 0, %s160
      %s182 = sphi 0, %s184
      %s185 = sphi 0, %s182
      %s186 = sphi 0, %s185
      %s202 = sphi 0, %s186
      %s210 = sphi 0, %s212
      %s213 = sphi 0, %s210
      %s214 = sphi 0, %s213
      %s230 = sphi 0, %s214
    $region4: #{tpu_custom_call.1} parent=1 // loop_header_branch
      %27 = sbr.rel (%p25) target = $region8
    $region5: #{tpu_custom_call.1} parent=1 // loop_body
      %s29 = ssub.s32 %s24, 1
      %s30 = ssub.s32 %s24, 2
      %s37 = sadd.s32 1, %s32
      %p38 = scmp.ge.s32.totalorder %s37, 2
      %s39 = scalar_select %p38, 0, %s37
      %s40 = sadd.s32 1, %s31
      %s41 = scalar_select %p38, %s40, %s31
      %p42 = scmp.ge.s32.totalorder %s41, 2
      %s43 = scalar_select %p42, 0, %s41
      %s44 = ssub.s32 %s31, %s43
      %p45 = scmp.eq.s32.totalorder %s44, 0
      %s47 = sadd.s32 %s46, 1
      %s48 = scalar_select %p45, %s46, %s47
      %p51 = pneg %p45
      %p52 = scmp.eq.s32.totalorder %s24, 3
      %p53 = por %p51, %p52
      %p54 = scmp.ne.s32.totalorder %s46, %s49
      %p55 = scmp.eq.s32.totalorder %s24, 0
      %p56 = por %p54, %p55
      %p57 = scmp.ne.s32.totalorder %s46, %s49
      %p58 = scmp.eq.s32.totalorder %s29, 3
      %p59 = por %p57, %p58
      %p60 = scmp.ne.s32.totalorder %s49, %s50
      %p61 = scmp.eq.s32.totalorder %s29, 0
      %p62 = por %p60, %p61
      %p63 = scmp.ne.s32.totalorder %s49, %s50
      %p64 = scmp.eq.s32.totalorder %s30, 3
      %p65 = por %p63, %p64
      %p67 = scmp.ne.s32.totalorder %s50, %s66
      %p68 = scmp.eq.s32.totalorder %s30, 0
      %p69 = por %p67, %p68
      %s71 = sadd.s32 %s70, 1
      %p74 = scmp.eq.s32.totalorder %s24, 3
      %p75 = scmp.ne.s32.totalorder %s70, %s72
      %p76 = scmp.eq.s32.totalorder %s24, 0
      %p77 = por %p75, %p76
      %p78 = scmp.ne.s32.totalorder %s70, %s72
      %p79 = scmp.eq.s32.totalorder %s29, 3
      %p80 = por %p78, %p79
      %p81 = scmp.ne.s32.totalorder %s72, %s73
      %p82 = scmp.eq.s32.totalorder %s29, 0
      %p83 = por %p81, %p82
      %p84 = scmp.ne.s32.totalorder %s72, %s73
      %p85 = scmp.eq.s32.totalorder %s30, 3
      %p86 = por %p84, %p85
      %p88 = scmp.ne.s32.totalorder %s73, %s87
      %p89 = scmp.eq.s32.totalorder %s30, 0
      %p90 = por %p88, %p89
      %s92 = sadd.s32 %s91, 1
      %p95 = scmp.eq.s32.totalorder %s24, 3
      %p96 = scmp.ne.s32.totalorder %s91, %s93
      %p97 = scmp.eq.s32.totalorder %s24, 0
      %p98 = por %p96, %p97
      %p99 = scmp.ne.s32.totalorder %s91, %s93
      %p100 = scmp.eq.s32.totalorder %s29, 3
      %p101 = por %p99, %p100
      %p102 = scmp.ne.s32.totalorder %s93, %s94
      %p103 = scmp.eq.s32.totalorder %s29, 0
      %p104 = por %p102, %p103
      %p105 = scmp.ne.s32.totalorder %s93, %s94
      %p106 = scmp.eq.s32.totalorder %s30, 3
      %p107 = por %p105, %p106
      %p109 = scmp.ne.s32.totalorder %s94, %s108
      %p110 = scmp.eq.s32.totalorder %s30, 0
      %p111 = por %p109, %p110
      %s113 = sadd.s32 %s112, 1
      %p116 = scmp.eq.s32.totalorder %s24, 3
      %p117 = scmp.ne.s32.totalorder %s112, %s114
      %p118 = scmp.eq.s32.totalorder %s24, 0
      %p119 = por %p117, %p118
      %p120 = scmp.ne.s32.totalorder %s112, %s114
      %p121 = scmp.eq.s32.totalorder %s29, 3
      %p122 = por %p120, %p121
      %p123 = scmp.ne.s32.totalorder %s114, %s115
      %p124 = scmp.eq.s32.totalorder %s29, 0
      %p125 = por %p123, %p124
      %p126 = scmp.ne.s32.totalorder %s114, %s115
      %p127 = scmp.eq.s32.totalorder %s30, 3
      %p128 = por %p126, %p127
      %p130 = scmp.ne.s32.totalorder %s115, %s129
      %p131 = scmp.eq.s32.totalorder %s30, 0
      %p132 = por %p130, %p131
      %s134 = sadd.s32 %s133, 1
      %p137 = scmp.eq.s32.totalorder %s24, 3
      %p138 = scmp.ne.s32.totalorder %s133, %s135
      %p139 = scmp.eq.s32.totalorder %s24, 0
      %p140 = por %p138, %p139
      %p141 = scmp.ne.s32.totalorder %s133, %s135
      %p142 = scmp.eq.s32.totalorder %s29, 3
      %p143 = por %p141, %p142
      %p144 = scmp.ne.s32.totalorder %s135, %s136
      %p145 = scmp.eq.s32.totalorder %s29, 0
      %p146 = por %p144, %p145
      %p147 = scmp.ne.s32.totalorder %s135, %s136
      %p148 = scmp.eq.s32.totalorder %s30, 3
      %p149 = por %p147, %p148
      %p151 = scmp.ne.s32.totalorder %s136, %s150
      %p152 = scmp.eq.s32.totalorder %s30, 0
      %p153 = por %p151, %p152
      %s154 = ssub.s32 %s32, %s39
      %p155 = scmp.eq.s32.totalorder %s154, 0
      %s157 = sadd.s32 %s156, 1
      %s158 = scalar_select %p155, %s156, %s157
      %p161 = pneg %p155
      %p162 = scmp.eq.s32.totalorder %s24, 3
      %p163 = por %p161, %p162
      %p164 = scmp.ne.s32.totalorder %s156, %s159
      %p165 = scmp.eq.s32.totalorder %s24, 0
      %p166 = por %p164, %p165
      %p167 = scmp.ne.s32.totalorder %s156, %s159
      %p168 = scmp.eq.s32.totalorder %s29, 3
      %p169 = por %p167, %p168
      %p170 = scmp.ne.s32.totalorder %s159, %s160
      %p171 = scmp.eq.s32.totalorder %s29, 0
      %p172 = por %p170, %p171
      %p173 = scmp.ne.s32.totalorder %s159, %s160
      %p174 = scmp.eq.s32.totalorder %s30, 3
      %p175 = por %p173, %p174
      %p177 = scmp.ne.s32.totalorder %s160, %s176
      %p178 = scmp.eq.s32.totalorder %s30, 0
      %p179 = por %p177, %p178
      %s180 = ssub.s32 %s32, %s39
      %p181 = scmp.eq.s32.totalorder %s180, 0
      %s183 = sadd.s32 %s182, 1
      %s184 = scalar_select %p181, %s182, %s183
      %p187 = pneg %p181
      %p188 = scmp.eq.s32.totalorder %s24, 3
      %p189 = por %p187, %p188
      %p190 = scmp.ne.s32.totalorder %s182, %s185
      %p191 = scmp.eq.s32.totalorder %s24, 0
      %p192 = por %p190, %p191
      %p193 = scmp.ne.s32.totalorder %s182, %s185
      %p194 = scmp.eq.s32.totalorder %s29, 3
      %p195 = por %p193, %p194
      %p196 = scmp.ne.s32.totalorder %s185, %s186
      %p197 = scmp.eq.s32.totalorder %s29, 0
      %p198 = por %p196, %p197
      %p199 = scmp.ne.s32.totalorder %s185, %s186
      %p200 = scmp.eq.s32.totalorder %s30, 3
      %p201 = por %p199, %p200
      %p203 = scmp.ne.s32.totalorder %s186, %s202
      %p204 = scmp.eq.s32.totalorder %s30, 0
      %p205 = por %p203, %p204
      %s206 = ssub.s32 %s31, %s43
      %s207 = ssub.s32 %s32, %s39
      %s208 = sor.u32 %s206, %s207
      %p209 = scmp.eq.s32.totalorder %s208, 0
      %s211 = sadd.s32 %s210, 1
      %s212 = scalar_select %p209, %s210, %s211
      %p215 = pneg %p209
      %p216 = scmp.eq.s32.totalorder %s24, 3
      %p217 = por %p215, %p216
      %p218 = scmp.ne.s32.totalorder %s210, %s213
      %p219 = scmp.eq.s32.totalorder %s24, 0
      %p220 = por %p218, %p219
      %p221 = scmp.ne.s32.totalorder %s210, %s213
      %p222 = scmp.eq.s32.totalorder %s29, 3
      %p223 = por %p221, %p222
      %p224 = scmp.ne.s32.totalorder %s213, %s214
      %p225 = scmp.eq.s32.totalorder %s29, 0
      %p226 = por %p224, %p225
      %p227 = scmp.ne.s32.totalorder %s213, %s214
      %p228 = scmp.eq.s32.totalorder %s30, 3
      %p229 = por %p227, %p228
      %p231 = scmp.ne.s32.totalorder %s214, %s230
      %p232 = scmp.eq.s32.totalorder %s30, 0
      %p233 = por %p231, %p232
      %p234 = scmp.le.s32.totalorder 1, %s24
      %p235 = scmp.lt.s32.totalorder %s24, 5
      %p236 = pnand %p234, %p235
      %p237 = pneg %p236
      // Predicated region
      $region9: #{tpu_custom_call.1} parent=5 // pred_check
        _
      $region10: #{tpu_custom_call.1} parent=5 // pred_check_branch
        %239 = sbr.rel (%p236) target = $region12
      $region11: #{tpu_custom_call.1} parent=5 // pred_region
        %s240 = ssub.s32 %s24, 1
        // Predicated region
        $region13: #{tpu_custom_call.1} parent=11 // pred_check
          %p241 = pneg %p83
        $region14: #{tpu_custom_call.1} parent=11 // pred_check_branch
          %243 = sbr.rel (%p241) target = $region16
        $region15: #{tpu_custom_call.1} parent=11 // pred_region
          %s245 = ssub.s32 36864, 36864
          %246 = vsyncadd [#allocation7], %s245
          %s247 = sshll.u32 [#allocation6], 4
          %s248 = int_to_ptr.vmem [resolvable:$true] %s247
          %253 = dma.hbm_to_vmem [thread:$0]  %s1, 36864, %s248, [#allocation7], 384, 384, 24
        $region16: #{tpu_custom_call.1} parent=11 // pred_fallthru
          _
        // Predicated region
        $region17: #{tpu_custom_call.1} parent=11 // pred_check
          %p254 = pneg %p104
        $region18: #{tpu_custom_call.1} parent=11 // pred_check_branch
          %256 = sbr.rel (%p254) target = $region20
        $region19: #{tpu_custom_call.1} parent=11 // pred_region
          %s258 = ssub.s32 96, 96
          %259 = vsyncadd [#allocation7], %s258
          %s261 = sshll.u32 [#allocation8], 4
          %s262 = int_to_ptr.vmem [resolvable:$true] %s261
          %264 = dma.hbm_to_vmem [thread:$0]  %s2, 96, %s262, [#allocation7]
        $region20: #{tpu_custom_call.1} parent=11 // pred_fallthru
          _
        // Predicated region
        $region21: #{tpu_custom_call.1} parent=11 // pred_check
          %p265 = pneg %p125
        $region22: #{tpu_custom_call.1} parent=11 // pred_check_branch
          %267 = sbr.rel (%p265) target = $region24
        $region23: #{tpu_custom_call.1} parent=11 // pred_region
          %s269 = ssub.s32 96, 96
          %270 = vsyncadd [#allocation10], %s269
          %s272 = sshll.u32 [#allocation9], 4
          %s273 = int_to_ptr.vmem [resolvable:$true] %s272
          %275 = dma.hbm_to_vmem [thread:$0]  %s3, 96, %s273, [#allocation10]
        $region24: #{tpu_custom_call.1} parent=11 // pred_fallthru
          _
        // Predicated region
        $region25: #{tpu_custom_call.1} parent=11 // pred_check
          %p276 = pneg %p146
        $region26: #{tpu_custom_call.1} parent=11 // pred_check_branch
          %278 = sbr.rel (%p276) target = $region28
        $region27: #{tpu_custom_call.1} parent=11 // pred_region
          %s280 = ssub.s32 96, 96
          %281 = vsyncadd [#allocation10], %s280
          %s283 = sshll.u32 [#allocation11], 4
          %s284 = int_to_ptr.vmem [resolvable:$true] %s283
          %286 = dma.hbm_to_vmem [thread:$0]  %s4, 96, %s284, [#allocation10]
        $region28: #{tpu_custom_call.1} parent=11 // pred_fallthru
          _
      $region12: #{tpu_custom_call.1} parent=5 // pred_fallthru
        _
      %p287 = scmp.lt.s32.totalorder %s24, 4
      // Predicated region
      $region29: #{tpu_custom_call.1} parent=5 // pred_check
        %p288 = pneg %p287
      $region30: #{tpu_custom_call.1} parent=5 // pred_check_branch
        %290 = sbr.rel (%p288) target = $region32
      $region31: #{tpu_custom_call.1} parent=5 // pred_region
        // Predicated region
        $region33: #{tpu_custom_call.1} parent=31 // pred_check
          %p291 = pneg %p56
        $region34: #{tpu_custom_call.1} parent=31 // pred_check_branch
          %293 = sbr.rel (%p291) target = $region36
        $region35: #{tpu_custom_call.1} parent=31 // pred_region
          %s294 = sand.u32 %s46, 1
          %s295 = scalar_lea.sflag [#allocation4], %s294
          %s296 = sand.u32 %s46, 1
          %s297 = smul.addr %s296, 48
          %s298 = scalar_lea.vmem [#allocation3], %s297
          %s300 = ssub.s32 768, 768
          %301 = vsyncadd %s295, %s300
          %s302 = smul.addr %s31, 6
          %s303 = smul.addr %s302, 128
          %s304 = scalar_lea.hbm %s0, %s303
          %s306 = sshll.u32 %s298, 4
          %s307 = int_to_ptr.vmem [resolvable:$true] %s306
          %309 = dma.hbm_to_vmem [thread:$0]  %s304, 768, %s307, %s295
        $region36: #{tpu_custom_call.1} parent=31 // pred_fallthru
          _
        // Predicated region
        $region37: #{tpu_custom_call.1} parent=31 // pred_check
          %p310 = pneg %p166
        $region38: #{tpu_custom_call.1} parent=31 // pred_check_branch
          %312 = sbr.rel (%p310) target = $region40
        $region39: #{tpu_custom_call.1} parent=31 // pred_region
          %s313 = sand.u32 %s24, 1
          %s314 = scalar_lea.sflag [#allocation13], %s313
          %s315 = sand.u32 %s156, 1
          %s316 = smul.addr %s315, 1536
          %s317 = scalar_lea.vmem [#allocation12], %s316
          %s318 = smul.u32 4, %s32
          %s320 = ssub.s32 24576, 24576
          %321 = vsyncadd %s314, %s320
          %s322 = smul.addr %s318, 64
          %s323 = scalar_lea.hbm %s5, %s322
          %s324 = sshll.u32 %s317, 4
          %s325 = int_to_ptr.vmem [resolvable:$true] %s324
          %330 = dma.hbm_to_vmem [thread:$0]  %s323, 24576, %s325, %s314, 512, 256, 16
        $region40: #{tpu_custom_call.1} parent=31 // pred_fallthru
          _
        // Predicated region
        $region41: #{tpu_custom_call.1} parent=31 // pred_check
          %p331 = pneg %p192
        $region42: #{tpu_custom_call.1} parent=31 // pred_check_branch
          %333 = sbr.rel (%p331) target = $region44
        $region43: #{tpu_custom_call.1} parent=31 // pred_region
          %s334 = sand.u32 %s24, 1
          %s335 = scalar_lea.sflag [#allocation13], %s334
          %s336 = sand.u32 %s182, 1
          %s337 = smul.addr %s336, 4
          %s338 = scalar_lea.vmem [#allocation14], %s337
          %s339 = smul.u32 4, %s32
          %s341 = ssub.s32 64, 64
          %342 = vsyncadd %s335, %s341
          %s343 = smul.addr %s339, 16
          %s344 = scalar_lea.hbm %s6, %s343
          %s346 = sshll.u32 %s338, 4
          %s347 = int_to_ptr.vmem [resolvable:$true] %s346
          %349 = dma.hbm_to_vmem [thread:$0]  %s344, 64, %s347, %s335
        $region44: #{tpu_custom_call.1} parent=31 // pred_fallthru
          _
      $region32: #{tpu_custom_call.1} parent=5 // pred_fallthru
        _
      %p350 = scmp.le.s32.totalorder 1, %s24
      %p351 = scmp.lt.s32.totalorder %s24, 5
      %p352 = pnand %p350, %p351
      %p353 = pneg %p352
      // Predicated region
      $region45: #{tpu_custom_call.1} parent=5 // pred_check
        _
      $region46: #{tpu_custom_call.1} parent=5 // pred_check_branch
        %355 = sbr.rel (%p352) target = $region48
      $region47: #{tpu_custom_call.1} parent=5 // pred_region
        %s356 = ssub.s32 %s24, 1
        %s357 = sand.u32 %s49, 1
        %s358 = scalar_lea.sflag [#allocation4], %s357
        %s359 = sand.u32 %s49, 1
        %s360 = smul.addr %s359, 48
        %s361 = scalar_lea.vmem [#allocation3], %s360
        // Predicated region
        $region49: #{tpu_custom_call.1} parent=47 // pred_check
          %p362 = pneg %p62
        $region50: #{tpu_custom_call.1} parent=47 // pred_check_branch
          %364 = sbr.rel (%p362) target = $region52
        $region51: #{tpu_custom_call.1} parent=47 // pred_region
          %365 = dma.done %s358, 768
        $region52: #{tpu_custom_call.1} parent=47 // pred_fallthru
          _
        // Predicated region
        $region53: #{tpu_custom_call.1} parent=47 // pred_check
          %p366 = pneg %p83
        $region54: #{tpu_custom_call.1} parent=47 // pred_check_branch
          %368 = sbr.rel (%p366) target = $region56
        $region55: #{tpu_custom_call.1} parent=47 // pred_region
          %369 = dma.done [#allocation7], 36864
        $region56: #{tpu_custom_call.1} parent=47 // pred_fallthru
          _
        // Predicated region
        $region57: #{tpu_custom_call.1} parent=47 // pred_check
          %p370 = pneg %p104
        $region58: #{tpu_custom_call.1} parent=47 // pred_check_branch
          %372 = sbr.rel (%p370) target = $region60
        $region59: #{tpu_custom_call.1} parent=47 // pred_region
          %373 = dma.done [#allocation7], 96
        $region60: #{tpu_custom_call.1} parent=47 // pred_fallthru
          _
        // Predicated region
        $region61: #{tpu_custom_call.1} parent=47 // pred_check
          %p374 = pneg %p125
        $region62: #{tpu_custom_call.1} parent=47 // pred_check_branch
          %376 = sbr.rel (%p374) target = $region64
        $region63: #{tpu_custom_call.1} parent=47 // pred_region
          %377 = dma.done [#allocation10], 96
        $region64: #{tpu_custom_call.1} parent=47 // pred_fallthru
          _
        // Predicated region
        $region65: #{tpu_custom_call.1} parent=47 // pred_check
          %p378 = pneg %p146
        $region66: #{tpu_custom_call.1} parent=47 // pred_check_branch
          %380 = sbr.rel (%p378) target = $region68
        $region67: #{tpu_custom_call.1} parent=47 // pred_region
          %381 = dma.done [#allocation10], 96
        $region68: #{tpu_custom_call.1} parent=47 // pred_fallthru
          _
        %s382 = sand.u32 %s29, 1
        %s383 = scalar_lea.sflag [#allocation13], %s382
        %s384 = sand.u32 %s159, 1
        %s385 = smul.addr %s384, 1536
        %s386 = scalar_lea.vmem [#allocation12], %s385
        // Predicated region
        $region69: #{tpu_custom_call.1} parent=47 // pred_check
          %p387 = pneg %p172
        $region70: #{tpu_custom_call.1} parent=47 // pred_check_branch
          %389 = sbr.rel (%p387) target = $region72
        $region71: #{tpu_custom_call.1} parent=47 // pred_region
          %390 = dma.done %s383, 24576
        $region72: #{tpu_custom_call.1} parent=47 // pred_fallthru
          _
        %s391 = sand.u32 %s29, 1
        %s392 = scalar_lea.sflag [#allocation13], %s391
        %s393 = sand.u32 %s185, 1
        %s394 = smul.addr %s393, 4
        %s395 = scalar_lea.vmem [#allocation14], %s394
        // Predicated region
        $region73: #{tpu_custom_call.1} parent=47 // pred_check
          %p396 = pneg %p198
        $region74: #{tpu_custom_call.1} parent=47 // pred_check_branch
          %398 = sbr.rel (%p396) target = $region76
        $region75: #{tpu_custom_call.1} parent=47 // pred_region
          %399 = dma.done %s392, 64
        $region76: #{tpu_custom_call.1} parent=47 // pred_fallthru
          _
        %s400 = sand.u32 %s49, 1
        %s401 = scalar_lea.sflag [#allocation4], %s400
        %s402 = sand.u32 %s49, 1
        %s403 = smul.addr %s402, 48
        %s404 = scalar_lea.vmem [#allocation3], %s403
        %p405 = pneg %p62
        %p406 = pneg %p59
        %p407 = pneg %p83
        %p408 = pneg %p80
        %p409 = pneg %p104
        %p410 = pneg %p101
        %p411 = pneg %p125
        %p412 = pneg %p122
        %p413 = pneg %p146
        %p414 = pneg %p143
        %s415 = sand.u32 %s29, 1
        %s416 = scalar_lea.sflag [#allocation13], %s415
        %s417 = sand.u32 %s159, 1
        %s418 = smul.addr %s417, 1536
        %s419 = scalar_lea.vmem [#allocation12], %s418
        %p420 = pneg %p172
        %p421 = pneg %p169
        %s422 = sand.u32 %s29, 1
        %s423 = scalar_lea.sflag [#allocation13], %s422
        %s424 = sand.u32 %s185, 1
        %s425 = smul.addr %s424, 4
        %s426 = scalar_lea.vmem [#allocation14], %s425
        %p427 = pneg %p198
        %p428 = pneg %p195
        %p429 = pneg %p226
        %p430 = pneg %p223
        %s431 = sand.u32 %s213, 1
        %s432 = scalar_lea.sflag [#allocation5], %s431
        %s433 = sand.u32 %s213, 1
        %s434 = smul.addr %s433, 32
        %s435 = scalar_lea.vmem [#allocation15], %s434
        %s436 = smul.u32 4, %s34
        %s437 = smul.u32 4, %s34
        %s438 = smul.u32 4, %s34
        %p439 = scmp.eq.s32.totalorder %s34, 0
        // Predicated region
        $region77: #{tpu_custom_call.1} parent=47 // pred_check
          %p440 = pneg %p439
        $region78: #{tpu_custom_call.1} parent=47 // pred_check_branch
          %442 = sbr.rel (%p440) target = $region80
        $region79: #{tpu_custom_call.1} parent=47 // pred_region
          %v443 = vld [vmem:[%s361] sm:$0xff]
          %v444 = vld [vmem:[%s361 + $0x8] sm:$0xff]
          %v445 = vld [vmem:[%s361 + $0x10] sm:$0xff]
          %v446 = vld [vmem:[%s361 + $0x18] sm:$0xff]
          %v447 = vld [vmem:[%s361 + $0x20] sm:$0xff]
          %v448 = vld [vmem:[%s361 + $0x28] sm:$0xff]
          %v449 = vpack.c.bf16 %v443, %v443
          %v450 = vpack.c.bf16 %v444, %v444
          %v451 = vpack.c.bf16 %v445, %v445
          %v452 = vpack.c.bf16 %v446, %v446
          %v453 = vpack.c.bf16 %v447, %v447
          %v454 = vpack.c.bf16 %v448, %v448
          %v455 = vld [vmem:[#allocation6] sm:$0xff]
          %v456 = vld [vmem:[#allocation6 + $0x8] sm:$0xff]
          %v457 = vld [vmem:[#allocation6 + $0x10] sm:$0xff]
          %v458 = vld [vmem:[#allocation6 + $0x18] sm:$0xff]
          %v459 = vld [vmem:[#allocation6 + $0x20] sm:$0xff]
          %v460 = vld [vmem:[#allocation6 + $0x28] sm:$0xff]
          %v461 = vld [vmem:[#allocation6 + $0x30] sm:$0xff]
          %v462 = vld [vmem:[#allocation6 + $0x38] sm:$0xff]
          %v463 = vld [vmem:[#allocation6 + $0x40] sm:$0xff]
          %v464 = vld [vmem:[#allocation6 + $0x48] sm:$0xff]
          %v465 = vld [vmem:[#allocation6 + $0x50] sm:$0xff]
          %v466 = vld [vmem:[#allocation6 + $0x58] sm:$0xff]
          %v467 = vld [vmem:[#allocation6 + $0x60] sm:$0xff]
          %v468 = vld [vmem:[#allocation6 + $0x68] sm:$0xff]
          %v469 = vld [vmem:[#allocation6 + $0x70] sm:$0xff]
          %v470 = vld [vmem:[#allocation6 + $0x78] sm:$0xff]
          %v471 = vld [vmem:[#allocation6 + $0x80] sm:$0xff]
          %v472 = vld [vmem:[#allocation6 + $0x88] sm:$0xff]
          %v473 = vld [vmem:[#allocation6 + $0x90] sm:$0xff]
          %v474 = vld [vmem:[#allocation6 + $0x98] sm:$0xff]
          %v475 = vld [vmem:[#allocation6 + $0xa0] sm:$0xff]
          %v476 = vld [vmem:[#allocation6 + $0xa8] sm:$0xff]
          %v477 = vld [vmem:[#allocation6 + $0xb0] sm:$0xff]
          %v478 = vld [vmem:[#allocation6 + $0xb8] sm:$0xff]
          %v479 = vld [vmem:[#allocation6 + $0xc0] sm:$0xff]
          %v480 = vld [vmem:[#allocation6 + $0xc8] sm:$0xff]
          %v481 = vld [vmem:[#allocation6 + $0xd0] sm:$0xff]
          %v482 = vld [vmem:[#allocation6 + $0xd8] sm:$0xff]
          %v483 = vld [vmem:[#allocation6 + $0xe0] sm:$0xff]
          %v484 = vld [vmem:[#allocation6 + $0xe8] sm:$0xff]
          %v485 = vld [vmem:[#allocation6 + $0xf0] sm:$0xff]
          %v486 = vld [vmem:[#allocation6 + $0xf8] sm:$0xff]
          %v487 = vld [vmem:[#allocation6 + $0x100] sm:$0xff]
          %v488 = vld [vmem:[#allocation6 + $0x108] sm:$0xff]
          %v489 = vld [vmem:[#allocation6 + $0x110] sm:$0xff]
          %v490 = vld [vmem:[#allocation6 + $0x118] sm:$0xff]
          %v491 = vld [vmem:[#allocation6 + $0x120] sm:$0xff]
          %v492 = vld [vmem:[#allocation6 + $0x128] sm:$0xff]
          %v493 = vld [vmem:[#allocation6 + $0x130] sm:$0xff]
          %v494 = vld [vmem:[#allocation6 + $0x138] sm:$0xff]
          %v495 = vld [vmem:[#allocation6 + $0x140] sm:$0xff]
          %v496 = vld [vmem:[#allocation6 + $0x148] sm:$0xff]
          %v497 = vld [vmem:[#allocation6 + $0x150] sm:$0xff]
          %v498 = vld [vmem:[#allocation6 + $0x158] sm:$0xff]
          %v499 = vld [vmem:[#allocation6 + $0x160] sm:$0xff]
          %v500 = vld [vmem:[#allocation6 + $0x168] sm:$0xff]
          %v501 = vld [vmem:[#allocation6 + $0x170] sm:$0xff]
          %v502 = vld [vmem:[#allocation6 + $0x178] sm:$0xff]
          %v503 = vld [vmem:[#allocation6 + $0x180] sm:$0xff]
          %v504 = vld [vmem:[#allocation6 + $0x188] sm:$0xff]
          %v505 = vld [vmem:[#allocation6 + $0x190] sm:$0xff]
          %v506 = vld [vmem:[#allocation6 + $0x198] sm:$0xff]
          %v507 = vld [vmem:[#allocation6 + $0x1a0] sm:$0xff]
          %v508 = vld [vmem:[#allocation6 + $0x1a8] sm:$0xff]
          %v509 = vld [vmem:[#allocation6 + $0x1b0] sm:$0xff]
          %v510 = vld [vmem:[#allocation6 + $0x1b8] sm:$0xff]
          %v511 = vld [vmem:[#allocation6 + $0x1c0] sm:$0xff]
          %v512 = vld [vmem:[#allocation6 + $0x1c8] sm:$0xff]
          %v513 = vld [vmem:[#allocation6 + $0x1d0] sm:$0xff]
          %v514 = vld [vmem:[#allocation6 + $0x1d8] sm:$0xff]
          %v515 = vld [vmem:[#allocation6 + $0x1e0] sm:$0xff]
          %v516 = vld [vmem:[#allocation6 + $0x1e8] sm:$0xff]
          %v517 = vld [vmem:[#allocation6 + $0x1f0] sm:$0xff]
          %v518 = vld [vmem:[#allocation6 + $0x1f8] sm:$0xff]
          %v519 = vld [vmem:[#allocation6 + $0x200] sm:$0xff]
          %v520 = vld [vmem:[#allocation6 + $0x208] sm:$0xff]
          %v521 = vld [vmem:[#allocation6 + $0x210] sm:$0xff]
          %v522 = vld [vmem:[#allocation6 + $0x218] sm:$0xff]
          %v523 = vld [vmem:[#allocation6 + $0x220] sm:$0xff]
          %v524 = vld [vmem:[#allocation6 + $0x228] sm:$0xff]
          %v525 = vld [vmem:[#allocation6 + $0x230] sm:$0xff]
          %v526 = vld [vmem:[#allocation6 + $0x238] sm:$0xff]
          %v527 = vld [vmem:[#allocation6 + $0x240] sm:$0xff]
          %v528 = vld [vmem:[#allocation6 + $0x248] sm:$0xff]
          %v529 = vld [vmem:[#allocation6 + $0x250] sm:$0xff]
          %v530 = vld [vmem:[#allocation6 + $0x258] sm:$0xff]
          %v531 = vld [vmem:[#allocation6 + $0x260] sm:$0xff]
          %v532 = vld [vmem:[#allocation6 + $0x268] sm:$0xff]
          %v533 = vld [vmem:[#allocation6 + $0x270] sm:$0xff]
          %v534 = vld [vmem:[#allocation6 + $0x278] sm:$0xff]
          %v535 = vld [vmem:[#allocation6 + $0x280] sm:$0xff]
          %v536 = vld [vmem:[#allocation6 + $0x288] sm:$0xff]
          %v537 = vld [vmem:[#allocation6 + $0x290] sm:$0xff]
          %v538 = vld [vmem:[#allocation6 + $0x298] sm:$0xff]
          %v539 = vld [vmem:[#allocation6 + $0x2a0] sm:$0xff]
          %v540 = vld [vmem:[#allocation6 + $0x2a8] sm:$0xff]
          %v541 = vld [vmem:[#allocation6 + $0x2b0] sm:$0xff]
          %v542 = vld [vmem:[#allocation6 + $0x2b8] sm:$0xff]
          %v543 = vld [vmem:[#allocation6 + $0x2c0] sm:$0xff]
          %v544 = vld [vmem:[#allocation6 + $0x2c8] sm:$0xff]
          %v545 = vld [vmem:[#allocation6 + $0x2d0] sm:$0xff]
          %v546 = vld [vmem:[#allocation6 + $0x2d8] sm:$0xff]
          %v547 = vld [vmem:[#allocation6 + $0x2e0] sm:$0xff]
          %v548 = vld [vmem:[#allocation6 + $0x2e8] sm:$0xff]
          %v549 = vld [vmem:[#allocation6 + $0x2f0] sm:$0xff]
          %v550 = vld [vmem:[#allocation6 + $0x2f8] sm:$0xff]
          %v551 = vld [vmem:[#allocation6 + $0x300] sm:$0xff]
          %v552 = vld [vmem:[#allocation6 + $0x308] sm:$0xff]
          %v553 = vld [vmem:[#allocation6 + $0x310] sm:$0xff]
          %v554 = vld [vmem:[#allocation6 + $0x318] sm:$0xff]
          %v555 = vld [vmem:[#allocation6 + $0x320] sm:$0xff]
          %v556 = vld [vmem:[#allocation6 + $0x328] sm:$0xff]
          %v557 = vld [vmem:[#allocation6 + $0x330] sm:$0xff]
          %v558 = vld [vmem:[#allocation6 + $0x338] sm:$0xff]
          %v559 = vld [vmem:[#allocation6 + $0x340] sm:$0xff]
          %v560 = vld [vmem:[#allocation6 + $0x348] sm:$0xff]
          %v561 = vld [vmem:[#allocation6 + $0x350] sm:$0xff]
          %v562 = vld [vmem:[#allocation6 + $0x358] sm:$0xff]
          %v563 = vld [vmem:[#allocation6 + $0x360] sm:$0xff]
          %v564 = vld [vmem:[#allocation6 + $0x368] sm:$0xff]
          %v565 = vld [vmem:[#allocation6 + $0x370] sm:$0xff]
          %v566 = vld [vmem:[#allocation6 + $0x378] sm:$0xff]
          %v567 = vld [vmem:[#allocation6 + $0x380] sm:$0xff]
          %v568 = vld [vmem:[#allocation6 + $0x388] sm:$0xff]
          %v569 = vld [vmem:[#allocation6 + $0x390] sm:$0xff]
          %v570 = vld [vmem:[#allocation6 + $0x398] sm:$0xff]
          %v571 = vld [vmem:[#allocation6 + $0x3a0] sm:$0xff]
          %v572 = vld [vmem:[#allocation6 + $0x3a8] sm:$0xff]
          %v573 = vld [vmem:[#allocation6 + $0x3b0] sm:$0xff]
          %v574 = vld [vmem:[#allocation6 + $0x3b8] sm:$0xff]
          %v575 = vld [vmem:[#allocation6 + $0x3c0] sm:$0xff]
          %v576 = vld [vmem:[#allocation6 + $0x3c8] sm:$0xff]
          %v577 = vld [vmem:[#allocation6 + $0x3d0] sm:$0xff]
          %v578 = vld [vmem:[#allocation6 + $0x3d8] sm:$0xff]
          %v579 = vld [vmem:[#allocation6 + $0x3e0] sm:$0xff]
          %v580 = vld [vmem:[#allocation6 + $0x3e8] sm:$0xff]
          %v581 = vld [vmem:[#allocation6 + $0x3f0] sm:$0xff]
          %v582 = vld [vmem:[#allocation6 + $0x3f8] sm:$0xff]
          %v583 = vld [vmem:[#allocation6 + $0x400] sm:$0xff]
          %v584 = vld [vmem:[#allocation6 + $0x408] sm:$0xff]
          %v585 = vld [vmem:[#allocation6 + $0x410] sm:$0xff]
          %v586 = vld [vmem:[#allocation6 + $0x418] sm:$0xff]
          %v587 = vld [vmem:[#allocation6 + $0x420] sm:$0xff]
          %v588 = vld [vmem:[#allocation6 + $0x428] sm:$0xff]
          %v589 = vld [vmem:[#allocation6 + $0x430] sm:$0xff]
          %v590 = vld [vmem:[#allocation6 + $0x438] sm:$0xff]
          %v591 = vld [vmem:[#allocation6 + $0x440] sm:$0xff]
          %v592 = vld [vmem:[#allocation6 + $0x448] sm:$0xff]
          %v593 = vld [vmem:[#allocation6 + $0x450] sm:$0xff]
          %v594 = vld [vmem:[#allocation6 + $0x458] sm:$0xff]
          %v595 = vld [vmem:[#allocation6 + $0x460] sm:$0xff]
          %v596 = vld [vmem:[#allocation6 + $0x468] sm:$0xff]
          %v597 = vld [vmem:[#allocation6 + $0x470] sm:$0xff]
          %v598 = vld [vmem:[#allocation6 + $0x478] sm:$0xff]
          %v599 = vld [vmem:[#allocation6 + $0x480] sm:$0xff]
          %v600 = vld [vmem:[#allocation6 + $0x488] sm:$0xff]
          %v601 = vld [vmem:[#allocation6 + $0x490] sm:$0xff]
          %v602 = vld [vmem:[#allocation6 + $0x498] sm:$0xff]
          %v603 = vld [vmem:[#allocation6 + $0x4a0] sm:$0xff]
          %v604 = vld [vmem:[#allocation6 + $0x4a8] sm:$0xff]
          %v605 = vld [vmem:[#allocation6 + $0x4b0] sm:$0xff]
          %v606 = vld [vmem:[#allocation6 + $0x4b8] sm:$0xff]
          %v607 = vld [vmem:[#allocation6 + $0x4c0] sm:$0xff]
          %v608 = vld [vmem:[#allocation6 + $0x4c8] sm:$0xff]
          %v609 = vld [vmem:[#allocation6 + $0x4d0] sm:$0xff]
          %v610 = vld [vmem:[#allocation6 + $0x4d8] sm:$0xff]
          %v611 = vld [vmem:[#allocation6 + $0x4e0] sm:$0xff]
          %v612 = vld [vmem:[#allocation6 + $0x4e8] sm:$0xff]
          %v613 = vld [vmem:[#allocation6 + $0x4f0] sm:$0xff]
          %v614 = vld [vmem:[#allocation6 + $0x4f8] sm:$0xff]
          %v615 = vld [vmem:[#allocation6 + $0x500] sm:$0xff]
          %v616 = vld [vmem:[#allocation6 + $0x508] sm:$0xff]
          %v617 = vld [vmem:[#allocation6 + $0x510] sm:$0xff]
          %v618 = vld [vmem:[#allocation6 + $0x518] sm:$0xff]
          %v619 = vld [vmem:[#allocation6 + $0x520] sm:$0xff]
          %v620 = vld [vmem:[#allocation6 + $0x528] sm:$0xff]
          %v621 = vld [vmem:[#allocation6 + $0x530] sm:$0xff]
          %v622 = vld [vmem:[#allocation6 + $0x538] sm:$0xff]
          %v623 = vld [vmem:[#allocation6 + $0x540] sm:$0xff]
          %v624 = vld [vmem:[#allocation6 + $0x548] sm:$0xff]
          %v625 = vld [vmem:[#allocation6 + $0x550] sm:$0xff]
          %v626 = vld [vmem:[#allocation6 + $0x558] sm:$0xff]
          %v627 = vld [vmem:[#allocation6 + $0x560] sm:$0xff]
          %v628 = vld [vmem:[#allocation6 + $0x568] sm:$0xff]
          %v629 = vld [vmem:[#allocation6 + $0x570] sm:$0xff]
          %v630 = vld [vmem:[#allocation6 + $0x578] sm:$0xff]
          %v631 = vld [vmem:[#allocation6 + $0x580] sm:$0xff]
          %v632 = vld [vmem:[#allocation6 + $0x588] sm:$0xff]
          %v633 = vld [vmem:[#allocation6 + $0x590] sm:$0xff]
          %v634 = vld [vmem:[#allocation6 + $0x598] sm:$0xff]
          %v635 = vld [vmem:[#allocation6 + $0x5a0] sm:$0xff]
          %v636 = vld [vmem:[#allocation6 + $0x5a8] sm:$0xff]
          %v637 = vld [vmem:[#allocation6 + $0x5b0] sm:$0xff]
          %v638 = vld [vmem:[#allocation6 + $0x5b8] sm:$0xff]
          %v639 = vld [vmem:[#allocation6 + $0x5c0] sm:$0xff]
          %v640 = vld [vmem:[#allocation6 + $0x5c8] sm:$0xff]
          %v641 = vld [vmem:[#allocation6 + $0x5d0] sm:$0xff]
          %v642 = vld [vmem:[#allocation6 + $0x5d8] sm:$0xff]
          %v643 = vld [vmem:[#allocation6 + $0x5e0] sm:$0xff]
          %v644 = vld [vmem:[#allocation6 + $0x5e8] sm:$0xff]
          %v645 = vld [vmem:[#allocation6 + $0x5f0] sm:$0xff]
          %v646 = vld [vmem:[#allocation6 + $0x5f8] sm:$0xff]
          %v647 = vld [vmem:[#allocation6 + $0x600] sm:$0xff]
          %v648 = vld [vmem:[#allocation6 + $0x608] sm:$0xff]
          %v649 = vld [vmem:[#allocation6 + $0x610] sm:$0xff]
          %v650 = vld [vmem:[#allocation6 + $0x618] sm:$0xff]
          %v651 = vld [vmem:[#allocation6 + $0x620] sm:$0xff]
          %v652 = vld [vmem:[#allocation6 + $0x628] sm:$0xff]
          %v653 = vld [vmem:[#allocation6 + $0x630] sm:$0xff]
          %v654 = vld [vmem:[#allocation6 + $0x638] sm:$0xff]
          %v655 = vld [vmem:[#allocation6 + $0x640] sm:$0xff]
          %v656 = vld [vmem:[#allocation6 + $0x648] sm:$0xff]
          %v657 = vld [vmem:[#allocation6 + $0x650] sm:$0xff]
          %v658 = vld [vmem:[#allocation6 + $0x658] sm:$0xff]
          %v659 = vld [vmem:[#allocation6 + $0x660] sm:$0xff]
          %v660 = vld [vmem:[#allocation6 + $0x668] sm:$0xff]
          %v661 = vld [vmem:[#allocation6 + $0x670] sm:$0xff]
          %v662 = vld [vmem:[#allocation6 + $0x678] sm:$0xff]
          %v663 = vld [vmem:[#allocation6 + $0x680] sm:$0xff]
          %v664 = vld [vmem:[#allocation6 + $0x688] sm:$0xff]
          %v665 = vld [vmem:[#allocation6 + $0x690] sm:$0xff]
          %v666 = vld [vmem:[#allocation6 + $0x698] sm:$0xff]
          %v667 = vld [vmem:[#allocation6 + $0x6a0] sm:$0xff]
          %v668 = vld [vmem:[#allocation6 + $0x6a8] sm:$0xff]
          %v669 = vld [vmem:[#allocation6 + $0x6b0] sm:$0xff]
          %v670 = vld [vmem:[#allocation6 + $0x6b8] sm:$0xff]
          %v671 = vld [vmem:[#allocation6 + $0x6c0] sm:$0xff]
          %v672 = vld [vmem:[#allocation6 + $0x6c8] sm:$0xff]
          %v673 = vld [vmem:[#allocation6 + $0x6d0] sm:$0xff]
          %v674 = vld [vmem:[#allocation6 + $0x6d8] sm:$0xff]
          %v675 = vld [vmem:[#allocation6 + $0x6e0] sm:$0xff]
          %v676 = vld [vmem:[#allocation6 + $0x6e8] sm:$0xff]
          %v677 = vld [vmem:[#allocation6 + $0x6f0] sm:$0xff]
          %v678 = vld [vmem:[#allocation6 + $0x6f8] sm:$0xff]
          %v679 = vld [vmem:[#allocation6 + $0x700] sm:$0xff]
          %v680 = vld [vmem:[#allocation6 + $0x708] sm:$0xff]
          %v681 = vld [vmem:[#allocation6 + $0x710] sm:$0xff]
          %v682 = vld [vmem:[#allocation6 + $0x718] sm:$0xff]
          %v683 = vld [vmem:[#allocation6 + $0x720] sm:$0xff]
          %v684 = vld [vmem:[#allocation6 + $0x728] sm:$0xff]
          %v685 = vld [vmem:[#allocation6 + $0x730] sm:$0xff]
          %v686 = vld [vmem:[#allocation6 + $0x738] sm:$0xff]
          %v687 = vld [vmem:[#allocation6 + $0x740] sm:$0xff]
          %v688 = vld [vmem:[#allocation6 + $0x748] sm:$0xff]
          %v689 = vld [vmem:[#allocation6 + $0x750] sm:$0xff]
          %v690 = vld [vmem:[#allocation6 + $0x758] sm:$0xff]
          %v691 = vld [vmem:[#allocation6 + $0x760] sm:$0xff]
          %v692 = vld [vmem:[#allocation6 + $0x768] sm:$0xff]
          %v693 = vld [vmem:[#allocation6 + $0x770] sm:$0xff]
          %v694 = vld [vmem:[#allocation6 + $0x778] sm:$0xff]
          %v695 = vld [vmem:[#allocation6 + $0x780] sm:$0xff]
          %v696 = vld [vmem:[#allocation6 + $0x788] sm:$0xff]
          %v697 = vld [vmem:[#allocation6 + $0x790] sm:$0xff]
          %v698 = vld [vmem:[#allocation6 + $0x798] sm:$0xff]
          %v699 = vld [vmem:[#allocation6 + $0x7a0] sm:$0xff]
          %v700 = vld [vmem:[#allocation6 + $0x7a8] sm:$0xff]
          %v701 = vld [vmem:[#allocation6 + $0x7b0] sm:$0xff]
          %v702 = vld [vmem:[#allocation6 + $0x7b8] sm:$0xff]
          %v703 = vld [vmem:[#allocation6 + $0x7c0] sm:$0xff]
          %v704 = vld [vmem:[#allocation6 + $0x7c8] sm:$0xff]
          %v705 = vld [vmem:[#allocation6 + $0x7d0] sm:$0xff]
          %v706 = vld [vmem:[#allocation6 + $0x7d8] sm:$0xff]
          %v707 = vld [vmem:[#allocation6 + $0x7e0] sm:$0xff]
          %v708 = vld [vmem:[#allocation6 + $0x7e8] sm:$0xff]
          %v709 = vld [vmem:[#allocation6 + $0x7f0] sm:$0xff]
          %v710 = vld [vmem:[#allocation6 + $0x7f8] sm:$0xff]
          %v711 = vld [vmem:[#allocation6 + $0x800] sm:$0xff]
          %v712 = vld [vmem:[#allocation6 + $0x808] sm:$0xff]
          %v713 = vld [vmem:[#allocation6 + $0x810] sm:$0xff]
          %v714 = vld [vmem:[#allocation6 + $0x818] sm:$0xff]
          %v715 = vld [vmem:[#allocation6 + $0x820] sm:$0xff]
          %v716 = vld [vmem:[#allocation6 + $0x828] sm:$0xff]
          %v717 = vld [vmem:[#allocation6 + $0x830] sm:$0xff]
          %v718 = vld [vmem:[#allocation6 + $0x838] sm:$0xff]
          %v719 = vld [vmem:[#allocation6 + $0x840] sm:$0xff]
          %v720 = vld [vmem:[#allocation6 + $0x848] sm:$0xff]
          %v721 = vld [vmem:[#allocation6 + $0x850] sm:$0xff]
          %v722 = vld [vmem:[#allocation6 + $0x858] sm:$0xff]
          %v723 = vld [vmem:[#allocation6 + $0x860] sm:$0xff]
          %v724 = vld [vmem:[#allocation6 + $0x868] sm:$0xff]
          %v725 = vld [vmem:[#allocation6 + $0x870] sm:$0xff]
          %v726 = vld [vmem:[#allocation6 + $0x878] sm:$0xff]
          %v727 = vld [vmem:[#allocation6 + $0x880] sm:$0xff]
          %v728 = vld [vmem:[#allocation6 + $0x888] sm:$0xff]
          %v729 = vld [vmem:[#allocation6 + $0x890] sm:$0xff]
          %v730 = vld [vmem:[#allocation6 + $0x898] sm:$0xff]
          %v731 = vld [vmem:[#allocation6 + $0x8a0] sm:$0xff]
          %v732 = vld [vmem:[#allocation6 + $0x8a8] sm:$0xff]
          %v733 = vld [vmem:[#allocation6 + $0x8b0] sm:$0xff]
          %v734 = vld [vmem:[#allocation6 + $0x8b8] sm:$0xff]
          %v735 = vld [vmem:[#allocation6 + $0x8c0] sm:$0xff]
          %v736 = vld [vmem:[#allocation6 + $0x8c8] sm:$0xff]
          %v737 = vld [vmem:[#allocation6 + $0x8d0] sm:$0xff]
          %v738 = vld [vmem:[#allocation6 + $0x8d8] sm:$0xff]
          %v739 = vld [vmem:[#allocation6 + $0x8e0] sm:$0xff]
          %v740 = vld [vmem:[#allocation6 + $0x8e8] sm:$0xff]
          %v741 = vld [vmem:[#allocation6 + $0x8f0] sm:$0xff]
          %v742 = vld [vmem:[#allocation6 + $0x8f8] sm:$0xff]
          %v743 = vld [vmem:[#allocation8] sm:$0x3f]
          %v745 = vlaneseq
          %v746 = vshrl.u32 %v745, 7
          %v747 = vsub.s32 0, %v746
          %v748 = vrot.slane %v743, %v747
          %v749 = vlaneseq
          %v750 = vshrl.u32 %v749, 7
          %v751 = vsub.s32 1, %v750
          %v752 = vrot.slane %v743, %v751
          %v753 = vlaneseq
          %v754 = vshrl.u32 %v753, 7
          %v755 = vsub.s32 2, %v754
          %v756 = vrot.slane %v743, %v755
          %v757 = vlaneseq
          %v758 = vshrl.u32 %v757, 7
          %v759 = vsub.s32 3, %v758
          %v760 = vrot.slane %v743, %v759
          %v761 = vlaneseq
          %v762 = vshrl.u32 %v761, 7
          %v763 = vsub.s32 4, %v762
          %v764 = vrot.slane %v743, %v763
          %v765 = vlaneseq
          %v766 = vshrl.u32 %v765, 7
          %v767 = vsub.s32 5, %v766
          %v768 = vrot.slane %v743, %v767
          %v1063 = vunpack.c.l.b16 %v455
          %v1064 = vunpack.c.h.b16 %v455
          %v1065 = vunpack.c.l.b16 %v456
          %v1066 = vunpack.c.h.b16 %v456
          %v1067 = vunpack.c.l.b16 %v457
          %v1068 = vunpack.c.h.b16 %v457
          %v1069 = vunpack.c.l.b16 %v458
          %v1070 = vunpack.c.h.b16 %v458
          %v1071 = vunpack.c.l.b16 %v459
          %v1072 = vunpack.c.h.b16 %v459
          %v1073 = vunpack.c.l.b16 %v460
          %v1074 = vunpack.c.h.b16 %v460
          %v1075 = vunpack.c.l.b16 %v461
          %v1076 = vunpack.c.h.b16 %v461
          %v1077 = vunpack.c.l.b16 %v462
          %v1078 = vunpack.c.h.b16 %v462
          %v1079 = vunpack.c.l.b16 %v463
          %v1080 = vunpack.c.h.b16 %v463
          %v1081 = vunpack.c.l.b16 %v464
          %v1082 = vunpack.c.h.b16 %v464
          %v1083 = vunpack.c.l.b16 %v465
          %v1084 = vunpack.c.h.b16 %v465
          %v1085 = vunpack.c.l.b16 %v466
          %v1086 = vunpack.c.h.b16 %v466
          %v1087 = vunpack.c.l.b16 %v467
          %v1088 = vunpack.c.h.b16 %v467
          %v1089 = vunpack.c.l.b16 %v468
          %v1090 = vunpack.c.h.b16 %v468
          %v1091 = vunpack.c.l.b16 %v469
          %v1092 = vunpack.c.h.b16 %v469
          %v1093 = vunpack.c.l.b16 %v470
          %v1094 = vunpack.c.h.b16 %v470
          %v1095 = vunpack.c.l.b16 %v471
          %v1096 = vunpack.c.h.b16 %v471
          %v1097 = vunpack.c.l.b16 %v472
          %v1098 = vunpack.c.h.b16 %v472
          %v1099 = vunpack.c.l.b16 %v473
          %v1100 = vunpack.c.h.b16 %v473
          %v1101 = vunpack.c.l.b16 %v474
          %v1102 = vunpack.c.h.b16 %v474
          %v1103 = vunpack.c.l.b16 %v475
          %v1104 = vunpack.c.h.b16 %v475
          %v1105 = vunpack.c.l.b16 %v476
          %v1106 = vunpack.c.h.b16 %v476
          %v1107 = vunpack.c.l.b16 %v477
          %v1108 = vunpack.c.h.b16 %v477
          %v1109 = vunpack.c.l.b16 %v478
          %v1110 = vunpack.c.h.b16 %v478
          %v1111 = vunpack.c.l.b16 %v479
          %v1112 = vunpack.c.h.b16 %v479
          %v1113 = vunpack.c.l.b16 %v480
          %v1114 = vunpack.c.h.b16 %v480
          %v1115 = vunpack.c.l.b16 %v481
          %v1116 = vunpack.c.h.b16 %v481
          %v1117 = vunpack.c.l.b16 %v482
          %v1118 = vunpack.c.h.b16 %v482
          %v1119 = vunpack.c.l.b16 %v483
          %v1120 = vunpack.c.h.b16 %v483
          %v1121 = vunpack.c.l.b16 %v484
          %v1122 = vunpack.c.h.b16 %v484
          %v1123 = vunpack.c.l.b16 %v485
          %v1124 = vunpack.c.h.b16 %v485
          %v1125 = vunpack.c.l.b16 %v486
          %v1126 = vunpack.c.h.b16 %v486
          %v1127 = vunpack.c.l.b16 %v487
          %v1128 = vunpack.c.h.b16 %v487
          %v1129 = vunpack.c.l.b16 %v488
          %v1130 = vunpack.c.h.b16 %v488
          %v1131 = vunpack.c.l.b16 %v489
          %v1132 = vunpack.c.h.b16 %v489
          %v1133 = vunpack.c.l.b16 %v490
          %v1134 = vunpack.c.h.b16 %v490
          %v1135 = vunpack.c.l.b16 %v491
          %v1136 = vunpack.c.h.b16 %v491
          %v1137 = vunpack.c.l.b16 %v492
          %v1138 = vunpack.c.h.b16 %v492
          %v1139 = vunpack.c.l.b16 %v493
          %v1140 = vunpack.c.h.b16 %v493
          %v1141 = vunpack.c.l.b16 %v494
          %v1142 = vunpack.c.h.b16 %v494
          %v1143 = vunpack.c.l.b16 %v495
          %v1144 = vunpack.c.h.b16 %v495
          %v1145 = vunpack.c.l.b16 %v496
          %v1146 = vunpack.c.h.b16 %v496
          %v1147 = vunpack.c.l.b16 %v497
          %v1148 = vunpack.c.h.b16 %v497
          %v1149 = vunpack.c.l.b16 %v498
          %v1150 = vunpack.c.h.b16 %v498
          %v1151 = vunpack.c.l.b16 %v499
          %v1152 = vunpack.c.h.b16 %v499
          %v1153 = vunpack.c.l.b16 %v500
          %v1154 = vunpack.c.h.b16 %v500
          %v1155 = vunpack.c.l.b16 %v501
          %v1156 = vunpack.c.h.b16 %v501
          %v1157 = vunpack.c.l.b16 %v502
          %v1158 = vunpack.c.h.b16 %v502
          %v1159 = vunpack.c.l.b16 %v503
          %v1160 = vunpack.c.h.b16 %v503
          %v1161 = vunpack.c.l.b16 %v504
          %v1162 = vunpack.c.h.b16 %v504
          %v1163 = vunpack.c.l.b16 %v505
          %v1164 = vunpack.c.h.b16 %v505
          %v1165 = vunpack.c.l.b16 %v506
          %v1166 = vunpack.c.h.b16 %v506
          %v1167 = vunpack.c.l.b16 %v507
          %v1168 = vunpack.c.h.b16 %v507
          %v1169 = vunpack.c.l.b16 %v508
          %v1170 = vunpack.c.h.b16 %v508
          %v1171 = vunpack.c.l.b16 %v509
          %v1172 = vunpack.c.h.b16 %v509
          %v1173 = vunpack.c.l.b16 %v510
          %v1174 = vunpack.c.h.b16 %v510
          %v1175 = vunpack.c.l.b16 %v511
          %v1176 = vunpack.c.h.b16 %v511
          %v1177 = vunpack.c.l.b16 %v512
          %v1178 = vunpack.c.h.b16 %v512
          %v1179 = vunpack.c.l.b16 %v513
          %v1180 = vunpack.c.h.b16 %v513
          %v1181 = vunpack.c.l.b16 %v514
          %v1182 = vunpack.c.h.b16 %v514
          %v1183 = vunpack.c.l.b16 %v515
          %v1184 = vunpack.c.h.b16 %v515
          %v1185 = vunpack.c.l.b16 %v516
          %v1186 = vunpack.c.h.b16 %v516
          %v1187 = vunpack.c.l.b16 %v517
          %v1188 = vunpack.c.h.b16 %v517
          %v1189 = vunpack.c.l.b16 %v518
          %v1190 = vunpack.c.h.b16 %v518
          %v1191 = vunpack.c.l.b16 %v519
          %v1192 = vunpack.c.h.b16 %v519
          %v1193 = vunpack.c.l.b16 %v520
          %v1194 = vunpack.c.h.b16 %v520
          %v1195 = vunpack.c.l.b16 %v521
          %v1196 = vunpack.c.h.b16 %v521
          %v1197 = vunpack.c.l.b16 %v522
          %v1198 = vunpack.c.h.b16 %v522
          %v1199 = vunpack.c.l.b16 %v523
          %v1200 = vunpack.c.h.b16 %v523
          %v1201 = vunpack.c.l.b16 %v524
          %v1202 = vunpack.c.h.b16 %v524
          %v1203 = vunpack.c.l.b16 %v525
          %v1204 = vunpack.c.h.b16 %v525
          %v1205 = vunpack.c.l.b16 %v526
          %v1206 = vunpack.c.h.b16 %v526
          %v1207 = vunpack.c.l.b16 %v527
          %v1208 = vunpack.c.h.b16 %v527
          %v1209 = vunpack.c.l.b16 %v528
          %v1210 = vunpack.c.h.b16 %v528
          %v1211 = vunpack.c.l.b16 %v529
          %v1212 = vunpack.c.h.b16 %v529
          %v1213 = vunpack.c.l.b16 %v530
          %v1214 = vunpack.c.h.b16 %v530
          %v1215 = vunpack.c.l.b16 %v531
          %v1216 = vunpack.c.h.b16 %v531
          %v1217 = vunpack.c.l.b16 %v532
          %v1218 = vunpack.c.h.b16 %v532
          %v1219 = vunpack.c.l.b16 %v533
          %v1220 = vunpack.c.h.b16 %v533
          %v1221 = vunpack.c.l.b16 %v534
          %v1222 = vunpack.c.h.b16 %v534
          %v1223 = vunpack.c.l.b16 %v535
          %v1224 = vunpack.c.h.b16 %v535
          %v1225 = vunpack.c.l.b16 %v536
          %v1226 = vunpack.c.h.b16 %v536
          %v1227 = vunpack.c.l.b16 %v537
          %v1228 = vunpack.c.h.b16 %v537
          %v1229 = vunpack.c.l.b16 %v538
          %v1230 = vunpack.c.h.b16 %v538
          %v1231 = vunpack.c.l.b16 %v539
          %v1232 = vunpack.c.h.b16 %v539
          %v1233 = vunpack.c.l.b16 %v540
          %v1234 = vunpack.c.h.b16 %v540
          %v1235 = vunpack.c.l.b16 %v541
          %v1236 = vunpack.c.h.b16 %v541
          %v1237 = vunpack.c.l.b16 %v542
          %v1238 = vunpack.c.h.b16 %v542
          %v1239 = vunpack.c.l.b16 %v543
          %v1240 = vunpack.c.h.b16 %v543
          %v1241 = vunpack.c.l.b16 %v544
          %v1242 = vunpack.c.h.b16 %v544
          %v1243 = vunpack.c.l.b16 %v545
          %v1244 = vunpack.c.h.b16 %v545
          %v1245 = vunpack.c.l.b16 %v546
          %v1246 = vunpack.c.h.b16 %v546
          %v1247 = vunpack.c.l.b16 %v547
          %v1248 = vunpack.c.h.b16 %v547
          %v1249 = vunpack.c.l.b16 %v548
          %v1250 = vunpack.c.h.b16 %v548
          %v1251 = vunpack.c.l.b16 %v549
          %v1252 = vunpack.c.h.b16 %v549
          %v1253 = vunpack.c.l.b16 %v550
          %v1254 = vunpack.c.h.b16 %v550
          %v1255 = vunpack.c.l.b16 %v551
          %v1256 = vunpack.c.h.b16 %v551
          %v1257 = vunpack.c.l.b16 %v552
          %v1258 = vunpack.c.h.b16 %v552
          %v1259 = vunpack.c.l.b16 %v553
          %v1260 = vunpack.c.h.b16 %v553
          %v1261 = vunpack.c.l.b16 %v554
          %v1262 = vunpack.c.h.b16 %v554
          %v1263 = vunpack.c.l.b16 %v555
          %v1264 = vunpack.c.h.b16 %v555
          %v1265 = vunpack.c.l.b16 %v556
          %v1266 = vunpack.c.h.b16 %v556
          %v1267 = vunpack.c.l.b16 %v557
          %v1268 = vunpack.c.h.b16 %v557
          %v1269 = vunpack.c.l.b16 %v558
          %v1270 = vunpack.c.h.b16 %v558
          %v1271 = vunpack.c.l.b16 %v559
          %v1272 = vunpack.c.h.b16 %v559
          %v1273 = vunpack.c.l.b16 %v560
          %v1274 = vunpack.c.h.b16 %v560
          %v1275 = vunpack.c.l.b16 %v561
          %v1276 = vunpack.c.h.b16 %v561
          %v1277 = vunpack.c.l.b16 %v562
          %v1278 = vunpack.c.h.b16 %v562
          %v1279 = vunpack.c.l.b16 %v563
          %v1280 = vunpack.c.h.b16 %v563
          %v1281 = vunpack.c.l.b16 %v564
          %v1282 = vunpack.c.h.b16 %v564
          %v1283 = vunpack.c.l.b16 %v565
          %v1284 = vunpack.c.h.b16 %v565
          %v1285 = vunpack.c.l.b16 %v566
          %v1286 = vunpack.c.h.b16 %v566
          %v1287 = vunpack.c.l.b16 %v567
          %v1288 = vunpack.c.h.b16 %v567
          %v1289 = vunpack.c.l.b16 %v568
          %v1290 = vunpack.c.h.b16 %v568
          %v1291 = vunpack.c.l.b16 %v569
          %v1292 = vunpack.c.h.b16 %v569
          %v1293 = vunpack.c.l.b16 %v570
          %v1294 = vunpack.c.h.b16 %v570
          %v1295 = vunpack.c.l.b16 %v571
          %v1296 = vunpack.c.h.b16 %v571
          %v1297 = vunpack.c.l.b16 %v572
          %v1298 = vunpack.c.h.b16 %v572
          %v1299 = vunpack.c.l.b16 %v573
          %v1300 = vunpack.c.h.b16 %v573
          %v1301 = vunpack.c.l.b16 %v574
          %v1302 = vunpack.c.h.b16 %v574
          %v1303 = vunpack.c.l.b16 %v575
          %v1304 = vunpack.c.h.b16 %v575
          %v1305 = vunpack.c.l.b16 %v576
          %v1306 = vunpack.c.h.b16 %v576
          %v1307 = vunpack.c.l.b16 %v577
          %v1308 = vunpack.c.h.b16 %v577
          %v1309 = vunpack.c.l.b16 %v578
          %v1310 = vunpack.c.h.b16 %v578
          %v1311 = vunpack.c.l.b16 %v579
          %v1312 = vunpack.c.h.b16 %v579
          %v1313 = vunpack.c.l.b16 %v580
          %v1314 = vunpack.c.h.b16 %v580
          %v1315 = vunpack.c.l.b16 %v581
          %v1316 = vunpack.c.h.b16 %v581
          %v1317 = vunpack.c.l.b16 %v582
          %v1318 = vunpack.c.h.b16 %v582
          %v1319 = vunpack.c.l.b16 %v583
          %v1320 = vunpack.c.h.b16 %v583
          %v1321 = vunpack.c.l.b16 %v584
          %v1322 = vunpack.c.h.b16 %v584
          %v1323 = vunpack.c.l.b16 %v585
          %v1324 = vunpack.c.h.b16 %v585
          %v1325 = vunpack.c.l.b16 %v586
          %v1326 = vunpack.c.h.b16 %v586
          %v1327 = vunpack.c.l.b16 %v587
          %v1328 = vunpack.c.h.b16 %v587
          %v1329 = vunpack.c.l.b16 %v588
          %v1330 = vunpack.c.h.b16 %v588
          %v1331 = vunpack.c.l.b16 %v589
          %v1332 = vunpack.c.h.b16 %v589
          %v1333 = vunpack.c.l.b16 %v590
          %v1334 = vunpack.c.h.b16 %v590
          %v1335 = vunpack.c.l.b16 %v591
          %v1336 = vunpack.c.h.b16 %v591
          %v1337 = vunpack.c.l.b16 %v592
          %v1338 = vunpack.c.h.b16 %v592
          %v1339 = vunpack.c.l.b16 %v593
          %v1340 = vunpack.c.h.b16 %v593
          %v1341 = vunpack.c.l.b16 %v594
          %v1342 = vunpack.c.h.b16 %v594
          %v1343 = vunpack.c.l.b16 %v595
          %v1344 = vunpack.c.h.b16 %v595
          %v1345 = vunpack.c.l.b16 %v596
          %v1346 = vunpack.c.h.b16 %v596
          %v1347 = vunpack.c.l.b16 %v597
          %v1348 = vunpack.c.h.b16 %v597
          %v1349 = vunpack.c.l.b16 %v598
          %v1350 = vunpack.c.h.b16 %v598
          %v1351 = vunpack.c.l.b16 %v599
          %v1352 = vunpack.c.h.b16 %v599
          %v1353 = vunpack.c.l.b16 %v600
          %v1354 = vunpack.c.h.b16 %v600
          %v1355 = vunpack.c.l.b16 %v601
          %v1356 = vunpack.c.h.b16 %v601
          %v1357 = vunpack.c.l.b16 %v602
          %v1358 = vunpack.c.h.b16 %v602
          %v1359 = vunpack.c.l.b16 %v603
          %v1360 = vunpack.c.h.b16 %v603
          %v1361 = vunpack.c.l.b16 %v604
          %v1362 = vunpack.c.h.b16 %v604
          %v1363 = vunpack.c.l.b16 %v605
          %v1364 = vunpack.c.h.b16 %v605
          %v1365 = vunpack.c.l.b16 %v606
          %v1366 = vunpack.c.h.b16 %v606
          %v1367 = vunpack.c.l.b16 %v607
          %v1368 = vunpack.c.h.b16 %v607
          %v1369 = vunpack.c.l.b16 %v608
          %v1370 = vunpack.c.h.b16 %v608
          %v1371 = vunpack.c.l.b16 %v609
          %v1372 = vunpack.c.h.b16 %v609
          %v1373 = vunpack.c.l.b16 %v610
          %v1374 = vunpack.c.h.b16 %v610
          %v1375 = vunpack.c.l.b16 %v611
          %v1376 = vunpack.c.h.b16 %v611
          %v1377 = vunpack.c.l.b16 %v612
          %v1378 = vunpack.c.h.b16 %v612
          %v1379 = vunpack.c.l.b16 %v613
          %v1380 = vunpack.c.h.b16 %v613
          %v1381 = vunpack.c.l.b16 %v614
          %v1382 = vunpack.c.h.b16 %v614
          %v1383 = vunpack.c.l.b16 %v615
          %v1384 = vunpack.c.h.b16 %v615
          %v1385 = vunpack.c.l.b16 %v616
          %v1386 = vunpack.c.h.b16 %v616
          %v1387 = vunpack.c.l.b16 %v617
          %v1388 = vunpack.c.h.b16 %v617
          %v1389 = vunpack.c.l.b16 %v618
          %v1390 = vunpack.c.h.b16 %v618
          %v1391 = vunpack.c.l.b16 %v619
          %v1392 = vunpack.c.h.b16 %v619
          %v1393 = vunpack.c.l.b16 %v620
          %v1394 = vunpack.c.h.b16 %v620
          %v1395 = vunpack.c.l.b16 %v621
          %v1396 = vunpack.c.h.b16 %v621
          %v1397 = vunpack.c.l.b16 %v622
          %v1398 = vunpack.c.h.b16 %v622
          %v1399 = vunpack.c.l.b16 %v623
          %v1400 = vunpack.c.h.b16 %v623
          %v1401 = vunpack.c.l.b16 %v624
          %v1402 = vunpack.c.h.b16 %v624
          %v1403 = vunpack.c.l.b16 %v625
          %v1404 = vunpack.c.h.b16 %v625
          %v1405 = vunpack.c.l.b16 %v626
          %v1406 = vunpack.c.h.b16 %v626
          %v1407 = vunpack.c.l.b16 %v627
          %v1408 = vunpack.c.h.b16 %v627
          %v1409 = vunpack.c.l.b16 %v628
          %v1410 = vunpack.c.h.b16 %v628
          %v1411 = vunpack.c.l.b16 %v629
          %v1412 = vunpack.c.h.b16 %v629
          %v1413 = vunpack.c.l.b16 %v630
          %v1414 = vunpack.c.h.b16 %v630
          %v1415 = vunpack.c.l.b16 %v631
          %v1416 = vunpack.c.h.b16 %v631
          %v1417 = vunpack.c.l.b16 %v632
          %v1418 = vunpack.c.h.b16 %v632
          %v1419 = vunpack.c.l.b16 %v633
          %v1420 = vunpack.c.h.b16 %v633
          %v1421 = vunpack.c.l.b16 %v634
          %v1422 = vunpack.c.h.b16 %v634
          %v1423 = vunpack.c.l.b16 %v635
          %v1424 = vunpack.c.h.b16 %v635
          %v1425 = vunpack.c.l.b16 %v636
          %v1426 = vunpack.c.h.b16 %v636
          %v1427 = vunpack.c.l.b16 %v637
          %v1428 = vunpack.c.h.b16 %v637
          %v1429 = vunpack.c.l.b16 %v638
          %v1430 = vunpack.c.h.b16 %v638
          %v1431 = vunpack.c.l.b16 %v639
          %v1432 = vunpack.c.h.b16 %v639
          %v1433 = vunpack.c.l.b16 %v640
          %v1434 = vunpack.c.h.b16 %v640
          %v1435 = vunpack.c.l.b16 %v641
          %v1436 = vunpack.c.h.b16 %v641
          %v1437 = vunpack.c.l.b16 %v642
          %v1438 = vunpack.c.h.b16 %v642
          %v1439 = vunpack.c.l.b16 %v643
          %v1440 = vunpack.c.h.b16 %v643
          %v1441 = vunpack.c.l.b16 %v644
          %v1442 = vunpack.c.h.b16 %v644
          %v1443 = vunpack.c.l.b16 %v645
          %v1444 = vunpack.c.h.b16 %v645
          %v1445 = vunpack.c.l.b16 %v646
          %v1446 = vunpack.c.h.b16 %v646
          %v1447 = vunpack.c.l.b16 %v647
          %v1448 = vunpack.c.h.b16 %v647
          %v1449 = vunpack.c.l.b16 %v648
          %v1450 = vunpack.c.h.b16 %v648
          %v1451 = vunpack.c.l.b16 %v649
          %v1452 = vunpack.c.h.b16 %v649
          %v1453 = vunpack.c.l.b16 %v650
          %v1454 = vunpack.c.h.b16 %v650
          %v1455 = vunpack.c.l.b16 %v651
          %v1456 = vunpack.c.h.b16 %v651
          %v1457 = vunpack.c.l.b16 %v652
          %v1458 = vunpack.c.h.b16 %v652
          %v1459 = vunpack.c.l.b16 %v653
          %v1460 = vunpack.c.h.b16 %v653
          %v1461 = vunpack.c.l.b16 %v654
          %v1462 = vunpack.c.h.b16 %v654
          %v1463 = vunpack.c.l.b16 %v655
          %v1464 = vunpack.c.h.b16 %v655
          %v1465 = vunpack.c.l.b16 %v656
          %v1466 = vunpack.c.h.b16 %v656
          %v1467 = vunpack.c.l.b16 %v657
          %v1468 = vunpack.c.h.b16 %v657
          %v1469 = vunpack.c.l.b16 %v658
          %v1470 = vunpack.c.h.b16 %v658
          %v1471 = vunpack.c.l.b16 %v659
          %v1472 = vunpack.c.h.b16 %v659
          %v1473 = vunpack.c.l.b16 %v660
          %v1474 = vunpack.c.h.b16 %v660
          %v1475 = vunpack.c.l.b16 %v661
          %v1476 = vunpack.c.h.b16 %v661
          %v1477 = vunpack.c.l.b16 %v662
          %v1478 = vunpack.c.h.b16 %v662
          %v1479 = vunpack.c.l.b16 %v663
          %v1480 = vunpack.c.h.b16 %v663
          %v1481 = vunpack.c.l.b16 %v664
          %v1482 = vunpack.c.h.b16 %v664
          %v1483 = vunpack.c.l.b16 %v665
          %v1484 = vunpack.c.h.b16 %v665
          %v1485 = vunpack.c.l.b16 %v666
          %v1486 = vunpack.c.h.b16 %v666
          %v1487 = vunpack.c.l.b16 %v667
          %v1488 = vunpack.c.h.b16 %v667
          %v1489 = vunpack.c.l.b16 %v668
          %v1490 = vunpack.c.h.b16 %v668
          %v1491 = vunpack.c.l.b16 %v669
          %v1492 = vunpack.c.h.b16 %v669
          %v1493 = vunpack.c.l.b16 %v670
          %v1494 = vunpack.c.h.b16 %v670
          %v1495 = vunpack.c.l.b16 %v671
          %v1496 = vunpack.c.h.b16 %v671
          %v1497 = vunpack.c.l.b16 %v672
          %v1498 = vunpack.c.h.b16 %v672
          %v1499 = vunpack.c.l.b16 %v673
          %v1500 = vunpack.c.h.b16 %v673
          %v1501 = vunpack.c.l.b16 %v674
          %v1502 = vunpack.c.h.b16 %v674
          %v1503 = vunpack.c.l.b16 %v675
          %v1504 = vunpack.c.h.b16 %v675
          %v1505 = vunpack.c.l.b16 %v676
          %v1506 = vunpack.c.h.b16 %v676
          %v1507 = vunpack.c.l.b16 %v677
          %v1508 = vunpack.c.h.b16 %v677
          %v1509 = vunpack.c.l.b16 %v678
          %v1510 = vunpack.c.h.b16 %v678
          %v1511 = vunpack.c.l.b16 %v679
          %v1512 = vunpack.c.h.b16 %v679
          %v1513 = vunpack.c.l.b16 %v680
          %v1514 = vunpack.c.h.b16 %v680
          %v1515 = vunpack.c.l.b16 %v681
          %v1516 = vunpack.c.h.b16 %v681
          %v1517 = vunpack.c.l.b16 %v682
          %v1518 = vunpack.c.h.b16 %v682
          %v1519 = vunpack.c.l.b16 %v683
          %v1520 = vunpack.c.h.b16 %v683
          %v1521 = vunpack.c.l.b16 %v684
          %v1522 = vunpack.c.h.b16 %v684
          %v1523 = vunpack.c.l.b16 %v685
          %v1524 = vunpack.c.h.b16 %v685
          %v1525 = vunpack.c.l.b16 %v686
          %v1526 = vunpack.c.h.b16 %v686
          %v1527 = vunpack.c.l.b16 %v687
          %v1528 = vunpack.c.h.b16 %v687
          %v1529 = vunpack.c.l.b16 %v688
          %v1530 = vunpack.c.h.b16 %v688
          %v1531 = vunpack.c.l.b16 %v689
          %v1532 = vunpack.c.h.b16 %v689
          %v1533 = vunpack.c.l.b16 %v690
          %v1534 = vunpack.c.h.b16 %v690
          %v1535 = vunpack.c.l.b16 %v691
          %v1536 = vunpack.c.h.b16 %v691
          %v1537 = vunpack.c.l.b16 %v692
          %v1538 = vunpack.c.h.b16 %v692
          %v1539 = vunpack.c.l.b16 %v693
          %v1540 = vunpack.c.h.b16 %v693
          %v1541 = vunpack.c.l.b16 %v694
          %v1542 = vunpack.c.h.b16 %v694
          %v1543 = vunpack.c.l.b16 %v695
          %v1544 = vunpack.c.h.b16 %v695
          %v1545 = vunpack.c.l.b16 %v696
          %v1546 = vunpack.c.h.b16 %v696
          %v1547 = vunpack.c.l.b16 %v697
          %v1548 = vunpack.c.h.b16 %v697
          %v1549 = vunpack.c.l.b16 %v698
          %v1550 = vunpack.c.h.b16 %v698
          %v1551 = vunpack.c.l.b16 %v699
          %v1552 = vunpack.c.h.b16 %v699
          %v1553 = vunpack.c.l.b16 %v700
          %v1554 = vunpack.c.h.b16 %v700
          %v1555 = vunpack.c.l.b16 %v701
          %v1556 = vunpack.c.h.b16 %v701
          %v1557 = vunpack.c.l.b16 %v702
          %v1558 = vunpack.c.h.b16 %v702
          %v1559 = vunpack.c.l.b16 %v703
          %v1560 = vunpack.c.h.b16 %v703
          %v1561 = vunpack.c.l.b16 %v704
          %v1562 = vunpack.c.h.b16 %v704
          %v1563 = vunpack.c.l.b16 %v705
          %v1564 = vunpack.c.h.b16 %v705
          %v1565 = vunpack.c.l.b16 %v706
          %v1566 = vunpack.c.h.b16 %v706
          %v1567 = vunpack.c.l.b16 %v707
          %v1568 = vunpack.c.h.b16 %v707
          %v1569 = vunpack.c.l.b16 %v708
          %v1570 = vunpack.c.h.b16 %v708
          %v1571 = vunpack.c.l.b16 %v709
          %v1572 = vunpack.c.h.b16 %v709
          %v1573 = vunpack.c.l.b16 %v710
          %v1574 = vunpack.c.h.b16 %v710
          %v1575 = vunpack.c.l.b16 %v711
          %v1576 = vunpack.c.h.b16 %v711
          %v1577 = vunpack.c.l.b16 %v712
          %v1578 = vunpack.c.h.b16 %v712
          %v1579 = vunpack.c.l.b16 %v713
          %v1580 = vunpack.c.h.b16 %v713
          %v1581 = vunpack.c.l.b16 %v714
          %v1582 = vunpack.c.h.b16 %v714
          %v1583 = vunpack.c.l.b16 %v715
          %v1584 = vunpack.c.h.b16 %v715
          %v1585 = vunpack.c.l.b16 %v716
          %v1586 = vunpack.c.h.b16 %v716
          %v1587 = vunpack.c.l.b16 %v717
          %v1588 = vunpack.c.h.b16 %v717
          %v1589 = vunpack.c.l.b16 %v718
          %v1590 = vunpack.c.h.b16 %v718
          %v1591 = vunpack.c.l.b16 %v719
          %v1592 = vunpack.c.h.b16 %v719
          %v1593 = vunpack.c.l.b16 %v720
          %v1594 = vunpack.c.h.b16 %v720
          %v1595 = vunpack.c.l.b16 %v721
          %v1596 = vunpack.c.h.b16 %v721
          %v1597 = vunpack.c.l.b16 %v722
          %v1598 = vunpack.c.h.b16 %v722
          %v1599 = vunpack.c.l.b16 %v723
          %v1600 = vunpack.c.h.b16 %v723
          %v1601 = vunpack.c.l.b16 %v724
          %v1602 = vunpack.c.h.b16 %v724
          %v1603 = vunpack.c.l.b16 %v725
          %v1604 = vunpack.c.h.b16 %v725
          %v1605 = vunpack.c.l.b16 %v726
          %v1606 = vunpack.c.h.b16 %v726
          %v1607 = vunpack.c.l.b16 %v727
          %v1608 = vunpack.c.h.b16 %v727
          %v1609 = vunpack.c.l.b16 %v728
          %v1610 = vunpack.c.h.b16 %v728
          %v1611 = vunpack.c.l.b16 %v729
          %v1612 = vunpack.c.h.b16 %v729
          %v1613 = vunpack.c.l.b16 %v730
          %v1614 = vunpack.c.h.b16 %v730
          %v1615 = vunpack.c.l.b16 %v731
          %v1616 = vunpack.c.h.b16 %v731
          %v1617 = vunpack.c.l.b16 %v732
          %v1618 = vunpack.c.h.b16 %v732
          %v1619 = vunpack.c.l.b16 %v733
          %v1620 = vunpack.c.h.b16 %v733
          %v1621 = vunpack.c.l.b16 %v734
          %v1622 = vunpack.c.h.b16 %v734
          %v1623 = vunpack.c.l.b16 %v735
          %v1624 = vunpack.c.h.b16 %v735
          %v1625 = vunpack.c.l.b16 %v736
          %v1626 = vunpack.c.h.b16 %v736
          %v1627 = vunpack.c.l.b16 %v737
          %v1628 = vunpack.c.h.b16 %v737
          %v1629 = vunpack.c.l.b16 %v738
          %v1630 = vunpack.c.h.b16 %v738
          %v1631 = vunpack.c.l.b16 %v739
          %v1632 = vunpack.c.h.b16 %v739
          %v1633 = vunpack.c.l.b16 %v740
          %v1634 = vunpack.c.h.b16 %v740
          %v1635 = vunpack.c.l.b16 %v741
          %v1636 = vunpack.c.h.b16 %v741
          %v1637 = vunpack.c.l.b16 %v742
          %v1638 = vunpack.c.h.b16 %v742
          %v1639 = vpack.c.b16 %v1069, %v1063
          %v1640 = vpack.c.b16 %v1070, %v1064
          %v1641 = vpack.c.b16 %v1071, %v1065
          %v1642 = vpack.c.b16 %v1072, %v1066
          %v1643 = vpack.c.b16 %v1073, %v1067
          %v1644 = vpack.c.b16 %v1074, %v1068
          %v1645 = vpack.c.b16 %v1081, %v1075
          %v1646 = vpack.c.b16 %v1082, %v1076
          %v1647 = vpack.c.b16 %v1083, %v1077
          %v1648 = vpack.c.b16 %v1084, %v1078
          %v1649 = vpack.c.b16 %v1085, %v1079
          %v1650 = vpack.c.b16 %v1086, %v1080
          %v1651 = vpack.c.b16 %v1093, %v1087
          %v1652 = vpack.c.b16 %v1094, %v1088
          %v1653 = vpack.c.b16 %v1095, %v1089
          %v1654 = vpack.c.b16 %v1096, %v1090
          %v1655 = vpack.c.b16 %v1097, %v1091
          %v1656 = vpack.c.b16 %v1098, %v1092
          %v1657 = vpack.c.b16 %v1105, %v1099
          %v1658 = vpack.c.b16 %v1106, %v1100
          %v1659 = vpack.c.b16 %v1107, %v1101
          %v1660 = vpack.c.b16 %v1108, %v1102
          %v1661 = vpack.c.b16 %v1109, %v1103
          %v1662 = vpack.c.b16 %v1110, %v1104
          %v1663 = vpack.c.b16 %v1117, %v1111
          %v1664 = vpack.c.b16 %v1118, %v1112
          %v1665 = vpack.c.b16 %v1119, %v1113
          %v1666 = vpack.c.b16 %v1120, %v1114
          %v1667 = vpack.c.b16 %v1121, %v1115
          %v1668 = vpack.c.b16 %v1122, %v1116
          %v1669 = vpack.c.b16 %v1129, %v1123
          %v1670 = vpack.c.b16 %v1130, %v1124
          %v1671 = vpack.c.b16 %v1131, %v1125
          %v1672 = vpack.c.b16 %v1132, %v1126
          %v1673 = vpack.c.b16 %v1133, %v1127
          %v1674 = vpack.c.b16 %v1134, %v1128
          %v1675 = vpack.c.b16 %v1141, %v1135
          %v1676 = vpack.c.b16 %v1142, %v1136
          %v1677 = vpack.c.b16 %v1143, %v1137
          %v1678 = vpack.c.b16 %v1144, %v1138
          %v1679 = vpack.c.b16 %v1145, %v1139
          %v1680 = vpack.c.b16 %v1146, %v1140
          %v1681 = vpack.c.b16 %v1153, %v1147
          %v1682 = vpack.c.b16 %v1154, %v1148
          %v1683 = vpack.c.b16 %v1155, %v1149
          %v1684 = vpack.c.b16 %v1156, %v1150
          %v1685 = vpack.c.b16 %v1157, %v1151
          %v1686 = vpack.c.b16 %v1158, %v1152
          %v1687 = vpack.c.b16 %v1165, %v1159
          %v1688 = vpack.c.b16 %v1166, %v1160
          %v1689 = vpack.c.b16 %v1167, %v1161
          %v1690 = vpack.c.b16 %v1168, %v1162
          %v1691 = vpack.c.b16 %v1169, %v1163
          %v1692 = vpack.c.b16 %v1170, %v1164
          %v1693 = vpack.c.b16 %v1177, %v1171
          %v1694 = vpack.c.b16 %v1178, %v1172
          %v1695 = vpack.c.b16 %v1179, %v1173
          %v1696 = vpack.c.b16 %v1180, %v1174
          %v1697 = vpack.c.b16 %v1181, %v1175
          %v1698 = vpack.c.b16 %v1182, %v1176
          %v1699 = vpack.c.b16 %v1189, %v1183
          %v1700 = vpack.c.b16 %v1190, %v1184
          %v1701 = vpack.c.b16 %v1191, %v1185
          %v1702 = vpack.c.b16 %v1192, %v1186
          %v1703 = vpack.c.b16 %v1193, %v1187
          %v1704 = vpack.c.b16 %v1194, %v1188
          %v1705 = vpack.c.b16 %v1201, %v1195
          %v1706 = vpack.c.b16 %v1202, %v1196
          %v1707 = vpack.c.b16 %v1203, %v1197
          %v1708 = vpack.c.b16 %v1204, %v1198
          %v1709 = vpack.c.b16 %v1205, %v1199
          %v1710 = vpack.c.b16 %v1206, %v1200
          %v1711 = vpack.c.b16 %v1213, %v1207
          %v1712 = vpack.c.b16 %v1214, %v1208
          %v1713 = vpack.c.b16 %v1215, %v1209
          %v1714 = vpack.c.b16 %v1216, %v1210
          %v1715 = vpack.c.b16 %v1217, %v1211
          %v1716 = vpack.c.b16 %v1218, %v1212
          %v1717 = vpack.c.b16 %v1225, %v1219
          %v1718 = vpack.c.b16 %v1226, %v1220
          %v1719 = vpack.c.b16 %v1227, %v1221
          %v1720 = vpack.c.b16 %v1228, %v1222
          %v1721 = vpack.c.b16 %v1229, %v1223
          %v1722 = vpack.c.b16 %v1230, %v1224
          %v1723 = vpack.c.b16 %v1237, %v1231
          %v1724 = vpack.c.b16 %v1238, %v1232
          %v1725 = vpack.c.b16 %v1239, %v1233
          %v1726 = vpack.c.b16 %v1240, %v1234
          %v1727 = vpack.c.b16 %v1241, %v1235
          %v1728 = vpack.c.b16 %v1242, %v1236
          %v1729 = vpack.c.b16 %v1249, %v1243
          %v1730 = vpack.c.b16 %v1250, %v1244
          %v1731 = vpack.c.b16 %v1251, %v1245
          %v1732 = vpack.c.b16 %v1252, %v1246
          %v1733 = vpack.c.b16 %v1253, %v1247
          %v1734 = vpack.c.b16 %v1254, %v1248
          %v1735 = vpack.c.b16 %v1261, %v1255
          %v1736 = vpack.c.b16 %v1262, %v1256
          %v1737 = vpack.c.b16 %v1263, %v1257
          %v1738 = vpack.c.b16 %v1264, %v1258
          %v1739 = vpack.c.b16 %v1265, %v1259
          %v1740 = vpack.c.b16 %v1266, %v1260
          %v1741 = vpack.c.b16 %v1273, %v1267
          %v1742 = vpack.c.b16 %v1274, %v1268
          %v1743 = vpack.c.b16 %v1275, %v1269
          %v1744 = vpack.c.b16 %v1276, %v1270
          %v1745 = vpack.c.b16 %v1277, %v1271
          %v1746 = vpack.c.b16 %v1278, %v1272
          %v1747 = vpack.c.b16 %v1285, %v1279
          %v1748 = vpack.c.b16 %v1286, %v1280
          %v1749 = vpack.c.b16 %v1287, %v1281
          %v1750 = vpack.c.b16 %v1288, %v1282
          %v1751 = vpack.c.b16 %v1289, %v1283
          %v1752 = vpack.c.b16 %v1290, %v1284
          %v1753 = vpack.c.b16 %v1297, %v1291
          %v1754 = vpack.c.b16 %v1298, %v1292
          %v1755 = vpack.c.b16 %v1299, %v1293
          %v1756 = vpack.c.b16 %v1300, %v1294
          %v1757 = vpack.c.b16 %v1301, %v1295
          %v1758 = vpack.c.b16 %v1302, %v1296
          %v1759 = vpack.c.b16 %v1309, %v1303
          %v1760 = vpack.c.b16 %v1310, %v1304
          %v1761 = vpack.c.b16 %v1311, %v1305
          %v1762 = vpack.c.b16 %v1312, %v1306
          %v1763 = vpack.c.b16 %v1313, %v1307
          %v1764 = vpack.c.b16 %v1314, %v1308
          %v1765 = vpack.c.b16 %v1321, %v1315
          %v1766 = vpack.c.b16 %v1322, %v1316
          %v1767 = vpack.c.b16 %v1323, %v1317
          %v1768 = vpack.c.b16 %v1324, %v1318
          %v1769 = vpack.c.b16 %v1325, %v1319
          %v1770 = vpack.c.b16 %v1326, %v1320
          %v1771 = vpack.c.b16 %v1333, %v1327
          %v1772 = vpack.c.b16 %v1334, %v1328
          %v1773 = vpack.c.b16 %v1335, %v1329
          %v1774 = vpack.c.b16 %v1336, %v1330
          %v1775 = vpack.c.b16 %v1337, %v1331
          %v1776 = vpack.c.b16 %v1338, %v1332
          %v1777 = vpack.c.b16 %v1345, %v1339
          %v1778 = vpack.c.b16 %v1346, %v1340
          %v1779 = vpack.c.b16 %v1347, %v1341
          %v1780 = vpack.c.b16 %v1348, %v1342
          %v1781 = vpack.c.b16 %v1349, %v1343
          %v1782 = vpack.c.b16 %v1350, %v1344
          %v1783 = vpack.c.b16 %v1357, %v1351
          %v1784 = vpack.c.b16 %v1358, %v1352
          %v1785 = vpack.c.b16 %v1359, %v1353
          %v1786 = vpack.c.b16 %v1360, %v1354
          %v1787 = vpack.c.b16 %v1361, %v1355
          %v1788 = vpack.c.b16 %v1362, %v1356
          %v1789 = vpack.c.b16 %v1369, %v1363
          %v1790 = vpack.c.b16 %v1370, %v1364
          %v1791 = vpack.c.b16 %v1371, %v1365
          %v1792 = vpack.c.b16 %v1372, %v1366
          %v1793 = vpack.c.b16 %v1373, %v1367
          %v1794 = vpack.c.b16 %v1374, %v1368
          %v1795 = vpack.c.b16 %v1381, %v1375
          %v1796 = vpack.c.b16 %v1382, %v1376
          %v1797 = vpack.c.b16 %v1383, %v1377
          %v1798 = vpack.c.b16 %v1384, %v1378
          %v1799 = vpack.c.b16 %v1385, %v1379
          %v1800 = vpack.c.b16 %v1386, %v1380
          %v1801 = vpack.c.b16 %v1393, %v1387
          %v1802 = vpack.c.b16 %v1394, %v1388
          %v1803 = vpack.c.b16 %v1395, %v1389
          %v1804 = vpack.c.b16 %v1396, %v1390
          %v1805 = vpack.c.b16 %v1397, %v1391
          %v1806 = vpack.c.b16 %v1398, %v1392
          %v1807 = vpack.c.b16 %v1405, %v1399
          %v1808 = vpack.c.b16 %v1406, %v1400
          %v1809 = vpack.c.b16 %v1407, %v1401
          %v1810 = vpack.c.b16 %v1408, %v1402
          %v1811 = vpack.c.b16 %v1409, %v1403
          %v1812 = vpack.c.b16 %v1410, %v1404
          %v1813 = vpack.c.b16 %v1417, %v1411
          %v1814 = vpack.c.b16 %v1418, %v1412
          %v1815 = vpack.c.b16 %v1419, %v1413
          %v1816 = vpack.c.b16 %v1420, %v1414
          %v1817 = vpack.c.b16 %v1421, %v1415
          %v1818 = vpack.c.b16 %v1422, %v1416
          %v1819 = vpack.c.b16 %v1429, %v1423
          %v1820 = vpack.c.b16 %v1430, %v1424
          %v1821 = vpack.c.b16 %v1431, %v1425
          %v1822 = vpack.c.b16 %v1432, %v1426
          %v1823 = vpack.c.b16 %v1433, %v1427
          %v1824 = vpack.c.b16 %v1434, %v1428
          %v1825 = vpack.c.b16 %v1441, %v1435
          %v1826 = vpack.c.b16 %v1442, %v1436
          %v1827 = vpack.c.b16 %v1443, %v1437
          %v1828 = vpack.c.b16 %v1444, %v1438
          %v1829 = vpack.c.b16 %v1445, %v1439
          %v1830 = vpack.c.b16 %v1446, %v1440
          %v1831 = vpack.c.b16 %v1453, %v1447
          %v1832 = vpack.c.b16 %v1454, %v1448
          %v1833 = vpack.c.b16 %v1455, %v1449
          %v1834 = vpack.c.b16 %v1456, %v1450
          %v1835 = vpack.c.b16 %v1457, %v1451
          %v1836 = vpack.c.b16 %v1458, %v1452
          %v1837 = vpack.c.b16 %v1465, %v1459
          %v1838 = vpack.c.b16 %v1466, %v1460
          %v1839 = vpack.c.b16 %v1467, %v1461
          %v1840 = vpack.c.b16 %v1468, %v1462
          %v1841 = vpack.c.b16 %v1469, %v1463
          %v1842 = vpack.c.b16 %v1470, %v1464
          %v1843 = vpack.c.b16 %v1477, %v1471
          %v1844 = vpack.c.b16 %v1478, %v1472
          %v1845 = vpack.c.b16 %v1479, %v1473
          %v1846 = vpack.c.b16 %v1480, %v1474
          %v1847 = vpack.c.b16 %v1481, %v1475
          %v1848 = vpack.c.b16 %v1482, %v1476
          %v1849 = vpack.c.b16 %v1489, %v1483
          %v1850 = vpack.c.b16 %v1490, %v1484
          %v1851 = vpack.c.b16 %v1491, %v1485
          %v1852 = vpack.c.b16 %v1492, %v1486
          %v1853 = vpack.c.b16 %v1493, %v1487
          %v1854 = vpack.c.b16 %v1494, %v1488
          %v1855 = vpack.c.b16 %v1501, %v1495
          %v1856 = vpack.c.b16 %v1502, %v1496
          %v1857 = vpack.c.b16 %v1503, %v1497
          %v1858 = vpack.c.b16 %v1504, %v1498
          %v1859 = vpack.c.b16 %v1505, %v1499
          %v1860 = vpack.c.b16 %v1506, %v1500
          %v1861 = vpack.c.b16 %v1513, %v1507
          %v1862 = vpack.c.b16 %v1514, %v1508
          %v1863 = vpack.c.b16 %v1515, %v1509
          %v1864 = vpack.c.b16 %v1516, %v1510
          %v1865 = vpack.c.b16 %v1517, %v1511
          %v1866 = vpack.c.b16 %v1518, %v1512
          %v1867 = vpack.c.b16 %v1525, %v1519
          %v1868 = vpack.c.b16 %v1526, %v1520
          %v1869 = vpack.c.b16 %v1527, %v1521
          %v1870 = vpack.c.b16 %v1528, %v1522
          %v1871 = vpack.c.b16 %v1529, %v1523
          %v1872 = vpack.c.b16 %v1530, %v1524
          %v1873 = vpack.c.b16 %v1537, %v1531
          %v1874 = vpack.c.b16 %v1538, %v1532
          %v1875 = vpack.c.b16 %v1539, %v1533
          %v1876 = vpack.c.b16 %v1540, %v1534
          %v1877 = vpack.c.b16 %v1541, %v1535
          %v1878 = vpack.c.b16 %v1542, %v1536
          %v1879 = vpack.c.b16 %v1549, %v1543
          %v1880 = vpack.c.b16 %v1550, %v1544
          %v1881 = vpack.c.b16 %v1551, %v1545
          %v1882 = vpack.c.b16 %v1552, %v1546
          %v1883 = vpack.c.b16 %v1553, %v1547
          %v1884 = vpack.c.b16 %v1554, %v1548
          %v1885 = vpack.c.b16 %v1561, %v1555
          %v1886 = vpack.c.b16 %v1562, %v1556
          %v1887 = vpack.c.b16 %v1563, %v1557
          %v1888 = vpack.c.b16 %v1564, %v1558
          %v1889 = vpack.c.b16 %v1565, %v1559
          %v1890 = vpack.c.b16 %v1566, %v1560
          %v1891 = vpack.c.b16 %v1573, %v1567
          %v1892 = vpack.c.b16 %v1574, %v1568
          %v1893 = vpack.c.b16 %v1575, %v1569
          %v1894 = vpack.c.b16 %v1576, %v1570
          %v1895 = vpack.c.b16 %v1577, %v1571
          %v1896 = vpack.c.b16 %v1578, %v1572
          %v1897 = vpack.c.b16 %v1585, %v1579
          %v1898 = vpack.c.b16 %v1586, %v1580
          %v1899 = vpack.c.b16 %v1587, %v1581
          %v1900 = vpack.c.b16 %v1588, %v1582
          %v1901 = vpack.c.b16 %v1589, %v1583
          %v1902 = vpack.c.b16 %v1590, %v1584
          %v1903 = vpack.c.b16 %v1597, %v1591
          %v1904 = vpack.c.b16 %v1598, %v1592
          %v1905 = vpack.c.b16 %v1599, %v1593
          %v1906 = vpack.c.b16 %v1600, %v1594
          %v1907 = vpack.c.b16 %v1601, %v1595
          %v1908 = vpack.c.b16 %v1602, %v1596
          %v1909 = vpack.c.b16 %v1609, %v1603
          %v1910 = vpack.c.b16 %v1610, %v1604
          %v1911 = vpack.c.b16 %v1611, %v1605
          %v1912 = vpack.c.b16 %v1612, %v1606
          %v1913 = vpack.c.b16 %v1613, %v1607
          %v1914 = vpack.c.b16 %v1614, %v1608
          %v1915 = vpack.c.b16 %v1621, %v1615
          %v1916 = vpack.c.b16 %v1622, %v1616
          %v1917 = vpack.c.b16 %v1623, %v1617
          %v1918 = vpack.c.b16 %v1624, %v1618
          %v1919 = vpack.c.b16 %v1625, %v1619
          %v1920 = vpack.c.b16 %v1626, %v1620
          %v1921 = vpack.c.b16 %v1633, %v1627
          %v1922 = vpack.c.b16 %v1634, %v1628
          %v1923 = vpack.c.b16 %v1635, %v1629
          %v1924 = vpack.c.b16 %v1636, %v1630
          %v1925 = vpack.c.b16 %v1637, %v1631
          %v1926 = vpack.c.b16 %v1638, %v1632
          %2215 = vmatprep.subr.bf16.mxu0 %v1640
          %2216 = vmatpush1.bf16.msra.mxu0 %v1639
          %2217 = vmatprep.subr.bf16.mxu0 %v1646
          %2218 = vmatpush1.bf16.msra.mxu0 %v1645
          %2219 = vmatprep.subr.bf16.mxu0 %v1652
          %2220 = vmatpush1.bf16.msra.mxu0 %v1651
          %2221 = vmatprep.subr.bf16.mxu0 %v1658
          %2222 = vmatpush1.bf16.msra.mxu0 %v1657
          %2223 = vmatprep.subr.bf16.mxu0 %v1664
          %2224 = vmatpush1.bf16.msra.mxu0 %v1663
          %2225 = vmatprep.subr.bf16.mxu0 %v1670
          %2226 = vmatpush1.bf16.msra.mxu0 %v1669
          %2227 = vmatprep.subr.bf16.mxu0 %v1676
          %2228 = vmatpush1.bf16.msra.mxu0 %v1675
          %2229 = vmatprep.subr.bf16.mxu0 %v1682
          %2230 = vmatpush1.bf16.msra.mxu0 %v1681
          %2231 = vmatprep.subr.bf16.mxu0 %v1688
          %2232 = vmatpush1.bf16.msra.mxu0 %v1687
          %2233 = vmatprep.subr.bf16.mxu0 %v1694
          %2234 = vmatpush1.bf16.msra.mxu0 %v1693
          %2235 = vmatprep.subr.bf16.mxu0 %v1700
          %2236 = vmatpush1.bf16.msra.mxu0 %v1699
          %2237 = vmatprep.subr.bf16.mxu0 %v1706
          %2238 = vmatpush1.bf16.msra.mxu0 %v1705
          %2239 = vmatprep.subr.bf16.mxu0 %v1712
          %2240 = vmatpush1.bf16.msra.mxu0 %v1711
          %2241 = vmatprep.subr.bf16.mxu0 %v1718
          %2242 = vmatpush1.bf16.msra.mxu0 %v1717
          %2243 = vmatprep.subr.bf16.mxu0 %v1724
          %2244 = vmatpush1.bf16.msra.mxu0 %v1723
          %2245 = vmatprep.subr.bf16.mxu0 %v1730
          %2246 = vmatpush1.bf16.msra.mxu0 %v1729
          %2247 = vmatprep.mubr.bf16.mxu0 %v450
          %2248 = vmatmul.mubr.bf16.gmra.mrb[0].mxu0 %v449
          %v2249 = vpop.f32.mrb[0].mxu0
          %v2250 = vadd.f32 %v748, %v2249
          %v2251 = vpop.f32.mrb[0].mxu0
          %v2252 = vadd.f32 %v752, %v2251
          %v2253 = vpop.f32.mrb[0].mxu0
          %v2254 = vpop.f32.mrb[0].mxu0
          %2255 = vdwg.mxu0
          %2256 = vmatprep.subr.bf16.mxu0 %v1736
          %2257 = vmatpush1.bf16.msra.mxu0 %v1735
          %2258 = vmatprep.subr.bf16.mxu0 %v1742
          %2259 = vmatpush1.bf16.msra.mxu0 %v1741
          %2260 = vmatprep.subr.bf16.mxu0 %v1748
          %2261 = vmatpush1.bf16.msra.mxu0 %v1747
          %2262 = vmatprep.subr.bf16.mxu0 %v1754
          %2263 = vmatpush1.bf16.msra.mxu0 %v1753
          %2264 = vmatprep.subr.bf16.mxu0 %v1760
          %2265 = vmatpush1.bf16.msra.mxu0 %v1759
          %2266 = vmatprep.subr.bf16.mxu0 %v1766
          %2267 = vmatpush1.bf16.msra.mxu0 %v1765
          %2268 = vmatprep.subr.bf16.mxu0 %v1772
          %2269 = vmatpush1.bf16.msra.mxu0 %v1771
          %2270 = vmatprep.subr.bf16.mxu0 %v1778
          %2271 = vmatpush1.bf16.msra.mxu0 %v1777
          %2272 = vmatprep.subr.bf16.mxu0 %v1784
          %2273 = vmatpush1.bf16.msra.mxu0 %v1783
          %2274 = vmatprep.subr.bf16.mxu0 %v1790
          %2275 = vmatpush1.bf16.msra.mxu0 %v1789
          %2276 = vmatprep.subr.bf16.mxu0 %v1796
          %2277 = vmatpush1.bf16.msra.mxu0 %v1795
          %2278 = vmatprep.subr.bf16.mxu0 %v1802
          %2279 = vmatpush1.bf16.msra.mxu0 %v1801
          %2280 = vmatprep.subr.bf16.mxu0 %v1808
          %2281 = vmatpush1.bf16.msra.mxu0 %v1807
          %2282 = vmatprep.subr.bf16.mxu0 %v1814
          %2283 = vmatpush1.bf16.msra.mxu0 %v1813
          %2284 = vmatprep.subr.bf16.mxu0 %v1820
          %2285 = vmatpush1.bf16.msra.mxu0 %v1819
          %2286 = vmatprep.subr.bf16.mxu0 %v1826
          %2287 = vmatpush1.bf16.msra.mxu0 %v1825
          %2288 = vmatprep.mubr.bf16.mxu0 %v452
          %2289 = vmatmul.mubr.bf16.gmra.mrb[0].mxu0 %v451
          %v2290 = vpop.f32.mrb[0].mxu0
          %v2291 = vadd.f32 %v2250, %v2290
          %v2292 = vpop.f32.mrb[0].mxu0
          %v2293 = vadd.f32 %v2252, %v2292
          %v2294 = vpop.f32.mrb[0].mxu0
          %v2295 = vpop.f32.mrb[0].mxu0
          %2296 = vdwg.mxu0
          %2297 = vmatprep.subr.bf16.mxu0 %v1832
          %2298 = vmatpush1.bf16.msra.mxu0 %v1831
          %2299 = vmatprep.subr.bf16.mxu0 %v1838
          %2300 = vmatpush1.bf16.msra.mxu0 %v1837
          %2301 = vmatprep.subr.bf16.mxu0 %v1844
          %2302 = vmatpush1.bf16.msra.mxu0 %v1843
          %2303 = vmatprep.subr.bf16.mxu0 %v1850
          %2304 = vmatpush1.bf16.msra.mxu0 %v1849
          %2305 = vmatprep.subr.bf16.mxu0 %v1856
          %2306 = vmatpush1.bf16.msra.mxu0 %v1855
          %2307 = vmatprep.subr.bf16.mxu0 %v1862
          %2308 = vmatpush1.bf16.msra.mxu0 %v1861
          %2309 = vmatprep.subr.bf16.mxu0 %v1868
          %2310 = vmatpush1.bf16.msra.mxu0 %v1867
          %2311 = vmatprep.subr.bf16.mxu0 %v1874
          %2312 = vmatpush1.bf16.msra.mxu0 %v1873
          %2313 = vmatprep.subr.bf16.mxu0 %v1880
          %2314 = vmatpush1.bf16.msra.mxu0 %v1879
          %2315 = vmatprep.subr.bf16.mxu0 %v1886
          %2316 = vmatpush1.bf16.msra.mxu0 %v1885
          %2317 = vmatprep.subr.bf16.mxu0 %v1892
          %2318 = vmatpush1.bf16.msra.mxu0 %v1891
          %2319 = vmatprep.subr.bf16.mxu0 %v1898
          %2320 = vmatpush1.bf16.msra.mxu0 %v1897
          %2321 = vmatprep.subr.bf16.mxu0 %v1904
          %2322 = vmatpush1.bf16.msra.mxu0 %v1903
          %2323 = vmatprep.subr.bf16.mxu0 %v1910
          %2324 = vmatpush1.bf16.msra.mxu0 %v1909
          %2325 = vmatprep.subr.bf16.mxu0 %v1916
          %2326 = vmatpush1.bf16.msra.mxu0 %v1915
          %2327 = vmatprep.subr.bf16.mxu0 %v1922
          %2328 = vmatpush1.bf16.msra.mxu0 %v1921
          %2329 = vmatprep.mubr.bf16.mxu0 %v454
          %2330 = vmatmul.mubr.bf16.gmra.mrb[0].mxu0 %v453
          %v2331 = vpop.f32.mrb[0].mxu0
          %v2332 = vadd.f32 %v2291, %v2331
          %v2333 = vpop.f32.mrb[0].mxu0
          %v2334 = vadd.f32 %v2293, %v2333
          %v2335 = vpop.f32.mrb[0].mxu0
          %v2336 = vpop.f32.mrb[0].mxu0
          %2337 = vdwg.mxu0
          %2338 = vmatprep.subr.bf16.mxu0 %v1642
          %2339 = vmatpush1.bf16.msra.mxu0 %v1641
          %2340 = vmatprep.subr.bf16.mxu0 %v1648
          %2341 = vmatpush1.bf16.msra.mxu0 %v1647
          %2342 = vmatprep.subr.bf16.mxu0 %v1654
          %2343 = vmatpush1.bf16.msra.mxu0 %v1653
          %2344 = vmatprep.subr.bf16.mxu0 %v1660
          %2345 = vmatpush1.bf16.msra.mxu0 %v1659
          %2346 = vmatprep.subr.bf16.mxu0 %v1666
          %2347 = vmatpush1.bf16.msra.mxu0 %v1665
          %2348 = vmatprep.subr.bf16.mxu0 %v1672
          %2349 = vmatpush1.bf16.msra.mxu0 %v1671
          %2350 = vmatprep.subr.bf16.mxu0 %v1678
          %2351 = vmatpush1.bf16.msra.mxu0 %v1677
          %2352 = vmatprep.subr.bf16.mxu0 %v1684
          %2353 = vmatpush1.bf16.msra.mxu0 %v1683
          %2354 = vmatprep.subr.bf16.mxu0 %v1690
          %2355 = vmatpush1.bf16.msra.mxu0 %v1689
          %2356 = vmatprep.subr.bf16.mxu0 %v1696
          %2357 = vmatpush1.bf16.msra.mxu0 %v1695
          %2358 = vmatprep.subr.bf16.mxu0 %v1702
          %2359 = vmatpush1.bf16.msra.mxu0 %v1701
          %2360 = vmatprep.subr.bf16.mxu0 %v1708
          %2361 = vmatpush1.bf16.msra.mxu0 %v1707
          %2362 = vmatprep.subr.bf16.mxu0 %v1714
          %2363 = vmatpush1.bf16.msra.mxu0 %v1713
          %2364 = vmatprep.subr.bf16.mxu0 %v1720
          %2365 = vmatpush1.bf16.msra.mxu0 %v1719
          %2366 = vmatprep.subr.bf16.mxu0 %v1726
          %2367 = vmatpush1.bf16.msra.mxu0 %v1725
          %2368 = vmatprep.subr.bf16.mxu0 %v1732
          %2369 = vmatpush1.bf16.msra.mxu0 %v1731
          %2370 = vmatprep.mubr.bf16.mxu0 %v450
          %2371 = vmatmul.mubr.bf16.gmra.mrb[0].mxu0 %v449
          %v2372 = vpop.f32.mrb[0].mxu0
          %v2373 = vadd.f32 %v756, %v2372
          %v2374 = vpop.f32.mrb[0].mxu0
          %v2375 = vadd.f32 %v760, %v2374
          %v2376 = vpop.f32.mrb[0].mxu0
          %v2377 = vpop.f32.mrb[0].mxu0
          %2378 = vdwg.mxu0
          %2379 = vmatprep.subr.bf16.mxu0 %v1738
          %2380 = vmatpush1.bf16.msra.mxu0 %v1737
          %2381 = vmatprep.subr.bf16.mxu0 %v1744
          %2382 = vmatpush1.bf16.msra.mxu0 %v1743
          %2383 = vmatprep.subr.bf16.mxu0 %v1750
          %2384 = vmatpush1.bf16.msra.mxu0 %v1749
          %2385 = vmatprep.subr.bf16.mxu0 %v1756
          %2386 = vmatpush1.bf16.msra.mxu0 %v1755
          %2387 = vmatprep.subr.bf16.mxu0 %v1762
          %2388 = vmatpush1.bf16.msra.mxu0 %v1761
          %2389 = vmatprep.subr.bf16.mxu0 %v1768
          %2390 = vmatpush1.bf16.msra.mxu0 %v1767
          %2391 = vmatprep.subr.bf16.mxu0 %v1774
          %2392 = vmatpush1.bf16.msra.mxu0 %v1773
          %2393 = vmatprep.subr.bf16.mxu0 %v1780
          %2394 = vmatpush1.bf16.msra.mxu0 %v1779
          %2395 = vmatprep.subr.bf16.mxu0 %v1786
          %2396 = vmatpush1.bf16.msra.mxu0 %v1785
          %2397 = vmatprep.subr.bf16.mxu0 %v1792
          %2398 = vmatpush1.bf16.msra.mxu0 %v1791
          %2399 = vmatprep.subr.bf16.mxu0 %v1798
          %2400 = vmatpush1.bf16.msra.mxu0 %v1797
          %2401 = vmatprep.subr.bf16.mxu0 %v1804
          %2402 = vmatpush1.bf16.msra.mxu0 %v1803
          %2403 = vmatprep.subr.bf16.mxu0 %v1810
          %2404 = vmatpush1.bf16.msra.mxu0 %v1809
          %2405 = vmatprep.subr.bf16.mxu0 %v1816
          %2406 = vmatpush1.bf16.msra.mxu0 %v1815
          %2407 = vmatprep.subr.bf16.mxu0 %v1822
          %2408 = vmatpush1.bf16.msra.mxu0 %v1821
          %2409 = vmatprep.subr.bf16.mxu0 %v1828
          %2410 = vmatpush1.bf16.msra.mxu0 %v1827
          %2411 = vmatprep.mubr.bf16.mxu0 %v452
          %2412 = vmatmul.mubr.bf16.gmra.mrb[0].mxu0 %v451
          %v2413 = vpop.f32.mrb[0].mxu0
          %v2414 = vadd.f32 %v2373, %v2413
          %v2415 = vpop.f32.mrb[0].mxu0
          %v2416 = vadd.f32 %v2375, %v2415
          %v2417 = vpop.f32.mrb[0].mxu0
          %v2418 = vpop.f32.mrb[0].mxu0
          %2419 = vdwg.mxu0
          %2420 = vmatprep.subr.bf16.mxu0 %v1834
          %2421 = vmatpush1.bf16.msra.mxu0 %v1833
          %2422 = vmatprep.subr.bf16.mxu0 %v1840
          %2423 = vmatpush1.bf16.msra.mxu0 %v1839
          %2424 = vmatprep.subr.bf16.mxu0 %v1846
          %2425 = vmatpush1.bf16.msra.mxu0 %v1845
          %2426 = vmatprep.subr.bf16.mxu0 %v1852
          %2427 = vmatpush1.bf16.msra.mxu0 %v1851
          %2428 = vmatprep.subr.bf16.mxu0 %v1858
          %2429 = vmatpush1.bf16.msra.mxu0 %v1857
          %2430 = vmatprep.subr.bf16.mxu0 %v1864
          %2431 = vmatpush1.bf16.msra.mxu0 %v1863
          %2432 = vmatprep.subr.bf16.mxu0 %v1870
          %2433 = vmatpush1.bf16.msra.mxu0 %v1869
          %2434 = vmatprep.subr.bf16.mxu0 %v1876
          %2435 = vmatpush1.bf16.msra.mxu0 %v1875
          %2436 = vmatprep.subr.bf16.mxu0 %v1882
          %2437 = vmatpush1.bf16.msra.mxu0 %v1881
          %2438 = vmatprep.subr.bf16.mxu0 %v1888
          %2439 = vmatpush1.bf16.msra.mxu0 %v1887
          %2440 = vmatprep.subr.bf16.mxu0 %v1894
          %2441 = vmatpush1.bf16.msra.mxu0 %v1893
          %2442 = vmatprep.subr.bf16.mxu0 %v1900
          %2443 = vmatpush1.bf16.msra.mxu0 %v1899
          %2444 = vmatprep.subr.bf16.mxu0 %v1906
          %2445 = vmatpush1.bf16.msra.mxu0 %v1905
          %2446 = vmatprep.subr.bf16.mxu0 %v1912
          %2447 = vmatpush1.bf16.msra.mxu0 %v1911
          %2448 = vmatprep.subr.bf16.mxu0 %v1918
          %2449 = vmatpush1.bf16.msra.mxu0 %v1917
          %2450 = vmatprep.subr.bf16.mxu0 %v1924
          %2451 = vmatpush1.bf16.msra.mxu0 %v1923
          %2452 = vmatprep.mubr.bf16.mxu0 %v454
          %2453 = vmatmul.mubr.bf16.gmra.mrb[0].mxu0 %v453
          %v2454 = vpop.f32.mrb[0].mxu0
          %v2455 = vadd.f32 %v2414, %v2454
          %v2456 = vpop.f32.mrb[0].mxu0
          %v2457 = vadd.f32 %v2416, %v2456
          %v2458 = vpop.f32.mrb[0].mxu0
          %v2459 = vpop.f32.mrb[0].mxu0
          %2460 = vdwg.mxu0
          %2461 = vmatprep.subr.bf16.mxu0 %v1644
          %2462 = vmatpush1.bf16.msra.mxu0 %v1643
          %2463 = vmatprep.subr.bf16.mxu0 %v1650
          %2464 = vmatpush1.bf16.msra.mxu0 %v1649
          %2465 = vmatprep.subr.bf16.mxu0 %v1656
          %2466 = vmatpush1.bf16.msra.mxu0 %v1655
          %2467 = vmatprep.subr.bf16.mxu0 %v1662
          %2468 = vmatpush1.bf16.msra.mxu0 %v1661
          %2469 = vmatprep.subr.bf16.mxu0 %v1668
          %2470 = vmatpush1.bf16.msra.mxu0 %v1667
          %2471 = vmatprep.subr.bf16.mxu0 %v1674
          %2472 = vmatpush1.bf16.msra.mxu0 %v1673
          %2473 = vmatprep.subr.bf16.mxu0 %v1680
          %2474 = vmatpush1.bf16.msra.mxu0 %v1679
          %2475 = vmatprep.subr.bf16.mxu0 %v1686
          %2476 = vmatpush1.bf16.msra.mxu0 %v1685
          %2477 = vmatprep.subr.bf16.mxu0 %v1692
          %2478 = vmatpush1.bf16.msra.mxu0 %v1691
          %2479 = vmatprep.subr.bf16.mxu0 %v1698
          %2480 = vmatpush1.bf16.msra.mxu0 %v1697
          %2481 = vmatprep.subr.bf16.mxu0 %v1704
          %2482 = vmatpush1.bf16.msra.mxu0 %v1703
          %2483 = vmatprep.subr.bf16.mxu0 %v1710
          %2484 = vmatpush1.bf16.msra.mxu0 %v1709
          %2485 = vmatprep.subr.bf16.mxu0 %v1716
          %2486 = vmatpush1.bf16.msra.mxu0 %v1715
          %2487 = vmatprep.subr.bf16.mxu0 %v1722
          %2488 = vmatpush1.bf16.msra.mxu0 %v1721
          %2489 = vmatprep.subr.bf16.mxu0 %v1728
          %2490 = vmatpush1.bf16.msra.mxu0 %v1727
          %2491 = vmatprep.subr.bf16.mxu0 %v1734
          %2492 = vmatpush1.bf16.msra.mxu0 %v1733
          %2493 = vmatprep.mubr.bf16.mxu0 %v450
          %2494 = vmatmul.mubr.bf16.gmra.mrb[0].mxu0 %v449
          %v2495 = vpop.f32.mrb[0].mxu0
          %v2496 = vadd.f32 %v764, %v2495
          %v2497 = vpop.f32.mrb[0].mxu0
          %v2498 = vadd.f32 %v768, %v2497
          %v2499 = vpop.f32.mrb[0].mxu0
          %v2500 = vpop.f32.mrb[0].mxu0
          %2501 = vdwg.mxu0
          %2502 = vmatprep.subr.bf16.mxu0 %v1740
          %2503 = vmatpush1.bf16.msra.mxu0 %v1739
          %2504 = vmatprep.subr.bf16.mxu0 %v1746
          %2505 = vmatpush1.bf16.msra.mxu0 %v1745
          %2506 = vmatprep.subr.bf16.mxu0 %v1752
          %2507 = vmatpush1.bf16.msra.mxu0 %v1751
          %2508 = vmatprep.subr.bf16.mxu0 %v1758
          %2509 = vmatpush1.bf16.msra.mxu0 %v1757
          %2510 = vmatprep.subr.bf16.mxu0 %v1764
          %2511 = vmatpush1.bf16.msra.mxu0 %v1763
          %2512 = vmatprep.subr.bf16.mxu0 %v1770
          %2513 = vmatpush1.bf16.msra.mxu0 %v1769
          %2514 = vmatprep.subr.bf16.mxu0 %v1776
          %2515 = vmatpush1.bf16.msra.mxu0 %v1775
          %2516 = vmatprep.subr.bf16.mxu0 %v1782
          %2517 = vmatpush1.bf16.msra.mxu0 %v1781
          %2518 = vmatprep.subr.bf16.mxu0 %v1788
          %2519 = vmatpush1.bf16.msra.mxu0 %v1787
          %2520 = vmatprep.subr.bf16.mxu0 %v1794
          %2521 = vmatpush1.bf16.msra.mxu0 %v1793
          %2522 = vmatprep.subr.bf16.mxu0 %v1800
          %2523 = vmatpush1.bf16.msra.mxu0 %v1799
          %2524 = vmatprep.subr.bf16.mxu0 %v1806
          %2525 = vmatpush1.bf16.msra.mxu0 %v1805
          %2526 = vmatprep.subr.bf16.mxu0 %v1812
          %2527 = vmatpush1.bf16.msra.mxu0 %v1811
          %2528 = vmatprep.subr.bf16.mxu0 %v1818
          %2529 = vmatpush1.bf16.msra.mxu0 %v1817
          %2530 = vmatprep.subr.bf16.mxu0 %v1824
          %2531 = vmatpush1.bf16.msra.mxu0 %v1823
          %2532 = vmatprep.subr.bf16.mxu0 %v1830
          %2533 = vmatpush1.bf16.msra.mxu0 %v1829
          %2534 = vmatprep.mubr.bf16.mxu0 %v452
          %2535 = vmatmul.mubr.bf16.gmra.mrb[0].mxu0 %v451
          %v2536 = vpop.f32.mrb[0].mxu0
          %v2537 = vadd.f32 %v2496, %v2536
          %v2538 = vpop.f32.mrb[0].mxu0
          %v2539 = vadd.f32 %v2498, %v2538
          %v2540 = vpop.f32.mrb[0].mxu0
          %v2541 = vpop.f32.mrb[0].mxu0
          %2542 = vdwg.mxu0
          %2543 = vmatprep.subr.bf16.mxu0 %v1836
          %2544 = vmatpush1.bf16.msra.mxu0 %v1835
          %2545 = vmatprep.subr.bf16.mxu0 %v1842
          %2546 = vmatpush1.bf16.msra.mxu0 %v1841
          %2547 = vmatprep.subr.bf16.mxu0 %v1848
          %2548 = vmatpush1.bf16.msra.mxu0 %v1847
          %2549 = vmatprep.subr.bf16.mxu0 %v1854
          %2550 = vmatpush1.bf16.msra.mxu0 %v1853
          %2551 = vmatprep.subr.bf16.mxu0 %v1860
          %2552 = vmatpush1.bf16.msra.mxu0 %v1859
          %2553 = vmatprep.subr.bf16.mxu0 %v1866
          %2554 = vmatpush1.bf16.msra.mxu0 %v1865
          %2555 = vmatprep.subr.bf16.mxu0 %v1872
          %2556 = vmatpush1.bf16.msra.mxu0 %v1871
          %2557 = vmatprep.subr.bf16.mxu0 %v1878
          %2558 = vmatpush1.bf16.msra.mxu0 %v1877
          %2559 = vmatprep.subr.bf16.mxu0 %v1884
          %2560 = vmatpush1.bf16.msra.mxu0 %v1883
          %2561 = vmatprep.subr.bf16.mxu0 %v1890
          %2562 = vmatpush1.bf16.msra.mxu0 %v1889
          %2563 = vmatprep.subr.bf16.mxu0 %v1896
          %2564 = vmatpush1.bf16.msra.mxu0 %v1895
          %2565 = vmatprep.subr.bf16.mxu0 %v1902
          %2566 = vmatpush1.bf16.msra.mxu0 %v1901
          %2567 = vmatprep.subr.bf16.mxu0 %v1908
          %2568 = vmatpush1.bf16.msra.mxu0 %v1907
          %2569 = vmatprep.subr.bf16.mxu0 %v1914
          %2570 = vmatpush1.bf16.msra.mxu0 %v1913
          %2571 = vmatprep.subr.bf16.mxu0 %v1920
          %2572 = vmatpush1.bf16.msra.mxu0 %v1919
          %2573 = vmatprep.subr.bf16.mxu0 %v1926
          %2574 = vmatpush1.bf16.msra.mxu0 %v1925
          %2575 = vmatprep.mubr.bf16.mxu0 %v454
          %2576 = vmatmul.mubr.bf16.gmra.mrb[0].mxu0 %v453
          %v2577 = vpop.f32.mrb[0].mxu0
          %v2578 = vadd.f32 %v2537, %v2577
          %v2579 = vpop.f32.mrb[0].mxu0
          %v2580 = vadd.f32 %v2539, %v2579
          %v2581 = vpop.f32.mrb[0].mxu0
          %v2582 = vpop.f32.mrb[0].mxu0
          %2583 = vdwg.mxu0
          %v2584 = vadd.f32 %v2332, %v2334
          %v2585 = vadd.f32 %v2584, %v2455
          %v2586 = vadd.f32 %v2585, %v2457
          %v2587 = vadd.f32 %v2586, %v2578
          %v2588 = vadd.f32 %v2587, %v2580
          %2589 = vadd.xlane.f32.xlu0 %v2588
          %v2590 = vpop.xlane.xlu0 %2589
          %v2591 = vrcp.pop 768.0
          %v2592 = vmul.f32 %v2590, %v2591
          %v2593 = vsub.f32 %v2332, %v2592
          %v2594 = vsub.f32 %v2334, %v2592
          %v2595 = vsub.f32 %v2455, %v2592
          %v2596 = vsub.f32 %v2457, %v2592
          %v2597 = vsub.f32 %v2578, %v2592
          %v2598 = vsub.f32 %v2580, %v2592
          %v2599 = vmul.f32 %v2593, %v2593
          %v2600 = vmul.f32 %v2594, %v2594
          %v2601 = vmul.f32 %v2595, %v2595
          %v2602 = vmul.f32 %v2596, %v2596
          %v2603 = vmul.f32 %v2597, %v2597
          %v2604 = vmul.f32 %v2598, %v2598
          %v2605 = vadd.f32 %v2599, %v2600
          %v2606 = vadd.f32 %v2605, %v2601
          %v2607 = vadd.f32 %v2606, %v2602
          %v2608 = vadd.f32 %v2607, %v2603
          %v2609 = vadd.f32 %v2608, %v2604
          %2610 = vadd.xlane.f32.xlu0 %v2609
          %v2611 = vpop.xlane.xlu0 %2610
          %v2612 = vmul.f32 %v2611, %v2591
          %v2613 = vadd.f32 %v2612, 1e-13
          %v2614 = vrsqrt.pop %v2613
          %v2615 = vmul.f32 %v2593, %v2614
          %v2616 = vmul.f32 %v2594, %v2614
          %v2617 = vmul.f32 %v2595, %v2614
          %v2618 = vmul.f32 %v2596, %v2614
          %v2619 = vmul.f32 %v2597, %v2614
          %v2620 = vmul.f32 %v2598, %v2614
          %v2621 = vld [vmem:[#allocation9] sm:$0x3f]
          %v2623 = vlaneseq
          %v2624 = vshrl.u32 %v2623, 7
          %v2625 = vsub.s32 0, %v2624
          %v2626 = vrot.slane %v2621, %v2625
          %v2627 = vlaneseq
          %v2628 = vshrl.u32 %v2627, 7
          %v2629 = vsub.s32 1, %v2628
          %v2630 = vrot.slane %v2621, %v2629
          %v2631 = vlaneseq
          %v2632 = vshrl.u32 %v2631, 7
          %v2633 = vsub.s32 2, %v2632
          %v2634 = vrot.slane %v2621, %v2633
          %v2635 = vlaneseq
          %v2636 = vshrl.u32 %v2635, 7
          %v2637 = vsub.s32 3, %v2636
          %v2638 = vrot.slane %v2621, %v2637
          %v2639 = vlaneseq
          %v2640 = vshrl.u32 %v2639, 7
          %v2641 = vsub.s32 4, %v2640
          %v2642 = vrot.slane %v2621, %v2641
          %v2643 = vlaneseq
          %v2644 = vshrl.u32 %v2643, 7
          %v2645 = vsub.s32 5, %v2644
          %v2646 = vrot.slane %v2621, %v2645
          %v2653 = vmul.f32 %v2615, %v2626
          %v2654 = vmul.f32 %v2616, %v2630
          %v2655 = vmul.f32 %v2617, %v2634
          %v2656 = vmul.f32 %v2618, %v2638
          %v2657 = vmul.f32 %v2619, %v2642
          %v2658 = vmul.f32 %v2620, %v2646
          %v2659 = vld [vmem:[#allocation11] sm:$0x3f]
          %v2661 = vlaneseq
          %v2662 = vshrl.u32 %v2661, 7
          %v2663 = vsub.s32 0, %v2662
          %v2664 = vrot.slane %v2659, %v2663
          %v2665 = vlaneseq
          %v2666 = vshrl.u32 %v2665, 7
          %v2667 = vsub.s32 1, %v2666
          %v2668 = vrot.slane %v2659, %v2667
          %v2669 = vlaneseq
          %v2670 = vshrl.u32 %v2669, 7
          %v2671 = vsub.s32 2, %v2670
          %v2672 = vrot.slane %v2659, %v2671
          %v2673 = vlaneseq
          %v2674 = vshrl.u32 %v2673, 7
          %v2675 = vsub.s32 3, %v2674
          %v2676 = vrot.slane %v2659, %v2675
          %v2677 = vlaneseq
          %v2678 = vshrl.u32 %v2677, 7
          %v2679 = vsub.s32 4, %v2678
          %v2680 = vrot.slane %v2659, %v2679
          %v2681 = vlaneseq
          %v2682 = vshrl.u32 %v2681, 7
          %v2683 = vsub.s32 5, %v2682
          %v2684 = vrot.slane %v2659, %v2683
          %v2691 = vadd.f32 %v2653, %v2664
          %v2692 = vadd.f32 %v2654, %v2668
          %v2693 = vadd.f32 %v2655, %v2672
          %v2694 = vadd.f32 %v2656, %v2676
          %v2695 = vadd.f32 %v2657, %v2680
          %v2696 = vadd.f32 %v2658, %v2684
          %v2697 = vpack.c.bf16 %v2691, %v2691
          %v2698 = vpack.c.bf16 %v2692, %v2692
          %v2699 = vpack.c.bf16 %v2693, %v2693
          %v2700 = vpack.c.bf16 %v2694, %v2694
          %v2701 = vpack.c.bf16 %v2695, %v2695
          %v2702 = vpack.c.bf16 %v2696, %v2696
          %v2709 = vunpack.c.l.b16 %v2697
          %v2710 = vunpack.c.l.b16 %v2698
          %v2711 = vunpack.c.l.b16 %v2699
          %v2712 = vunpack.c.l.b16 %v2700
          %v2713 = vunpack.c.l.b16 %v2701
          %v2714 = vunpack.c.l.b16 %v2702
          %v2715 = vpack.c.b16 %v2710, %v2709
          %v2716 = vpack.c.b16 %v2712, %v2711
          %v2717 = vpack.c.b16 %v2714, %v2713
          %2721 = vst [vmem:[#allocation2] sm:$0xff] %v2715
          %2722 = vst [vmem:[#allocation2 + $0x8] sm:$0xff] %v2716
          %2723 = vst [vmem:[#allocation2 + $0x10] sm:$0xff] %v2717
        $region80: #{tpu_custom_call.1} parent=47 // pred_fallthru
          _
        %v2724 = vld [vmem:[#allocation2] sm:$0xff]
        %v2725 = vld [vmem:[#allocation2 + $0x8] sm:$0xff]
        %v2726 = vld [vmem:[#allocation2 + $0x10] sm:$0xff]
        %v2727 = vld [vmem:[%s386] sm:$0xff]
        %v2728 = vld [vmem:[%s386 + $0x8] sm:$0xff]
        %v2729 = vld [vmem:[%s386 + $0x10] sm:$0xff]
        %v2730 = vld [vmem:[%s386 + $0x18] sm:$0xff]
        %v2731 = vld [vmem:[%s386 + $0x20] sm:$0xff]
        %v2732 = vld [vmem:[%s386 + $0x28] sm:$0xff]
        %v2733 = vld [vmem:[%s386 + $0x30] sm:$0xff]
        %v2734 = vld [vmem:[%s386 + $0x38] sm:$0xff]
        %v2735 = vld [vmem:[%s386 + $0x40] sm:$0xff]
        %v2736 = vld [vmem:[%s386 + $0x48] sm:$0xff]
        %v2737 = vld [vmem:[%s386 + $0x50] sm:$0xff]
        %v2738 = vld [vmem:[%s386 + $0x58] sm:$0xff]
        %v2739 = vld [vmem:[%s386 + $0x60] sm:$0xff]
        %v2740 = vld [vmem:[%s386 + $0x68] sm:$0xff]
        %v2741 = vld [vmem:[%s386 + $0x70] sm:$0xff]
        %v2742 = vld [vmem:[%s386 + $0x78] sm:$0xff]
        %v2743 = vld [vmem:[%s386 + $0x80] sm:$0xff]
        %v2744 = vld [vmem:[%s386 + $0x88] sm:$0xff]
        %v2745 = vld [vmem:[%s386 + $0x90] sm:$0xff]
        %v2746 = vld [vmem:[%s386 + $0x98] sm:$0xff]
        %v2747 = vld [vmem:[%s386 + $0xa0] sm:$0xff]
        %v2748 = vld [vmem:[%s386 + $0xa8] sm:$0xff]
        %v2749 = vld [vmem:[%s386 + $0xb0] sm:$0xff]
        %v2750 = vld [vmem:[%s386 + $0xb8] sm:$0xff]
        %v2751 = vld [vmem:[%s386 + $0xc0] sm:$0xff]
        %v2752 = vld [vmem:[%s386 + $0xc8] sm:$0xff]
        %v2753 = vld [vmem:[%s386 + $0xd0] sm:$0xff]
        %v2754 = vld [vmem:[%s386 + $0xd8] sm:$0xff]
        %v2755 = vld [vmem:[%s386 + $0xe0] sm:$0xff]
        %v2756 = vld [vmem:[%s386 + $0xe8] sm:$0xff]
        %v2757 = vld [vmem:[%s386 + $0xf0] sm:$0xff]
        %v2758 = vld [vmem:[%s386 + $0xf8] sm:$0xff]
        %v2759 = vld [vmem:[%s386 + $0x100] sm:$0xff]
        %v2760 = vld [vmem:[%s386 + $0x108] sm:$0xff]
        %v2761 = vld [vmem:[%s386 + $0x110] sm:$0xff]
        %v2762 = vld [vmem:[%s386 + $0x118] sm:$0xff]
        %v2763 = vld [vmem:[%s386 + $0x120] sm:$0xff]
        %v2764 = vld [vmem:[%s386 + $0x128] sm:$0xff]
        %v2765 = vld [vmem:[%s386 + $0x130] sm:$0xff]
        %v2766 = vld [vmem:[%s386 + $0x138] sm:$0xff]
        %v2767 = vld [vmem:[%s386 + $0x140] sm:$0xff]
        %v2768 = vld [vmem:[%s386 + $0x148] sm:$0xff]
        %v2769 = vld [vmem:[%s386 + $0x150] sm:$0xff]
        %v2770 = vld [vmem:[%s386 + $0x158] sm:$0xff]
        %v2771 = vld [vmem:[%s386 + $0x160] sm:$0xff]
        %v2772 = vld [vmem:[%s386 + $0x168] sm:$0xff]
        %v2773 = vld [vmem:[%s386 + $0x170] sm:$0xff]
        %v2774 = vld [vmem:[%s386 + $0x178] sm:$0xff]
        %v2775 = vld [vmem:[%s386 + $0x180] sm:$0xff]
        %v2776 = vld [vmem:[%s386 + $0x188] sm:$0xff]
        %v2777 = vld [vmem:[%s386 + $0x190] sm:$0xff]
        %v2778 = vld [vmem:[%s386 + $0x198] sm:$0xff]
        %v2779 = vld [vmem:[%s386 + $0x1a0] sm:$0xff]
        %v2780 = vld [vmem:[%s386 + $0x1a8] sm:$0xff]
        %v2781 = vld [vmem:[%s386 + $0x1b0] sm:$0xff]
        %v2782 = vld [vmem:[%s386 + $0x1b8] sm:$0xff]
        %v2783 = vld [vmem:[%s386 + $0x1c0] sm:$0xff]
        %v2784 = vld [vmem:[%s386 + $0x1c8] sm:$0xff]
        %v2785 = vld [vmem:[%s386 + $0x1d0] sm:$0xff]
        %v2786 = vld [vmem:[%s386 + $0x1d8] sm:$0xff]
        %v2787 = vld [vmem:[%s386 + $0x1e0] sm:$0xff]
        %v2788 = vld [vmem:[%s386 + $0x1e8] sm:$0xff]
        %v2789 = vld [vmem:[%s386 + $0x1f0] sm:$0xff]
        %v2790 = vld [vmem:[%s386 + $0x1f8] sm:$0xff]
        %v2791 = vld [vmem:[%s386 + $0x200] sm:$0xff]
        %v2792 = vld [vmem:[%s386 + $0x208] sm:$0xff]
        %v2793 = vld [vmem:[%s386 + $0x210] sm:$0xff]
        %v2794 = vld [vmem:[%s386 + $0x218] sm:$0xff]
        %v2795 = vld [vmem:[%s386 + $0x220] sm:$0xff]
        %v2796 = vld [vmem:[%s386 + $0x228] sm:$0xff]
        %v2797 = vld [vmem:[%s386 + $0x230] sm:$0xff]
        %v2798 = vld [vmem:[%s386 + $0x238] sm:$0xff]
        %v2799 = vld [vmem:[%s386 + $0x240] sm:$0xff]
        %v2800 = vld [vmem:[%s386 + $0x248] sm:$0xff]
        %v2801 = vld [vmem:[%s386 + $0x250] sm:$0xff]
        %v2802 = vld [vmem:[%s386 + $0x258] sm:$0xff]
        %v2803 = vld [vmem:[%s386 + $0x260] sm:$0xff]
        %v2804 = vld [vmem:[%s386 + $0x268] sm:$0xff]
        %v2805 = vld [vmem:[%s386 + $0x270] sm:$0xff]
        %v2806 = vld [vmem:[%s386 + $0x278] sm:$0xff]
        %v2807 = vld [vmem:[%s386 + $0x280] sm:$0xff]
        %v2808 = vld [vmem:[%s386 + $0x288] sm:$0xff]
        %v2809 = vld [vmem:[%s386 + $0x290] sm:$0xff]
        %v2810 = vld [vmem:[%s386 + $0x298] sm:$0xff]
        %v2811 = vld [vmem:[%s386 + $0x2a0] sm:$0xff]
        %v2812 = vld [vmem:[%s386 + $0x2a8] sm:$0xff]
        %v2813 = vld [vmem:[%s386 + $0x2b0] sm:$0xff]
        %v2814 = vld [vmem:[%s386 + $0x2b8] sm:$0xff]
        %v2815 = vld [vmem:[%s386 + $0x2c0] sm:$0xff]
        %v2816 = vld [vmem:[%s386 + $0x2c8] sm:$0xff]
        %v2817 = vld [vmem:[%s386 + $0x2d0] sm:$0xff]
        %v2818 = vld [vmem:[%s386 + $0x2d8] sm:$0xff]
        %v2819 = vld [vmem:[%s386 + $0x2e0] sm:$0xff]
        %v2820 = vld [vmem:[%s386 + $0x2e8] sm:$0xff]
        %v2821 = vld [vmem:[%s386 + $0x2f0] sm:$0xff]
        %v2822 = vld [vmem:[%s386 + $0x2f8] sm:$0xff]
        %v2823 = vld [vmem:[%s386 + $0x300] sm:$0xff]
        %v2824 = vld [vmem:[%s386 + $0x308] sm:$0xff]
        %v2825 = vld [vmem:[%s386 + $0x310] sm:$0xff]
        %v2826 = vld [vmem:[%s386 + $0x318] sm:$0xff]
        %v2827 = vld [vmem:[%s386 + $0x320] sm:$0xff]
        %v2828 = vld [vmem:[%s386 + $0x328] sm:$0xff]
        %v2829 = vld [vmem:[%s386 + $0x330] sm:$0xff]
        %v2830 = vld [vmem:[%s386 + $0x338] sm:$0xff]
        %v2831 = vld [vmem:[%s386 + $0x340] sm:$0xff]
        %v2832 = vld [vmem:[%s386 + $0x348] sm:$0xff]
        %v2833 = vld [vmem:[%s386 + $0x350] sm:$0xff]
        %v2834 = vld [vmem:[%s386 + $0x358] sm:$0xff]
        %v2835 = vld [vmem:[%s386 + $0x360] sm:$0xff]
        %v2836 = vld [vmem:[%s386 + $0x368] sm:$0xff]
        %v2837 = vld [vmem:[%s386 + $0x370] sm:$0xff]
        %v2838 = vld [vmem:[%s386 + $0x378] sm:$0xff]
        %v2839 = vld [vmem:[%s386 + $0x380] sm:$0xff]
        %v2840 = vld [vmem:[%s386 + $0x388] sm:$0xff]
        %v2841 = vld [vmem:[%s386 + $0x390] sm:$0xff]
        %v2842 = vld [vmem:[%s386 + $0x398] sm:$0xff]
        %v2843 = vld [vmem:[%s386 + $0x3a0] sm:$0xff]
        %v2844 = vld [vmem:[%s386 + $0x3a8] sm:$0xff]
        %v2845 = vld [vmem:[%s386 + $0x3b0] sm:$0xff]
        %v2846 = vld [vmem:[%s386 + $0x3b8] sm:$0xff]
        %v2847 = vld [vmem:[%s386 + $0x3c0] sm:$0xff]
        %v2848 = vld [vmem:[%s386 + $0x3c8] sm:$0xff]
        %v2849 = vld [vmem:[%s386 + $0x3d0] sm:$0xff]
        %v2850 = vld [vmem:[%s386 + $0x3d8] sm:$0xff]
        %v2851 = vld [vmem:[%s386 + $0x3e0] sm:$0xff]
        %v2852 = vld [vmem:[%s386 + $0x3e8] sm:$0xff]
        %v2853 = vld [vmem:[%s386 + $0x3f0] sm:$0xff]
        %v2854 = vld [vmem:[%s386 + $0x3f8] sm:$0xff]
        %v2855 = vld [vmem:[%s386 + $0x400] sm:$0xff]
        %v2856 = vld [vmem:[%s386 + $0x408] sm:$0xff]
        %v2857 = vld [vmem:[%s386 + $0x410] sm:$0xff]
        %v2858 = vld [vmem:[%s386 + $0x418] sm:$0xff]
        %v2859 = vld [vmem:[%s386 + $0x420] sm:$0xff]
        %v2860 = vld [vmem:[%s386 + $0x428] sm:$0xff]
        %v2861 = vld [vmem:[%s386 + $0x430] sm:$0xff]
        %v2862 = vld [vmem:[%s386 + $0x438] sm:$0xff]
        %v2863 = vld [vmem:[%s386 + $0x440] sm:$0xff]
        %v2864 = vld [vmem:[%s386 + $0x448] sm:$0xff]
        %v2865 = vld [vmem:[%s386 + $0x450] sm:$0xff]
        %v2866 = vld [vmem:[%s386 + $0x458] sm:$0xff]
        %v2867 = vld [vmem:[%s386 + $0x460] sm:$0xff]
        %v2868 = vld [vmem:[%s386 + $0x468] sm:$0xff]
        %v2869 = vld [vmem:[%s386 + $0x470] sm:$0xff]
        %v2870 = vld [vmem:[%s386 + $0x478] sm:$0xff]
        %v2871 = vld [vmem:[%s386 + $0x480] sm:$0xff]
        %v2872 = vld [vmem:[%s386 + $0x488] sm:$0xff]
        %v2873 = vld [vmem:[%s386 + $0x490] sm:$0xff]
        %v2874 = vld [vmem:[%s386 + $0x498] sm:$0xff]
        %v2875 = vld [vmem:[%s386 + $0x4a0] sm:$0xff]
        %v2876 = vld [vmem:[%s386 + $0x4a8] sm:$0xff]
        %v2877 = vld [vmem:[%s386 + $0x4b0] sm:$0xff]
        %v2878 = vld [vmem:[%s386 + $0x4b8] sm:$0xff]
        %v2879 = vld [vmem:[%s386 + $0x4c0] sm:$0xff]
        %v2880 = vld [vmem:[%s386 + $0x4c8] sm:$0xff]
        %v2881 = vld [vmem:[%s386 + $0x4d0] sm:$0xff]
        %v2882 = vld [vmem:[%s386 + $0x4d8] sm:$0xff]
        %v2883 = vld [vmem:[%s386 + $0x4e0] sm:$0xff]
        %v2884 = vld [vmem:[%s386 + $0x4e8] sm:$0xff]
        %v2885 = vld [vmem:[%s386 + $0x4f0] sm:$0xff]
        %v2886 = vld [vmem:[%s386 + $0x4f8] sm:$0xff]
        %v2887 = vld [vmem:[%s386 + $0x500] sm:$0xff]
        %v2888 = vld [vmem:[%s386 + $0x508] sm:$0xff]
        %v2889 = vld [vmem:[%s386 + $0x510] sm:$0xff]
        %v2890 = vld [vmem:[%s386 + $0x518] sm:$0xff]
        %v2891 = vld [vmem:[%s386 + $0x520] sm:$0xff]
        %v2892 = vld [vmem:[%s386 + $0x528] sm:$0xff]
        %v2893 = vld [vmem:[%s386 + $0x530] sm:$0xff]
        %v2894 = vld [vmem:[%s386 + $0x538] sm:$0xff]
        %v2895 = vld [vmem:[%s386 + $0x540] sm:$0xff]
        %v2896 = vld [vmem:[%s386 + $0x548] sm:$0xff]
        %v2897 = vld [vmem:[%s386 + $0x550] sm:$0xff]
        %v2898 = vld [vmem:[%s386 + $0x558] sm:$0xff]
        %v2899 = vld [vmem:[%s386 + $0x560] sm:$0xff]
        %v2900 = vld [vmem:[%s386 + $0x568] sm:$0xff]
        %v2901 = vld [vmem:[%s386 + $0x570] sm:$0xff]
        %v2902 = vld [vmem:[%s386 + $0x578] sm:$0xff]
        %v2903 = vld [vmem:[%s386 + $0x580] sm:$0xff]
        %v2904 = vld [vmem:[%s386 + $0x588] sm:$0xff]
        %v2905 = vld [vmem:[%s386 + $0x590] sm:$0xff]
        %v2906 = vld [vmem:[%s386 + $0x598] sm:$0xff]
        %v2907 = vld [vmem:[%s386 + $0x5a0] sm:$0xff]
        %v2908 = vld [vmem:[%s386 + $0x5a8] sm:$0xff]
        %v2909 = vld [vmem:[%s386 + $0x5b0] sm:$0xff]
        %v2910 = vld [vmem:[%s386 + $0x5b8] sm:$0xff]
        %v2911 = vld [vmem:[%s386 + $0x5c0] sm:$0xff]
        %v2912 = vld [vmem:[%s386 + $0x5c8] sm:$0xff]
        %v2913 = vld [vmem:[%s386 + $0x5d0] sm:$0xff]
        %v2914 = vld [vmem:[%s386 + $0x5d8] sm:$0xff]
        %v2915 = vld [vmem:[%s386 + $0x5e0] sm:$0xff]
        %v2916 = vld [vmem:[%s386 + $0x5e8] sm:$0xff]
        %v2917 = vld [vmem:[%s386 + $0x5f0] sm:$0xff]
        %v2918 = vld [vmem:[%s386 + $0x5f8] sm:$0xff]
        %v2919 = vld [vmem:[%s395] sm:$0xf]
        %v2921 = vlaneseq
        %v2922 = vshrl.u32 %v2921, 7
        %v2923 = vsub.s32 0, %v2922
        %v2924 = vrot.slane %v2919, %v2923
        %v2925 = vlaneseq
        %v2926 = vshrl.u32 %v2925, 7
        %v2927 = vsub.s32 1, %v2926
        %v2928 = vrot.slane %v2919, %v2927
        %v2929 = vlaneseq
        %v2930 = vshrl.u32 %v2929, 7
        %v2931 = vsub.s32 2, %v2930
        %v2932 = vrot.slane %v2919, %v2931
        %v2933 = vlaneseq
        %v2934 = vshrl.u32 %v2933, 7
        %v2935 = vsub.s32 3, %v2934
        %v2936 = vrot.slane %v2919, %v2935
        %v2944 = vunpack.c.l.b16 %v2724
        %v2945 = vunpack.c.h.b16 %v2724
        %v2946 = vunpack.c.l.b16 %v2725
        %v2947 = vunpack.c.h.b16 %v2725
        %v2948 = vunpack.c.l.b16 %v2726
        %v2949 = vunpack.c.h.b16 %v2726
        %v2950 = vpack.c.b16 %v2944, %v2944
        %v2951 = vpack.c.b16 %v2945, %v2945
        %v2952 = vpack.c.b16 %v2946, %v2946
        %v2953 = vpack.c.b16 %v2947, %v2947
        %v2954 = vpack.c.b16 %v2948, %v2948
        %v2955 = vpack.c.b16 %v2949, %v2949
        %v3154 = vunpack.c.l.b16 %v2727
        %v3155 = vunpack.c.h.b16 %v2727
        %v3156 = vunpack.c.l.b16 %v2728
        %v3157 = vunpack.c.h.b16 %v2728
        %v3158 = vunpack.c.l.b16 %v2729
        %v3159 = vunpack.c.h.b16 %v2729
        %v3160 = vunpack.c.l.b16 %v2730
        %v3161 = vunpack.c.h.b16 %v2730
        %v3162 = vunpack.c.l.b16 %v2731
        %v3163 = vunpack.c.h.b16 %v2731
        %v3164 = vunpack.c.l.b16 %v2732
        %v3165 = vunpack.c.h.b16 %v2732
        %v3166 = vunpack.c.l.b16 %v2733
        %v3167 = vunpack.c.h.b16 %v2733
        %v3168 = vunpack.c.l.b16 %v2734
        %v3169 = vunpack.c.h.b16 %v2734
        %v3170 = vunpack.c.l.b16 %v2735
        %v3171 = vunpack.c.h.b16 %v2735
        %v3172 = vunpack.c.l.b16 %v2736
        %v3173 = vunpack.c.h.b16 %v2736
        %v3174 = vunpack.c.l.b16 %v2737
        %v3175 = vunpack.c.h.b16 %v2737
        %v3176 = vunpack.c.l.b16 %v2738
        %v3177 = vunpack.c.h.b16 %v2738
        %v3178 = vunpack.c.l.b16 %v2739
        %v3179 = vunpack.c.h.b16 %v2739
        %v3180 = vunpack.c.l.b16 %v2740
        %v3181 = vunpack.c.h.b16 %v2740
        %v3182 = vunpack.c.l.b16 %v2741
        %v3183 = vunpack.c.h.b16 %v2741
        %v3184 = vunpack.c.l.b16 %v2742
        %v3185 = vunpack.c.h.b16 %v2742
        %v3186 = vunpack.c.l.b16 %v2743
        %v3187 = vunpack.c.h.b16 %v2743
        %v3188 = vunpack.c.l.b16 %v2744
        %v3189 = vunpack.c.h.b16 %v2744
        %v3190 = vunpack.c.l.b16 %v2745
        %v3191 = vunpack.c.h.b16 %v2745
        %v3192 = vunpack.c.l.b16 %v2746
        %v3193 = vunpack.c.h.b16 %v2746
        %v3194 = vunpack.c.l.b16 %v2747
        %v3195 = vunpack.c.h.b16 %v2747
        %v3196 = vunpack.c.l.b16 %v2748
        %v3197 = vunpack.c.h.b16 %v2748
        %v3198 = vunpack.c.l.b16 %v2749
        %v3199 = vunpack.c.h.b16 %v2749
        %v3200 = vunpack.c.l.b16 %v2750
        %v3201 = vunpack.c.h.b16 %v2750
        %v3202 = vunpack.c.l.b16 %v2751
        %v3203 = vunpack.c.h.b16 %v2751
        %v3204 = vunpack.c.l.b16 %v2752
        %v3205 = vunpack.c.h.b16 %v2752
        %v3206 = vunpack.c.l.b16 %v2753
        %v3207 = vunpack.c.h.b16 %v2753
        %v3208 = vunpack.c.l.b16 %v2754
        %v3209 = vunpack.c.h.b16 %v2754
        %v3210 = vunpack.c.l.b16 %v2755
        %v3211 = vunpack.c.h.b16 %v2755
        %v3212 = vunpack.c.l.b16 %v2756
        %v3213 = vunpack.c.h.b16 %v2756
        %v3214 = vunpack.c.l.b16 %v2757
        %v3215 = vunpack.c.h.b16 %v2757
        %v3216 = vunpack.c.l.b16 %v2758
        %v3217 = vunpack.c.h.b16 %v2758
        %v3218 = vunpack.c.l.b16 %v2759
        %v3219 = vunpack.c.h.b16 %v2759
        %v3220 = vunpack.c.l.b16 %v2760
        %v3221 = vunpack.c.h.b16 %v2760
        %v3222 = vunpack.c.l.b16 %v2761
        %v3223 = vunpack.c.h.b16 %v2761
        %v3224 = vunpack.c.l.b16 %v2762
        %v3225 = vunpack.c.h.b16 %v2762
        %v3226 = vunpack.c.l.b16 %v2763
        %v3227 = vunpack.c.h.b16 %v2763
        %v3228 = vunpack.c.l.b16 %v2764
        %v3229 = vunpack.c.h.b16 %v2764
        %v3230 = vunpack.c.l.b16 %v2765
        %v3231 = vunpack.c.h.b16 %v2765
        %v3232 = vunpack.c.l.b16 %v2766
        %v3233 = vunpack.c.h.b16 %v2766
        %v3234 = vunpack.c.l.b16 %v2767
        %v3235 = vunpack.c.h.b16 %v2767
        %v3236 = vunpack.c.l.b16 %v2768
        %v3237 = vunpack.c.h.b16 %v2768
        %v3238 = vunpack.c.l.b16 %v2769
        %v3239 = vunpack.c.h.b16 %v2769
        %v3240 = vunpack.c.l.b16 %v2770
        %v3241 = vunpack.c.h.b16 %v2770
        %v3242 = vunpack.c.l.b16 %v2771
        %v3243 = vunpack.c.h.b16 %v2771
        %v3244 = vunpack.c.l.b16 %v2772
        %v3245 = vunpack.c.h.b16 %v2772
        %v3246 = vunpack.c.l.b16 %v2773
        %v3247 = vunpack.c.h.b16 %v2773
        %v3248 = vunpack.c.l.b16 %v2774
        %v3249 = vunpack.c.h.b16 %v2774
        %v3250 = vunpack.c.l.b16 %v2775
        %v3251 = vunpack.c.h.b16 %v2775
        %v3252 = vunpack.c.l.b16 %v2776
        %v3253 = vunpack.c.h.b16 %v2776
        %v3254 = vunpack.c.l.b16 %v2777
        %v3255 = vunpack.c.h.b16 %v2777
        %v3256 = vunpack.c.l.b16 %v2778
        %v3257 = vunpack.c.h.b16 %v2778
        %v3258 = vunpack.c.l.b16 %v2779
        %v3259 = vunpack.c.h.b16 %v2779
        %v3260 = vunpack.c.l.b16 %v2780
        %v3261 = vunpack.c.h.b16 %v2780
        %v3262 = vunpack.c.l.b16 %v2781
        %v3263 = vunpack.c.h.b16 %v2781
        %v3264 = vunpack.c.l.b16 %v2782
        %v3265 = vunpack.c.h.b16 %v2782
        %v3266 = vunpack.c.l.b16 %v2783
        %v3267 = vunpack.c.h.b16 %v2783
        %v3268 = vunpack.c.l.b16 %v2784
        %v3269 = vunpack.c.h.b16 %v2784
        %v3270 = vunpack.c.l.b16 %v2785
        %v3271 = vunpack.c.h.b16 %v2785
        %v3272 = vunpack.c.l.b16 %v2786
        %v3273 = vunpack.c.h.b16 %v2786
        %v3274 = vunpack.c.l.b16 %v2787
        %v3275 = vunpack.c.h.b16 %v2787
        %v3276 = vunpack.c.l.b16 %v2788
        %v3277 = vunpack.c.h.b16 %v2788
        %v3278 = vunpack.c.l.b16 %v2789
        %v3279 = vunpack.c.h.b16 %v2789
        %v3280 = vunpack.c.l.b16 %v2790
        %v3281 = vunpack.c.h.b16 %v2790
        %v3282 = vunpack.c.l.b16 %v2791
        %v3283 = vunpack.c.h.b16 %v2791
        %v3284 = vunpack.c.l.b16 %v2792
        %v3285 = vunpack.c.h.b16 %v2792
        %v3286 = vunpack.c.l.b16 %v2793
        %v3287 = vunpack.c.h.b16 %v2793
        %v3288 = vunpack.c.l.b16 %v2794
        %v3289 = vunpack.c.h.b16 %v2794
        %v3290 = vunpack.c.l.b16 %v2795
        %v3291 = vunpack.c.h.b16 %v2795
        %v3292 = vunpack.c.l.b16 %v2796
        %v3293 = vunpack.c.h.b16 %v2796
        %v3294 = vunpack.c.l.b16 %v2797
        %v3295 = vunpack.c.h.b16 %v2797
        %v3296 = vunpack.c.l.b16 %v2798
        %v3297 = vunpack.c.h.b16 %v2798
        %v3298 = vunpack.c.l.b16 %v2799
        %v3299 = vunpack.c.h.b16 %v2799
        %v3300 = vunpack.c.l.b16 %v2800
        %v3301 = vunpack.c.h.b16 %v2800
        %v3302 = vunpack.c.l.b16 %v2801
        %v3303 = vunpack.c.h.b16 %v2801
        %v3304 = vunpack.c.l.b16 %v2802
        %v3305 = vunpack.c.h.b16 %v2802
        %v3306 = vunpack.c.l.b16 %v2803
        %v3307 = vunpack.c.h.b16 %v2803
        %v3308 = vunpack.c.l.b16 %v2804
        %v3309 = vunpack.c.h.b16 %v2804
        %v3310 = vunpack.c.l.b16 %v2805
        %v3311 = vunpack.c.h.b16 %v2805
        %v3312 = vunpack.c.l.b16 %v2806
        %v3313 = vunpack.c.h.b16 %v2806
        %v3314 = vunpack.c.l.b16 %v2807
        %v3315 = vunpack.c.h.b16 %v2807
        %v3316 = vunpack.c.l.b16 %v2808
        %v3317 = vunpack.c.h.b16 %v2808
        %v3318 = vunpack.c.l.b16 %v2809
        %v3319 = vunpack.c.h.b16 %v2809
        %v3320 = vunpack.c.l.b16 %v2810
        %v3321 = vunpack.c.h.b16 %v2810
        %v3322 = vunpack.c.l.b16 %v2811
        %v3323 = vunpack.c.h.b16 %v2811
        %v3324 = vunpack.c.l.b16 %v2812
        %v3325 = vunpack.c.h.b16 %v2812
        %v3326 = vunpack.c.l.b16 %v2813
        %v3327 = vunpack.c.h.b16 %v2813
        %v3328 = vunpack.c.l.b16 %v2814
        %v3329 = vunpack.c.h.b16 %v2814
        %v3330 = vunpack.c.l.b16 %v2815
        %v3331 = vunpack.c.h.b16 %v2815
        %v3332 = vunpack.c.l.b16 %v2816
        %v3333 = vunpack.c.h.b16 %v2816
        %v3334 = vunpack.c.l.b16 %v2817
        %v3335 = vunpack.c.h.b16 %v2817
        %v3336 = vunpack.c.l.b16 %v2818
        %v3337 = vunpack.c.h.b16 %v2818
        %v3338 = vunpack.c.l.b16 %v2819
        %v3339 = vunpack.c.h.b16 %v2819
        %v3340 = vunpack.c.l.b16 %v2820
        %v3341 = vunpack.c.h.b16 %v2820
        %v3342 = vunpack.c.l.b16 %v2821
        %v3343 = vunpack.c.h.b16 %v2821
        %v3344 = vunpack.c.l.b16 %v2822
        %v3345 = vunpack.c.h.b16 %v2822
        %v3346 = vunpack.c.l.b16 %v2823
        %v3347 = vunpack.c.h.b16 %v2823
        %v3348 = vunpack.c.l.b16 %v2824
        %v3349 = vunpack.c.h.b16 %v2824
        %v3350 = vunpack.c.l.b16 %v2825
        %v3351 = vunpack.c.h.b16 %v2825
        %v3352 = vunpack.c.l.b16 %v2826
        %v3353 = vunpack.c.h.b16 %v2826
        %v3354 = vunpack.c.l.b16 %v2827
        %v3355 = vunpack.c.h.b16 %v2827
        %v3356 = vunpack.c.l.b16 %v2828
        %v3357 = vunpack.c.h.b16 %v2828
        %v3358 = vunpack.c.l.b16 %v2829
        %v3359 = vunpack.c.h.b16 %v2829
        %v3360 = vunpack.c.l.b16 %v2830
        %v3361 = vunpack.c.h.b16 %v2830
        %v3362 = vunpack.c.l.b16 %v2831
        %v3363 = vunpack.c.h.b16 %v2831
        %v3364 = vunpack.c.l.b16 %v2832
        %v3365 = vunpack.c.h.b16 %v2832
        %v3366 = vunpack.c.l.b16 %v2833
        %v3367 = vunpack.c.h.b16 %v2833
        %v3368 = vunpack.c.l.b16 %v2834
        %v3369 = vunpack.c.h.b16 %v2834
        %v3370 = vunpack.c.l.b16 %v2835
        %v3371 = vunpack.c.h.b16 %v2835
        %v3372 = vunpack.c.l.b16 %v2836
        %v3373 = vunpack.c.h.b16 %v2836
        %v3374 = vunpack.c.l.b16 %v2837
        %v3375 = vunpack.c.h.b16 %v2837
        %v3376 = vunpack.c.l.b16 %v2838
        %v3377 = vunpack.c.h.b16 %v2838
        %v3378 = vunpack.c.l.b16 %v2839
        %v3379 = vunpack.c.h.b16 %v2839
        %v3380 = vunpack.c.l.b16 %v2840
        %v3381 = vunpack.c.h.b16 %v2840
        %v3382 = vunpack.c.l.b16 %v2841
        %v3383 = vunpack.c.h.b16 %v2841
        %v3384 = vunpack.c.l.b16 %v2842
        %v3385 = vunpack.c.h.b16 %v2842
        %v3386 = vunpack.c.l.b16 %v2843
        %v3387 = vunpack.c.h.b16 %v2843
        %v3388 = vunpack.c.l.b16 %v2844
        %v3389 = vunpack.c.h.b16 %v2844
        %v3390 = vunpack.c.l.b16 %v2845
        %v3391 = vunpack.c.h.b16 %v2845
        %v3392 = vunpack.c.l.b16 %v2846
        %v3393 = vunpack.c.h.b16 %v2846
        %v3394 = vunpack.c.l.b16 %v2847
        %v3395 = vunpack.c.h.b16 %v2847
        %v3396 = vunpack.c.l.b16 %v2848
        %v3397 = vunpack.c.h.b16 %v2848
        %v3398 = vunpack.c.l.b16 %v2849
        %v3399 = vunpack.c.h.b16 %v2849
        %v3400 = vunpack.c.l.b16 %v2850
        %v3401 = vunpack.c.h.b16 %v2850
        %v3402 = vunpack.c.l.b16 %v2851
        %v3403 = vunpack.c.h.b16 %v2851
        %v3404 = vunpack.c.l.b16 %v2852
        %v3405 = vunpack.c.h.b16 %v2852
        %v3406 = vunpack.c.l.b16 %v2853
        %v3407 = vunpack.c.h.b16 %v2853
        %v3408 = vunpack.c.l.b16 %v2854
        %v3409 = vunpack.c.h.b16 %v2854
        %v3410 = vunpack.c.l.b16 %v2855
        %v3411 = vunpack.c.h.b16 %v2855
        %v3412 = vunpack.c.l.b16 %v2856
        %v3413 = vunpack.c.h.b16 %v2856
        %v3414 = vunpack.c.l.b16 %v2857
        %v3415 = vunpack.c.h.b16 %v2857
        %v3416 = vunpack.c.l.b16 %v2858
        %v3417 = vunpack.c.h.b16 %v2858
        %v3418 = vunpack.c.l.b16 %v2859
        %v3419 = vunpack.c.h.b16 %v2859
        %v3420 = vunpack.c.l.b16 %v2860
        %v3421 = vunpack.c.h.b16 %v2860
        %v3422 = vunpack.c.l.b16 %v2861
        %v3423 = vunpack.c.h.b16 %v2861
        %v3424 = vunpack.c.l.b16 %v2862
        %v3425 = vunpack.c.h.b16 %v2862
        %v3426 = vunpack.c.l.b16 %v2863
        %v3427 = vunpack.c.h.b16 %v2863
        %v3428 = vunpack.c.l.b16 %v2864
        %v3429 = vunpack.c.h.b16 %v2864
        %v3430 = vunpack.c.l.b16 %v2865
        %v3431 = vunpack.c.h.b16 %v2865
        %v3432 = vunpack.c.l.b16 %v2866
        %v3433 = vunpack.c.h.b16 %v2866
        %v3434 = vunpack.c.l.b16 %v2867
        %v3435 = vunpack.c.h.b16 %v2867
        %v3436 = vunpack.c.l.b16 %v2868
        %v3437 = vunpack.c.h.b16 %v2868
        %v3438 = vunpack.c.l.b16 %v2869
        %v3439 = vunpack.c.h.b16 %v2869
        %v3440 = vunpack.c.l.b16 %v2870
        %v3441 = vunpack.c.h.b16 %v2870
        %v3442 = vunpack.c.l.b16 %v2871
        %v3443 = vunpack.c.h.b16 %v2871
        %v3444 = vunpack.c.l.b16 %v2872
        %v3445 = vunpack.c.h.b16 %v2872
        %v3446 = vunpack.c.l.b16 %v2873
        %v3447 = vunpack.c.h.b16 %v2873
        %v3448 = vunpack.c.l.b16 %v2874
        %v3449 = vunpack.c.h.b16 %v2874
        %v3450 = vunpack.c.l.b16 %v2875
        %v3451 = vunpack.c.h.b16 %v2875
        %v3452 = vunpack.c.l.b16 %v2876
        %v3453 = vunpack.c.h.b16 %v2876
        %v3454 = vunpack.c.l.b16 %v2877
        %v3455 = vunpack.c.h.b16 %v2877
        %v3456 = vunpack.c.l.b16 %v2878
        %v3457 = vunpack.c.h.b16 %v2878
        %v3458 = vunpack.c.l.b16 %v2879
        %v3459 = vunpack.c.h.b16 %v2879
        %v3460 = vunpack.c.l.b16 %v2880
        %v3461 = vunpack.c.h.b16 %v2880
        %v3462 = vunpack.c.l.b16 %v2881
        %v3463 = vunpack.c.h.b16 %v2881
        %v3464 = vunpack.c.l.b16 %v2882
        %v3465 = vunpack.c.h.b16 %v2882
        %v3466 = vunpack.c.l.b16 %v2883
        %v3467 = vunpack.c.h.b16 %v2883
        %v3468 = vunpack.c.l.b16 %v2884
        %v3469 = vunpack.c.h.b16 %v2884
        %v3470 = vunpack.c.l.b16 %v2885
        %v3471 = vunpack.c.h.b16 %v2885
        %v3472 = vunpack.c.l.b16 %v2886
        %v3473 = vunpack.c.h.b16 %v2886
        %v3474 = vunpack.c.l.b16 %v2887
        %v3475 = vunpack.c.h.b16 %v2887
        %v3476 = vunpack.c.l.b16 %v2888
        %v3477 = vunpack.c.h.b16 %v2888
        %v3478 = vunpack.c.l.b16 %v2889
        %v3479 = vunpack.c.h.b16 %v2889
        %v3480 = vunpack.c.l.b16 %v2890
        %v3481 = vunpack.c.h.b16 %v2890
        %v3482 = vunpack.c.l.b16 %v2891
        %v3483 = vunpack.c.h.b16 %v2891
        %v3484 = vunpack.c.l.b16 %v2892
        %v3485 = vunpack.c.h.b16 %v2892
        %v3486 = vunpack.c.l.b16 %v2893
        %v3487 = vunpack.c.h.b16 %v2893
        %v3488 = vunpack.c.l.b16 %v2894
        %v3489 = vunpack.c.h.b16 %v2894
        %v3490 = vunpack.c.l.b16 %v2895
        %v3491 = vunpack.c.h.b16 %v2895
        %v3492 = vunpack.c.l.b16 %v2896
        %v3493 = vunpack.c.h.b16 %v2896
        %v3494 = vunpack.c.l.b16 %v2897
        %v3495 = vunpack.c.h.b16 %v2897
        %v3496 = vunpack.c.l.b16 %v2898
        %v3497 = vunpack.c.h.b16 %v2898
        %v3498 = vunpack.c.l.b16 %v2899
        %v3499 = vunpack.c.h.b16 %v2899
        %v3500 = vunpack.c.l.b16 %v2900
        %v3501 = vunpack.c.h.b16 %v2900
        %v3502 = vunpack.c.l.b16 %v2901
        %v3503 = vunpack.c.h.b16 %v2901
        %v3504 = vunpack.c.l.b16 %v2902
        %v3505 = vunpack.c.h.b16 %v2902
        %v3506 = vunpack.c.l.b16 %v2903
        %v3507 = vunpack.c.h.b16 %v2903
        %v3508 = vunpack.c.l.b16 %v2904
        %v3509 = vunpack.c.h.b16 %v2904
        %v3510 = vunpack.c.l.b16 %v2905
        %v3511 = vunpack.c.h.b16 %v2905
        %v3512 = vunpack.c.l.b16 %v2906
        %v3513 = vunpack.c.h.b16 %v2906
        %v3514 = vunpack.c.l.b16 %v2907
        %v3515 = vunpack.c.h.b16 %v2907
        %v3516 = vunpack.c.l.b16 %v2908
        %v3517 = vunpack.c.h.b16 %v2908
        %v3518 = vunpack.c.l.b16 %v2909
        %v3519 = vunpack.c.h.b16 %v2909
        %v3520 = vunpack.c.l.b16 %v2910
        %v3521 = vunpack.c.h.b16 %v2910
        %v3522 = vunpack.c.l.b16 %v2911
        %v3523 = vunpack.c.h.b16 %v2911
        %v3524 = vunpack.c.l.b16 %v2912
        %v3525 = vunpack.c.h.b16 %v2912
        %v3526 = vunpack.c.l.b16 %v2913
        %v3527 = vunpack.c.h.b16 %v2913
        %v3528 = vunpack.c.l.b16 %v2914
        %v3529 = vunpack.c.h.b16 %v2914
        %v3530 = vunpack.c.l.b16 %v2915
        %v3531 = vunpack.c.h.b16 %v2915
        %v3532 = vunpack.c.l.b16 %v2916
        %v3533 = vunpack.c.h.b16 %v2916
        %v3534 = vunpack.c.l.b16 %v2917
        %v3535 = vunpack.c.h.b16 %v2917
        %v3536 = vunpack.c.l.b16 %v2918
        %v3537 = vunpack.c.h.b16 %v2918
        %v3538 = vpack.c.b16 %v3158, %v3154
        %v3539 = vpack.c.b16 %v3159, %v3155
        %v3540 = vpack.c.b16 %v3160, %v3156
        %v3541 = vpack.c.b16 %v3161, %v3157
        %v3542 = vpack.c.b16 %v3166, %v3162
        %v3543 = vpack.c.b16 %v3167, %v3163
        %v3544 = vpack.c.b16 %v3168, %v3164
        %v3545 = vpack.c.b16 %v3169, %v3165
        %v3546 = vpack.c.b16 %v3174, %v3170
        %v3547 = vpack.c.b16 %v3175, %v3171
        %v3548 = vpack.c.b16 %v3176, %v3172
        %v3549 = vpack.c.b16 %v3177, %v3173
        %v3550 = vpack.c.b16 %v3182, %v3178
        %v3551 = vpack.c.b16 %v3183, %v3179
        %v3552 = vpack.c.b16 %v3184, %v3180
        %v3553 = vpack.c.b16 %v3185, %v3181
        %v3554 = vpack.c.b16 %v3190, %v3186
        %v3555 = vpack.c.b16 %v3191, %v3187
        %v3556 = vpack.c.b16 %v3192, %v3188
        %v3557 = vpack.c.b16 %v3193, %v3189
        %v3558 = vpack.c.b16 %v3198, %v3194
        %v3559 = vpack.c.b16 %v3199, %v3195
        %v3560 = vpack.c.b16 %v3200, %v3196
        %v3561 = vpack.c.b16 %v3201, %v3197
        %v3562 = vpack.c.b16 %v3206, %v3202
        %v3563 = vpack.c.b16 %v3207, %v3203
        %v3564 = vpack.c.b16 %v3208, %v3204
        %v3565 = vpack.c.b16 %v3209, %v3205
        %v3566 = vpack.c.b16 %v3214, %v3210
        %v3567 = vpack.c.b16 %v3215, %v3211
        %v3568 = vpack.c.b16 %v3216, %v3212
        %v3569 = vpack.c.b16 %v3217, %v3213
        %v3570 = vpack.c.b16 %v3222, %v3218
        %v3571 = vpack.c.b16 %v3223, %v3219
        %v3572 = vpack.c.b16 %v3224, %v3220
        %v3573 = vpack.c.b16 %v3225, %v3221
        %v3574 = vpack.c.b16 %v3230, %v3226
        %v3575 = vpack.c.b16 %v3231, %v3227
        %v3576 = vpack.c.b16 %v3232, %v3228
        %v3577 = vpack.c.b16 %v3233, %v3229
        %v3578 = vpack.c.b16 %v3238, %v3234
        %v3579 = vpack.c.b16 %v3239, %v3235
        %v3580 = vpack.c.b16 %v3240, %v3236
        %v3581 = vpack.c.b16 %v3241, %v3237
        %v3582 = vpack.c.b16 %v3246, %v3242
        %v3583 = vpack.c.b16 %v3247, %v3243
        %v3584 = vpack.c.b16 %v3248, %v3244
        %v3585 = vpack.c.b16 %v3249, %v3245
        %v3586 = vpack.c.b16 %v3254, %v3250
        %v3587 = vpack.c.b16 %v3255, %v3251
        %v3588 = vpack.c.b16 %v3256, %v3252
        %v3589 = vpack.c.b16 %v3257, %v3253
        %v3590 = vpack.c.b16 %v3262, %v3258
        %v3591 = vpack.c.b16 %v3263, %v3259
        %v3592 = vpack.c.b16 %v3264, %v3260
        %v3593 = vpack.c.b16 %v3265, %v3261
        %v3594 = vpack.c.b16 %v3270, %v3266
        %v3595 = vpack.c.b16 %v3271, %v3267
        %v3596 = vpack.c.b16 %v3272, %v3268
        %v3597 = vpack.c.b16 %v3273, %v3269
        %v3598 = vpack.c.b16 %v3278, %v3274
        %v3599 = vpack.c.b16 %v3279, %v3275
        %v3600 = vpack.c.b16 %v3280, %v3276
        %v3601 = vpack.c.b16 %v3281, %v3277
        %v3602 = vpack.c.b16 %v3286, %v3282
        %v3603 = vpack.c.b16 %v3287, %v3283
        %v3604 = vpack.c.b16 %v3288, %v3284
        %v3605 = vpack.c.b16 %v3289, %v3285
        %v3606 = vpack.c.b16 %v3294, %v3290
        %v3607 = vpack.c.b16 %v3295, %v3291
        %v3608 = vpack.c.b16 %v3296, %v3292
        %v3609 = vpack.c.b16 %v3297, %v3293
        %v3610 = vpack.c.b16 %v3302, %v3298
        %v3611 = vpack.c.b16 %v3303, %v3299
        %v3612 = vpack.c.b16 %v3304, %v3300
        %v3613 = vpack.c.b16 %v3305, %v3301
        %v3614 = vpack.c.b16 %v3310, %v3306
        %v3615 = vpack.c.b16 %v3311, %v3307
        %v3616 = vpack.c.b16 %v3312, %v3308
        %v3617 = vpack.c.b16 %v3313, %v3309
        %v3618 = vpack.c.b16 %v3318, %v3314
        %v3619 = vpack.c.b16 %v3319, %v3315
        %v3620 = vpack.c.b16 %v3320, %v3316
        %v3621 = vpack.c.b16 %v3321, %v3317
        %v3622 = vpack.c.b16 %v3326, %v3322
        %v3623 = vpack.c.b16 %v3327, %v3323
        %v3624 = vpack.c.b16 %v3328, %v3324
        %v3625 = vpack.c.b16 %v3329, %v3325
        %v3626 = vpack.c.b16 %v3334, %v3330
        %v3627 = vpack.c.b16 %v3335, %v3331
        %v3628 = vpack.c.b16 %v3336, %v3332
        %v3629 = vpack.c.b16 %v3337, %v3333
        %v3630 = vpack.c.b16 %v3342, %v3338
        %v3631 = vpack.c.b16 %v3343, %v3339
        %v3632 = vpack.c.b16 %v3344, %v3340
        %v3633 = vpack.c.b16 %v3345, %v3341
        %v3634 = vpack.c.b16 %v3350, %v3346
        %v3635 = vpack.c.b16 %v3351, %v3347
        %v3636 = vpack.c.b16 %v3352, %v3348
        %v3637 = vpack.c.b16 %v3353, %v3349
        %v3638 = vpack.c.b16 %v3358, %v3354
        %v3639 = vpack.c.b16 %v3359, %v3355
        %v3640 = vpack.c.b16 %v3360, %v3356
        %v3641 = vpack.c.b16 %v3361, %v3357
        %v3642 = vpack.c.b16 %v3366, %v3362
        %v3643 = vpack.c.b16 %v3367, %v3363
        %v3644 = vpack.c.b16 %v3368, %v3364
        %v3645 = vpack.c.b16 %v3369, %v3365
        %v3646 = vpack.c.b16 %v3374, %v3370
        %v3647 = vpack.c.b16 %v3375, %v3371
        %v3648 = vpack.c.b16 %v3376, %v3372
        %v3649 = vpack.c.b16 %v3377, %v3373
        %v3650 = vpack.c.b16 %v3382, %v3378
        %v3651 = vpack.c.b16 %v3383, %v3379
        %v3652 = vpack.c.b16 %v3384, %v3380
        %v3653 = vpack.c.b16 %v3385, %v3381
        %v3654 = vpack.c.b16 %v3390, %v3386
        %v3655 = vpack.c.b16 %v3391, %v3387
        %v3656 = vpack.c.b16 %v3392, %v3388
        %v3657 = vpack.c.b16 %v3393, %v3389
        %v3658 = vpack.c.b16 %v3398, %v3394
        %v3659 = vpack.c.b16 %v3399, %v3395
        %v3660 = vpack.c.b16 %v3400, %v3396
        %v3661 = vpack.c.b16 %v3401, %v3397
        %v3662 = vpack.c.b16 %v3406, %v3402
        %v3663 = vpack.c.b16 %v3407, %v3403
        %v3664 = vpack.c.b16 %v3408, %v3404
        %v3665 = vpack.c.b16 %v3409, %v3405
        %v3666 = vpack.c.b16 %v3414, %v3410
        %v3667 = vpack.c.b16 %v3415, %v3411
        %v3668 = vpack.c.b16 %v3416, %v3412
        %v3669 = vpack.c.b16 %v3417, %v3413
        %v3670 = vpack.c.b16 %v3422, %v3418
        %v3671 = vpack.c.b16 %v3423, %v3419
        %v3672 = vpack.c.b16 %v3424, %v3420
        %v3673 = vpack.c.b16 %v3425, %v3421
        %v3674 = vpack.c.b16 %v3430, %v3426
        %v3675 = vpack.c.b16 %v3431, %v3427
        %v3676 = vpack.c.b16 %v3432, %v3428
        %v3677 = vpack.c.b16 %v3433, %v3429
        %v3678 = vpack.c.b16 %v3438, %v3434
        %v3679 = vpack.c.b16 %v3439, %v3435
        %v3680 = vpack.c.b16 %v3440, %v3436
        %v3681 = vpack.c.b16 %v3441, %v3437
        %v3682 = vpack.c.b16 %v3446, %v3442
        %v3683 = vpack.c.b16 %v3447, %v3443
        %v3684 = vpack.c.b16 %v3448, %v3444
        %v3685 = vpack.c.b16 %v3449, %v3445
        %v3686 = vpack.c.b16 %v3454, %v3450
        %v3687 = vpack.c.b16 %v3455, %v3451
        %v3688 = vpack.c.b16 %v3456, %v3452
        %v3689 = vpack.c.b16 %v3457, %v3453
        %v3690 = vpack.c.b16 %v3462, %v3458
        %v3691 = vpack.c.b16 %v3463, %v3459
        %v3692 = vpack.c.b16 %v3464, %v3460
        %v3693 = vpack.c.b16 %v3465, %v3461
        %v3694 = vpack.c.b16 %v3470, %v3466
        %v3695 = vpack.c.b16 %v3471, %v3467
        %v3696 = vpack.c.b16 %v3472, %v3468
        %v3697 = vpack.c.b16 %v3473, %v3469
        %v3698 = vpack.c.b16 %v3478, %v3474
        %v3699 = vpack.c.b16 %v3479, %v3475
        %v3700 = vpack.c.b16 %v3480, %v3476
        %v3701 = vpack.c.b16 %v3481, %v3477
        %v3702 = vpack.c.b16 %v3486, %v3482
        %v3703 = vpack.c.b16 %v3487, %v3483
        %v3704 = vpack.c.b16 %v3488, %v3484
        %v3705 = vpack.c.b16 %v3489, %v3485
        %v3706 = vpack.c.b16 %v3494, %v3490
        %v3707 = vpack.c.b16 %v3495, %v3491
        %v3708 = vpack.c.b16 %v3496, %v3492
        %v3709 = vpack.c.b16 %v3497, %v3493
        %v3710 = vpack.c.b16 %v3502, %v3498
        %v3711 = vpack.c.b16 %v3503, %v3499
        %v3712 = vpack.c.b16 %v3504, %v3500
        %v3713 = vpack.c.b16 %v3505, %v3501
        %v3714 = vpack.c.b16 %v3510, %v3506
        %v3715 = vpack.c.b16 %v3511, %v3507
        %v3716 = vpack.c.b16 %v3512, %v3508
        %v3717 = vpack.c.b16 %v3513, %v3509
        %v3718 = vpack.c.b16 %v3518, %v3514
        %v3719 = vpack.c.b16 %v3519, %v3515
        %v3720 = vpack.c.b16 %v3520, %v3516
        %v3721 = vpack.c.b16 %v3521, %v3517
        %v3722 = vpack.c.b16 %v3526, %v3522
        %v3723 = vpack.c.b16 %v3527, %v3523
        %v3724 = vpack.c.b16 %v3528, %v3524
        %v3725 = vpack.c.b16 %v3529, %v3525
        %v3726 = vpack.c.b16 %v3534, %v3530
        %v3727 = vpack.c.b16 %v3535, %v3531
        %v3728 = vpack.c.b16 %v3536, %v3532
        %v3729 = vpack.c.b16 %v3537, %v3533
        %3922 = vmatprep.subr.bf16.mxu0 %v3539
        %3923 = vmatpush1.bf16.msra.mxu0 %v3538
        %3924 = vmatprep.subr.bf16.mxu0 %v3543
        %3925 = vmatpush1.bf16.msra.mxu0 %v3542
        %3926 = vmatprep.subr.bf16.mxu0 %v3547
        %3927 = vmatpush1.bf16.msra.mxu0 %v3546
        %3928 = vmatprep.subr.bf16.mxu0 %v3551
        %3929 = vmatpush1.bf16.msra.mxu0 %v3550
        %3930 = vmatprep.subr.bf16.mxu0 %v3555
        %3931 = vmatpush1.bf16.msra.mxu0 %v3554
        %3932 = vmatprep.subr.bf16.mxu0 %v3559
        %3933 = vmatpush1.bf16.msra.mxu0 %v3558
        %3934 = vmatprep.subr.bf16.mxu0 %v3563
        %3935 = vmatpush1.bf16.msra.mxu0 %v3562
        %3936 = vmatprep.subr.bf16.mxu0 %v3567
        %3937 = vmatpush1.bf16.msra.mxu0 %v3566
        %3938 = vmatprep.subr.bf16.mxu0 %v3571
        %3939 = vmatpush1.bf16.msra.mxu0 %v3570
        %3940 = vmatprep.subr.bf16.mxu0 %v3575
        %3941 = vmatpush1.bf16.msra.mxu0 %v3574
        %3942 = vmatprep.subr.bf16.mxu0 %v3579
        %3943 = vmatpush1.bf16.msra.mxu0 %v3578
        %3944 = vmatprep.subr.bf16.mxu0 %v3583
        %3945 = vmatpush1.bf16.msra.mxu0 %v3582
        %3946 = vmatprep.subr.bf16.mxu0 %v3587
        %3947 = vmatpush1.bf16.msra.mxu0 %v3586
        %3948 = vmatprep.subr.bf16.mxu0 %v3591
        %3949 = vmatpush1.bf16.msra.mxu0 %v3590
        %3950 = vmatprep.subr.bf16.mxu0 %v3595
        %3951 = vmatpush1.bf16.msra.mxu0 %v3594
        %3952 = vmatprep.subr.bf16.mxu0 %v3599
        %3953 = vmatpush1.bf16.msra.mxu0 %v3598
        %3954 = vmatprep.mubr.bf16.mxu0 %v2951
        %3955 = vmatmul.mubr.bf16.gmra.mrb[0].mxu0 %v2950
        %v3956 = vpop.f32.mrb[0].mxu0
        %v3957 = vadd.f32 %v2924, %v3956
        %v3958 = vpop.f32.mrb[0].mxu0
        %v3959 = vadd.f32 %v2928, %v3958
        %v3960 = vpop.f32.mrb[0].mxu0
        %v3961 = vpop.f32.mrb[0].mxu0
        %3962 = vdwg.mxu0
        %3963 = vmatprep.subr.bf16.mxu0 %v3603
        %3964 = vmatpush1.bf16.msra.mxu0 %v3602
        %3965 = vmatprep.subr.bf16.mxu0 %v3607
        %3966 = vmatpush1.bf16.msra.mxu0 %v3606
        %3967 = vmatprep.subr.bf16.mxu0 %v3611
        %3968 = vmatpush1.bf16.msra.mxu0 %v3610
        %3969 = vmatprep.subr.bf16.mxu0 %v3615
        %3970 = vmatpush1.bf16.msra.mxu0 %v3614
        %3971 = vmatprep.subr.bf16.mxu0 %v3619
        %3972 = vmatpush1.bf16.msra.mxu0 %v3618
        %3973 = vmatprep.subr.bf16.mxu0 %v3623
        %3974 = vmatpush1.bf16.msra.mxu0 %v3622
        %3975 = vmatprep.subr.bf16.mxu0 %v3627
        %3976 = vmatpush1.bf16.msra.mxu0 %v3626
        %3977 = vmatprep.subr.bf16.mxu0 %v3631
        %3978 = vmatpush1.bf16.msra.mxu0 %v3630
        %3979 = vmatprep.subr.bf16.mxu0 %v3635
        %3980 = vmatpush1.bf16.msra.mxu0 %v3634
        %3981 = vmatprep.subr.bf16.mxu0 %v3639
        %3982 = vmatpush1.bf16.msra.mxu0 %v3638
        %3983 = vmatprep.subr.bf16.mxu0 %v3643
        %3984 = vmatpush1.bf16.msra.mxu0 %v3642
        %3985 = vmatprep.subr.bf16.mxu0 %v3647
        %3986 = vmatpush1.bf16.msra.mxu0 %v3646
        %3987 = vmatprep.subr.bf16.mxu0 %v3651
        %3988 = vmatpush1.bf16.msra.mxu0 %v3650
        %3989 = vmatprep.subr.bf16.mxu0 %v3655
        %3990 = vmatpush1.bf16.msra.mxu0 %v3654
        %3991 = vmatprep.subr.bf16.mxu0 %v3659
        %3992 = vmatpush1.bf16.msra.mxu0 %v3658
        %3993 = vmatprep.subr.bf16.mxu0 %v3663
        %3994 = vmatpush1.bf16.msra.mxu0 %v3662
        %3995 = vmatprep.mubr.bf16.mxu0 %v2953
        %3996 = vmatmul.mubr.bf16.gmra.mrb[0].mxu0 %v2952
        %v3997 = vpop.f32.mrb[0].mxu0
        %v3998 = vadd.f32 %v3957, %v3997
        %v3999 = vpop.f32.mrb[0].mxu0
        %v4000 = vadd.f32 %v3959, %v3999
        %v4001 = vpop.f32.mrb[0].mxu0
        %v4002 = vpop.f32.mrb[0].mxu0
        %4003 = vdwg.mxu0
        %4004 = vmatprep.subr.bf16.mxu0 %v3667
        %4005 = vmatpush1.bf16.msra.mxu0 %v3666
        %4006 = vmatprep.subr.bf16.mxu0 %v3671
        %4007 = vmatpush1.bf16.msra.mxu0 %v3670
        %4008 = vmatprep.subr.bf16.mxu0 %v3675
        %4009 = vmatpush1.bf16.msra.mxu0 %v3674
        %4010 = vmatprep.subr.bf16.mxu0 %v3679
        %4011 = vmatpush1.bf16.msra.mxu0 %v3678
        %4012 = vmatprep.subr.bf16.mxu0 %v3683
        %4013 = vmatpush1.bf16.msra.mxu0 %v3682
        %4014 = vmatprep.subr.bf16.mxu0 %v3687
        %4015 = vmatpush1.bf16.msra.mxu0 %v3686
        %4016 = vmatprep.subr.bf16.mxu0 %v3691
        %4017 = vmatpush1.bf16.msra.mxu0 %v3690
        %4018 = vmatprep.subr.bf16.mxu0 %v3695
        %4019 = vmatpush1.bf16.msra.mxu0 %v3694
        %4020 = vmatprep.subr.bf16.mxu0 %v3699
        %4021 = vmatpush1.bf16.msra.mxu0 %v3698
        %4022 = vmatprep.subr.bf16.mxu0 %v3703
        %4023 = vmatpush1.bf16.msra.mxu0 %v3702
        %4024 = vmatprep.subr.bf16.mxu0 %v3707
        %4025 = vmatpush1.bf16.msra.mxu0 %v3706
        %4026 = vmatprep.subr.bf16.mxu0 %v3711
        %4027 = vmatpush1.bf16.msra.mxu0 %v3710
        %4028 = vmatprep.subr.bf16.mxu0 %v3715
        %4029 = vmatpush1.bf16.msra.mxu0 %v3714
        %4030 = vmatprep.subr.bf16.mxu0 %v3719
        %4031 = vmatpush1.bf16.msra.mxu0 %v3718
        %4032 = vmatprep.subr.bf16.mxu0 %v3723
        %4033 = vmatpush1.bf16.msra.mxu0 %v3722
        %4034 = vmatprep.subr.bf16.mxu0 %v3727
        %4035 = vmatpush1.bf16.msra.mxu0 %v3726
        %4036 = vmatprep.mubr.bf16.mxu0 %v2955
        %4037 = vmatmul.mubr.bf16.gmra.mrb[0].mxu0 %v2954
        %v4038 = vpop.f32.mrb[0].mxu0
        %v4039 = vadd.f32 %v3998, %v4038
        %v4040 = vpop.f32.mrb[0].mxu0
        %v4041 = vadd.f32 %v4000, %v4040
        %v4042 = vpop.f32.mrb[0].mxu0
        %v4043 = vpop.f32.mrb[0].mxu0
        %4044 = vdwg.mxu0
        %4045 = vmatprep.subr.bf16.mxu0 %v3541
        %4046 = vmatpush1.bf16.msra.mxu0 %v3540
        %4047 = vmatprep.subr.bf16.mxu0 %v3545
        %4048 = vmatpush1.bf16.msra.mxu0 %v3544
        %4049 = vmatprep.subr.bf16.mxu0 %v3549
        %4050 = vmatpush1.bf16.msra.mxu0 %v3548
        %4051 = vmatprep.subr.bf16.mxu0 %v3553
        %4052 = vmatpush1.bf16.msra.mxu0 %v3552
        %4053 = vmatprep.subr.bf16.mxu0 %v3557
        %4054 = vmatpush1.bf16.msra.mxu0 %v3556
        %4055 = vmatprep.subr.bf16.mxu0 %v3561
        %4056 = vmatpush1.bf16.msra.mxu0 %v3560
        %4057 = vmatprep.subr.bf16.mxu0 %v3565
        %4058 = vmatpush1.bf16.msra.mxu0 %v3564
        %4059 = vmatprep.subr.bf16.mxu0 %v3569
        %4060 = vmatpush1.bf16.msra.mxu0 %v3568
        %4061 = vmatprep.subr.bf16.mxu0 %v3573
        %4062 = vmatpush1.bf16.msra.mxu0 %v3572
        %4063 = vmatprep.subr.bf16.mxu0 %v3577
        %4064 = vmatpush1.bf16.msra.mxu0 %v3576
        %4065 = vmatprep.subr.bf16.mxu0 %v3581
        %4066 = vmatpush1.bf16.msra.mxu0 %v3580
        %4067 = vmatprep.subr.bf16.mxu0 %v3585
        %4068 = vmatpush1.bf16.msra.mxu0 %v3584
        %4069 = vmatprep.subr.bf16.mxu0 %v3589
        %4070 = vmatpush1.bf16.msra.mxu0 %v3588
        %4071 = vmatprep.subr.bf16.mxu0 %v3593
        %4072 = vmatpush1.bf16.msra.mxu0 %v3592
        %4073 = vmatprep.subr.bf16.mxu0 %v3597
        %4074 = vmatpush1.bf16.msra.mxu0 %v3596
        %4075 = vmatprep.subr.bf16.mxu0 %v3601
        %4076 = vmatpush1.bf16.msra.mxu0 %v3600
        %4077 = vmatprep.mubr.bf16.mxu0 %v2951
        %4078 = vmatmul.mubr.bf16.gmra.mrb[0].mxu0 %v2950
        %v4079 = vpop.f32.mrb[0].mxu0
        %v4080 = vadd.f32 %v2932, %v4079
        %v4081 = vpop.f32.mrb[0].mxu0
        %v4082 = vadd.f32 %v2936, %v4081
        %v4083 = vpop.f32.mrb[0].mxu0
        %v4084 = vpop.f32.mrb[0].mxu0
        %4085 = vdwg.mxu0
        %4086 = vmatprep.subr.bf16.mxu0 %v3605
        %4087 = vmatpush1.bf16.msra.mxu0 %v3604
        %4088 = vmatprep.subr.bf16.mxu0 %v3609
        %4089 = vmatpush1.bf16.msra.mxu0 %v3608
        %4090 = vmatprep.subr.bf16.mxu0 %v3613
        %4091 = vmatpush1.bf16.msra.mxu0 %v3612
        %4092 = vmatprep.subr.bf16.mxu0 %v3617
        %4093 = vmatpush1.bf16.msra.mxu0 %v3616
        %4094 = vmatprep.subr.bf16.mxu0 %v3621
        %4095 = vmatpush1.bf16.msra.mxu0 %v3620
        %4096 = vmatprep.subr.bf16.mxu0 %v3625
        %4097 = vmatpush1.bf16.msra.mxu0 %v3624
        %4098 = vmatprep.subr.bf16.mxu0 %v3629
        %4099 = vmatpush1.bf16.msra.mxu0 %v3628
        %4100 = vmatprep.subr.bf16.mxu0 %v3633
        %4101 = vmatpush1.bf16.msra.mxu0 %v3632
        %4102 = vmatprep.subr.bf16.mxu0 %v3637
        %4103 = vmatpush1.bf16.msra.mxu0 %v3636
        %4104 = vmatprep.subr.bf16.mxu0 %v3641
        %4105 = vmatpush1.bf16.msra.mxu0 %v3640
        %4106 = vmatprep.subr.bf16.mxu0 %v3645
        %4107 = vmatpush1.bf16.msra.mxu0 %v3644
        %4108 = vmatprep.subr.bf16.mxu0 %v3649
        %4109 = vmatpush1.bf16.msra.mxu0 %v3648
        %4110 = vmatprep.subr.bf16.mxu0 %v3653
        %4111 = vmatpush1.bf16.msra.mxu0 %v3652
        %4112 = vmatprep.subr.bf16.mxu0 %v3657
        %4113 = vmatpush1.bf16.msra.mxu0 %v3656
        %4114 = vmatprep.subr.bf16.mxu0 %v3661
        %4115 = vmatpush1.bf16.msra.mxu0 %v3660
        %4116 = vmatprep.subr.bf16.mxu0 %v3665
        %4117 = vmatpush1.bf16.msra.mxu0 %v3664
        %4118 = vmatprep.mubr.bf16.mxu0 %v2953
        %4119 = vmatmul.mubr.bf16.gmra.mrb[0].mxu0 %v2952
        %v4120 = vpop.f32.mrb[0].mxu0
        %v4121 = vadd.f32 %v4080, %v4120
        %v4122 = vpop.f32.mrb[0].mxu0
        %v4123 = vadd.f32 %v4082, %v4122
        %v4124 = vpop.f32.mrb[0].mxu0
        %v4125 = vpop.f32.mrb[0].mxu0
        %4126 = vdwg.mxu0
        %4127 = vmatprep.subr.bf16.mxu0 %v3669
        %4128 = vmatpush1.bf16.msra.mxu0 %v3668
        %4129 = vmatprep.subr.bf16.mxu0 %v3673
        %4130 = vmatpush1.bf16.msra.mxu0 %v3672
        %4131 = vmatprep.subr.bf16.mxu0 %v3677
        %4132 = vmatpush1.bf16.msra.mxu0 %v3676
        %4133 = vmatprep.subr.bf16.mxu0 %v3681
        %4134 = vmatpush1.bf16.msra.mxu0 %v3680
        %4135 = vmatprep.subr.bf16.mxu0 %v3685
        %4136 = vmatpush1.bf16.msra.mxu0 %v3684
        %4137 = vmatprep.subr.bf16.mxu0 %v3689
        %4138 = vmatpush1.bf16.msra.mxu0 %v3688
        %4139 = vmatprep.subr.bf16.mxu0 %v3693
        %4140 = vmatpush1.bf16.msra.mxu0 %v3692
        %4141 = vmatprep.subr.bf16.mxu0 %v3697
        %4142 = vmatpush1.bf16.msra.mxu0 %v3696
        %4143 = vmatprep.subr.bf16.mxu0 %v3701
        %4144 = vmatpush1.bf16.msra.mxu0 %v3700
        %4145 = vmatprep.subr.bf16.mxu0 %v3705
        %4146 = vmatpush1.bf16.msra.mxu0 %v3704
        %4147 = vmatprep.subr.bf16.mxu0 %v3709
        %4148 = vmatpush1.bf16.msra.mxu0 %v3708
        %4149 = vmatprep.subr.bf16.mxu0 %v3713
        %4150 = vmatpush1.bf16.msra.mxu0 %v3712
        %4151 = vmatprep.subr.bf16.mxu0 %v3717
        %4152 = vmatpush1.bf16.msra.mxu0 %v3716
        %4153 = vmatprep.subr.bf16.mxu0 %v3721
        %4154 = vmatpush1.bf16.msra.mxu0 %v3720
        %4155 = vmatprep.subr.bf16.mxu0 %v3725
        %4156 = vmatpush1.bf16.msra.mxu0 %v3724
        %4157 = vmatprep.subr.bf16.mxu0 %v3729
        %4158 = vmatpush1.bf16.msra.mxu0 %v3728
        %4159 = vmatprep.mubr.bf16.mxu0 %v2955
        %4160 = vmatmul.mubr.bf16.gmra.mrb[0].mxu0 %v2954
        %v4161 = vpop.f32.mrb[0].mxu0
        %v4162 = vadd.f32 %v4121, %v4161
        %v4163 = vpop.f32.mrb[0].mxu0
        %v4164 = vadd.f32 %v4123, %v4163
        %v4165 = vpop.f32.mrb[0].mxu0
        %v4166 = vpop.f32.mrb[0].mxu0
        %4167 = vdwg.mxu0
        %4168 = vst [vmem:[%s435] sm:$0xff] %v4039
        %4169 = vst [vmem:[%s435 + $0x8] sm:$0xff] %v4041
        %4170 = vst [vmem:[%s435 + $0x10] sm:$0xff] %v4162
        %4171 = vst [vmem:[%s435 + $0x18] sm:$0xff] %v4164
        %s4172 = sand.u32 %s213, 1
        %s4173 = scalar_lea.sflag [#allocation5], %s4172
        %s4174 = sand.u32 %s213, 1
        %s4175 = smul.addr %s4174, 32
        %s4176 = scalar_lea.vmem [#allocation15], %s4175
        // Predicated region
        $region81: #{tpu_custom_call.1} parent=47 // pred_check
          %p4177 = pneg %p223
        $region82: #{tpu_custom_call.1} parent=47 // pred_check_branch
          %4179 = sbr.rel (%p4177) target = $region84
        $region83: #{tpu_custom_call.1} parent=47 // pred_region
          %s4180 = smul.u32 4, %s34
          %s4182 = ssub.s32 512, 512
          %4183 = vsyncadd %s4173, %s4182
          %s4184 = smul.addr %s33, 8
          %s4185 = sadd.s32 %s4180, %s4184
          %s4186 = smul.addr %s4185, 128
          %s4187 = scalar_lea.hbm %s7, %s4186
          %s4189 = sshll.u32 %s4176, 4
          %s4190 = int_to_ptr.vmem [resolvable:$true] %s4189
          %4192 = dma.vmem_to_hbm [thread:$0]  %s4190, 512, %s4187, %s4173
        $region84: #{tpu_custom_call.1} parent=47 // pred_fallthru
          _
      $region48: #{tpu_custom_call.1} parent=5 // pred_fallthru
        _
      %p4193 = scmp.le.s32.totalorder 2, %s24
      // Predicated region
      $region85: #{tpu_custom_call.1} parent=5 // pred_check
        %p4194 = pneg %p4193
      $region86: #{tpu_custom_call.1} parent=5 // pred_check_branch
        %4196 = sbr.rel (%p4194) target = $region88
      $region87: #{tpu_custom_call.1} parent=5 // pred_region
        %s4197 = ssub.s32 %s24, 2
        // Predicated region
        $region89: #{tpu_custom_call.1} parent=87 // pred_check
          %p4198 = pneg %p229
        $region90: #{tpu_custom_call.1} parent=87 // pred_check_branch
          %4200 = sbr.rel (%p4198) target = $region92
        $region91: #{tpu_custom_call.1} parent=87 // pred_region
          %s4201 = sand.u32 %s214, 1
          %s4202 = scalar_lea.sflag [#allocation5], %s4201
          %s4203 = sand.u32 %s214, 1
          %s4204 = smul.addr %s4203, 32
          %s4205 = scalar_lea.vmem [#allocation15], %s4204
          %4206 = dma.done %s4202, 512
        $region92: #{tpu_custom_call.1} parent=87 // pred_fallthru
          _
      $region88: #{tpu_custom_call.1} parent=5 // pred_fallthru
        _
    $region6: #{tpu_custom_call.1} parent=1 // loop_footer
      %s28 = sadd.s32 1, %s24
    $region7: #{tpu_custom_call.1} parent=1 // loop_footer_branch
      %23 = sbr.rel target = $region3
    $region8: #{tpu_custom_call.1} parent=1 // loop_exit
      _
    %4207 = vsyncpa [#allocation4], 1
    %s4208 = scalar_lea.sflag [#allocation4], 1
    %4209 = vsyncpa %s4208, 1
    %4210 = vsyncpa [#allocation7], 1
    %4211 = vsyncpa [#allocation10], 1
    %4212 = vsyncpa [#allocation13], 1
    %s4213 = scalar_lea.sflag [#allocation13], 1
    %4214 = vsyncpa %s4213, 1
    %4215 = vsyncpa [#allocation5], 1
    %s4216 = scalar_lea.sflag [#allocation5], 1
    %4217 = vsyncpa %s4216, 1

// kernel: tpu_custom_call.1
$region0: #{tpu_custom_call.1}
  #allocation0 [shape = 'u32[]', space=smem, size = 0x4, offset = 0x4, fixed_abs, tag = 'smem constant byte address 0x4 - core index']
  #allocation1 [shape = 'u32[144,128]{1,0:T(1,128)}', space=vmem, size = 0x12000, scoped, tag = 'internal scratch']
  #allocation2 [shape = 'bf16[8,768]{1,0:T(8,128)(2,1)}', space=vmem, size = 0x3000, scoped, tag = 'scratch operand']
  %s0 = inlined_call_operand.hbm [shape: f32[16,768], index: 0, kind: input, shape index: {}]
  %s1 = inlined_call_operand.hbm [shape: bf16[768,768], index: 1, kind: input, shape index: {}]
  %s2 = inlined_call_operand.hbm [shape: f32[1,768], index: 2, kind: input, shape index: {}]
  %s3 = inlined_call_operand.hbm [shape: f32[1,768], index: 3, kind: input, shape index: {}]
  %s4 = inlined_call_operand.hbm [shape: f32[1,768], index: 4, kind: input, shape index: {}]
  %s5 = inlined_call_operand.hbm [shape: bf16[768,1024], index: 5, kind: input, shape index: {}]
  %s6 = inlined_call_operand.hbm [shape: f32[1,1024], index: 6, kind: input, shape index: {}]
  %s7 = inlined_call_operand.hbm [shape: f32[16,1024], index: 7, kind: output, shape index: {}]
  %s8 = sld [smem:[#allocation0]]
  $region93: #{tpu_custom_call.1} parent=0
    _
  %s10 = ssub.s32 1, %s8
  %s11 = scalar_select 0, %s10, %s8
  $region1: #{tpu_custom_call.1} parent=0
    #allocation3 [shape = 'u8[49152]{0}', space=vmem, size = 0xc000, scoped, tag = 'input window, operand 0']
    #allocation4 [shape = 's32[2]{0}', space=sflag, size = 0x8, scoped, tag = 'scoped memory for tpu_custom_call.1']
    #allocation5 [shape = 's32[2]{0}', space=sflag, size = 0x8, scoped, tag = 'scoped memory for tpu_custom_call.1']
    #allocation6 [shape = 'u8[1179648]{0}', space=vmem, size = 0x120000, scoped, tag = 'input window, operand 1, single buffered']
    #allocation7 [shape = 's32[1]{0}', space=sflag, size = 0x4, scoped, tag = 'scoped memory for tpu_custom_call.1']
    #allocation8 [shape = 'u8[3072]{0}', space=vmem, size = 0xc00, scoped, tag = 'input window, operand 2, single buffered']
    #allocation9 [shape = 'u8[3072]{0}', space=vmem, size = 0xc00, scoped, tag = 'input window, operand 3, single buffered']
    #allocation10 [shape = 's32[1]{0}', space=sflag, size = 0x4, scoped, tag = 'scoped memory for tpu_custom_call.1']
    #allocation11 [shape = 'u8[3072]{0}', space=vmem, size = 0xc00, scoped, tag = 'input window, operand 4, single buffered']
    #allocation12 [shape = 'u8[1572864]{0}', space=vmem, size = 0x180000, scoped, tag = 'input window, operand 5']
    #allocation13 [shape = 's32[2]{0}', space=sflag, size = 0x8, scoped, tag = 'scoped memory for tpu_custom_call.1']
    #allocation14 [shape = 'u8[4096]{0}', space=vmem, size = 0x1000, scoped, tag = 'input window, operand 6']
    #allocation15 [shape = 'u8[32768]{0}', space=vmem, size = 0x8000, scoped, tag = 'output window, operand 0']
    %12 = vsyncpa [#allocation4], 0
    %s13 = scalar_lea.sflag [#allocation4], 1
    %14 = vsyncpa %s13, 0
    %15 = vsyncpa [#allocation7], 0
    %16 = vsyncpa [#allocation10], 0
    %17 = vsyncpa [#allocation13], 0
    %s18 = scalar_lea.sflag [#allocation13], 1
    %19 = vsyncpa %s18, 0
    %20 = vsyncpa [#allocation5], 0
    %s21 = scalar_lea.sflag [#allocation5], 1
    %22 = vsyncpa %s21, 0
    loop: start=0, step=1, limit=6
    $region2: #{tpu_custom_call.1} parent=1 // loop_pre_header
      _
    $region3: #{tpu_custom_call.1} parent=1 // loop_header
      %s24 = sphi 0, %s28
      %p25 = scmp.ge.s32.totalorder %s24, 6
      %s31 = sphi 0, %s43
      %s32 = sphi 0, %s39
      %s33 = sphi 0, %s31
      %s34 = sphi 0, %s32
      %s35 = sphi 0, %s33
      %s36 = sphi 0, %s34
      %s46 = sphi 0, %s48
      %s49 = sphi 0, %s46
      %s50 = sphi 0, %s49
      %s66 = sphi 0, %s50
      %s70 = sphi 0, %s70
      %s72 = sphi 0, %s70
      %s73 = sphi 0, %s72
      %s87 = sphi 0, %s73
      %s91 = sphi 0, %s91
      %s93 = sphi 0, %s91
      %s94 = sphi 0, %s93
      %s108 = sphi 0, %s94
      %s112 = sphi 0, %s112
      %s114 = sphi 0, %s112
      %s115 = sphi 0, %s114
      %s129 = sphi 0, %s115
      %s133 = sphi 0, %s133
      %s135 = sphi 0, %s133
      %s136 = sphi 0, %s135
      %s150 = sphi 0, %s136
      %s156 = sphi 0, %s158
      %s159 = sphi 0, %s156
      %s160 = sphi 0, %s159
      %s176 = sphi 0, %s160
      %s182 = sphi 0, %s184
      %s185 = sphi 0, %s182
      %s186 = sphi 0, %s185
      %s202 = sphi 0, %s186
      %s210 = sphi 0, %s212
      %s213 = sphi 0, %s210
      %s214 = sphi 0, %s213
      %s230 = sphi 0, %s214
    $region4: #{tpu_custom_call.1} parent=1 // loop_header_branch
      %27 = sbr.rel (%p25) target = $region8
    $region5: #{tpu_custom_call.1} parent=1 // loop_body
      %s29 = ssub.s32 %s24, 1
      %s30 = ssub.s32 %s24, 2
      %s37 = sadd.s32 1, %s32
      %p38 = scmp.ge.s32.totalorder %s37, 2
      %s39 = scalar_select %p38, 0, %s37
      %s40 = sadd.s32 1, %s31
      %s41 = scalar_select %p38, %s40, %s31
      %p42 = scmp.ge.s32.totalorder %s41, 2
      %s43 = scalar_select %p42, 0, %s41
      %s44 = ssub.s32 %s31, %s43
      %p45 = scmp.eq.s32.totalorder %s44, 0
      %s47 = sadd.s32 %s46, 1
      %s48 = scalar_select %p45, %s46, %s47
      %p51 = pneg %p45
      %p52 = scmp.eq.s32.totalorder %s24, 3
      %p53 = por %p51, %p52
      %p54 = scmp.ne.s32.totalorder %s46, %s49
      %p55 = scmp.eq.s32.totalorder %s24, 0
      %p56 = por %p54, %p55
      %p57 = scmp.ne.s32.totalorder %s46, %s49
      %p58 = scmp.eq.s32.totalorder %s29, 3
      %p59 = por %p57, %p58
      %p60 = scmp.ne.s32.totalorder %s49, %s50
      %p61 = scmp.eq.s32.totalorder %s29, 0
      %p62 = por %p60, %p61
      %p63 = scmp.ne.s32.totalorder %s49, %s50
      %p64 = scmp.eq.s32.totalorder %s30, 3
      %p65 = por %p63, %p64
      %p67 = scmp.ne.s32.totalorder %s50, %s66
      %p68 = scmp.eq.s32.totalorder %s30, 0
      %p69 = por %p67, %p68
      %s71 = sadd.s32 %s70, 1
      %p74 = scmp.eq.s32.totalorder %s24, 3
      %p75 = scmp.ne.s32.totalorder %s70, %s72
      %p76 = scmp.eq.s32.totalorder %s24, 0
      %p77 = por %p75, %p76
      %p78 = scmp.ne.s32.totalorder %s70, %s72
      %p79 = scmp.eq.s32.totalorder %s29, 3
      %p80 = por %p78, %p79
      %p81 = scmp.ne.s32.totalorder %s72, %s73
      %p82 = scmp.eq.s32.totalorder %s29, 0
      %p83 = por %p81, %p82
      %p84 = scmp.ne.s32.totalorder %s72, %s73
      %p85 = scmp.eq.s32.totalorder %s30, 3
      %p86 = por %p84, %p85
      %p88 = scmp.ne.s32.totalorder %s73, %s87
      %p89 = scmp.eq.s32.totalorder %s30, 0
      %p90 = por %p88, %p89
      %s92 = sadd.s32 %s91, 1
      %p95 = scmp.eq.s32.totalorder %s24, 3
      %p96 = scmp.ne.s32.totalorder %s91, %s93
      %p97 = scmp.eq.s32.totalorder %s24, 0
      %p98 = por %p96, %p97
      %p99 = scmp.ne.s32.totalorder %s91, %s93
      %p100 = scmp.eq.s32.totalorder %s29, 3
      %p101 = por %p99, %p100
      %p102 = scmp.ne.s32.totalorder %s93, %s94
      %p103 = scmp.eq.s32.totalorder %s29, 0
      %p104 = por %p102, %p103
      %p105 = scmp.ne.s32.totalorder %s93, %s94
      %p106 = scmp.eq.s32.totalorder %s30, 3
      %p107 = por %p105, %p106
      %p109 = scmp.ne.s32.totalorder %s94, %s108
      %p110 = scmp.eq.s32.totalorder %s30, 0
      %p111 = por %p109, %p110
      %s113 = sadd.s32 %s112, 1
      %p116 = scmp.eq.s32.totalorder %s24, 3
      %p117 = scmp.ne.s32.totalorder %s112, %s114
      %p118 = scmp.eq.s32.totalorder %s24, 0
      %p119 = por %p117, %p118
      %p120 = scmp.ne.s32.totalorder %s112, %s114
      %p121 = scmp.eq.s32.totalorder %s29, 3
      %p122 = por %p120, %p121
      %p123 = scmp.ne.s32.totalorder %s114, %s115
      %p124 = scmp.eq.s32.totalorder %s29, 0
      %p125 = por %p123, %p124
      %p126 = scmp.ne.s32.totalorder %s114, %s115
      %p127 = scmp.eq.s32.totalorder %s30, 3
      %p128 = por %p126, %p127
      %p130 = scmp.ne.s32.totalorder %s115, %s129
      %p131 = scmp.eq.s32.totalorder %s30, 0
      %p132 = por %p130, %p131
      %s134 = sadd.s32 %s133, 1
      %p137 = scmp.eq.s32.totalorder %s24, 3
      %p138 = scmp.ne.s32.totalorder %s133, %s135
      %p139 = scmp.eq.s32.totalorder %s24, 0
      %p140 = por %p138, %p139
      %p141 = scmp.ne.s32.totalorder %s133, %s135
      %p142 = scmp.eq.s32.totalorder %s29, 3
      %p143 = por %p141, %p142
      %p144 = scmp.ne.s32.totalorder %s135, %s136
      %p145 = scmp.eq.s32.totalorder %s29, 0
      %p146 = por %p144, %p145
      %p147 = scmp.ne.s32.totalorder %s135, %s136
      %p148 = scmp.eq.s32.totalorder %s30, 3
      %p149 = por %p147, %p148
      %p151 = scmp.ne.s32.totalorder %s136, %s150
      %p152 = scmp.eq.s32.totalorder %s30, 0
      %p153 = por %p151, %p152
      %s154 = ssub.s32 %s32, %s39
      %p155 = scmp.eq.s32.totalorder %s154, 0
      %s157 = sadd.s32 %s156, 1
      %s158 = scalar_select %p155, %s156, %s157
      %p161 = pneg %p155
      %p162 = scmp.eq.s32.totalorder %s24, 3
      %p163 = por %p161, %p162
      %p164 = scmp.ne.s32.totalorder %s156, %s159
      %p165 = scmp.eq.s32.totalorder %s24, 0
      %p166 = por %p164, %p165
      %p167 = scmp.ne.s32.totalorder %s156, %s159
      %p168 = scmp.eq.s32.totalorder %s29, 3
      %p169 = por %p167, %p168
      %p170 = scmp.ne.s32.totalorder %s159, %s160
      %p171 = scmp.eq.s32.totalorder %s29, 0
      %p172 = por %p170, %p171
      %p173 = scmp.ne.s32.totalorder %s159, %s160
      %p174 = scmp.eq.s32.totalorder %s30, 3
      %p175 = por %p173, %p174
      %p177 = scmp.ne.s32.totalorder %s160, %s176
      %p178 = scmp.eq.s32.totalorder %s30, 0
      %p179 = por %p177, %p178
      %s180 = ssub.s32 %s32, %s39
      %p181 = scmp.eq.s32.totalorder %s180, 0
      %s183 = sadd.s32 %s182, 1
      %s184 = scalar_select %p181, %s182, %s183
      %p187 = pneg %p181
      %p188 = scmp.eq.s32.totalorder %s24, 3
      %p189 = por %p187, %p188
      %p190 = scmp.ne.s32.totalorder %s182, %s185
      %p191 = scmp.eq.s32.totalorder %s24, 0
      %p192 = por %p190, %p191
      %p193 = scmp.ne.s32.totalorder %s182, %s185
      %p194 = scmp.eq.s32.totalorder %s29, 3
      %p195 = por %p193, %p194
      %p196 = scmp.ne.s32.totalorder %s185, %s186
      %p197 = scmp.eq.s32.totalorder %s29, 0
      %p198 = por %p196, %p197
      %p199 = scmp.ne.s32.totalorder %s185, %s186
      %p200 = scmp.eq.s32.totalorder %s30, 3
      %p201 = por %p199, %p200
      %p203 = scmp.ne.s32.totalorder %s186, %s202
      %p204 = scmp.eq.s32.totalorder %s30, 0
      %p205 = por %p203, %p204
      %s206 = ssub.s32 %s31, %s43
      %s207 = ssub.s32 %s32, %s39
      %s208 = sor.u32 %s206, %s207
      %p209 = scmp.eq.s32.totalorder %s208, 0
      %s211 = sadd.s32 %s210, 1
      %s212 = scalar_select %p209, %s210, %s211
      %p215 = pneg %p209
      %p216 = scmp.eq.s32.totalorder %s24, 3
      %p217 = por %p215, %p216
      %p218 = scmp.ne.s32.totalorder %s210, %s213
      %p219 = scmp.eq.s32.totalorder %s24, 0
      %p220 = por %p218, %p219
      %p221 = scmp.ne.s32.totalorder %s210, %s213
      %p222 = scmp.eq.s32.totalorder %s29, 3
      %p223 = por %p221, %p222
      %p224 = scmp.ne.s32.totalorder %s213, %s214
      %p225 = scmp.eq.s32.totalorder %s29, 0
      %p226 = por %p224, %p225
      %p227 = scmp.ne.s32.totalorder %s213, %s214
      %p228 = scmp.eq.s32.totalorder %s30, 3
      %p229 = por %p227, %p228
      %p231 = scmp.ne.s32.totalorder %s214, %s230
      %p232 = scmp.eq.s32.totalorder %s30, 0
      %p233 = por %p231, %p232
      %p234 = scmp.le.s32.totalorder 1, %s24
      %p235 = scmp.lt.s32.totalorder %s24, 5
      %p236 = pnand %p234, %p235
      %p237 = pneg %p236
      // Predicated region
      $region9: #{tpu_custom_call.1} parent=5 // pred_check
        _
      $region10: #{tpu_custom_call.1} parent=5 // pred_check_branch
        %239 = sbr.rel (%p236) target = $region12
      $region11: #{tpu_custom_call.1} parent=5 // pred_region
        %s240 = ssub.s32 %s24, 1
        // Predicated region
        $region13: #{tpu_custom_call.1} parent=11 // pred_check
          %p241 = pneg %p83
        $region14: #{tpu_custom_call.1} parent=11 // pred_check_branch
          %243 = sbr.rel (%p241) target = $region16
        $region15: #{tpu_custom_call.1} parent=11 // pred_region
          %s245 = ssub.s32 36864, 36864
          %246 = vsyncadd [#allocation7], %s245
          %s247 = sshll.u32 [#allocation6], 4
          %s248 = int_to_ptr.vmem [resolvable:$true] %s247
          %253 = dma.hbm_to_vmem [thread:$0]  %s1, 36864, %s248, [#allocation7], 384, 384, 24
        $region16: #{tpu_custom_call.1} parent=11 // pred_fallthru
          _
        // Predicated region
        $region17: #{tpu_custom_call.1} parent=11 // pred_check
          %p254 = pneg %p104
        $region18: #{tpu_custom_call.1} parent=11 // pred_check_branch
          %256 = sbr.rel (%p254) target = $region20
        $region19: #{tpu_custom_call.1} parent=11 // pred_region
          %s258 = ssub.s32 96, 96
          %259 = vsyncadd [#allocation7], %s258
          %s261 = sshll.u32 [#allocation8], 4
          %s262 = int_to_ptr.vmem [resolvable:$true] %s261
          %264 = dma.hbm_to_vmem [thread:$0]  %s2, 96, %s262, [#allocation7]
        $region20: #{tpu_custom_call.1} parent=11 // pred_fallthru
          _
        // Predicated region
        $region21: #{tpu_custom_call.1} parent=11 // pred_check
          %p265 = pneg %p125
        $region22: #{tpu_custom_call.1} parent=11 // pred_check_branch
          %267 = sbr.rel (%p265) target = $region24
        $region23: #{tpu_custom_call.1} parent=11 // pred_region
          %s269 = ssub.s32 96, 96
          %270 = vsyncadd [#allocation10], %s269
          %s272 = sshll.u32 [#allocation9], 4
          %s273 = int_to_ptr.vmem [resolvable:$true] %s272
          %275 = dma.hbm_to_vmem [thread:$0]  %s3, 96, %s273, [#allocation10]
        $region24: #{tpu_custom_call.1} parent=11 // pred_fallthru
          _
        // Predicated region
        $region25: #{tpu_custom_call.1} parent=11 // pred_check
          %p276 = pneg %p146
        $region26: #{tpu_custom_call.1} parent=11 // pred_check_branch
          %278 = sbr.rel (%p276) target = $region28
        $region27: #{tpu_custom_call.1} parent=11 // pred_region
          %s280 = ssub.s32 96, 96
          %281 = vsyncadd [#allocation10], %s280
          %s283 = sshll.u32 [#allocation11], 4
          %s284 = int_to_ptr.vmem [resolvable:$true] %s283
          %286 = dma.hbm_to_vmem [thread:$0]  %s4, 96, %s284, [#allocation10]
        $region28: #{tpu_custom_call.1} parent=11 // pred_fallthru
          _
      $region12: #{tpu_custom_call.1} parent=5 // pred_fallthru
        _
      %p287 = scmp.lt.s32.totalorder %s24, 4
      // Predicated region
      $region29: #{tpu_custom_call.1} parent=5 // pred_check
        %p288 = pneg %p287
      $region30: #{tpu_custom_call.1} parent=5 // pred_check_branch
        %290 = sbr.rel (%p288) target = $region32
      $region31: #{tpu_custom_call.1} parent=5 // pred_region
        // Predicated region
        $region33: #{tpu_custom_call.1} parent=31 // pred_check
          %p291 = pneg %p56
        $region34: #{tpu_custom_call.1} parent=31 // pred_check_branch
          %293 = sbr.rel (%p291) target = $region36
        $region35: #{tpu_custom_call.1} parent=31 // pred_region
          %s294 = sand.u32 %s46, 1
          %s295 = scalar_lea.sflag [#allocation4], %s294
          %s296 = sand.u32 %s46, 1
          %s297 = smul.addr %s296, 48
          %s298 = scalar_lea.vmem [#allocation3], %s297
          %s300 = ssub.s32 768, 768
          %301 = vsyncadd %s295, %s300
          %s302 = smul.addr %s31, 6
          %s303 = smul.addr %s302, 128
          %s304 = scalar_lea.hbm %s0, %s303
          %s306 = sshll.u32 %s298, 4
          %s307 = int_to_ptr.vmem [resolvable:$true] %s306
          %309 = dma.hbm_to_vmem [thread:$0]  %s304, 768, %s307, %s295
        $region36: #{tpu_custom_call.1} parent=31 // pred_fallthru
          _
        // Predicated region
        $region37: #{tpu_custom_call.1} parent=31 // pred_check
          %p310 = pneg %p166
        $region38: #{tpu_custom_call.1} parent=31 // pred_check_branch
          %312 = sbr.rel (%p310) target = $region40
        $region39: #{tpu_custom_call.1} parent=31 // pred_region
          %s313 = sand.u32 %s24, 1
          %s314 = scalar_lea.sflag [#allocation13], %s313
          %s315 = sand.u32 %s156, 1
          %s316 = smul.addr %s315, 1536
          %s317 = scalar_lea.vmem [#allocation12], %s316
          %s318 = smul.u32 4, %s32
          %s320 = ssub.s32 24576, 24576
          %321 = vsyncadd %s314, %s320
          %s322 = smul.addr %s318, 64
          %s323 = scalar_lea.hbm %s5, %s322
          %s324 = sshll.u32 %s317, 4
          %s325 = int_to_ptr.vmem [resolvable:$true] %s324
          %330 = dma.hbm_to_vmem [thread:$0]  %s323, 24576, %s325, %s314, 512, 256, 16
        $region40: #{tpu_custom_call.1} parent=31 // pred_fallthru
          _
        // Predicated region
        $region41: #{tpu_custom_call.1} parent=31 // pred_check
          %p331 = pneg %p192
        $region42: #{tpu_custom_call.1} parent=31 // pred_check_branch
          %333 = sbr.rel (%p331) target = $region44
        $region43: #{tpu_custom_call.1} parent=31 // pred_region
          %s334 = sand.u32 %s24, 1
          %s335 = scalar_lea.sflag [#allocation13], %s334
          %s336 = sand.u32 %s182, 1
          %s337 = smul.addr %s336, 4
          %s338 = scalar_lea.vmem [#allocation14], %s337
          %s339 = smul.u32 4, %s32
          %s341 = ssub.s32 64, 64
          %342 = vsyncadd %s335, %s341
          %s343 = smul.addr %s339, 16
          %s344 = scalar_lea.hbm %s6, %s343
          %s346 = sshll.u32 %s338, 4
          %s347 = int_to_ptr.vmem [resolvable:$true] %s346
          %349 = dma.hbm_to_vmem [thread:$0]  %s344, 64, %s347, %s335
        $region44: #{tpu_custom_call.1} parent=31 // pred_fallthru
          _
      $region32: #{tpu_custom_call.1} parent=5 // pred_fallthru
        _
      %p350 = scmp.le.s32.totalorder 1, %s24
      %p351 = scmp.lt.s32.totalorder %s24, 5
      %p352 = pnand %p350, %p351
      %p353 = pneg %p352
      // Predicated region
      $region45: #{tpu_custom_call.1} parent=5 // pred_check
        _
      $region46: #{tpu_custom_call.1} parent=5 // pred_check_branch
        %355 = sbr.rel (%p352) target = $region48
      $region47: #{tpu_custom_call.1} parent=5 // pred_region
        %s356 = ssub.s32 %s24, 1
        %s357 = sand.u32 %s49, 1
        %s358 = scalar_lea.sflag [#allocation4], %s357
        %s359 = sand.u32 %s49, 1
        %s360 = smul.addr %s359, 48
        %s361 = scalar_lea.vmem [#allocation3], %s360
        // Predicated region
        $region49: #{tpu_custom_call.1} parent=47 // pred_check
          %p362 = pneg %p62
        $region50: #{tpu_custom_call.1} parent=47 // pred_check_branch
          %364 = sbr.rel (%p362) target = $region52
        $region51: #{tpu_custom_call.1} parent=47 // pred_region
          %365 = dma.done %s358, 768
        $region52: #{tpu_custom_call.1} parent=47 // pred_fallthru
          _
        // Predicated region
        $region53: #{tpu_custom_call.1} parent=47 // pred_check
          %p366 = pneg %p83
        $region54: #{tpu_custom_call.1} parent=47 // pred_check_branch
          %368 = sbr.rel (%p366) target = $region56
        $region55: #{tpu_custom_call.1} parent=47 // pred_region
          %369 = dma.done [#allocation7], 36864
        $region56: #{tpu_custom_call.1} parent=47 // pred_fallthru
          _
        // Predicated region
        $region57: #{tpu_custom_call.1} parent=47 // pred_check
          %p370 = pneg %p104
        $region58: #{tpu_custom_call.1} parent=47 // pred_check_branch
          %372 = sbr.rel (%p370) target = $region60
        $region59: #{tpu_custom_call.1} parent=47 // pred_region
          %373 = dma.done [#allocation7], 96
        $region60: #{tpu_custom_call.1} parent=47 // pred_fallthru
          _
        // Predicated region
        $region61: #{tpu_custom_call.1} parent=47 // pred_check
          %p374 = pneg %p125
        $region62: #{tpu_custom_call.1} parent=47 // pred_check_branch
          %376 = sbr.rel (%p374) target = $region64
        $region63: #{tpu_custom_call.1} parent=47 // pred_region
          %377 = dma.done [#allocation10], 96
        $region64: #{tpu_custom_call.1} parent=47 // pred_fallthru
          _
        // Predicated region
        $region65: #{tpu_custom_call.1} parent=47 // pred_check
          %p378 = pneg %p146
        $region66: #{tpu_custom_call.1} parent=47 // pred_check_branch
          %380 = sbr.rel (%p378) target = $region68
        $region67: #{tpu_custom_call.1} parent=47 // pred_region
          %381 = dma.done [#allocation10], 96
        $region68: #{tpu_custom_call.1} parent=47 // pred_fallthru
          _
        %s382 = sand.u32 %s29, 1
        %s383 = scalar_lea.sflag [#allocation13], %s382
        %s384 = sand.u32 %s159, 1
        %s385 = smul.addr %s384, 1536
        %s386 = scalar_lea.vmem [#allocation12], %s385
        // Predicated region
        $region69: #{tpu_custom_call.1} parent=47 // pred_check
          %p387 = pneg %p172
        $region70: #{tpu_custom_call.1} parent=47 // pred_check_branch
          %389 = sbr.rel (%p387) target = $region72
        $region71: #{tpu_custom_call.1} parent=47 // pred_region
          %390 = dma.done %s383, 24576
        $region72: #{tpu_custom_call.1} parent=47 // pred_fallthru
          _
        %s391 = sand.u32 %s29, 1
        %s392 = scalar_lea.sflag [#allocation13], %s391
        %s393 = sand.u32 %s185, 1
        %s394 = smul.addr %s393, 4
        %s395 = scalar_lea.vmem [#allocation14], %s394
        // Predicated region
        $region73: #{tpu_custom_call.1} parent=47 // pred_check
          %p396 = pneg %p198
        $region74: #{tpu_custom_call.1} parent=47 // pred_check_branch
          %398 = sbr.rel (%p396) target = $region76
        $region75: #{tpu_custom_call.1} parent=47 // pred_region
          %399 = dma.done %s392, 64
        $region76: #{tpu_custom_call.1} parent=47 // pred_fallthru
          _
        %s400 = sand.u32 %s49, 1
        %s401 = scalar_lea.sflag [#allocation4], %s400
        %s402 = sand.u32 %s49, 1
        %s403 = smul.addr %s402, 48
        %s404 = scalar_lea.vmem [#allocation3], %s403
        %p405 = pneg %p62
        %p406 = pneg %p59
        %p407 = pneg %p83
        %p408 = pneg %p80
        %p409 = pneg %p104
        %p410 = pneg %p101
        %p411 = pneg %p125
        %p412 = pneg %p122
        %p413 = pneg %p146
        %p414 = pneg %p143
        %s415 = sand.u32 %s29, 1
        %s416 = scalar_lea.sflag [#allocation13], %s415
        %s417 = sand.u32 %s159, 1
        %s418 = smul.addr %s417, 1536
        %s419 = scalar_lea.vmem [#allocation12], %s418
        %p420 = pneg %p172
        %p421 = pneg %p169
        %s422 = sand.u32 %s29, 1
        %s423 = scalar_lea.sflag [#allocation13], %s422
        %s424 = sand.u32 %s185, 1
        %s425 = smul.addr %s424, 4
        %s426 = scalar_lea.vmem [#allocation14], %s425
        %p427 = pneg %p198
        %p428 = pneg %p195
        %p429 = pneg %p226
        %p430 = pneg %p223
        %s431 = sand.u32 %s213, 1
        %s432 = scalar_lea.sflag [#allocation5], %s431
        %s433 = sand.u32 %s213, 1
        %s434 = smul.addr %s433, 32
        %s435 = scalar_lea.vmem [#allocation15], %s434
        %s436 = smul.u32 4, %s34
        %s437 = smul.u32 4, %s34
        %s438 = smul.u32 4, %s34
        %p439 = scmp.eq.s32.totalorder %s34, 0
        // Predicated region
        $region77: #{tpu_custom_call.1} parent=47 // pred_check
          %p440 = pneg %p439
        $region78: #{tpu_custom_call.1} parent=47 // pred_check_branch
          %442 = sbr.rel (%p440) target = $region80
        $region79: #{tpu_custom_call.1} parent=47 // pred_region
          %v443 = vld [vmem:[%s361] sm:$0xff]
          %v444 = vld [vmem:[%s361 + $0x8] sm:$0xff]
          %v445 = vld [vmem:[%s361 + $0x10] sm:$0xff]
          %v446 = vld [vmem:[%s361 + $0x18] sm:$0xff]
          %v447 = vld [vmem:[%s361 + $0x20] sm:$0xff]
          %v448 = vld [vmem:[%s361 + $0x28] sm:$0xff]
          %v449 = vpack.c.bf16 %v443, %v443
          %v450 = vpack.c.bf16 %v444, %v444
          %v451 = vpack.c.bf16 %v445, %v445
          %v452 = vpack.c.bf16 %v446, %v446
          %v453 = vpack.c.bf16 %v447, %v447
          %v454 = vpack.c.bf16 %v448, %v448
          %v455 = vld [vmem:[#allocation6] sm:$0xff]
          %v456 = vld [vmem:[#allocation6 + $0x8] sm:$0xff]
          %v457 = vld [vmem:[#allocation6 + $0x10] sm:$0xff]
          %v458 = vld [vmem:[#allocation6 + $0x18] sm:$0xff]
          %v459 = vld [vmem:[#allocation6 + $0x20] sm:$0xff]
          %v460 = vld [vmem:[#allocation6 + $0x28] sm:$0xff]
          %v461 = vld [vmem:[#allocation6 + $0x30] sm:$0xff]
          %v462 = vld [vmem:[#allocation6 + $0x38] sm:$0xff]
          %v463 = vld [vmem:[#allocation6 + $0x40] sm:$0xff]
          %v464 = vld [vmem:[#allocation6 + $0x48] sm:$0xff]
          %v465 = vld [vmem:[#allocation6 + $0x50] sm:$0xff]
          %v466 = vld [vmem:[#allocation6 + $0x58] sm:$0xff]
          %v467 = vld [vmem:[#allocation6 + $0x60] sm:$0xff]
          %v468 = vld [vmem:[#allocation6 + $0x68] sm:$0xff]
          %v469 = vld [vmem:[#allocation6 + $0x70] sm:$0xff]
          %v470 = vld [vmem:[#allocation6 + $0x78] sm:$0xff]
          %v471 = vld [vmem:[#allocation6 + $0x80] sm:$0xff]
          %v472 = vld [vmem:[#allocation6 + $0x88] sm:$0xff]
          %v473 = vld [vmem:[#allocation6 + $0x90] sm:$0xff]
          %v474 = vld [vmem:[#allocation6 + $0x98] sm:$0xff]
          %v475 = vld [vmem:[#allocation6 + $0xa0] sm:$0xff]
          %v476 = vld [vmem:[#allocation6 + $0xa8] sm:$0xff]
          %v477 = vld [vmem:[#allocation6 + $0xb0] sm:$0xff]
          %v478 = vld [vmem:[#allocation6 + $0xb8] sm:$0xff]
          %v479 = vld [vmem:[#allocation6 + $0xc0] sm:$0xff]
          %v480 = vld [vmem:[#allocation6 + $0xc8] sm:$0xff]
          %v481 = vld [vmem:[#allocation6 + $0xd0] sm:$0xff]
          %v482 = vld [vmem:[#allocation6 + $0xd8] sm:$0xff]
          %v483 = vld [vmem:[#allocation6 + $0xe0] sm:$0xff]
          %v484 = vld [vmem:[#allocation6 + $0xe8] sm:$0xff]
          %v485 = vld [vmem:[#allocation6 + $0xf0] sm:$0xff]
          %v486 = vld [vmem:[#allocation6 + $0xf8] sm:$0xff]
          %v487 = vld [vmem:[#allocation6 + $0x100] sm:$0xff]
          %v488 = vld [vmem:[#allocation6 + $0x108] sm:$0xff]
          %v489 = vld [vmem:[#allocation6 + $0x110] sm:$0xff]
          %v490 = vld [vmem:[#allocation6 + $0x118] sm:$0xff]
          %v491 = vld [vmem:[#allocation6 + $0x120] sm:$0xff]
          %v492 = vld [vmem:[#allocation6 + $0x128] sm:$0xff]
          %v493 = vld [vmem:[#allocation6 + $0x130] sm:$0xff]
          %v494 = vld [vmem:[#allocation6 + $0x138] sm:$0xff]
          %v495 = vld [vmem:[#allocation6 + $0x140] sm:$0xff]
          %v496 = vld [vmem:[#allocation6 + $0x148] sm:$0xff]
          %v497 = vld [vmem:[#allocation6 + $0x150] sm:$0xff]
          %v498 = vld [vmem:[#allocation6 + $0x158] sm:$0xff]
          %v499 = vld [vmem:[#allocation6 + $0x160] sm:$0xff]
          %v500 = vld [vmem:[#allocation6 + $0x168] sm:$0xff]
          %v501 = vld [vmem:[#allocation6 + $0x170] sm:$0xff]
          %v502 = vld [vmem:[#allocation6 + $0x178] sm:$0xff]
          %v503 = vld [vmem:[#allocation6 + $0x180] sm:$0xff]
          %v504 = vld [vmem:[#allocation6 + $0x188] sm:$0xff]
          %v505 = vld [vmem:[#allocation6 + $0x190] sm:$0xff]
          %v506 = vld [vmem:[#allocation6 + $0x198] sm:$0xff]
          %v507 = vld [vmem:[#allocation6 + $0x1a0] sm:$0xff]
          %v508 = vld [vmem:[#allocation6 + $0x1a8] sm:$0xff]
          %v509 = vld [vmem:[#allocation6 + $0x1b0] sm:$0xff]
          %v510 = vld [vmem:[#allocation6 + $0x1b8] sm:$0xff]
          %v511 = vld [vmem:[#allocation6 + $0x1c0] sm:$0xff]
          %v512 = vld [vmem:[#allocation6 + $0x1c8] sm:$0xff]
          %v513 = vld [vmem:[#allocation6 + $0x1d0] sm:$0xff]
          %v514 = vld [vmem:[#allocation6 + $0x1d8] sm:$0xff]
          %v515 = vld [vmem:[#allocation6 + $0x1e0] sm:$0xff]
          %v516 = vld [vmem:[#allocation6 + $0x1e8] sm:$0xff]
          %v517 = vld [vmem:[#allocation6 + $0x1f0] sm:$0xff]
          %v518 = vld [vmem:[#allocation6 + $0x1f8] sm:$0xff]
          %v519 = vld [vmem:[#allocation6 + $0x200] sm:$0xff]
          %v520 = vld [vmem:[#allocation6 + $0x208] sm:$0xff]
          %v521 = vld [vmem:[#allocation6 + $0x210] sm:$0xff]
          %v522 = vld [vmem:[#allocation6 + $0x218] sm:$0xff]
          %v523 = vld [vmem:[#allocation6 + $0x220] sm:$0xff]
          %v524 = vld [vmem:[#allocation6 + $0x228] sm:$0xff]
          %v525 = vld [vmem:[#allocation6 + $0x230] sm:$0xff]
          %v526 = vld [vmem:[#allocation6 + $0x238] sm:$0xff]
          %v527 = vld [vmem:[#allocation6 + $0x240] sm:$0xff]
          %v528 = vld [vmem:[#allocation6 + $0x248] sm:$0xff]
          %v529 = vld [vmem:[#allocation6 + $0x250] sm:$0xff]
          %v530 = vld [vmem:[#allocation6 + $0x258] sm:$0xff]
          %v531 = vld [vmem:[#allocation6 + $0x260] sm:$0xff]
          %v532 = vld [vmem:[#allocation6 + $0x268] sm:$0xff]
          %v533 = vld [vmem:[#allocation6 + $0x270] sm:$0xff]
          %v534 = vld [vmem:[#allocation6 + $0x278] sm:$0xff]
          %v535 = vld [vmem:[#allocation6 + $0x280] sm:$0xff]
          %v536 = vld [vmem:[#allocation6 + $0x288] sm:$0xff]
          %v537 = vld [vmem:[#allocation6 + $0x290] sm:$0xff]
          %v538 = vld [vmem:[#allocation6 + $0x298] sm:$0xff]
          %v539 = vld [vmem:[#allocation6 + $0x2a0] sm:$0xff]
          %v540 = vld [vmem:[#allocation6 + $0x2a8] sm:$0xff]
          %v541 = vld [vmem:[#allocation6 + $0x2b0] sm:$0xff]
          %v542 = vld [vmem:[#allocation6 + $0x2b8] sm:$0xff]
          %v543 = vld [vmem:[#allocation6 + $0x2c0] sm:$0xff]
          %v544 = vld [vmem:[#allocation6 + $0x2c8] sm:$0xff]
          %v545 = vld [vmem:[#allocation6 + $0x2d0] sm:$0xff]
          %v546 = vld [vmem:[#allocation6 + $0x2d8] sm:$0xff]
          %v547 = vld [vmem:[#allocation6 + $0x2e0] sm:$0xff]
          %v548 = vld [vmem:[#allocation6 + $0x2e8] sm:$0xff]
          %v549 = vld [vmem:[#allocation6 + $0x2f0] sm:$0xff]
          %v550 = vld [vmem:[#allocation6 + $0x2f8] sm:$0xff]
          %v551 = vld [vmem:[#allocation6 + $0x300] sm:$0xff]
          %v552 = vld [vmem:[#allocation6 + $0x308] sm:$0xff]
          %v553 = vld [vmem:[#allocation6 + $0x310] sm:$0xff]
          %v554 = vld [vmem:[#allocation6 + $0x318] sm:$0xff]
          %v555 = vld [vmem:[#allocation6 + $0x320] sm:$0xff]
          %v556 = vld [vmem:[#allocation6 + $0x328] sm:$0xff]
          %v557 = vld [vmem:[#allocation6 + $0x330] sm:$0xff]
          %v558 = vld [vmem:[#allocation6 + $0x338] sm:$0xff]
          %v559 = vld [vmem:[#allocation6 + $0x340] sm:$0xff]
          %v560 = vld [vmem:[#allocation6 + $0x348] sm:$0xff]
          %v561 = vld [vmem:[#allocation6 + $0x350] sm:$0xff]
          %v562 = vld [vmem:[#allocation6 + $0x358] sm:$0xff]
          %v563 = vld [vmem:[#allocation6 + $0x360] sm:$0xff]
          %v564 = vld [vmem:[#allocation6 + $0x368] sm:$0xff]
          %v565 = vld [vmem:[#allocation6 + $0x370] sm:$0xff]
          %v566 = vld [vmem:[#allocation6 + $0x378] sm:$0xff]
          %v567 = vld [vmem:[#allocation6 + $0x380] sm:$0xff]
          %v568 = vld [vmem:[#allocation6 + $0x388] sm:$0xff]
          %v569 = vld [vmem:[#allocation6 + $0x390] sm:$0xff]
          %v570 = vld [vmem:[#allocation6 + $0x398] sm:$0xff]
          %v571 = vld [vmem:[#allocation6 + $0x3a0] sm:$0xff]
          %v572 = vld [vmem:[#allocation6 + $0x3a8] sm:$0xff]
          %v573 = vld [vmem:[#allocation6 + $0x3b0] sm:$0xff]
          %v574 = vld [vmem:[#allocation6 + $0x3b8] sm:$0xff]
          %v575 = vld [vmem:[#allocation6 + $0x3c0] sm:$0xff]
          %v576 = vld [vmem:[#allocation6 + $0x3c8] sm:$0xff]
          %v577 = vld [vmem:[#allocation6 + $0x3d0] sm:$0xff]
          %v578 = vld [vmem:[#allocation6 + $0x3d8] sm:$0xff]
          %v579 = vld [vmem:[#allocation6 + $0x3e0] sm:$0xff]
          %v580 = vld [vmem:[#allocation6 + $0x3e8] sm:$0xff]
          %v581 = vld [vmem:[#allocation6 + $0x3f0] sm:$0xff]
          %v582 = vld [vmem:[#allocation6 + $0x3f8] sm:$0xff]
          %v583 = vld [vmem:[#allocation6 + $0x400] sm:$0xff]
          %v584 = vld [vmem:[#allocation6 + $0x408] sm:$0xff]
          %v585 = vld [vmem:[#allocation6 + $0x410] sm:$0xff]
          %v586 = vld [vmem:[#allocation6 + $0x418] sm:$0xff]
          %v587 = vld [vmem:[#allocation6 + $0x420] sm:$0xff]
          %v588 = vld [vmem:[#allocation6 + $0x428] sm:$0xff]
          %v589 = vld [vmem:[#allocation6 + $0x430] sm:$0xff]
          %v590 = vld [vmem:[#allocation6 + $0x438] sm:$0xff]
          %v591 = vld [vmem:[#allocation6 + $0x440] sm:$0xff]
          %v592 = vld [vmem:[#allocation6 + $0x448] sm:$0xff]
          %v593 = vld [vmem:[#allocation6 + $0x450] sm:$0xff]
          %v594 = vld [vmem:[#allocation6 + $0x458] sm:$0xff]
          %v595 = vld [vmem:[#allocation6 + $0x460] sm:$0xff]
          %v596 = vld [vmem:[#allocation6 + $0x468] sm:$0xff]
          %v597 = vld [vmem:[#allocation6 + $0x470] sm:$0xff]
          %v598 = vld [vmem:[#allocation6 + $0x478] sm:$0xff]
          %v599 = vld [vmem:[#allocation6 + $0x480] sm:$0xff]
          %v600 = vld [vmem:[#allocation6 + $0x488] sm:$0xff]
          %v601 = vld [vmem:[#allocation6 + $0x490] sm:$0xff]
          %v602 = vld [vmem:[#allocation6 + $0x498] sm:$0xff]
          %v603 = vld [vmem:[#allocation6 + $0x4a0] sm:$0xff]
          %v604 = vld [vmem:[#allocation6 + $0x4a8] sm:$0xff]
          %v605 = vld [vmem:[#allocation6 + $0x4b0] sm:$0xff]
          %v606 = vld [vmem:[#allocation6 + $0x4b8] sm:$0xff]
          %v607 = vld [vmem:[#allocation6 + $0x4c0] sm:$0xff]
          %v608 = vld [vmem:[#allocation6 + $0x4c8] sm:$0xff]
          %v609 = vld [vmem:[#allocation6 + $0x4d0] sm:$0xff]
          %v610 = vld [vmem:[#allocation6 + $0x4d8] sm:$0xff]
          %v611 = vld [vmem:[#allocation6 + $0x4e0] sm:$0xff]
          %v612 = vld [vmem:[#allocation6 + $0x4e8] sm:$0xff]
          %v613 = vld [vmem:[#allocation6 + $0x4f0] sm:$0xff]
          %v614 = vld [vmem:[#allocation6 + $0x4f8] sm:$0xff]
          %v615 = vld [vmem:[#allocation6 + $0x500] sm:$0xff]
          %v616 = vld [vmem:[#allocation6 + $0x508] sm:$0xff]
          %v617 = vld [vmem:[#allocation6 + $0x510] sm:$0xff]
          %v618 = vld [vmem:[#allocation6 + $0x518] sm:$0xff]
          %v619 = vld [vmem:[#allocation6 + $0x520] sm:$0xff]
          %v620 = vld [vmem:[#allocation6 + $0x528] sm:$0xff]
          %v621 = vld [vmem:[#allocation6 + $0x530] sm:$0xff]
          %v622 = vld [vmem:[#allocation6 + $0x538] sm:$0xff]
          %v623 = vld [vmem:[#allocation6 + $0x540] sm:$0xff]
          %v624 = vld [vmem:[#allocation6 + $0x548] sm:$0xff]
          %v625 = vld [vmem:[#allocation6 + $0x550] sm:$0xff]
          %v626 = vld [vmem:[#allocation6 + $0x558] sm:$0xff]
          %v627 = vld [vmem:[#allocation6 + $0x560] sm:$0xff]
          %v628 = vld [vmem:[#allocation6 + $0x568] sm:$0xff]
          %v629 = vld [vmem:[#allocation6 + $0x570] sm:$0xff]
          %v630 = vld [vmem:[#allocation6 + $0x578] sm:$0xff]
          %v631 = vld [vmem:[#allocation6 + $0x580] sm:$0xff]
          %v632 = vld [vmem:[#allocation6 + $0x588] sm:$0xff]
          %v633 = vld [vmem:[#allocation6 + $0x590] sm:$0xff]
          %v634 = vld [vmem:[#allocation6 + $0x598] sm:$0xff]
          %v635 = vld [vmem:[#allocation6 + $0x5a0] sm:$0xff]
          %v636 = vld [vmem:[#allocation6 + $0x5a8] sm:$0xff]
          %v637 = vld [vmem:[#allocation6 + $0x5b0] sm:$0xff]
          %v638 = vld [vmem:[#allocation6 + $0x5b8] sm:$0xff]
          %v639 = vld [vmem:[#allocation6 + $0x5c0] sm:$0xff]
          %v640 = vld [vmem:[#allocation6 + $0x5c8] sm:$0xff]
          %v641 = vld [vmem:[#allocation6 + $0x5d0] sm:$0xff]
          %v642 = vld [vmem:[#allocation6 + $0x5d8] sm:$0xff]
          %v643 = vld [vmem:[#allocation6 + $0x5e0] sm:$0xff]
          %v644 = vld [vmem:[#allocation6 + $0x5e8] sm:$0xff]
          %v645 = vld [vmem:[#allocation6 + $0x5f0] sm:$0xff]
          %v646 = vld [vmem:[#allocation6 + $0x5f8] sm:$0xff]
          %v647 = vld [vmem:[#allocation6 + $0x600] sm:$0xff]
          %v648 = vld [vmem:[#allocation6 + $0x608] sm:$0xff]
          %v649 = vld [vmem:[#allocation6 + $0x610] sm:$0xff]
          %v650 = vld [vmem:[#allocation6 + $0x618] sm:$0xff]
          %v651 = vld [vmem:[#allocation6 + $0x620] sm:$0xff]
          %v652 = vld [vmem:[#allocation6 + $0x628] sm:$0xff]
          %v653 = vld [vmem:[#allocation6 + $0x630] sm:$0xff]
          %v654 = vld [vmem:[#allocation6 + $0x638] sm:$0xff]
          %v655 = vld [vmem:[#allocation6 + $0x640] sm:$0xff]
          %v656 = vld [vmem:[#allocation6 + $0x648] sm:$0xff]
          %v657 = vld [vmem:[#allocation6 + $0x650] sm:$0xff]
          %v658 = vld [vmem:[#allocation6 + $0x658] sm:$0xff]
          %v659 = vld [vmem:[#allocation6 + $0x660] sm:$0xff]
          %v660 = vld [vmem:[#allocation6 + $0x668] sm:$0xff]
          %v661 = vld [vmem:[#allocation6 + $0x670] sm:$0xff]
          %v662 = vld [vmem:[#allocation6 + $0x678] sm:$0xff]
          %v663 = vld [vmem:[#allocation6 + $0x680] sm:$0xff]
          %v664 = vld [vmem:[#allocation6 + $0x688] sm:$0xff]
          %v665 = vld [vmem:[#allocation6 + $0x690] sm:$0xff]
          %v666 = vld [vmem:[#allocation6 + $0x698] sm:$0xff]
          %v667 = vld [vmem:[#allocation6 + $0x6a0] sm:$0xff]
          %v668 = vld [vmem:[#allocation6 + $0x6a8] sm:$0xff]
          %v669 = vld [vmem:[#allocation6 + $0x6b0] sm:$0xff]
          %v670 = vld [vmem:[#allocation6 + $0x6b8] sm:$0xff]
          %v671 = vld [vmem:[#allocation6 + $0x6c0] sm:$0xff]
          %v672 = vld [vmem:[#allocation6 + $0x6c8] sm:$0xff]
          %v673 = vld [vmem:[#allocation6 + $0x6d0] sm:$0xff]
          %v674 = vld [vmem:[#allocation6 + $0x6d8] sm:$0xff]
          %v675 = vld [vmem:[#allocation6 + $0x6e0] sm:$0xff]
          %v676 = vld [vmem:[#allocation6 + $0x6e8] sm:$0xff]
          %v677 = vld [vmem:[#allocation6 + $0x6f0] sm:$0xff]
          %v678 = vld [vmem:[#allocation6 + $0x6f8] sm:$0xff]
          %v679 = vld [vmem:[#allocation6 + $0x700] sm:$0xff]
          %v680 = vld [vmem:[#allocation6 + $0x708] sm:$0xff]
          %v681 = vld [vmem:[#allocation6 + $0x710] sm:$0xff]
          %v682 = vld [vmem:[#allocation6 + $0x718] sm:$0xff]
          %v683 = vld [vmem:[#allocation6 + $0x720] sm:$0xff]
          %v684 = vld [vmem:[#allocation6 + $0x728] sm:$0xff]
          %v685 = vld [vmem:[#allocation6 + $0x730] sm:$0xff]
          %v686 = vld [vmem:[#allocation6 + $0x738] sm:$0xff]
          %v687 = vld [vmem:[#allocation6 + $0x740] sm:$0xff]
          %v688 = vld [vmem:[#allocation6 + $0x748] sm:$0xff]
          %v689 = vld [vmem:[#allocation6 + $0x750] sm:$0xff]
          %v690 = vld [vmem:[#allocation6 + $0x758] sm:$0xff]
          %v691 = vld [vmem:[#allocation6 + $0x760] sm:$0xff]
          %v692 = vld [vmem:[#allocation6 + $0x768] sm:$0xff]
          %v693 = vld [vmem:[#allocation6 + $0x770] sm:$0xff]
          %v694 = vld [vmem:[#allocation6 + $0x778] sm:$0xff]
          %v695 = vld [vmem:[#allocation6 + $0x780] sm:$0xff]
          %v696 = vld [vmem:[#allocation6 + $0x788] sm:$0xff]
          %v697 = vld [vmem:[#allocation6 + $0x790] sm:$0xff]
          %v698 = vld [vmem:[#allocation6 + $0x798] sm:$0xff]
          %v699 = vld [vmem:[#allocation6 + $0x7a0] sm:$0xff]
          %v700 = vld [vmem:[#allocation6 + $0x7a8] sm:$0xff]
          %v701 = vld [vmem:[#allocation6 + $0x7b0] sm:$0xff]
          %v702 = vld [vmem:[#allocation6 + $0x7b8] sm:$0xff]
          %v703 = vld [vmem:[#allocation6 + $0x7c0] sm:$0xff]
          %v704 = vld [vmem:[#allocation6 + $0x7c8] sm:$0xff]
          %v705 = vld [vmem:[#allocation6 + $0x7d0] sm:$0xff]
          %v706 = vld [vmem:[#allocation6 + $0x7d8] sm:$0xff]
          %v707 = vld [vmem:[#allocation6 + $0x7e0] sm:$0xff]
          %v708 = vld [vmem:[#allocation6 + $0x7e8] sm:$0xff]
          %v709 = vld [vmem:[#allocation6 + $0x7f0] sm:$0xff]
          %v710 = vld [vmem:[#allocation6 + $0x7f8] sm:$0xff]
          %v711 = vld [vmem:[#allocation6 + $0x800] sm:$0xff]
          %v712 = vld [vmem:[#allocation6 + $0x808] sm:$0xff]
          %v713 = vld [vmem:[#allocation6 + $0x810] sm:$0xff]
          %v714 = vld [vmem:[#allocation6 + $0x818] sm:$0xff]
          %v715 = vld [vmem:[#allocation6 + $0x820] sm:$0xff]
          %v716 = vld [vmem:[#allocation6 + $0x828] sm:$0xff]
          %v717 = vld [vmem:[#allocation6 + $0x830] sm:$0xff]
          %v718 = vld [vmem:[#allocation6 + $0x838] sm:$0xff]
          %v719 = vld [vmem:[#allocation6 + $0x840] sm:$0xff]
          %v720 = vld [vmem:[#allocation6 + $0x848] sm:$0xff]
          %v721 = vld [vmem:[#allocation6 + $0x850] sm:$0xff]
          %v722 = vld [vmem:[#allocation6 + $0x858] sm:$0xff]
          %v723 = vld [vmem:[#allocation6 + $0x860] sm:$0xff]
          %v724 = vld [vmem:[#allocation6 + $0x868] sm:$0xff]
          %v725 = vld [vmem:[#allocation6 + $0x870] sm:$0xff]
          %v726 = vld [vmem:[#allocation6 + $0x878] sm:$0xff]
          %v727 = vld [vmem:[#allocation6 + $0x880] sm:$0xff]
          %v728 = vld [vmem:[#allocation6 + $0x888] sm:$0xff]
          %v729 = vld [vmem:[#allocation6 + $0x890] sm:$0xff]
          %v730 = vld [vmem:[#allocation6 + $0x898] sm:$0xff]
          %v731 = vld [vmem:[#allocation6 + $0x8a0] sm:$0xff]
          %v732 = vld [vmem:[#allocation6 + $0x8a8] sm:$0xff]
          %v733 = vld [vmem:[#allocation6 + $0x8b0] sm:$0xff]
          %v734 = vld [vmem:[#allocation6 + $0x8b8] sm:$0xff]
          %v735 = vld [vmem:[#allocation6 + $0x8c0] sm:$0xff]
          %v736 = vld [vmem:[#allocation6 + $0x8c8] sm:$0xff]
          %v737 = vld [vmem:[#allocation6 + $0x8d0] sm:$0xff]
          %v738 = vld [vmem:[#allocation6 + $0x8d8] sm:$0xff]
          %v739 = vld [vmem:[#allocation6 + $0x8e0] sm:$0xff]
          %v740 = vld [vmem:[#allocation6 + $0x8e8] sm:$0xff]
          %v741 = vld [vmem:[#allocation6 + $0x8f0] sm:$0xff]
          %v742 = vld [vmem:[#allocation6 + $0x8f8] sm:$0xff]
          %v743 = vld [vmem:[#allocation8] sm:$0x3f]
          %v745 = vlaneseq
          %v746 = vshrl.u32 %v745, 7
          %v747 = vsub.s32 0, %v746
          %v748 = vrot.slane %v743, %v747
          %v749 = vlaneseq
          %v750 = vshrl.u32 %v749, 7
          %v751 = vsub.s32 1, %v750
          %v752 = vrot.slane %v743, %v751
          %v753 = vlaneseq
          %v754 = vshrl.u32 %v753, 7
          %v755 = vsub.s32 2, %v754
          %v756 = vrot.slane %v743, %v755
          %v757 = vlaneseq
          %v758 = vshrl.u32 %v757, 7
          %v759 = vsub.s32 3, %v758
          %v760 = vrot.slane %v743, %v759
          %v761 = vlaneseq
          %v762 = vshrl.u32 %v761, 7
          %v763 = vsub.s32 4, %v762
          %v764 = vrot.slane %v743, %v763
          %v765 = vlaneseq
          %v766 = vshrl.u32 %v765, 7
          %v767 = vsub.s32 5, %v766
          %v768 = vrot.slane %v743, %v767
          %v1063 = vunpack.c.l.b16 %v455
          %v1064 = vunpack.c.h.b16 %v455
          %v1065 = vunpack.c.l.b16 %v456
          %v1066 = vunpack.c.h.b16 %v456
          %v1067 = vunpack.c.l.b16 %v457
          %v1068 = vunpack.c.h.b16 %v457
          %v1069 = vunpack.c.l.b16 %v458
          %v1070 = vunpack.c.h.b16 %v458
          %v1071 = vunpack.c.l.b16 %v459
          %v1072 = vunpack.c.h.b16 %v459
          %v1073 = vunpack.c.l.b16 %v460
          %v1074 = vunpack.c.h.b16 %v460
          %v1075 = vunpack.c.l.b16 %v461
          %v1076 = vunpack.c.h.b16 %v461
          %v1077 = vunpack.c.l.b16 %v462
          %v1078 = vunpack.c.h.b16 %v462
          %v1079 = vunpack.c.l.b16 %v463
          %v1080 = vunpack.c.h.b16 %v463
          %v1081 = vunpack.c.l.b16 %v464
          %v1082 = vunpack.c.h.b16 %v464
          %v1083 = vunpack.c.l.b16 %v465
          %v1084 = vunpack.c.h.b16 %v465
          %v1085 = vunpack.c.l.b16 %v466
          %v1086 = vunpack.c.h.b16 %v466
          %v1087 = vunpack.c.l.b16 %v467
          %v1088 = vunpack.c.h.b16 %v467
          %v1089 = vunpack.c.l.b16 %v468
          %v1090 = vunpack.c.h.b16 %v468
          %v1091 = vunpack.c.l.b16 %v469
          %v1092 = vunpack.c.h.b16 %v469
          %v1093 = vunpack.c.l.b16 %v470
          %v1094 = vunpack.c.h.b16 %v470
          %v1095 = vunpack.c.l.b16 %v471
          %v1096 = vunpack.c.h.b16 %v471
          %v1097 = vunpack.c.l.b16 %v472
          %v1098 = vunpack.c.h.b16 %v472
          %v1099 = vunpack.c.l.b16 %v473
          %v1100 = vunpack.c.h.b16 %v473
          %v1101 = vunpack.c.l.b16 %v474
          %v1102 = vunpack.c.h.b16 %v474
          %v1103 = vunpack.c.l.b16 %v475
          %v1104 = vunpack.c.h.b16 %v475
          %v1105 = vunpack.c.l.b16 %v476
          %v1106 = vunpack.c.h.b16 %v476
          %v1107 = vunpack.c.l.b16 %v477
          %v1108 = vunpack.c.h.b16 %v477
          %v1109 = vunpack.c.l.b16 %v478
          %v1110 = vunpack.c.h.b16 %v478
          %v1111 = vunpack.c.l.b16 %v479
          %v1112 = vunpack.c.h.b16 %v479
          %v1113 = vunpack.c.l.b16 %v480
          %v1114 = vunpack.c.h.b16 %v480
          %v1115 = vunpack.c.l.b16 %v481
          %v1116 = vunpack.c.h.b16 %v481
          %v1117 = vunpack.c.l.b16 %v482
          %v1118 = vunpack.c.h.b16 %v482
          %v1119 = vunpack.c.l.b16 %v483
          %v1120 = vunpack.c.h.b16 %v483
          %v1121 = vunpack.c.l.b16 %v484
          %v1122 = vunpack.c.h.b16 %v484
          %v1123 = vunpack.c.l.b16 %v485
          %v1124 = vunpack.c.h.b16 %v485
          %v1125 = vunpack.c.l.b16 %v486
          %v1126 = vunpack.c.h.b16 %v486
          %v1127 = vunpack.c.l.b16 %v487
          %v1128 = vunpack.c.h.b16 %v487
          %v1129 = vunpack.c.l.b16 %v488
          %v1130 = vunpack.c.h.b16 %v488
          %v1131 = vunpack.c.l.b16 %v489
          %v1132 = vunpack.c.h.b16 %v489
          %v1133 = vunpack.c.l.b16 %v490
          %v1134 = vunpack.c.h.b16 %v490
          %v1135 = vunpack.c.l.b16 %v491
          %v1136 = vunpack.c.h.b16 %v491
          %v1137 = vunpack.c.l.b16 %v492
          %v1138 = vunpack.c.h.b16 %v492
          %v1139 = vunpack.c.l.b16 %v493
          %v1140 = vunpack.c.h.b16 %v493
          %v1141 = vunpack.c.l.b16 %v494
          %v1142 = vunpack.c.h.b16 %v494
          %v1143 = vunpack.c.l.b16 %v495
          %v1144 = vunpack.c.h.b16 %v495
          %v1145 = vunpack.c.l.b16 %v496
          %v1146 = vunpack.c.h.b16 %v496
          %v1147 = vunpack.c.l.b16 %v497
          %v1148 = vunpack.c.h.b16 %v497
          %v1149 = vunpack.c.l.b16 %v498
          %v1150 = vunpack.c.h.b16 %v498
          %v1151 = vunpack.c.l.b16 %v499
          %v1152 = vunpack.c.h.b16 %v499
          %v1153 = vunpack.c.l.b16 %v500
          %v1154 = vunpack.c.h.b16 %v500
          %v1155 = vunpack.c.l.b16 %v501
          %v1156 = vunpack.c.h.b16 %v501
          %v1157 = vunpack.c.l.b16 %v502
          %v1158 = vunpack.c.h.b16 %v502
          %v1159 = vunpack.c.l.b16 %v503
          %v1160 = vunpack.c.h.b16 %v503
          %v1161 = vunpack.c.l.b16 %v504
          %v1162 = vunpack.c.h.b16 %v504
          %v1163 = vunpack.c.l.b16 %v505
          %v1164 = vunpack.c.h.b16 %v505
          %v1165 = vunpack.c.l.b16 %v506
          %v1166 = vunpack.c.h.b16 %v506
          %v1167 = vunpack.c.l.b16 %v507
          %v1168 = vunpack.c.h.b16 %v507
          %v1169 = vunpack.c.l.b16 %v508
          %v1170 = vunpack.c.h.b16 %v508
          %v1171 = vunpack.c.l.b16 %v509
          %v1172 = vunpack.c.h.b16 %v509
          %v1173 = vunpack.c.l.b16 %v510
          %v1174 = vunpack.c.h.b16 %v510
          %v1175 = vunpack.c.l.b16 %v511
          %v1176 = vunpack.c.h.b16 %v511
          %v1177 = vunpack.c.l.b16 %v512
          %v1178 = vunpack.c.h.b16 %v512
          %v1179 = vunpack.c.l.b16 %v513
          %v1180 = vunpack.c.h.b16 %v513
          %v1181 = vunpack.c.l.b16 %v514
          %v1182 = vunpack.c.h.b16 %v514
          %v1183 = vunpack.c.l.b16 %v515
          %v1184 = vunpack.c.h.b16 %v515
          %v1185 = vunpack.c.l.b16 %v516
          %v1186 = vunpack.c.h.b16 %v516
          %v1187 = vunpack.c.l.b16 %v517
          %v1188 = vunpack.c.h.b16 %v517
          %v1189 = vunpack.c.l.b16 %v518
          %v1190 = vunpack.c.h.b16 %v518
          %v1191 = vunpack.c.l.b16 %v519
          %v1192 = vunpack.c.h.b16 %v519
          %v1193 = vunpack.c.l.b16 %v520
          %v1194 = vunpack.c.h.b16 %v520
          %v1195 = vunpack.c.l.b16 %v521
          %v1196 = vunpack.c.h.b16 %v521
          %v1197 = vunpack.c.l.b16 %v522
          %v1198 = vunpack.c.h.b16 %v522
          %v1199 = vunpack.c.l.b16 %v523
          %v1200 = vunpack.c.h.b16 %v523
          %v1201 = vunpack.c.l.b16 %v524
          %v1202 = vunpack.c.h.b16 %v524
          %v1203 = vunpack.c.l.b16 %v525
          %v1204 = vunpack.c.h.b16 %v525
          %v1205 = vunpack.c.l.b16 %v526
          %v1206 = vunpack.c.h.b16 %v526
          %v1207 = vunpack.c.l.b16 %v527
          %v1208 = vunpack.c.h.b16 %v527
          %v1209 = vunpack.c.l.b16 %v528
          %v1210 = vunpack.c.h.b16 %v528
          %v1211 = vunpack.c.l.b16 %v529
          %v1212 = vunpack.c.h.b16 %v529
          %v1213 = vunpack.c.l.b16 %v530
          %v1214 = vunpack.c.h.b16 %v530
          %v1215 = vunpack.c.l.b16 %v531
          %v1216 = vunpack.c.h.b16 %v531
          %v1217 = vunpack.c.l.b16 %v532
          %v1218 = vunpack.c.h.b16 %v532
          %v1219 = vunpack.c.l.b16 %v533
          %v1220 = vunpack.c.h.b16 %v533
          %v1221 = vunpack.c.l.b16 %v534
          %v1222 = vunpack.c.h.b16 %v534
          %v1223 = vunpack.c.l.b16 %v535
          %v1224 = vunpack.c.h.b16 %v535
          %v1225 = vunpack.c.l.b16 %v536
          %v1226 = vunpack.c.h.b16 %v536
          %v1227 = vunpack.c.l.b16 %v537
          %v1228 = vunpack.c.h.b16 %v537
          %v1229 = vunpack.c.l.b16 %v538
          %v1230 = vunpack.c.h.b16 %v538
          %v1231 = vunpack.c.l.b16 %v539
          %v1232 = vunpack.c.h.b16 %v539
          %v1233 = vunpack.c.l.b16 %v540
          %v1234 = vunpack.c.h.b16 %v540
          %v1235 = vunpack.c.l.b16 %v541
          %v1236 = vunpack.c.h.b16 %v541
          %v1237 = vunpack.c.l.b16 %v542
          %v1238 = vunpack.c.h.b16 %v542
          %v1239 = vunpack.c.l.b16 %v543
          %v1240 = vunpack.c.h.b16 %v543
          %v1241 = vunpack.c.l.b16 %v544
          %v1242 = vunpack.c.h.b16 %v544
          %v1243 = vunpack.c.l.b16 %v545
          %v1244 = vunpack.c.h.b16 %v545
          %v1245 = vunpack.c.l.b16 %v546
          %v1246 = vunpack.c.h.b16 %v546
          %v1247 = vunpack.c.l.b16 %v547
          %v1248 = vunpack.c.h.b16 %v547
          %v1249 = vunpack.c.l.b16 %v548
          %v1250 = vunpack.c.h.b16 %v548
          %v1251 = vunpack.c.l.b16 %v549
          %v1252 = vunpack.c.h.b16 %v549
          %v1253 = vunpack.c.l.b16 %v550
          %v1254 = vunpack.c.h.b16 %v550
          %v1255 = vunpack.c.l.b16 %v551
          %v1256 = vunpack.c.h.b16 %v551
          %v1257 = vunpack.c.l.b16 %v552
          %v1258 = vunpack.c.h.b16 %v552
          %v1259 = vunpack.c.l.b16 %v553
          %v1260 = vunpack.c.h.b16 %v553
          %v1261 = vunpack.c.l.b16 %v554
          %v1262 = vunpack.c.h.b16 %v554
          %v1263 = vunpack.c.l.b16 %v555
          %v1264 = vunpack.c.h.b16 %v555
          %v1265 = vunpack.c.l.b16 %v556
          %v1266 = vunpack.c.h.b16 %v556
          %v1267 = vunpack.c.l.b16 %v557
          %v1268 = vunpack.c.h.b16 %v557
          %v1269 = vunpack.c.l.b16 %v558
          %v1270 = vunpack.c.h.b16 %v558
          %v1271 = vunpack.c.l.b16 %v559
          %v1272 = vunpack.c.h.b16 %v559
          %v1273 = vunpack.c.l.b16 %v560
          %v1274 = vunpack.c.h.b16 %v560
          %v1275 = vunpack.c.l.b16 %v561
          %v1276 = vunpack.c.h.b16 %v561
          %v1277 = vunpack.c.l.b16 %v562
          %v1278 = vunpack.c.h.b16 %v562
          %v1279 = vunpack.c.l.b16 %v563
          %v1280 = vunpack.c.h.b16 %v563
          %v1281 = vunpack.c.l.b16 %v564
          %v1282 = vunpack.c.h.b16 %v564
          %v1283 = vunpack.c.l.b16 %v565
          %v1284 = vunpack.c.h.b16 %v565
          %v1285 = vunpack.c.l.b16 %v566
          %v1286 = vunpack.c.h.b16 %v566
          %v1287 = vunpack.c.l.b16 %v567
          %v1288 = vunpack.c.h.b16 %v567
          %v1289 = vunpack.c.l.b16 %v568
          %v1290 = vunpack.c.h.b16 %v568
          %v1291 = vunpack.c.l.b16 %v569
          %v1292 = vunpack.c.h.b16 %v569
          %v1293 = vunpack.c.l.b16 %v570
          %v1294 = vunpack.c.h.b16 %v570
          %v1295 = vunpack.c.l.b16 %v571
          %v1296 = vunpack.c.h.b16 %v571
          %v1297 = vunpack.c.l.b16 %v572
          %v1298 = vunpack.c.h.b16 %v572
          %v1299 = vunpack.c.l.b16 %v573
          %v1300 = vunpack.c.h.b16 %v573
          %v1301 = vunpack.c.l.b16 %v574
          %v1302 = vunpack.c.h.b16 %v574
          %v1303 = vunpack.c.l.b16 %v575
          %v1304 = vunpack.c.h.b16 %v575
          %v1305 = vunpack.c.l.b16 %v576
          %v1306 = vunpack.c.h.b16 %v576
          %v1307 = vunpack.c.l.b16 %v577
          %v1308 = vunpack.c.h.b16 %v577
          %v1309 = vunpack.c.l.b16 %v578
          %v1310 = vunpack.c.h.b16 %v578
          %v1311 = vunpack.c.l.b16 %v579
          %v1312 = vunpack.c.h.b16 %v579
          %v1313 = vunpack.c.l.b16 %v580
          %v1314 = vunpack.c.h.b16 %v580
          %v1315 = vunpack.c.l.b16 %v581
          %v1316 = vunpack.c.h.b16 %v581
          %v1317 = vunpack.c.l.b16 %v582
          %v1318 = vunpack.c.h.b16 %v582
          %v1319 = vunpack.c.l.b16 %v583
          %v1320 = vunpack.c.h.b16 %v583
          %v1321 = vunpack.c.l.b16 %v584
          %v1322 = vunpack.c.h.b16 %v584
          %v1323 = vunpack.c.l.b16 %v585
          %v1324 = vunpack.c.h.b16 %v585
          %v1325 = vunpack.c.l.b16 %v586
          %v1326 = vunpack.c.h.b16 %v586
          %v1327 = vunpack.c.l.b16 %v587
          %v1328 = vunpack.c.h.b16 %v587
          %v1329 = vunpack.c.l.b16 %v588
          %v1330 = vunpack.c.h.b16 %v588
          %v1331 = vunpack.c.l.b16 %v589
          %v1332 = vunpack.c.h.b16 %v589
          %v1333 = vunpack.c.l.b16 %v590
          %v1334 = vunpack.c.h.b16 %v590
          %v1335 = vunpack.c.l.b16 %v591
          %v1336 = vunpack.c.h.b16 %v591
          %v1337 = vunpack.c.l.b16 %v592
          %v1338 = vunpack.c.h.b16 %v592
          %v1339 = vunpack.c.l.b16 %v593
          %v1340 = vunpack.c.h.b16 %v593
          %v1341 = vunpack.c.l.b16 %v594
          %v1342 = vunpack.c.h.b16 %v594
          %v1343 = vunpack.c.l.b16 %v595
          %v1344 = vunpack.c.h.b16 %v595
          %v1345 = vunpack.c.l.b16 %v596
          %v1346 = vunpack.c.h.b16 %v596
          %v1347 = vunpack.c.l.b16 %v597
          %v1348 = vunpack.c.h.b16 %v597
          %v1349 = vunpack.c.l.b16 %v598
          %v1350 = vunpack.c.h.b16 %v598
          %v1351 = vunpack.c.l.b16 %v599
          %v1352 = vunpack.c.h.b16 %v599
          %v1353 = vunpack.c.l.b16 %v600
          %v1354 = vunpack.c.h.b16 %v600
          %v1355 = vunpack.c.l.b16 %v601
          %v1356 = vunpack.c.h.b16 %v601
          %v1357 = vunpack.c.l.b16 %v602
          %v1358 = vunpack.c.h.b16 %v602
          %v1359 = vunpack.c.l.b16 %v603
          %v1360 = vunpack.c.h.b16 %v603
          %v1361 = vunpack.c.l.b16 %v604
          %v1362 = vunpack.c.h.b16 %v604
          %v1363 = vunpack.c.l.b16 %v605
          %v1364 = vunpack.c.h.b16 %v605
          %v1365 = vunpack.c.l.b16 %v606
          %v1366 = vunpack.c.h.b16 %v606
          %v1367 = vunpack.c.l.b16 %v607
          %v1368 = vunpack.c.h.b16 %v607
          %v1369 = vunpack.c.l.b16 %v608
          %v1370 = vunpack.c.h.b16 %v608
          %v1371 = vunpack.c.l.b16 %v609
          %v1372 = vunpack.c.h.b16 %v609
          %v1373 = vunpack.c.l.b16 %v610
          %v1374 = vunpack.c.h.b16 %v610
          %v1375 = vunpack.c.l.b16 %v611
          %v1376 = vunpack.c.h.b16 %v611
          %v1377 = vunpack.c.l.b16 %v612
          %v1378 = vunpack.c.h.b16 %v612
          %v1379 = vunpack.c.l.b16 %v613
          %v1380 = vunpack.c.h.b16 %v613
          %v1381 = vunpack.c.l.b16 %v614
          %v1382 = vunpack.c.h.b16 %v614
          %v1383 = vunpack.c.l.b16 %v615
          %v1384 = vunpack.c.h.b16 %v615
          %v1385 = vunpack.c.l.b16 %v616
          %v1386 = vunpack.c.h.b16 %v616
          %v1387 = vunpack.c.l.b16 %v617
          %v1388 = vunpack.c.h.b16 %v617
          %v1389 = vunpack.c.l.b16 %v618
          %v1390 = vunpack.c.h.b16 %v618
          %v1391 = vunpack.c.l.b16 %v619
          %v1392 = vunpack.c.h.b16 %v619
          %v1393 = vunpack.c.l.b16 %v620
          %v1394 = vunpack.c.h.b16 %v620
          %v1395 = vunpack.c.l.b16 %v621
          %v1396 = vunpack.c.h.b16 %v621
          %v1397 = vunpack.c.l.b16 %v622
          %v1398 = vunpack.c.h.b16 %v622
          %v1399 = vunpack.c.l.b16 %v623
          %v1400 = vunpack.c.h.b16 %v623
          %v1401 = vunpack.c.l.b16 %v624
          %v1402 = vunpack.c.h.b16 %v624
          %v1403 = vunpack.c.l.b16 %v625
          %v1404 = vunpack.c.h.b16 %v625
          %v1405 = vunpack.c.l.b16 %v626
          %v1406 = vunpack.c.h.b16 %v626
          %v1407 = vunpack.c.l.b16 %v627
          %v1408 = vunpack.c.h.b16 %v627
          %v1409 = vunpack.c.l.b16 %v628
          %v1410 = vunpack.c.h.b16 %v628
          %v1411 = vunpack.c.l.b16 %v629
          %v1412 = vunpack.c.h.b16 %v629
          %v1413 = vunpack.c.l.b16 %v630
          %v1414 = vunpack.c.h.b16 %v630
          %v1415 = vunpack.c.l.b16 %v631
          %v1416 = vunpack.c.h.b16 %v631
          %v1417 = vunpack.c.l.b16 %v632
          %v1418 = vunpack.c.h.b16 %v632
          %v1419 = vunpack.c.l.b16 %v633
          %v1420 = vunpack.c.h.b16 %v633
          %v1421 = vunpack.c.l.b16 %v634
          %v1422 = vunpack.c.h.b16 %v634
          %v1423 = vunpack.c.l.b16 %v635
          %v1424 = vunpack.c.h.b16 %v635
          %v1425 = vunpack.c.l.b16 %v636
          %v1426 = vunpack.c.h.b16 %v636
          %v1427 = vunpack.c.l.b16 %v637
          %v1428 = vunpack.c.h.b16 %v637
          %v1429 = vunpack.c.l.b16 %v638
          %v1430 = vunpack.c.h.b16 %v638
          %v1431 = vunpack.c.l.b16 %v639
          %v1432 = vunpack.c.h.b16 %v639
          %v1433 = vunpack.c.l.b16 %v640
          %v1434 = vunpack.c.h.b16 %v640
          %v1435 = vunpack.c.l.b16 %v641
          %v1436 = vunpack.c.h.b16 %v641
          %v1437 = vunpack.c.l.b16 %v642
          %v1438 = vunpack.c.h.b16 %v642
          %v1439 = vunpack.c.l.b16 %v643
          %v1440 = vunpack.c.h.b16 %v643
          %v1441 = vunpack.c.l.b16 %v644
          %v1442 = vunpack.c.h.b16 %v644
          %v1443 = vunpack.c.l.b16 %v645
          %v1444 = vunpack.c.h.b16 %v645
          %v1445 = vunpack.c.l.b16 %v646
          %v1446 = vunpack.c.h.b16 %v646
          %v1447 = vunpack.c.l.b16 %v647
          %v1448 = vunpack.c.h.b16 %v647
          %v1449 = vunpack.c.l.b16 %v648
          %v1450 = vunpack.c.h.b16 %v648
          %v1451 = vunpack.c.l.b16 %v649
          %v1452 = vunpack.c.h.b16 %v649
          %v1453 = vunpack.c.l.b16 %v650
          %v1454 = vunpack.c.h.b16 %v650
          %v1455 = vunpack.c.l.b16 %v651
          %v1456 = vunpack.c.h.b16 %v651
          %v1457 = vunpack.c.l.b16 %v652
          %v1458 = vunpack.c.h.b16 %v652
          %v1459 = vunpack.c.l.b16 %v653
          %v1460 = vunpack.c.h.b16 %v653
          %v1461 = vunpack.c.l.b16 %v654
          %v1462 = vunpack.c.h.b16 %v654
          %v1463 = vunpack.c.l.b16 %v655
          %v1464 = vunpack.c.h.b16 %v655
          %v1465 = vunpack.c.l.b16 %v656
          %v1466 = vunpack.c.h.b16 %v656
          %v1467 = vunpack.c.l.b16 %v657
          %v1468 = vunpack.c.h.b16 %v657
          %v1469 = vunpack.c.l.b16 %v658
          %v1470 = vunpack.c.h.b16 %v658
          %v1471 = vunpack.c.l.b16 %v659
          %v1472 = vunpack.c.h.b16 %v659
          %v1473 = vunpack.c.l.b16 %v660
          %v1474 = vunpack.c.h.b16 %v660
          %v1475 = vunpack.c.l.b16 %v661
          %v1476 = vunpack.c.h.b16 %v661
          %v1477 = vunpack.c.l.b16 %v662
          %v1478 = vunpack.c.h.b16 %v662
          %v1479 = vunpack.c.l.b16 %v663
          %v1480 = vunpack.c.h.b16 %v663
          %v1481 = vunpack.c.l.b16 %v664
          %v1482 = vunpack.c.h.b16 %v664
          %v1483 = vunpack.c.l.b16 %v665
          %v1484 = vunpack.c.h.b16 %v665
          %v1485 = vunpack.c.l.b16 %v666
          %v1486 = vunpack.c.h.b16 %v666
          %v1487 = vunpack.c.l.b16 %v667
          %v1488 = vunpack.c.h.b16 %v667
          %v1489 = vunpack.c.l.b16 %v668
          %v1490 = vunpack.c.h.b16 %v668
          %v1491 = vunpack.c.l.b16 %v669
          %v1492 = vunpack.c.h.b16 %v669
          %v1493 = vunpack.c.l.b16 %v670
          %v1494 = vunpack.c.h.b16 %v670
          %v1495 = vunpack.c.l.b16 %v671
          %v1496 = vunpack.c.h.b16 %v671
          %v1497 = vunpack.c.l.b16 %v672
          %v1498 = vunpack.c.h.b16 %v672
          %v1499 = vunpack.c.l.b16 %v673
          %v1500 = vunpack.c.h.b16 %v673
          %v1501 = vunpack.c.l.b16 %v674
          %v1502 = vunpack.c.h.b16 %v674
          %v1503 = vunpack.c.l.b16 %v675
          %v1504 = vunpack.c.h.b16 %v675
          %v1505 = vunpack.c.l.b16 %v676
          %v1506 = vunpack.c.h.b16 %v676
          %v1507 = vunpack.c.l.b16 %v677
          %v1508 = vunpack.c.h.b16 %v677
          %v1509 = vunpack.c.l.b16 %v678
          %v1510 = vunpack.c.h.b16 %v678
          %v1511 = vunpack.c.l.b16 %v679
          %v1512 = vunpack.c.h.b16 %v679
          %v1513 = vunpack.c.l.b16 %v680
          %v1514 = vunpack.c.h.b16 %v680
          %v1515 = vunpack.c.l.b16 %v681
          %v1516 = vunpack.c.h.b16 %v681
          %v1517 = vunpack.c.l.b16 %v682
          %v1518 = vunpack.c.h.b16 %v682
          %v1519 = vunpack.c.l.b16 %v683
          %v1520 = vunpack.c.h.b16 %v683
          %v1521 = vunpack.c.l.b16 %v684
          %v1522 = vunpack.c.h.b16 %v684
          %v1523 = vunpack.c.l.b16 %v685
          %v1524 = vunpack.c.h.b16 %v685
          %v1525 = vunpack.c.l.b16 %v686
          %v1526 = vunpack.c.h.b16 %v686
          %v1527 = vunpack.c.l.b16 %v687
          %v1528 = vunpack.c.h.b16 %v687
          %v1529 = vunpack.c.l.b16 %v688
          %v1530 = vunpack.c.h.b16 %v688
          %v1531 = vunpack.c.l.b16 %v689
          %v1532 = vunpack.c.h.b16 %v689
          %v1533 = vunpack.c.l.b16 %v690
          %v1534 = vunpack.c.h.b16 %v690
          %v1535 = vunpack.c.l.b16 %v691
          %v1536 = vunpack.c.h.b16 %v691
          %v1537 = vunpack.c.l.b16 %v692
          %v1538 = vunpack.c.h.b16 %v692
          %v1539 = vunpack.c.l.b16 %v693
          %v1540 = vunpack.c.h.b16 %v693
          %v1541 = vunpack.c.l.b16 %v694
          %v1542 = vunpack.c.h.b16 %v694
          %v1543 = vunpack.c.l.b16 %v695
          %v1544 = vunpack.c.h.b16 %v695
          %v1545 = vunpack.c.l.b16 %v696
          %v1546 = vunpack.c.h.b16 %v696
          %v1547 = vunpack.c.l.b16 %v697
          %v1548 = vunpack.c.h.b16 %v697
          %v1549 = vunpack.c.l.b16 %v698
          %v1550 = vunpack.c.h.b16 %v698
          %v1551 = vunpack.c.l.b16 %v699
          %v1552 = vunpack.c.h.b16 %v699
          %v1553 = vunpack.c.l.b16 %v700
          %v1554 = vunpack.c.h.b16 %v700
          %v1555 = vunpack.c.l.b16 %v701
          %v1556 = vunpack.c.h.b16 %v701
          %v1557 = vunpack.c.l.b16 %v702
          %v1558 = vunpack.c.h.b16 %v702
          %v1559 = vunpack.c.l.b16 %v703
          %v1560 = vunpack.c.h.b16 %v703
          %v1561 = vunpack.c.l.b16 %v704
          %v1562 = vunpack.c.h.b16 %v704
          %v1563 = vunpack.c.l.b16 %v705
          %v1564 = vunpack.c.h.b16 %v705
          %v1565 = vunpack.c.l.b16 %v706
          %v1566 = vunpack.c.h.b16 %v706
          %v1567 = vunpack.c.l.b16 %v707
          %v1568 = vunpack.c.h.b16 %v707
          %v1569 = vunpack.c.l.b16 %v708
          %v1570 = vunpack.c.h.b16 %v708
          %v1571 = vunpack.c.l.b16 %v709
          %v1572 = vunpack.c.h.b16 %v709
          %v1573 = vunpack.c.l.b16 %v710
          %v1574 = vunpack.c.h.b16 %v710
          %v1575 = vunpack.c.l.b16 %v711
          %v1576 = vunpack.c.h.b16 %v711
          %v1577 = vunpack.c.l.b16 %v712
          %v1578 = vunpack.c.h.b16 %v712
          %v1579 = vunpack.c.l.b16 %v713
          %v1580 = vunpack.c.h.b16 %v713
          %v1581 = vunpack.c.l.b16 %v714
          %v1582 = vunpack.c.h.b16 %v714
          %v1583 = vunpack.c.l.b16 %v715
          %v1584 = vunpack.c.h.b16 %v715
          %v1585 = vunpack.c.l.b16 %v716
          %v1586 = vunpack.c.h.b16 %v716
          %v1587 = vunpack.c.l.b16 %v717
          %v1588 = vunpack.c.h.b16 %v717
          %v1589 = vunpack.c.l.b16 %v718
          %v1590 = vunpack.c.h.b16 %v718
          %v1591 = vunpack.c.l.b16 %v719
          %v1592 = vunpack.c.h.b16 %v719
          %v1593 = vunpack.c.l.b16 %v720
          %v1594 = vunpack.c.h.b16 %v720
          %v1595 = vunpack.c.l.b16 %v721
          %v1596 = vunpack.c.h.b16 %v721
          %v1597 = vunpack.c.l.b16 %v722
          %v1598 = vunpack.c.h.b16 %v722
          %v1599 = vunpack.c.l.b16 %v723
          %v1600 = vunpack.c.h.b16 %v723
          %v1601 = vunpack.c.l.b16 %v724
          %v1602 = vunpack.c.h.b16 %v724
          %v1603 = vunpack.c.l.b16 %v725
          %v1604 = vunpack.c.h.b16 %v725
          %v1605 = vunpack.c.l.b16 %v726
          %v1606 = vunpack.c.h.b16 %v726
          %v1607 = vunpack.c.l.b16 %v727
          %v1608 = vunpack.c.h.b16 %v727
          %v1609 = vunpack.c.l.b16 %v728
          %v1610 = vunpack.c.h.b16 %v728
          %v1611 = vunpack.c.l.b16 %v729
          %v1612 = vunpack.c.h.b16 %v729
          %v1613 = vunpack.c.l.b16 %v730
          %v1614 = vunpack.c.h.b16 %v730
          %v1615 = vunpack.c.l.b16 %v731
          %v1616 = vunpack.c.h.b16 %v731
          %v1617 = vunpack.c.l.b16 %v732
          %v1618 = vunpack.c.h.b16 %v732
          %v1619 = vunpack.c.l.b16 %v733
          %v1620 = vunpack.c.h.b16 %v733
          %v1621 = vunpack.c.l.b16 %v734
          %v1622 = vunpack.c.h.b16 %v734
          %v1623 = vunpack.c.l.b16 %v735
          %v1624 = vunpack.c.h.b16 %v735
          %v1625 = vunpack.c.l.b16 %v736
          %v1626 = vunpack.c.h.b16 %v736
          %v1627 = vunpack.c.l.b16 %v737
          %v1628 = vunpack.c.h.b16 %v737
          %v1629 = vunpack.c.l.b16 %v738
          %v1630 = vunpack.c.h.b16 %v738
          %v1631 = vunpack.c.l.b16 %v739
          %v1632 = vunpack.c.h.b16 %v739
          %v1633 = vunpack.c.l.b16 %v740
          %v1634 = vunpack.c.h.b16 %v740
          %v1635 = vunpack.c.l.b16 %v741
          %v1636 = vunpack.c.h.b16 %v741
          %v1637 = vunpack.c.l.b16 %v742
          %v1638 = vunpack.c.h.b16 %v742
          %v1639 = vpack.c.b16 %v1069, %v1063
          %v1640 = vpack.c.b16 %v1070, %v1064
          %v1641 = vpack.c.b16 %v1071, %v1065
          %v1642 = vpack.c.b16 %v1072, %v1066
          %v1643 = vpack.c.b16 %v1073, %v1067
          %v1644 = vpack.c.b16 %v1074, %v1068
          %v1645 = vpack.c.b16 %v1081, %v1075
          %v1646 = vpack.c.b16 %v1082, %v1076
          %v1647 = vpack.c.b16 %v1083, %v1077
          %v1648 = vpack.c.b16 %v1084, %v1078
          %v1649 = vpack.c.b16 %v1085, %v1079
          %v1650 = vpack.c.b16 %v1086, %v1080
          %v1651 = vpack.c.b16 %v1093, %v1087
          %v1652 = vpack.c.b16 %v1094, %v1088
          %v1653 = vpack.c.b16 %v1095, %v1089
          %v1654 = vpack.c.b16 %v1096, %v1090
          %v1655 = vpack.c.b16 %v1097, %v1091
          %v1656 = vpack.c.b16 %v1098, %v1092
          %v1657 = vpack.c.b16 %v1105, %v1099
          %v1658 = vpack.c.b16 %v1106, %v1100
          %v1659 = vpack.c.b16 %v1107, %v1101
          %v1660 = vpack.c.b16 %v1108, %v1102
          %v1661 = vpack.c.b16 %v1109, %v1103
          %v1662 = vpack.c.b16 %v1110, %v1104
          %v1663 = vpack.c.b16 %v1117, %v1111
          %v1664 = vpack.c.b16 %v1118, %v1112
          %v1665 = vpack.c.b16 %v1119, %v1113
          %v1666 = vpack.c.b16 %v1120, %v1114
          %v1667 = vpack.c.b16 %v1121, %v1115
          %v1668 = vpack.c.b16 %v1122, %v1116
          %v1669 = vpack.c.b16 %v1129, %v1123
          %v1670 = vpack.c.b16 %v1130, %v1124
          %v1671 = vpack.c.b16 %v1131, %v1125
          %v1672 = vpack.c.b16 %v1132, %v1126
          %v1673 = vpack.c.b16 %v1133, %v1127
          %v1674 = vpack.c.b16 %v1134, %v1128
          %v1675 = vpack.c.b16 %v1141, %v1135
          %v1676 = vpack.c.b16 %v1142, %v1136
          %v1677 = vpack.c.b16 %v1143, %v1137
          %v1678 = vpack.c.b16 %v1144, %v1138
          %v1679 = vpack.c.b16 %v1145, %v1139
          %v1680 = vpack.c.b16 %v1146, %v1140
          %v1681 = vpack.c.b16 %v1153, %v1147
          %v1682 = vpack.c.b16 %v1154, %v1148
          %v1683 = vpack.c.b16 %v1155, %v1149
          %v1684 = vpack.c.b16 %v1156, %v1150
          %v1685 = vpack.c.b16 %v1157, %v1151
          %v1686 = vpack.c.b16 %v1158, %v1152
          %v1687 = vpack.c.b16 %v1165, %v1159
          %v1688 = vpack.c.b16 %v1166, %v1160
          %v1689 = vpack.c.b16 %v1167, %v1161
          %v1690 = vpack.c.b16 %v1168, %v1162
          %v1691 = vpack.c.b16 %v1169, %v1163
          %v1692 = vpack.c.b16 %v1170, %v1164
          %v1693 = vpack.c.b16 %v1177, %v1171
          %v1694 = vpack.c.b16 %v1178, %v1172
          %v1695 = vpack.c.b16 %v1179, %v1173
          %v1696 = vpack.c.b16 %v1180, %v1174
          %v1697 = vpack.c.b16 %v1181, %v1175
          %v1698 = vpack.c.b16 %v1182, %v1176
          %v1699 = vpack.c.b16 %v1189, %v1183
          %v1700 = vpack.c.b16 %v1190, %v1184
          %v1701 = vpack.c.b16 %v1191, %v1185
          %v1702 = vpack.c.b16 %v1192, %v1186
          %v1703 = vpack.c.b16 %v1193, %v1187
          %v1704 = vpack.c.b16 %v1194, %v1188
          %v1705 = vpack.c.b16 %v1201, %v1195
          %v1706 = vpack.c.b16 %v1202, %v1196
          %v1707 = vpack.c.b16 %v1203, %v1197
          %v1708 = vpack.c.b16 %v1204, %v1198
          %v1709 = vpack.c.b16 %v1205, %v1199
          %v1710 = vpack.c.b16 %v1206, %v1200
          %v1711 = vpack.c.b16 %v1213, %v1207
          %v1712 = vpack.c.b16 %v1214, %v1208
          %v1713 = vpack.c.b16 %v1215, %v1209
          %v1714 = vpack.c.b16 %v1216, %v1210
          %v1715 = vpack.c.b16 %v1217, %v1211
          %v1716 = vpack.c.b16 %v1218, %v1212
          %v1717 = vpack.c.b16 %v1225, %v1219
          %v1718 = vpack.c.b16 %v1226, %v1220
          %v1719 = vpack.c.b16 %v1227, %v1221
          %v1720 = vpack.c.b16 %v1228, %v1222
          %v1721 = vpack.c.b16 %v1229, %v1223
          %v1722 = vpack.c.b16 %v1230, %v1224
          %v1723 = vpack.c.b16 %v1237, %v1231
          %v1724 = vpack.c.b16 %v1238, %v1232
          %v1725 = vpack.c.b16 %v1239, %v1233
          %v1726 = vpack.c.b16 %v1240, %v1234
          %v1727 = vpack.c.b16 %v1241, %v1235
          %v1728 = vpack.c.b16 %v1242, %v1236
          %v1729 = vpack.c.b16 %v1249, %v1243
          %v1730 = vpack.c.b16 %v1250, %v1244
          %v1731 = vpack.c.b16 %v1251, %v1245
          %v1732 = vpack.c.b16 %v1252, %v1246
          %v1733 = vpack.c.b16 %v1253, %v1247
          %v1734 = vpack.c.b16 %v1254, %v1248
          %v1735 = vpack.c.b16 %v1261, %v1255
          %v1736 = vpack.c.b16 %v1262, %v1256
          %v1737 = vpack.c.b16 %v1263, %v1257
          %v1738 = vpack.c.b16 %v1264, %v1258
          %v1739 = vpack.c.b16 %v1265, %v1259
          %v1740 = vpack.c.b16 %v1266, %v1260
          %v1741 = vpack.c.b16 %v1273, %v1267
          %v1742 = vpack.c.b16 %v1274, %v1268
          %v1743 = vpack.c.b16 %v1275, %v1269
          %v1744 = vpack.c.b16 %v1276, %v1270
          %v1745 = vpack.c.b16 %v1277, %v1271
          %v1746 = vpack.c.b16 %v1278, %v1272
          %v1747 = vpack.c.b16 %v1285, %v1279
          %v1748 = vpack.c.b16 %v1286, %v1280
          %v1749 = vpack.c.b16 %v1287, %v1281
          %v1750 = vpack.c.b16 %v1288, %v1282
          %v1751 = vpack.c.b16 %v1289, %v1283
          %v1752 = vpack.c.b16 %v1290, %v1284
          %v1753 = vpack.c.b16 %v1297, %v1291
          %v1754 = vpack.c.b16 %v1298, %v1292
          %v1755 = vpack.c.b16 %v1299, %v1293
          %v1756 = vpack.c.b16 %v1300, %v1294
          %v1757 = vpack.c.b16 %v1301, %v1295
          %v1758 = vpack.c.b16 %v1302, %v1296
          %v1759 = vpack.c.b16 %v1309, %v1303
          %v1760 = vpack.c.b16 %v1310, %v1304
          %v1761 = vpack.c.b16 %v1311, %v1305
          %v1762 = vpack.c.b16 %v1312, %v1306
          %v1763 = vpack.c.b16 %v1313, %v1307
          %v1764 = vpack.c.b16 %v1314, %v1308
          %v1765 = vpack.c.b16 %v1321, %v1315
          %v1766 = vpack.c.b16 %v1322, %v1316
          %v1767 = vpack.c.b16 %v1323, %v1317
          %v1768 = vpack.c.b16 %v1324, %v1318
          %v1769 = vpack.c.b16 %v1325, %v1319
          %v1770 = vpack.c.b16 %v1326, %v1320
          %v1771 = vpack.c.b16 %v1333, %v1327
          %v1772 = vpack.c.b16 %v1334, %v1328
          %v1773 = vpack.c.b16 %v1335, %v1329
          %v1774 = vpack.c.b16 %v1336, %v1330
          %v1775 = vpack.c.b16 %v1337, %v1331
          %v1776 = vpack.c.b16 %v1338, %v1332
          %v1777 = vpack.c.b16 %v1345, %v1339
          %v1778 = vpack.c.b16 %v1346, %v1340
          %v1779 = vpack.c.b16 %v1347, %v1341
          %v1780 = vpack.c.b16 %v1348, %v1342
          %v1781 = vpack.c.b16 %v1349, %v1343
          %v1782 = vpack.c.b16 %v1350, %v1344
          %v1783 = vpack.c.b16 %v1357, %v1351
          %v1784 = vpack.c.b16 %v1358, %v1352
          %v1785 = vpack.c.b16 %v1359, %v1353
          %v1786 = vpack.c.b16 %v1360, %v1354
          %v1787 = vpack.c.b16 %v1361, %v1355
          %v1788 = vpack.c.b16 %v1362, %v1356
          %v1789 = vpack.c.b16 %v1369, %v1363
          %v1790 = vpack.c.b16 %v1370, %v1364
          %v1791 = vpack.c.b16 %v1371, %v1365
          %v1792 = vpack.c.b16 %v1372, %v1366
          %v1793 = vpack.c.b16 %v1373, %v1367
          %v1794 = vpack.c.b16 %v1374, %v1368
          %v1795 = vpack.c.b16 %v1381, %v1375
          %v1796 = vpack.c.b16 %v1382, %v1376
          %v1797 = vpack.c.b16 %v1383, %v1377
          %v1798 = vpack.c.b16 %v1384, %v1378
          %v1799 = vpack.c.b16 %v1385, %v1379
          %v1800 = vpack.c.b16 %v1386, %v1380
          %v1801 = vpack.c.b16 %v1393, %v1387
          %v1802 = vpack.c.b16 %v1394, %v1388
          %v1803 = vpack.c.b16 %v1395, %v1389
          %v1804 = vpack.c.b16 %v1396, %v1390
          %v1805 = vpack.c.b16 %v1397, %v1391
          %v1806 = vpack.c.b16 %v1398, %v1392
          %v1807 = vpack.c.b16 %v1405, %v1399
          %v1808 = vpack.c.b16 %v1406, %v1400
          %v1809 = vpack.c.b16 %v1407, %v1401
          %v1810 = vpack.c.b16 %v1408, %v1402
          %v1811 = vpack.c.b16 %v1409, %v1403
          %v1812 = vpack.c.b16 %v1410, %v1404
          %v1813 = vpack.c.b16 %v1417, %v1411
          %v1814 = vpack.c.b16 %v1418, %v1412
          %v1815 = vpack.c.b16 %v1419, %v1413
          %v1816 = vpack.c.b16 %v1420, %v1414
          %v1817 = vpack.c.b16 %v1421, %v1415
          %v1818 = vpack.c.b16 %v1422, %v1416
          %v1819 = vpack.c.b16 %v1429, %v1423
          %v1820 = vpack.c.b16 %v1430, %v1424
          %v1821 = vpack.c.b16 %v1431, %v1425
          %v1822 = vpack.c.b16 %v1432, %v1426
          %v1823 = vpack.c.b16 %v1433, %v1427
          %v1824 = vpack.c.b16 %v1434, %v1428
          %v1825 = vpack.c.b16 %v1441, %v1435
          %v1826 = vpack.c.b16 %v1442, %v1436
          %v1827 = vpack.c.b16 %v1443, %v1437
          %v1828 = vpack.c.b16 %v1444, %v1438
          %v1829 = vpack.c.b16 %v1445, %v1439
          %v1830 = vpack.c.b16 %v1446, %v1440
          %v1831 = vpack.c.b16 %v1453, %v1447
          %v1832 = vpack.c.b16 %v1454, %v1448
          %v1833 = vpack.c.b16 %v1455, %v1449
          %v1834 = vpack.c.b16 %v1456, %v1450
          %v1835 = vpack.c.b16 %v1457, %v1451
          %v1836 = vpack.c.b16 %v1458, %v1452
          %v1837 = vpack.c.b16 %v1465, %v1459
          %v1838 = vpack.c.b16 %v1466, %v1460
          %v1839 = vpack.c.b16 %v1467, %v1461
          %v1840 = vpack.c.b16 %v1468, %v1462
          %v1841 = vpack.c.b16 %v1469, %v1463
          %v1842 = vpack.c.b16 %v1470, %v1464
          %v1843 = vpack.c.b16 %v1477, %v1471
          %v1844 = vpack.c.b16 %v1478, %v1472
          %v1845 = vpack.c.b16 %v1479, %v1473
          %v1846 = vpack.c.b16 %v1480, %v1474
          %v1847 = vpack.c.b16 %v1481, %v1475
          %v1848 = vpack.c.b16 %v1482, %v1476
          %v1849 = vpack.c.b16 %v1489, %v1483
          %v1850 = vpack.c.b16 %v1490, %v1484
          %v1851 = vpack.c.b16 %v1491, %v1485
          %v1852 = vpack.c.b16 %v1492, %v1486
          %v1853 = vpack.c.b16 %v1493, %v1487
          %v1854 = vpack.c.b16 %v1494, %v1488
          %v1855 = vpack.c.b16 %v1501, %v1495
          %v1856 = vpack.c.b16 %v1502, %v1496
          %v1857 = vpack.c.b16 %v1503, %v1497
          %v1858 = vpack.c.b16 %v1504, %v1498
          %v1859 = vpack.c.b16 %v1505, %v1499
          %v1860 = vpack.c.b16 %v1506, %v1500
          %v1861 = vpack.c.b16 %v1513, %v1507
          %v1862 = vpack.c.b16 %v1514, %v1508
          %v1863 = vpack.c.b16 %v1515, %v1509
          %v1864 = vpack.c.b16 %v1516, %v1510
          %v1865 = vpack.c.b16 %v1517, %v1511
          %v1866 = vpack.c.b16 %v1518, %v1512
          %v1867 = vpack.c.b16 %v1525, %v1519
          %v1868 = vpack.c.b16 %v1526, %v1520
          %v1869 = vpack.c.b16 %v1527, %v1521
          %v1870 = vpack.c.b16 %v1528, %v1522
          %v1871 = vpack.c.b16 %v1529, %v1523
          %v1872 = vpack.c.b16 %v1530, %v1524
          %v1873 = vpack.c.b16 %v1537, %v1531
          %v1874 = vpack.c.b16 %v1538, %v1532
          %v1875 = vpack.c.b16 %v1539, %v1533
          %v1876 = vpack.c.b16 %v1540, %v1534
          %v1877 = vpack.c.b16 %v1541, %v1535
          %v1878 = vpack.c.b16 %v1542, %v1536
          %v1879 = vpack.c.b16 %v1549, %v1543
          %v1880 = vpack.c.b16 %v1550, %v1544
          %v1881 = vpack.c.b16 %v1551, %v1545
          %v1882 = vpack.c.b16 %v1552, %v1546
          %v1883 = vpack.c.b16 %v1553, %v1547
          %v1884 = vpack.c.b16 %v1554, %v1548
          %v1885 = vpack.c.b16 %v1561, %v1555
          %v1886 = vpack.c.b16 %v1562, %v1556
          %v1887 = vpack.c.b16 %v1563, %v1557
          %v1888 = vpack.c.b16 %v1564, %v1558
          %v1889 = vpack.c.b16 %v1565, %v1559
          %v1890 = vpack.c.b16 %v1566, %v1560
          %v1891 = vpack.c.b16 %v1573, %v1567
          %v1892 = vpack.c.b16 %v1574, %v1568
          %v1893 = vpack.c.b16 %v1575, %v1569
          %v1894 = vpack.c.b16 %v1576, %v1570
          %v1895 = vpack.c.b16 %v1577, %v1571
          %v1896 = vpack.c.b16 %v1578, %v1572
          %v1897 = vpack.c.b16 %v1585, %v1579
          %v1898 = vpack.c.b16 %v1586, %v1580
          %v1899 = vpack.c.b16 %v1587, %v1581
          %v1900 = vpack.c.b16 %v1588, %v1582
          %v1901 = vpack.c.b16 %v1589, %v1583
          %v1902 = vpack.c.b16 %v1590, %v1584
          %v1903 = vpack.c.b16 %v1597, %v1591
          %v1904 = vpack.c.b16 %v1598, %v1592
          %v1905 = vpack.c.b16 %v1599, %v1593
          %v1906 = vpack.c.b16 %v1600, %v1594
          %v1907 = vpack.c.b16 %v1601, %v1595
          %v1908 = vpack.c.b16 %v1602, %v1596
          %v1909 = vpack.c.b16 %v1609, %v1603
          %v1910 = vpack.c.b16 %v1610, %v1604
          %v1911 = vpack.c.b16 %v1611, %v1605
          %v1912 = vpack.c.b16 %v1612, %v1606
          %v1913 = vpack.c.b16 %v1613, %v1607
          %v1914 = vpack.c.b16 %v1614, %v1608
          %v1915 = vpack.c.b16 %v1621, %v1615
          %v1916 = vpack.c.b16 %v1622, %v1616
          %v1917 = vpack.c.b16 %v1623, %v1617
          %v1918 = vpack.c.b16 %v1624, %v1618
          %v1919 = vpack.c.b16 %v1625, %v1619
          %v1920 = vpack.c.b16 %v1626, %v1620
          %v1921 = vpack.c.b16 %v1633, %v1627
          %v1922 = vpack.c.b16 %v1634, %v1628
          %v1923 = vpack.c.b16 %v1635, %v1629
          %v1924 = vpack.c.b16 %v1636, %v1630
          %v1925 = vpack.c.b16 %v1637, %v1631
          %v1926 = vpack.c.b16 %v1638, %v1632
          %2215 = vmatprep.subr.bf16.mxu0 %v1640
          %2216 = vmatpush1.bf16.msra.mxu0 %v1639
          %2217 = vmatprep.subr.bf16.mxu0 %v1646
          %2218 = vmatpush1.bf16.msra.mxu0 %v1645
          %2219 = vmatprep.subr.bf16.mxu0 %v1652
          %2220 = vmatpush1.bf16.msra.mxu0 %v1651
          %2221 = vmatprep.subr.bf16.mxu0 %v1658
          %2222 = vmatpush1.bf16.msra.mxu0 %v1657
          %2223 = vmatprep.subr.bf16.mxu0 %v1664
          %2224 = vmatpush1.bf16.msra.mxu0 %v1663
          %2225 = vmatprep.subr.bf16.mxu0 %v1670
          %2226 = vmatpush1.bf16.msra.mxu0 %v1669
          %2227 = vmatprep.subr.bf16.mxu0 %v1676
          %2228 = vmatpush1.bf16.msra.mxu0 %v1675
          %2229 = vmatprep.subr.bf16.mxu0 %v1682
          %2230 = vmatpush1.bf16.msra.mxu0 %v1681
          %2231 = vmatprep.subr.bf16.mxu0 %v1688
          %2232 = vmatpush1.bf16.msra.mxu0 %v1687
          %2233 = vmatprep.subr.bf16.mxu0 %v1694
          %2234 = vmatpush1.bf16.msra.mxu0 %v1693
          %2235 = vmatprep.subr.bf16.mxu0 %v1700
          %2236 = vmatpush1.bf16.msra.mxu0 %v1699
          %2237 = vmatprep.subr.bf16.mxu0 %v1706
          %2238 = vmatpush1.bf16.msra.mxu0 %v1705
          %2239 = vmatprep.subr.bf16.mxu0 %v1712
          %2240 = vmatpush1.bf16.msra.mxu0 %v1711
          %2241 = vmatprep.subr.bf16.mxu0 %v1718
          %2242 = vmatpush1.bf16.msra.mxu0 %v1717
          %2243 = vmatprep.subr.bf16.mxu0 %v1724
          %2244 = vmatpush1.bf16.msra.mxu0 %v1723
          %2245 = vmatprep.subr.bf16.mxu0 %v1730
          %2246 = vmatpush1.bf16.msra.mxu0 %v1729
          %2247 = vmatprep.mubr.bf16.mxu0 %v450
          %2248 = vmatmul.mubr.bf16.gmra.mrb[0].mxu0 %v449
          %v2249 = vpop.f32.mrb[0].mxu0
          %v2250 = vadd.f32 %v748, %v2249
          %v2251 = vpop.f32.mrb[0].mxu0
          %v2252 = vadd.f32 %v752, %v2251
          %v2253 = vpop.f32.mrb[0].mxu0
          %v2254 = vpop.f32.mrb[0].mxu0
          %2255 = vdwg.mxu0
          %2256 = vmatprep.subr.bf16.mxu0 %v1736
          %2257 = vmatpush1.bf16.msra.mxu0 %v1735
          %2258 = vmatprep.subr.bf16.mxu0 %v1742
          %2259 = vmatpush1.bf16.msra.mxu0 %v1741
          %2260 = vmatprep.subr.bf16.mxu0 %v1748
          %2261 = vmatpush1.bf16.msra.mxu0 %v1747
          %2262 = vmatprep.subr.bf16.mxu0 %v1754
          %2263 = vmatpush1.bf16.msra.mxu0 %v1753
          %2264 = vmatprep.subr.bf16.mxu0 %v1760
          %2265 = vmatpush1.bf16.msra.mxu0 %v1759
          %2266 = vmatprep.subr.bf16.mxu0 %v1766
          %2267 = vmatpush1.bf16.msra.mxu0 %v1765
          %2268 = vmatprep.subr.bf16.mxu0 %v1772
          %2269 = vmatpush1.bf16.msra.mxu0 %v1771
          %2270 = vmatprep.subr.bf16.mxu0 %v1778
          %2271 = vmatpush1.bf16.msra.mxu0 %v1777
          %2272 = vmatprep.subr.bf16.mxu0 %v1784
          %2273 = vmatpush1.bf16.msra.mxu0 %v1783
          %2274 = vmatprep.subr.bf16.mxu0 %v1790
          %2275 = vmatpush1.bf16.msra.mxu0 %v1789
          %2276 = vmatprep.subr.bf16.mxu0 %v1796
          %2277 = vmatpush1.bf16.msra.mxu0 %v1795
          %2278 = vmatprep.subr.bf16.mxu0 %v1802
          %2279 = vmatpush1.bf16.msra.mxu0 %v1801
          %2280 = vmatprep.subr.bf16.mxu0 %v1808
          %2281 = vmatpush1.bf16.msra.mxu0 %v1807
          %2282 = vmatprep.subr.bf16.mxu0 %v1814
          %2283 = vmatpush1.bf16.msra.mxu0 %v1813
          %2284 = vmatprep.subr.bf16.mxu0 %v1820
          %2285 = vmatpush1.bf16.msra.mxu0 %v1819
          %2286 = vmatprep.subr.bf16.mxu0 %v1826
          %2287 = vmatpush1.bf16.msra.mxu0 %v1825
          %2288 = vmatprep.mubr.bf16.mxu0 %v452
          %2289 = vmatmul.mubr.bf16.gmra.mrb[0].mxu0 %v451
          %v2290 = vpop.f32.mrb[0].mxu0
          %v2291 = vadd.f32 %v2250, %v2290
          %v2292 = vpop.f32.mrb[0].mxu0
          %v2293 = vadd.f32 %v2252, %v2292
          %v2294 = vpop.f32.mrb[0].mxu0
          %v2295 = vpop.f32.mrb[0].mxu0
          %2296 = vdwg.mxu0
          %2297 = vmatprep.subr.bf16.mxu0 %v1832
          %2298 = vmatpush1.bf16.msra.mxu0 %v1831
          %2299 = vmatprep.subr.bf16.mxu0 %v1838
          %2300 = vmatpush1.bf16.msra.mxu0 %v1837
          %2301 = vmatprep.subr.bf16.mxu0 %v1844
          %2302 = vmatpush1.bf16.msra.mxu0 %v1843
          %2303 = vmatprep.subr.bf16.mxu0 %v1850
          %2304 = vmatpush1.bf16.msra.mxu0 %v1849
          %2305 = vmatprep.subr.bf16.mxu0 %v1856
          %2306 = vmatpush1.bf16.msra.mxu0 %v1855
          %2307 = vmatprep.subr.bf16.mxu0 %v1862
          %2308 = vmatpush1.bf16.msra.mxu0 %v1861
          %2309 = vmatprep.subr.bf16.mxu0 %v1868
          %2310 = vmatpush1.bf16.msra.mxu0 %v1867
          %2311 = vmatprep.subr.bf16.mxu0 %v1874
          %2312 = vmatpush1.bf16.msra.mxu0 %v1873
          %2313 = vmatprep.subr.bf16.mxu0 %v1880
          %2314 = vmatpush1.bf16.msra.mxu0 %v1879
          %2315 = vmatprep.subr.bf16.mxu0 %v1886
          %2316 = vmatpush1.bf16.msra.mxu0 %v1885
          %2317 = vmatprep.subr.bf16.mxu0 %v1892
          %2318 = vmatpush1.bf16.msra.mxu0 %v1891
          %2319 = vmatprep.subr.bf16.mxu0 %v1898
          %2320 = vmatpush1.bf16.msra.mxu0 %v1897
          %2321 = vmatprep.subr.bf16.mxu0 %v1904
          %2322 = vmatpush1.bf16.msra.mxu0 %v1903
          %2323 = vmatprep.subr.bf16.mxu0 %v1910
          %2324 = vmatpush1.bf16.msra.mxu0 %v1909
          %2325 = vmatprep.subr.bf16.mxu0 %v1916
          %2326 = vmatpush1.bf16.msra.mxu0 %v1915
          %2327 = vmatprep.subr.bf16.mxu0 %v1922
          %2328 = vmatpush1.bf16.msra.mxu0 %v1921
          %2329 = vmatprep.mubr.bf16.mxu0 %v454
          %2330 = vmatmul.mubr.bf16.gmra.mrb[0].mxu0 %v453
          %v2331 = vpop.f32.mrb[0].mxu0
          %v2332 = vadd.f32 %v2291, %v2331
          %v2333 = vpop.f32.mrb[0].mxu0
          %v2334 = vadd.f32 %v2293, %v2333
          %v2335 = vpop.f32.mrb[0].mxu0
          %v2336 = vpop.f32.mrb[0].mxu0
          %2337 = vdwg.mxu0
          %2338 = vmatprep.subr.bf16.mxu0 %v1642
          %2339 = vmatpush1.bf16.msra.mxu0 %v1641
          %2340 = vmatprep.subr.bf16.mxu0 %v1648
          %2341 = vmatpush1.bf16.msra.mxu0 %v1647
          %2342 = vmatprep.subr.bf16.mxu0 %v1654
          %2343 = vmatpush1.bf16.msra.mxu0 %v1653
          %2344 = vmatprep.subr.bf16.mxu0 %v1660
          %2345 = vmatpush1.bf16.msra.mxu0 %v1659
          %2346 = vmatprep.subr.bf16.mxu0 %v1666
          %2347 = vmatpush1.bf16.msra.mxu0 %v1665
          %2348 = vmatprep.subr.bf16.mxu0 %v1672
          %2349 = vmatpush1.bf16.msra.mxu0 %v1671
          %2350 = vmatprep.subr.bf16.mxu0 %v1678
          %2351 = vmatpush1.bf16.msra.mxu0 %v1677
          %2352 = vmatprep.subr.bf16.mxu0 %v1684
          %2353 = vmatpush1.bf16.msra.mxu0 %v1683
          %2354 = vmatprep.subr.bf16.mxu0 %v1690
          %2355 = vmatpush1.bf16.msra.mxu0 %v1689
          %2356 = vmatprep.subr.bf16.mxu0 %v1696
          %2357 = vmatpush1.bf16.msra.mxu0 %v1695
          %2358 = vmatprep.subr.bf16.mxu0 %v1702
          %2359 = vmatpush1.bf16.msra.mxu0 %v1701
          %2360 = vmatprep.subr.bf16.mxu0 %v1708
          %2361 = vmatpush1.bf16.msra.mxu0 %v1707
          %2362 = vmatprep.subr.bf16.mxu0 %v1714
          %2363 = vmatpush1.bf16.msra.mxu0 %v1713
          %2364 = vmatprep.subr.bf16.mxu0 %v1720
          %2365 = vmatpush1.bf16.msra.mxu0 %v1719
          %2366 = vmatprep.subr.bf16.mxu0 %v1726
          %2367 = vmatpush1.bf16.msra.mxu0 %v1725
          %2368 = vmatprep.subr.bf16.mxu0 %v1732
          %2369 = vmatpush1.bf16.msra.mxu0 %v1731
          %2370 = vmatprep.mubr.bf16.mxu0 %v450
          %2371 = vmatmul.mubr.bf16.gmra.mrb[0].mxu0 %v449
          %v2372 = vpop.f32.mrb[0].mxu0
          %v2373 = vadd.f32 %v756, %v2372
          %v2374 = vpop.f32.mrb[0].mxu0
          %v2375 = vadd.f32 %v760, %v2374
          %v2376 = vpop.f32.mrb[0].mxu0
          %v2377 = vpop.f32.mrb[0].mxu0
          %2378 = vdwg.mxu0
          %2379 = vmatprep.subr.bf16.mxu0 %v1738
          %2380 = vmatpush1.bf16.msra.mxu0 %v1737
          %2381 = vmatprep.subr.bf16.mxu0 %v1744
          %2382 = vmatpush1.bf16.msra.mxu0 %v1743
          %2383 = vmatprep.subr.bf16.mxu0 %v1750
          %2384 = vmatpush1.bf16.msra.mxu0 %v1749
          %2385 = vmatprep.subr.bf16.mxu0 %v1756
          %2386 = vmatpush1.bf16.msra.mxu0 %v1755
          %2387 = vmatprep.subr.bf16.mxu0 %v1762
          %2388 = vmatpush1.bf16.msra.mxu0 %v1761
          %2389 = vmatprep.subr.bf16.mxu0 %v1768
          %2390 = vmatpush1.bf16.msra.mxu0 %v1767
          %2391 = vmatprep.subr.bf16.mxu0 %v1774
          %2392 = vmatpush1.bf16.msra.mxu0 %v1773
          %2393 = vmatprep.subr.bf16.mxu0 %v1780
          %2394 = vmatpush1.bf16.msra.mxu0 %v1779
          %2395 = vmatprep.subr.bf16.mxu0 %v1786
          %2396 = vmatpush1.bf16.msra.mxu0 %v1785
          %2397 = vmatprep.subr.bf16.mxu0 %v1792
          %2398 = vmatpush1.bf16.msra.mxu0 %v1791
          %2399 = vmatprep.subr.bf16.mxu0 %v1798
          %2400 = vmatpush1.bf16.msra.mxu0 %v1797
          %2401 = vmatprep.subr.bf16.mxu0 %v1804
          %2402 = vmatpush1.bf16.msra.mxu0 %v1803
          %2403 = vmatprep.subr.bf16.mxu0 %v1810
          %2404 = vmatpush1.bf16.msra.mxu0 %v1809
          %2405 = vmatprep.subr.bf16.mxu0 %v1816
          %2406 = vmatpush1.bf16.msra.mxu0 %v1815
          %2407 = vmatprep.subr.bf16.mxu0 %v1822
          %2408 = vmatpush1.bf16.msra.mxu0 %v1821
          %2409 = vmatprep.subr.bf16.mxu0 %v1828
          %2410 = vmatpush1.bf16.msra.mxu0 %v1827
          %2411 = vmatprep.mubr.bf16.mxu0 %v452
          %2412 = vmatmul.mubr.bf16.gmra.mrb[0].mxu0 %v451
          %v2413 = vpop.f32.mrb[0].mxu0
          %v2414 = vadd.f32 %v2373, %v2413
          %v2415 = vpop.f32.mrb[0].mxu0
          %v2416 = vadd.f32 %v2375, %v2415
          %v2417 = vpop.f32.mrb[0].mxu0
          %v2418 = vpop.f32.mrb[0].mxu0
          %2419 = vdwg.mxu0
          %2420 = vmatprep.subr.bf16.mxu0 %v1834
          %2421 = vmatpush1.bf16.msra.mxu0 %v1833
          %2422 = vmatprep.subr.bf16.mxu0 %v1840
          %2423 = vmatpush1.bf16.msra.mxu0 %v1839
          %2424 = vmatprep.subr.bf16.mxu0 %v1846
          %2425 = vmatpush1.bf16.msra.mxu0 %v1845
          %2426 = vmatprep.subr.bf16.mxu0 %v1852
          %2427 = vmatpush1.bf16.msra.mxu0 %v1851
          %2428 = vmatprep.subr.bf16.mxu0 %v1858
          %2429 = vmatpush1.bf16.msra.mxu0 %v1857
          %2430 = vmatprep.subr.bf16.mxu0 %v1864
          %2431 = vmatpush1.bf16.msra.mxu0 %v1863
          %2432 = vmatprep.subr.bf16.mxu0 %v1870
          %2433 = vmatpush1.bf16.msra.mxu0 %v1869
          %2434 = vmatprep.subr.bf16.mxu0 %v1876
          %2435 = vmatpush1.bf16.msra.mxu0 %v1875
          %2436 = vmatprep.subr.bf16.mxu0 %v1882
          %2437 = vmatpush1.bf16.msra.mxu0 %v1881
          %2438 = vmatprep.subr.bf16.mxu0 %v1888
          %2439 = vmatpush1.bf16.msra.mxu0 %v1887
          %2440 = vmatprep.subr.bf16.mxu0 %v1894
          %2441 = vmatpush1.bf16.msra.mxu0 %v1893
          %2442 = vmatprep.subr.bf16.mxu0 %v1900
          %2443 = vmatpush1.bf16.msra.mxu0 %v1899
          %2444 = vmatprep.subr.bf16.mxu0 %v1906
          %2445 = vmatpush1.bf16.msra.mxu0 %v1905
          %2446 = vmatprep.subr.bf16.mxu0 %v1912
          %2447 = vmatpush1.bf16.msra.mxu0 %v1911
          %2448 = vmatprep.subr.bf16.mxu0 %v1918
          %2449 = vmatpush1.bf16.msra.mxu0 %v1917
          %2450 = vmatprep.subr.bf16.mxu0 %v1924
          %2451 = vmatpush1.bf16.msra.mxu0 %v1923
          %2452 = vmatprep.mubr.bf16.mxu0 %v454
          %2453 = vmatmul.mubr.bf16.gmra.mrb[0].mxu0 %v453
          %v2454 = vpop.f32.mrb[0].mxu0
          %v2455 = vadd.f32 %v2414, %v2454
          %v2456 = vpop.f32.mrb[0].mxu0
          %v2457 = vadd.f32 %v2416, %v2456
          %v2458 = vpop.f32.mrb[0].mxu0
          %v2459 = vpop.f32.mrb[0].mxu0
          %2460 = vdwg.mxu0
          %2461 = vmatprep.subr.bf16.mxu0 %v1644
          %2462 = vmatpush1.bf16.msra.mxu0 %v1643
          %2463 = vmatprep.subr.bf16.mxu0 %v1650
          %2464 = vmatpush1.bf16.msra.mxu0 %v1649
          %2465 = vmatprep.subr.bf16.mxu0 %v1656
          %2466 = vmatpush1.bf16.msra.mxu0 %v1655
          %2467 = vmatprep.subr.bf16.mxu0 %v1662
          %2468 = vmatpush1.bf16.msra.mxu0 %v1661
          %2469 = vmatprep.subr.bf16.mxu0 %v1668
          %2470 = vmatpush1.bf16.msra.mxu0 %v1667
          %2471 = vmatprep.subr.bf16.mxu0 %v1674
          %2472 = vmatpush1.bf16.msra.mxu0 %v1673
          %2473 = vmatprep.subr.bf16.mxu0 %v1680
          %2474 = vmatpush1.bf16.msra.mxu0 %v1679
          %2475 = vmatprep.subr.bf16.mxu0 %v1686
          %2476 = vmatpush1.bf16.msra.mxu0 %v1685
          %2477 = vmatprep.subr.bf16.mxu0 %v1692
          %2478 = vmatpush1.bf16.msra.mxu0 %v1691
          %2479 = vmatprep.subr.bf16.mxu0 %v1698
          %2480 = vmatpush1.bf16.msra.mxu0 %v1697
          %2481 = vmatprep.subr.bf16.mxu0 %v1704
          %2482 = vmatpush1.bf16.msra.mxu0 %v1703
          %2483 = vmatprep.subr.bf16.mxu0 %v1710
          %2484 = vmatpush1.bf16.msra.mxu0 %v1709
          %2485 = vmatprep.subr.bf16.mxu0 %v1716
          %2486 = vmatpush1.bf16.msra.mxu0 %v1715
          %2487 = vmatprep.subr.bf16.mxu0 %v1722
          %2488 = vmatpush1.bf16.msra.mxu0 %v1721
          %2489 = vmatprep.subr.bf16.mxu0 %v1728
          %2490 = vmatpush1.bf16.msra.mxu0 %v1727
          %2491 = vmatprep.subr.bf16.mxu0 %v1734
          %2492 = vmatpush1.bf16.msra.mxu0 %v1733
          %2493 = vmatprep.mubr.bf16.mxu0 %v450
          %2494 = vmatmul.mubr.bf16.gmra.mrb[0].mxu0 %v449
          %v2495 = vpop.f32.mrb[0].mxu0
          %v2496 = vadd.f32 %v764, %v2495
          %v2497 = vpop.f32.mrb[0].mxu0
          %v2498 = vadd.f32 %v768, %v2497
          %v2499 = vpop.f32.mrb[0].mxu0
          %v2500 = vpop.f32.mrb[0].mxu0
          %2501 = vdwg.mxu0
          %2502 = vmatprep.subr.bf16.mxu0 %v1740
          %2503 = vmatpush1.bf16.msra.mxu0 %v1739
          %2504 = vmatprep.subr.bf16.mxu0 %v1746
          %2505 = vmatpush1.bf16.msra.mxu0 %v1745
          %2506 = vmatprep.subr.bf16.mxu0 %v1752
          %2507 = vmatpush1.bf16.msra.mxu0 %v1751
          %2508 = vmatprep.subr.bf16.mxu0 %v1758
          %2509 = vmatpush1.bf16.msra.mxu0 %v1757
          %2510 = vmatprep.subr.bf16.mxu0 %v1764
          %2511 = vmatpush1.bf16.msra.mxu0 %v1763
          %2512 = vmatprep.subr.bf16.mxu0 %v1770
          %2513 = vmatpush1.bf16.msra.mxu0 %v1769
          %2514 = vmatprep.subr.bf16.mxu0 %v1776
          %2515 = vmatpush1.bf16.msra.mxu0 %v1775
          %2516 = vmatprep.subr.bf16.mxu0 %v1782
          %2517 = vmatpush1.bf16.msra.mxu0 %v1781
          %2518 = vmatprep.subr.bf16.mxu0 %v1788
          %2519 = vmatpush1.bf16.msra.mxu0 %v1787
          %2520 = vmatprep.subr.bf16.mxu0 %v1794
          %2521 = vmatpush1.bf16.msra.mxu0 %v1793
          %2522 = vmatprep.subr.bf16.mxu0 %v1800
          %2523 = vmatpush1.bf16.msra.mxu0 %v1799
          %2524 = vmatprep.subr.bf16.mxu0 %v1806
          %2525 = vmatpush1.bf16.msra.mxu0 %v1805
          %2526 = vmatprep.subr.bf16.mxu0 %v1812
          %2527 = vmatpush1.bf16.msra.mxu0 %v1811
          %2528 = vmatprep.subr.bf16.mxu0 %v1818
          %2529 = vmatpush1.bf16.msra.mxu0 %v1817
          %2530 = vmatprep.subr.bf16.mxu0 %v1824
          %2531 = vmatpush1.bf16.msra.mxu0 %v1823
          %2532 = vmatprep.subr.bf16.mxu0 %v1830
          %2533 = vmatpush1.bf16.msra.mxu0 %v1829
          %2534 = vmatprep.mubr.bf16.mxu0 %v452
          %2535 = vmatmul.mubr.bf16.gmra.mrb[0].mxu0 %v451
          %v2536 = vpop.f32.mrb[0].mxu0
          %v2537 = vadd.f32 %v2496, %v2536
          %v2538 = vpop.f32.mrb[0].mxu0
          %v2539 = vadd.f32 %v2498, %v2538
          %v2540 = vpop.f32.mrb[0].mxu0
          %v2541 = vpop.f32.mrb[0].mxu0
          %2542 = vdwg.mxu0
          %2543 = vmatprep.subr.bf16.mxu0 %v1836
          %2544 = vmatpush1.bf16.msra.mxu0 %v1835
          %2545 = vmatprep.subr.bf16.mxu0 %v1842
          %2546 = vmatpush1.bf16.msra.mxu0 %v1841
          %2547 = vmatprep.subr.bf16.mxu0 %v1848
          %2548 = vmatpush1.bf16.msra.mxu0 %v1847
          %2549 = vmatprep.subr.bf16.mxu0 %v1854
          %2550 = vmatpush1.bf16.msra.mxu0 %v1853
          %2551 = vmatprep.subr.bf16.mxu0 %v1860
          %2552 = vmatpush1.bf16.msra.mxu0 %v1859
          %2553 = vmatprep.subr.bf16.mxu0 %v1866
          %2554 = vmatpush1.bf16.msra.mxu0 %v1865
          %2555 = vmatprep.subr.bf16.mxu0 %v1872
          %2556 = vmatpush1.bf16.msra.mxu0 %v1871
          %2557 = vmatprep.subr.bf16.mxu0 %v1878
          %2558 = vmatpush1.bf16.msra.mxu0 %v1877
          %2559 = vmatprep.subr.bf16.mxu0 %v1884
          %2560 = vmatpush1.bf16.msra.mxu0 %v1883
          %2561 = vmatprep.subr.bf16.mxu0 %v1890
          %2562 = vmatpush1.bf16.msra.mxu0 %v1889
          %2563 = vmatprep.subr.bf16.mxu0 %v1896
          %2564 = vmatpush1.bf16.msra.mxu0 %v1895
          %2565 = vmatprep.subr.bf16.mxu0 %v1902
          %2566 = vmatpush1.bf16.msra.mxu0 %v1901
          %2567 = vmatprep.subr.bf16.mxu0 %v1908
          %2568 = vmatpush1.bf16.msra.mxu0 %v1907
          %2569 = vmatprep.subr.bf16.mxu0 %v1914
          %2570 = vmatpush1.bf16.msra.mxu0 %v1913
          %2571 = vmatprep.subr.bf16.mxu0 %v1920
          %2572 = vmatpush1.bf16.msra.mxu0 %v1919
          %2573 = vmatprep.subr.bf16.mxu0 %v1926
          %2574 = vmatpush1.bf16.msra.mxu0 %v1925
          %2575 = vmatprep.mubr.bf16.mxu0 %v454
          %2576 = vmatmul.mubr.bf16.gmra.mrb[0].mxu0 %v453
          %v2577 = vpop.f32.mrb[0].mxu0
          %v2578 = vadd.f32 %v2537, %v2577
          %v2579 = vpop.f32.mrb[0].mxu0
          %v2580 = vadd.f32 %v2539, %v2579
          %v2581 = vpop.f32.mrb[0].mxu0
          %v2582 = vpop.f32.mrb[0].mxu0
          %2583 = vdwg.mxu0
          %v2584 = vadd.f32 %v2332, %v2334
          %v2585 = vadd.f32 %v2584, %v2455
          %v2586 = vadd.f32 %v2585, %v2457
          %v2587 = vadd.f32 %v2586, %v2578
          %v2588 = vadd.f32 %v2587, %v2580
          %2589 = vadd.xlane.f32.xlu0 %v2588
          %v2590 = vpop.xlane.xlu0 %2589
          %v2591 = vrcp.pop 768.0
          %v2592 = vmul.f32 %v2590, %v2591
          %v2593 = vsub.f32 %v2332, %v2592
          %v2594 = vsub.f32 %v2334, %v2592
          %v2595 = vsub.f32 %v2455, %v2592
          %v2596 = vsub.f32 %v2457, %v2592
          %v2597 = vsub.f32 %v2578, %v2592
          %v2598 = vsub.f32 %v2580, %v2592
          %v2599 = vmul.f32 %v2593, %v2593
          %v2600 = vmul.f32 %v2594, %v2594
          %v2601 = vmul.f32 %v2595, %v2595
          %v2602 = vmul.f32 %v2596, %v2596
          %v2603 = vmul.f32 %v2597, %v2597
          %v2604 = vmul.f32 %v2598, %v2598
          %v2605 = vadd.f32 %v2599, %v2600
          %v2606 = vadd.f32 %v2605, %v2601
          %v2607 = vadd.f32 %v2606, %v2602
          %v2608 = vadd.f32 %v2607, %v2603
          %v2609 = vadd.f32 %v2608, %v2604
          %2610 = vadd.xlane.f32.xlu0 %v2609
          %v2611 = vpop.xlane.xlu0 %2610
          %v2612 = vmul.f32 %v2611, %v2591
          %v2613 = vadd.f32 %v2612, 1e-13
          %v2614 = vrsqrt.pop %v2613
          %v2615 = vmul.f32 %v2593, %v2614
          %v2616 = vmul.f32 %v2594, %v2614
          %v2617 = vmul.f32 %v2595, %v2614
          %v2618 = vmul.f32 %v2596, %v2614
          %v2619 = vmul.f32 %v2597, %v2614
          %v2620 = vmul.f32 %v2598, %v2614
          %v2621 = vld [vmem:[#allocation9] sm:$0x3f]
          %v2623 = vlaneseq
          %v2624 = vshrl.u32 %v2623, 7
          %v2625 = vsub.s32 0, %v2624
          %v2626 = vrot.slane %v2621, %v2625
          %v2627 = vlaneseq
          %v2628 = vshrl.u32 %v2627, 7
          %v2629 = vsub.s32 1, %v2628
          %v2630 = vrot.slane %v2621, %v2629
          %v2631 = vlaneseq
          %v2632 = vshrl.u32 %v2631, 7
          %v2633 = vsub.s32 2, %v2632
          %v2634 = vrot.slane %v2621, %v2633
          %v2635 = vlaneseq
          %v2636 = vshrl.u32 %v2635, 7
          %v2637 = vsub.s32 3, %v2636
          %v2638 = vrot.slane %v2621, %v2637
          %v2639 = vlaneseq
          %v2640 = vshrl.u32 %v2639, 7
          %v2641 = vsub.s32 4, %v2640
          %v2642 = vrot.slane %v2621, %v2641
          %v2643 = vlaneseq
          %v2644 = vshrl.u32 %v2643, 7
          %v2645 = vsub.s32 5, %v2644
          %v2646 = vrot.slane %v2621, %v2645
          %v2653 = vmul.f32 %v2615, %v2626
          %v2654 = vmul.f32 %v2616, %v2630
          %v2655 = vmul.f32 %v2617, %v2634
          %v2656 = vmul.f32 %v2618, %v2638
          %v2657 = vmul.f32 %v2619, %v2642
          %v2658 = vmul.f32 %v2620, %v2646
          %v2659 = vld [vmem:[#allocation11] sm:$0x3f]
          %v2661 = vlaneseq
          %v2662 = vshrl.u32 %v2661, 7
          %v2663 = vsub.s32 0, %v2662
          %v2664 = vrot.slane %v2659, %v2663
          %v2665 = vlaneseq
          %v2666 = vshrl.u32 %v2665, 7
          %v2667 = vsub.s32 1, %v2666
          %v2668 = vrot.slane %v2659, %v2667
          %v2669 = vlaneseq
          %v2670 = vshrl.u32 %v2669, 7
          %v2671 = vsub.s32 2, %v2670
          %v2672 = vrot.slane %v2659, %v2671
          %v2673 = vlaneseq
          %v2674 = vshrl.u32 %v2673, 7
          %v2675 = vsub.s32 3, %v2674
          %v2676 = vrot.slane %v2659, %v2675
          %v2677 = vlaneseq
          %v2678 = vshrl.u32 %v2677, 7
          %v2679 = vsub.s32 4, %v2678
          %v2680 = vrot.slane %v2659, %v2679
          %v2681 = vlaneseq
          %v2682 = vshrl.u32 %v2681, 7
          %v2683 = vsub.s32 5, %v2682
          %v2684 = vrot.slane %v2659, %v2683
          %v2691 = vadd.f32 %v2653, %v2664
          %v2692 = vadd.f32 %v2654, %v2668
          %v2693 = vadd.f32 %v2655, %v2672
          %v2694 = vadd.f32 %v2656, %v2676
          %v2695 = vadd.f32 %v2657, %v2680
          %v2696 = vadd.f32 %v2658, %v2684
          %v2697 = vpack.c.bf16 %v2691, %v2691
          %v2698 = vpack.c.bf16 %v2692, %v2692
          %v2699 = vpack.c.bf16 %v2693, %v2693
          %v2700 = vpack.c.bf16 %v2694, %v2694
          %v2701 = vpack.c.bf16 %v2695, %v2695
          %v2702 = vpack.c.bf16 %v2696, %v2696
          %v2709 = vunpack.c.l.b16 %v2697
          %v2710 = vunpack.c.l.b16 %v2698
          %v2711 = vunpack.c.l.b16 %v2699
          %v2712 = vunpack.c.l.b16 %v2700
          %v2713 = vunpack.c.l.b16 %v2701
          %v2714 = vunpack.c.l.b16 %v2702
          %v2715 = vpack.c.b16 %v2710, %v2709
          %v2716 = vpack.c.b16 %v2712, %v2711
          %v2717 = vpack.c.b16 %v2714, %v2713
          %2721 = vst [vmem:[#allocation2] sm:$0xff] %v2715
          %2722 = vst [vmem:[#allocation2 + $0x8] sm:$0xff] %v2716
          %2723 = vst [vmem:[#allocation2 + $0x10] sm:$0xff] %v2717
        $region80: #{tpu_custom_call.1} parent=47 // pred_fallthru
          _
        %v2724 = vld [vmem:[#allocation2] sm:$0xff]
        %v2725 = vld [vmem:[#allocation2 + $0x8] sm:$0xff]
        %v2726 = vld [vmem:[#allocation2 + $0x10] sm:$0xff]
        %v2727 = vld [vmem:[%s386] sm:$0xff]
        %v2728 = vld [vmem:[%s386 + $0x8] sm:$0xff]
        %v2729 = vld [vmem:[%s386 + $0x10] sm:$0xff]
        %v2730 = vld [vmem:[%s386 + $0x18] sm:$0xff]
        %v2731 = vld [vmem:[%s386 + $0x20] sm:$0xff]
        %v2732 = vld [vmem:[%s386 + $0x28] sm:$0xff]
        %v2733 = vld [vmem:[%s386 + $0x30] sm:$0xff]
        %v2734 = vld [vmem:[%s386 + $0x38] sm:$0xff]
        %v2735 = vld [vmem:[%s386 + $0x40] sm:$0xff]
        %v2736 = vld [vmem:[%s386 + $0x48] sm:$0xff]
        %v2737 = vld [vmem:[%s386 + $0x50] sm:$0xff]
        %v2738 = vld [vmem:[%s386 + $0x58] sm:$0xff]
        %v2739 = vld [vmem:[%s386 + $0x60] sm:$0xff]
        %v2740 = vld [vmem:[%s386 + $0x68] sm:$0xff]
        %v2741 = vld [vmem:[%s386 + $0x70] sm:$0xff]
        %v2742 = vld [vmem:[%s386 + $0x78] sm:$0xff]
        %v2743 = vld [vmem:[%s386 + $0x80] sm:$0xff]
        %v2744 = vld [vmem:[%s386 + $0x88] sm:$0xff]
        %v2745 = vld [vmem:[%s386 + $0x90] sm:$0xff]
        %v2746 = vld [vmem:[%s386 + $0x98] sm:$0xff]
        %v2747 = vld [vmem:[%s386 + $0xa0] sm:$0xff]
        %v2748 = vld [vmem:[%s386 + $0xa8] sm:$0xff]
        %v2749 = vld [vmem:[%s386 + $0xb0] sm:$0xff]
        %v2750 = vld [vmem:[%s386 + $0xb8] sm:$0xff]
        %v2751 = vld [vmem:[%s386 + $0xc0] sm:$0xff]
        %v2752 = vld [vmem:[%s386 + $0xc8] sm:$0xff]
        %v2753 = vld [vmem:[%s386 + $0xd0] sm:$0xff]
        %v2754 = vld [vmem:[%s386 + $0xd8] sm:$0xff]
        %v2755 = vld [vmem:[%s386 + $0xe0] sm:$0xff]
        %v2756 = vld [vmem:[%s386 + $0xe8] sm:$0xff]
        %v2757 = vld [vmem:[%s386 + $0xf0] sm:$0xff]
        %v2758 = vld [vmem:[%s386 + $0xf8] sm:$0xff]
        %v2759 = vld [vmem:[%s386 + $0x100] sm:$0xff]
        %v2760 = vld [vmem:[%s386 + $0x108] sm:$0xff]
        %v2761 = vld [vmem:[%s386 + $0x110] sm:$0xff]
        %v2762 = vld [vmem:[%s386 + $0x118] sm:$0xff]
        %v2763 = vld [vmem:[%s386 + $0x120] sm:$0xff]
        %v2764 = vld [vmem:[%s386 + $0x128] sm:$0xff]
        %v2765 = vld [vmem:[%s386 + $0x130] sm:$0xff]
        %v2766 = vld [vmem:[%s386 + $0x138] sm:$0xff]
        %v2767 = vld [vmem:[%s386 + $0x140] sm:$0xff]
        %v2768 = vld [vmem:[%s386 + $0x148] sm:$0xff]
        %v2769 = vld [vmem:[%s386 + $0x150] sm:$0xff]
        %v2770 = vld [vmem:[%s386 + $0x158] sm:$0xff]
        %v2771 = vld [vmem:[%s386 + $0x160] sm:$0xff]
        %v2772 = vld [vmem:[%s386 + $0x168] sm:$0xff]
        %v2773 = vld [vmem:[%s386 + $0x170] sm:$0xff]
        %v2774 = vld [vmem:[%s386 + $0x178] sm:$0xff]
        %v2775 = vld [vmem:[%s386 + $0x180] sm:$0xff]
        %v2776 = vld [vmem:[%s386 + $0x188] sm:$0xff]
        %v2777 = vld [vmem:[%s386 + $0x190] sm:$0xff]
        %v2778 = vld [vmem:[%s386 + $0x198] sm:$0xff]
        %v2779 = vld [vmem:[%s386 + $0x1a0] sm:$0xff]
        %v2780 = vld [vmem:[%s386 + $0x1a8] sm:$0xff]
        %v2781 = vld [vmem:[%s386 + $0x1b0] sm:$0xff]
        %v2782 = vld [vmem:[%s386 + $0x1b8] sm:$0xff]
        %v2783 = vld [vmem:[%s386 + $0x1c0] sm:$0xff]
        %v2784 = vld [vmem:[%s386 + $0x1c8] sm:$0xff]
        %v2785 = vld [vmem:[%s386 + $0x1d0] sm:$0xff]
        %v2786 = vld [vmem:[%s386 + $0x1d8] sm:$0xff]
        %v2787 = vld [vmem:[%s386 + $0x1e0] sm:$0xff]
        %v2788 = vld [vmem:[%s386 + $0x1e8] sm:$0xff]
        %v2789 = vld [vmem:[%s386 + $0x1f0] sm:$0xff]
        %v2790 = vld [vmem:[%s386 + $0x1f8] sm:$0xff]
        %v2791 = vld [vmem:[%s386 + $0x200] sm:$0xff]
        %v2792 = vld [vmem:[%s386 + $0x208] sm:$0xff]
        %v2793 = vld [vmem:[%s386 + $0x210] sm:$0xff]
        %v2794 = vld [vmem:[%s386 + $0x218] sm:$0xff]
        %v2795 = vld [vmem:[%s386 + $0x220] sm:$0xff]
        %v2796 = vld [vmem:[%s386 + $0x228] sm:$0xff]
        %v2797 = vld [vmem:[%s386 + $0x230] sm:$0xff]
        %v2798 = vld [vmem:[%s386 + $0x238] sm:$0xff]
        %v2799 = vld [vmem:[%s386 + $0x240] sm:$0xff]
        %v2800 = vld [vmem:[%s386 + $0x248] sm:$0xff]
        %v2801 = vld [vmem:[%s386 + $0x250] sm:$0xff]
        %v2802 = vld [vmem:[%s386 + $0x258] sm:$0xff]
        %v2803 = vld [vmem:[%s386 + $0x260] sm:$0xff]
        %v2804 = vld [vmem:[%s386 + $0x268] sm:$0xff]
        %v2805 = vld [vmem:[%s386 + $0x270] sm:$0xff]
        %v2806 = vld [vmem:[%s386 + $0x278] sm:$0xff]
        %v2807 = vld [vmem:[%s386 + $0x280] sm:$0xff]
        %v2808 = vld [vmem:[%s386 + $0x288] sm:$0xff]
        %v2809 = vld [vmem:[%s386 + $0x290] sm:$0xff]
        %v2810 = vld [vmem:[%s386 + $0x298] sm:$0xff]
        %v2811 = vld [vmem:[%s386 + $0x2a0] sm:$0xff]
        %v2812 = vld [vmem:[%s386 + $0x2a8] sm:$0xff]
        %v2813 = vld [vmem:[%s386 + $0x2b0] sm:$0xff]
        %v2814 = vld [vmem:[%s386 + $0x2b8] sm:$0xff]
        %v2815 = vld [vmem:[%s386 + $0x2c0] sm:$0xff]
        %v2816 = vld [vmem:[%s386 + $0x2c8] sm:$0xff]
        %v2817 = vld [vmem:[%s386 + $0x2d0] sm:$0xff]
        %v2818 = vld [vmem:[%s386 + $0x2d8] sm:$0xff]
        %v2819 = vld [vmem:[%s386 + $0x2e0] sm:$0xff]
        %v2820 = vld [vmem:[%s386 + $0x2e8] sm:$0xff]
        %v2821 = vld [vmem:[%s386 + $0x2f0] sm:$0xff]
        %v2822 = vld [vmem:[%s386 + $0x2f8] sm:$0xff]
        %v2823 = vld [vmem:[%s386 + $0x300] sm:$0xff]
        %v2824 = vld [vmem:[%s386 + $0x308] sm:$0xff]
        %v2825 = vld [vmem:[%s386 + $0x310] sm:$0xff]
        %v2826 = vld [vmem:[%s386 + $0x318] sm:$0xff]
        %v2827 = vld [vmem:[%s386 + $0x320] sm:$0xff]
        %v2828 = vld [vmem:[%s386 + $0x328] sm:$0xff]
        %v2829 = vld [vmem:[%s386 + $0x330] sm:$0xff]
        %v2830 = vld [vmem:[%s386 + $0x338] sm:$0xff]
        %v2831 = vld [vmem:[%s386 + $0x340] sm:$0xff]
        %v2832 = vld [vmem:[%s386 + $0x348] sm:$0xff]
        %v2833 = vld [vmem:[%s386 + $0x350] sm:$0xff]
        %v2834 = vld [vmem:[%s386 + $0x358] sm:$0xff]
        %v2835 = vld [vmem:[%s386 + $0x360] sm:$0xff]
        %v2836 = vld [vmem:[%s386 + $0x368] sm:$0xff]
        %v2837 = vld [vmem:[%s386 + $0x370] sm:$0xff]
        %v2838 = vld [vmem:[%s386 + $0x378] sm:$0xff]
        %v2839 = vld [vmem:[%s386 + $0x380] sm:$0xff]
        %v2840 = vld [vmem:[%s386 + $0x388] sm:$0xff]
        %v2841 = vld [vmem:[%s386 + $0x390] sm:$0xff]
        %v2842 = vld [vmem:[%s386 + $0x398] sm:$0xff]
        %v2843 = vld [vmem:[%s386 + $0x3a0] sm:$0xff]
        %v2844 = vld [vmem:[%s386 + $0x3a8] sm:$0xff]
        %v2845 = vld [vmem:[%s386 + $0x3b0] sm:$0xff]
        %v2846 = vld [vmem:[%s386 + $0x3b8] sm:$0xff]
        %v2847 = vld [vmem:[%s386 + $0x3c0] sm:$0xff]
        %v2848 = vld [vmem:[%s386 + $0x3c8] sm:$0xff]
        %v2849 = vld [vmem:[%s386 + $0x3d0] sm:$0xff]
        %v2850 = vld [vmem:[%s386 + $0x3d8] sm:$0xff]
        %v2851 = vld [vmem:[%s386 + $0x3e0] sm:$0xff]
        %v2852 = vld [vmem:[%s386 + $0x3e8] sm:$0xff]
        %v2853 = vld [vmem:[%s386 + $0x3f0] sm:$0xff]
        %v2854 = vld [vmem:[%s386 + $0x3f8] sm:$0xff]
        %v2855 = vld [vmem:[%s386 + $0x400] sm:$0xff]
        %v2856 = vld [vmem:[%s386 + $0x408] sm:$0xff]
        %v2857 = vld [vmem:[%s386 + $0x410] sm:$0xff]
        %v2858 = vld [vmem:[%s386 + $0x418] sm:$0xff]
        %v2859 = vld [vmem:[%s386 + $0x420] sm:$0xff]
        %v2860 = vld [vmem:[%s386 + $0x428] sm:$0xff]
        %v2861 = vld [vmem:[%s386 + $0x430] sm:$0xff]
        %v2862 = vld [vmem:[%s386 + $0x438] sm:$0xff]
        %v2863 = vld [vmem:[%s386 + $0x440] sm:$0xff]
        %v2864 = vld [vmem:[%s386 + $0x448] sm:$0xff]
        %v2865 = vld [vmem:[%s386 + $0x450] sm:$0xff]
        %v2866 = vld [vmem:[%s386 + $0x458] sm:$0xff]
        %v2867 = vld [vmem:[%s386 + $0x460] sm:$0xff]
        %v2868 = vld [vmem:[%s386 + $0x468] sm:$0xff]
        %v2869 = vld [vmem:[%s386 + $0x470] sm:$0xff]
        %v2870 = vld [vmem:[%s386 + $0x478] sm:$0xff]
        %v2871 = vld [vmem:[%s386 + $0x480] sm:$0xff]
        %v2872 = vld [vmem:[%s386 + $0x488] sm:$0xff]
        %v2873 = vld [vmem:[%s386 + $0x490] sm:$0xff]
        %v2874 = vld [vmem:[%s386 + $0x498] sm:$0xff]
        %v2875 = vld [vmem:[%s386 + $0x4a0] sm:$0xff]
        %v2876 = vld [vmem:[%s386 + $0x4a8] sm:$0xff]
        %v2877 = vld [vmem:[%s386 + $0x4b0] sm:$0xff]
        %v2878 = vld [vmem:[%s386 + $0x4b8] sm:$0xff]
        %v2879 = vld [vmem:[%s386 + $0x4c0] sm:$0xff]
        %v2880 = vld [vmem:[%s386 + $0x4c8] sm:$0xff]
        %v2881 = vld [vmem:[%s386 + $0x4d0] sm:$0xff]
        %v2882 = vld [vmem:[%s386 + $0x4d8] sm:$0xff]
        %v2883 = vld [vmem:[%s386 + $0x4e0] sm:$0xff]
        %v2884 = vld [vmem:[%s386 + $0x4e8] sm:$0xff]
        %v2885 = vld [vmem:[%s386 + $0x4f0] sm:$0xff]
        %v2886 = vld [vmem:[%s386 + $0x4f8] sm:$0xff]
        %v2887 = vld [vmem:[%s386 + $0x500] sm:$0xff]
        %v2888 = vld [vmem:[%s386 + $0x508] sm:$0xff]
        %v2889 = vld [vmem:[%s386 + $0x510] sm:$0xff]
        %v2890 = vld [vmem:[%s386 + $0x518] sm:$0xff]
        %v2891 = vld [vmem:[%s386 + $0x520] sm:$0xff]
        %v2892 = vld [vmem:[%s386 + $0x528] sm:$0xff]
        %v2893 = vld [vmem:[%s386 + $0x530] sm:$0xff]
        %v2894 = vld [vmem:[%s386 + $0x538] sm:$0xff]
        %v2895 = vld [vmem:[%s386 + $0x540] sm:$0xff]
        %v2896 = vld [vmem:[%s386 + $0x548] sm:$0xff]
        %v2897 = vld [vmem:[%s386 + $0x550] sm:$0xff]
        %v2898 = vld [vmem:[%s386 + $0x558] sm:$0xff]
        %v2899 = vld [vmem:[%s386 + $0x560] sm:$0xff]
        %v2900 = vld [vmem:[%s386 + $0x568] sm:$0xff]
        %v2901 = vld [vmem:[%s386 + $0x570] sm:$0xff]
        %v2902 = vld [vmem:[%s386 + $0x578] sm:$0xff]
        %v2903 = vld [vmem:[%s386 + $0x580] sm:$0xff]
        %v2904 = vld [vmem:[%s386 + $0x588] sm:$0xff]
        %v2905 = vld [vmem:[%s386 + $0x590] sm:$0xff]
        %v2906 = vld [vmem:[%s386 + $0x598] sm:$0xff]
        %v2907 = vld [vmem:[%s386 + $0x5a0] sm:$0xff]
        %v2908 = vld [vmem:[%s386 + $0x5a8] sm:$0xff]
        %v2909 = vld [vmem:[%s386 + $0x5b0] sm:$0xff]
        %v2910 = vld [vmem:[%s386 + $0x5b8] sm:$0xff]
        %v2911 = vld [vmem:[%s386 + $0x5c0] sm:$0xff]
        %v2912 = vld [vmem:[%s386 + $0x5c8] sm:$0xff]
        %v2913 = vld [vmem:[%s386 + $0x5d0] sm:$0xff]
        %v2914 = vld [vmem:[%s386 + $0x5d8] sm:$0xff]
        %v2915 = vld [vmem:[%s386 + $0x5e0] sm:$0xff]
        %v2916 = vld [vmem:[%s386 + $0x5e8] sm:$0xff]
        %v2917 = vld [vmem:[%s386 + $0x5f0] sm:$0xff]
        %v2918 = vld [vmem:[%s386 + $0x5f8] sm:$0xff]
        %v2919 = vld [vmem:[%s395] sm:$0xf]
        %v2921 = vlaneseq
        %v2922 = vshrl.u32 %v2921, 7
        %v2923 = vsub.s32 0, %v2922
        %v2924 = vrot.slane %v2919, %v2923
        %v2925 = vlaneseq
        %v2926 = vshrl.u32 %v2925, 7
        %v2927 = vsub.s32 1, %v2926
        %v2928 = vrot.slane %v2919, %v2927
        %v2929 = vlaneseq
        %v2930 = vshrl.u32 %v2929, 7
        %v2931 = vsub.s32 2, %v2930
        %v2932 = vrot.slane %v2919, %v2931
        %v2933 = vlaneseq
        %v2934 = vshrl.u32 %v2933, 7
        %v2935 = vsub.s32 3, %v2934
        %v2936 = vrot.slane %v2919, %v2935
        %v2944 = vunpack.c.l.b16 %v2724
        %v2945 = vunpack.c.h.b16 %v2724
        %v2946 = vunpack.c.l.b16 %v2725
        %v2947 = vunpack.c.h.b16 %v2725
        %v2948 = vunpack.c.l.b16 %v2726
        %v2949 = vunpack.c.h.b16 %v2726
        %v2950 = vpack.c.b16 %v2944, %v2944
        %v2951 = vpack.c.b16 %v2945, %v2945
        %v2952 = vpack.c.b16 %v2946, %v2946
        %v2953 = vpack.c.b16 %v2947, %v2947
        %v2954 = vpack.c.b16 %v2948, %v2948
        %v2955 = vpack.c.b16 %v2949, %v2949
        %v3154 = vunpack.c.l.b16 %v2727
        %v3155 = vunpack.c.h.b16 %v2727
        %v3156 = vunpack.c.l.b16 %v2728
        %v3157 = vunpack.c.h.b16 %v2728
        %v3158 = vunpack.c.l.b16 %v2729
        %v3159 = vunpack.c.h.b16 %v2729
        %v3160 = vunpack.c.l.b16 %v2730
        %v3161 = vunpack.c.h.b16 %v2730
        %v3162 = vunpack.c.l.b16 %v2731
        %v3163 = vunpack.c.h.b16 %v2731
        %v3164 = vunpack.c.l.b16 %v2732
        %v3165 = vunpack.c.h.b16 %v2732
        %v3166 = vunpack.c.l.b16 %v2733
        %v3167 = vunpack.c.h.b16 %v2733
        %v3168 = vunpack.c.l.b16 %v2734
        %v3169 = vunpack.c.h.b16 %v2734
        %v3170 = vunpack.c.l.b16 %v2735
        %v3171 = vunpack.c.h.b16 %v2735
        %v3172 = vunpack.c.l.b16 %v2736
        %v3173 = vunpack.c.h.b16 %v2736
        %v3174 = vunpack.c.l.b16 %v2737
        %v3175 = vunpack.c.h.b16 %v2737
        %v3176 = vunpack.c.l.b16 %v2738
        %v3177 = vunpack.c.h.b16 %v2738
        %v3178 = vunpack.c.l.b16 %v2739
        %v3179 = vunpack.c.h.b16 %v2739
        %v3180 = vunpack.c.l.b16 %v2740
        %v3181 = vunpack.c.h.b16 %v2740
        %v3182 = vunpack.c.l.b16 %v2741
        %v3183 = vunpack.c.h.b16 %v2741
        %v3184 = vunpack.c.l.b16 %v2742
        %v3185 = vunpack.c.h.b16 %v2742
        %v3186 = vunpack.c.l.b16 %v2743
        %v3187 = vunpack.c.h.b16 %v2743
        %v3188 = vunpack.c.l.b16 %v2744
        %v3189 = vunpack.c.h.b16 %v2744
        %v3190 = vunpack.c.l.b16 %v2745
        %v3191 = vunpack.c.h.b16 %v2745
        %v3192 = vunpack.c.l.b16 %v2746
        %v3193 = vunpack.c.h.b16 %v2746
        %v3194 = vunpack.c.l.b16 %v2747
        %v3195 = vunpack.c.h.b16 %v2747
        %v3196 = vunpack.c.l.b16 %v2748
        %v3197 = vunpack.c.h.b16 %v2748
        %v3198 = vunpack.c.l.b16 %v2749
        %v3199 = vunpack.c.h.b16 %v2749
        %v3200 = vunpack.c.l.b16 %v2750
        %v3201 = vunpack.c.h.b16 %v2750
        %v3202 = vunpack.c.l.b16 %v2751
        %v3203 = vunpack.c.h.b16 %v2751
        %v3204 = vunpack.c.l.b16 %v2752
        %v3205 = vunpack.c.h.b16 %v2752
        %v3206 = vunpack.c.l.b16 %v2753
        %v3207 = vunpack.c.h.b16 %v2753
        %v3208 = vunpack.c.l.b16 %v2754
        %v3209 = vunpack.c.h.b16 %v2754
        %v3210 = vunpack.c.l.b16 %v2755
        %v3211 = vunpack.c.h.b16 %v2755
        %v3212 = vunpack.c.l.b16 %v2756
        %v3213 = vunpack.c.h.b16 %v2756
        %v3214 = vunpack.c.l.b16 %v2757
        %v3215 = vunpack.c.h.b16 %v2757
        %v3216 = vunpack.c.l.b16 %v2758
        %v3217 = vunpack.c.h.b16 %v2758
        %v3218 = vunpack.c.l.b16 %v2759
        %v3219 = vunpack.c.h.b16 %v2759
        %v3220 = vunpack.c.l.b16 %v2760
        %v3221 = vunpack.c.h.b16 %v2760
        %v3222 = vunpack.c.l.b16 %v2761
        %v3223 = vunpack.c.h.b16 %v2761
        %v3224 = vunpack.c.l.b16 %v2762
        %v3225 = vunpack.c.h.b16 %v2762
        %v3226 = vunpack.c.l.b16 %v2763
        %v3227 = vunpack.c.h.b16 %v2763
        %v3228 = vunpack.c.l.b16 %v2764
        %v3229 = vunpack.c.h.b16 %v2764
        %v3230 = vunpack.c.l.b16 %v2765
        %v3231 = vunpack.c.h.b16 %v2765
        %v3232 = vunpack.c.l.b16 %v2766
        %v3233 = vunpack.c.h.b16 %v2766
        %v3234 = vunpack.c.l.b16 %v2767
        %v3235 = vunpack.c.h.b16 %v2767
        %v3236 = vunpack.c.l.b16 %v2768
        %v3237 = vunpack.c.h.b16 %v2768
        %v3238 = vunpack.c.l.b16 %v2769
        %v3239 = vunpack.c.h.b16 %v2769
        %v3240 = vunpack.c.l.b16 %v2770
        %v3241 = vunpack.c.h.b16 %v2770
        %v3242 = vunpack.c.l.b16 %v2771
        %v3243 = vunpack.c.h.b16 %v2771
        %v3244 = vunpack.c.l.b16 %v2772
        %v3245 = vunpack.c.h.b16 %v2772
        %v3246 = vunpack.c.l.b16 %v2773
        %v3247 = vunpack.c.h.b16 %v2773
        %v3248 = vunpack.c.l.b16 %v2774
        %v3249 = vunpack.c.h.b16 %v2774
        %v3250 = vunpack.c.l.b16 %v2775
        %v3251 = vunpack.c.h.b16 %v2775
        %v3252 = vunpack.c.l.b16 %v2776
        %v3253 = vunpack.c.h.b16 %v2776
        %v3254 = vunpack.c.l.b16 %v2777
        %v3255 = vunpack.c.h.b16 %v2777
        %v3256 = vunpack.c.l.b16 %v2778
        %v3257 = vunpack.c.h.b16 %v2778
        %v3258 = vunpack.c.l.b16 %v2779
        %v3259 = vunpack.c.h.b16 %v2779
        %v3260 = vunpack.c.l.b16 %v2780
        %v3261 = vunpack.c.h.b16 %v2780
        %v3262 = vunpack.c.l.b16 %v2781
        %v3263 = vunpack.c.h.b16 %v2781
        %v3264 = vunpack.c.l.b16 %v2782
        %v3265 = vunpack.c.h.b16 %v2782
        %v3266 = vunpack.c.l.b16 %v2783
        %v3267 = vunpack.c.h.b16 %v2783
        %v3268 = vunpack.c.l.b16 %v2784
        %v3269 = vunpack.c.h.b16 %v2784
        %v3270 = vunpack.c.l.b16 %v2785
        %v3271 = vunpack.c.h.b16 %v2785
        %v3272 = vunpack.c.l.b16 %v2786
        %v3273 = vunpack.c.h.b16 %v2786
        %v3274 = vunpack.c.l.b16 %v2787
        %v3275 = vunpack.c.h.b16 %v2787
        %v3276 = vunpack.c.l.b16 %v2788
        %v3277 = vunpack.c.h.b16 %v2788
        %v3278 = vunpack.c.l.b16 %v2789
        %v3279 = vunpack.c.h.b16 %v2789
        %v3280 = vunpack.c.l.b16 %v2790
        %v3281 = vunpack.c.h.b16 %v2790
        %v3282 = vunpack.c.l.b16 %v2791
        %v3283 = vunpack.c.h.b16 %v2791
        %v3284 = vunpack.c.l.b16 %v2792
        %v3285 = vunpack.c.h.b16 %v2792
        %v3286 = vunpack.c.l.b16 %v2793
        %v3287 = vunpack.c.h.b16 %v2793
        %v3288 = vunpack.c.l.b16 %v2794
        %v3289 = vunpack.c.h.b16 %v2794
        %v3290 = vunpack.c.l.b16 %v2795
        %v3291 = vunpack.c.h.b16 %v2795
        %v3292 = vunpack.c.l.b16 %v2796
        %v3293 = vunpack.c.h.b16 %v2796
        %v3294 = vunpack.c.l.b16 %v2797
        %v3295 = vunpack.c.h.b16 %v2797
        %v3296 = vunpack.c.l.b16 %v2798
        %v3297 = vunpack.c.h.b16 %v2798
        %v3298 = vunpack.c.l.b16 %v2799
        %v3299 = vunpack.c.h.b16 %v2799
        %v3300 = vunpack.c.l.b16 %v2800
        %v3301 = vunpack.c.h.b16 %v2800
        %v3302 = vunpack.c.l.b16 %v2801
        %v3303 = vunpack.c.h.b16 %v2801
        %v3304 = vunpack.c.l.b16 %v2802
        %v3305 = vunpack.c.h.b16 %v2802
        %v3306 = vunpack.c.l.b16 %v2803
        %v3307 = vunpack.c.h.b16 %v2803
        %v3308 = vunpack.c.l.b16 %v2804
        %v3309 = vunpack.c.h.b16 %v2804
        %v3310 = vunpack.c.l.b16 %v2805
        %v3311 = vunpack.c.h.b16 %v2805
        %v3312 = vunpack.c.l.b16 %v2806
        %v3313 = vunpack.c.h.b16 %v2806
        %v3314 = vunpack.c.l.b16 %v2807
        %v3315 = vunpack.c.h.b16 %v2807
        %v3316 = vunpack.c.l.b16 %v2808
        %v3317 = vunpack.c.h.b16 %v2808
        %v3318 = vunpack.c.l.b16 %v2809
        %v3319 = vunpack.c.h.b16 %v2809
        %v3320 = vunpack.c.l.b16 %v2810
        %v3321 = vunpack.c.h.b16 %v2810
        %v3322 = vunpack.c.l.b16 %v2811
        %v3323 = vunpack.c.h.b16 %v2811
        %v3324 = vunpack.c.l.b16 %v2812
        %v3325 = vunpack.c.h.b16 %v2812
        %v3326 = vunpack.c.l.b16 %v2813
        %v3327 = vunpack.c.h.b16 %v2813
        %v3328 = vunpack.c.l.b16 %v2814
        %v3329 = vunpack.c.h.b16 %v2814
        %v3330 = vunpack.c.l.b16 %v2815
        %v3331 = vunpack.c.h.b16 %v2815
        %v3332 = vunpack.c.l.b16 %v2816
        %v3333 = vunpack.c.h.b16 %v2816
        %v3334 = vunpack.c.l.b16 %v2817
        %v3335 = vunpack.c.h.b16 %v2817
        %v3336 = vunpack.c.l.b16 %v2818
        %v3337 = vunpack.c.h.b16 %v2818
        %v3338 = vunpack.c.l.b16 %v2819
        %v3339 = vunpack.c.h.b16 %v2819
        %v3340 = vunpack.c.l.b16 %v2820
        %v3341 = vunpack.c.h.b16 %v2820
        %v3342 = vunpack.c.l.b16 %v2821
        %v3343 = vunpack.c.h.b16 %v2821
        %v3344 = vunpack.c.l.b16 %v2822
        %v3345 = vunpack.c.h.b16 %v2822
        %v3346 = vunpack.c.l.b16 %v2823
        %v3347 = vunpack.c.h.b16 %v2823
        %v3348 = vunpack.c.l.b16 %v2824
        %v3349 = vunpack.c.h.b16 %v2824
        %v3350 = vunpack.c.l.b16 %v2825
        %v3351 = vunpack.c.h.b16 %v2825
        %v3352 = vunpack.c.l.b16 %v2826
        %v3353 = vunpack.c.h.b16 %v2826
        %v3354 = vunpack.c.l.b16 %v2827
        %v3355 = vunpack.c.h.b16 %v2827
        %v3356 = vunpack.c.l.b16 %v2828
        %v3357 = vunpack.c.h.b16 %v2828
        %v3358 = vunpack.c.l.b16 %v2829
        %v3359 = vunpack.c.h.b16 %v2829
        %v3360 = vunpack.c.l.b16 %v2830
        %v3361 = vunpack.c.h.b16 %v2830
        %v3362 = vunpack.c.l.b16 %v2831
        %v3363 = vunpack.c.h.b16 %v2831
        %v3364 = vunpack.c.l.b16 %v2832
        %v3365 = vunpack.c.h.b16 %v2832
        %v3366 = vunpack.c.l.b16 %v2833
        %v3367 = vunpack.c.h.b16 %v2833
        %v3368 = vunpack.c.l.b16 %v2834
        %v3369 = vunpack.c.h.b16 %v2834
        %v3370 = vunpack.c.l.b16 %v2835
        %v3371 = vunpack.c.h.b16 %v2835
        %v3372 = vunpack.c.l.b16 %v2836
        %v3373 = vunpack.c.h.b16 %v2836
        %v3374 = vunpack.c.l.b16 %v2837
        %v3375 = vunpack.c.h.b16 %v2837
        %v3376 = vunpack.c.l.b16 %v2838
        %v3377 = vunpack.c.h.b16 %v2838
        %v3378 = vunpack.c.l.b16 %v2839
        %v3379 = vunpack.c.h.b16 %v2839
        %v3380 = vunpack.c.l.b16 %v2840
        %v3381 = vunpack.c.h.b16 %v2840
        %v3382 = vunpack.c.l.b16 %v2841
        %v3383 = vunpack.c.h.b16 %v2841
        %v3384 = vunpack.c.l.b16 %v2842
        %v3385 = vunpack.c.h.b16 %v2842
        %v3386 = vunpack.c.l.b16 %v2843
        %v3387 = vunpack.c.h.b16 %v2843
        %v3388 = vunpack.c.l.b16 %v2844
        %v3389 = vunpack.c.h.b16 %v2844
        %v3390 = vunpack.c.l.b16 %v2845
        %v3391 = vunpack.c.h.b16 %v2845
        %v3392 = vunpack.c.l.b16 %v2846
        %v3393 = vunpack.c.h.b16 %v2846
        %v3394 = vunpack.c.l.b16 %v2847
        %v3395 = vunpack.c.h.b16 %v2847
        %v3396 = vunpack.c.l.b16 %v2848
        %v3397 = vunpack.c.h.b16 %v2848
        %v3398 = vunpack.c.l.b16 %v2849
        %v3399 = vunpack.c.h.b16 %v2849
        %v3400 = vunpack.c.l.b16 %v2850
        %v3401 = vunpack.c.h.b16 %v2850
        %v3402 = vunpack.c.l.b16 %v2851
        %v3403 = vunpack.c.h.b16 %v2851
        %v3404 = vunpack.c.l.b16 %v2852
        %v3405 = vunpack.c.h.b16 %v2852
        %v3406 = vunpack.c.l.b16 %v2853
        %v3407 = vunpack.c.h.b16 %v2853
        %v3408 = vunpack.c.l.b16 %v2854
        %v3409 = vunpack.c.h.b16 %v2854
        %v3410 = vunpack.c.l.b16 %v2855
        %v3411 = vunpack.c.h.b16 %v2855
        %v3412 = vunpack.c.l.b16 %v2856
        %v3413 = vunpack.c.h.b16 %v2856
        %v3414 = vunpack.c.l.b16 %v2857
        %v3415 = vunpack.c.h.b16 %v2857
        %v3416 = vunpack.c.l.b16 %v2858
        %v3417 = vunpack.c.h.b16 %v2858
        %v3418 = vunpack.c.l.b16 %v2859
        %v3419 = vunpack.c.h.b16 %v2859
        %v3420 = vunpack.c.l.b16 %v2860
        %v3421 = vunpack.c.h.b16 %v2860
        %v3422 = vunpack.c.l.b16 %v2861
        %v3423 = vunpack.c.h.b16 %v2861
        %v3424 = vunpack.c.l.b16 %v2862
        %v3425 = vunpack.c.h.b16 %v2862
        %v3426 = vunpack.c.l.b16 %v2863
        %v3427 = vunpack.c.h.b16 %v2863
        %v3428 = vunpack.c.l.b16 %v2864
        %v3429 = vunpack.c.h.b16 %v2864
        %v3430 = vunpack.c.l.b16 %v2865
        %v3431 = vunpack.c.h.b16 %v2865
        %v3432 = vunpack.c.l.b16 %v2866
        %v3433 = vunpack.c.h.b16 %v2866
        %v3434 = vunpack.c.l.b16 %v2867
        %v3435 = vunpack.c.h.b16 %v2867
        %v3436 = vunpack.c.l.b16 %v2868
        %v3437 = vunpack.c.h.b16 %v2868
        %v3438 = vunpack.c.l.b16 %v2869
        %v3439 = vunpack.c.h.b16 %v2869
        %v3440 = vunpack.c.l.b16 %v2870
        %v3441 = vunpack.c.h.b16 %v2870
        %v3442 = vunpack.c.l.b16 %v2871
        %v3443 = vunpack.c.h.b16 %v2871
        %v3444 = vunpack.c.l.b16 %v2872
        %v3445 = vunpack.c.h.b16 %v2872
        %v3446 = vunpack.c.l.b16 %v2873
        %v3447 = vunpack.c.h.b16 %v2873
        %v3448 = vunpack.c.l.b16 %v2874
        %v3449 = vunpack.c.h.b16 %v2874
        %v3450 = vunpack.c.l.b16 %v2875
        %v3451 = vunpack.c.h.b16 %v2875
        %v3452 = vunpack.c.l.b16 %v2876
        %v3453 = vunpack.c.h.b16 %v2876
        %v3454 = vunpack.c.l.b16 %v2877
        %v3455 = vunpack.c.h.b16 %v2877
        %v3456 = vunpack.c.l.b16 %v2878
        %v3457 = vunpack.c.h.b16 %v2878
        %v3458 = vunpack.c.l.b16 %v2879
        %v3459 = vunpack.c.h.b16 %v2879
        %v3460 = vunpack.c.l.b16 %v2880
        %v3461 = vunpack.c.h.b16 %v2880
        %v3462 = vunpack.c.l.b16 %v2881
        %v3463 = vunpack.c.h.b16 %v2881
        %v3464 = vunpack.c.l.b16 %v2882
        %v3465 = vunpack.c.h.b16 %v2882
        %v3466 = vunpack.c.l.b16 %v2883
        %v3467 = vunpack.c.h.b16 %v2883
        %v3468 = vunpack.c.l.b16 %v2884
        %v3469 = vunpack.c.h.b16 %v2884
        %v3470 = vunpack.c.l.b16 %v2885
        %v3471 = vunpack.c.h.b16 %v2885
        %v3472 = vunpack.c.l.b16 %v2886
        %v3473 = vunpack.c.h.b16 %v2886
        %v3474 = vunpack.c.l.b16 %v2887
        %v3475 = vunpack.c.h.b16 %v2887
        %v3476 = vunpack.c.l.b16 %v2888
        %v3477 = vunpack.c.h.b16 %v2888
        %v3478 = vunpack.c.l.b16 %v2889
        %v3479 = vunpack.c.h.b16 %v2889
        %v3480 = vunpack.c.l.b16 %v2890
        %v3481 = vunpack.c.h.b16 %v2890
        %v3482 = vunpack.c.l.b16 %v2891
        %v3483 = vunpack.c.h.b16 %v2891
        %v3484 = vunpack.c.l.b16 %v2892
        %v3485 = vunpack.c.h.b16 %v2892
        %v3486 = vunpack.c.l.b16 %v2893
        %v3487 = vunpack.c.h.b16 %v2893
        %v3488 = vunpack.c.l.b16 %v2894
        %v3489 = vunpack.c.h.b16 %v2894
        %v3490 = vunpack.c.l.b16 %v2895
        %v3491 = vunpack.c.h.b16 %v2895
        %v3492 = vunpack.c.l.b16 %v2896
        %v3493 = vunpack.c.h.b16 %v2896
        %v3494 = vunpack.c.l.b16 %v2897
        %v3495 = vunpack.c.h.b16 %v2897
        %v3496 = vunpack.c.l.b16 %v2898
        %v3497 = vunpack.c.h.b16 %v2898
        %v3498 = vunpack.c.l.b16 %v2899
        %v3499 = vunpack.c.h.b16 %v2899
        %v3500 = vunpack.c.l.b16 %v2900
        %v3501 = vunpack.c.h.b16 %v2900
        %v3502 = vunpack.c.l.b16 %v2901
        %v3503 = vunpack.c.h.b16 %v2901
        %v3504 = vunpack.c.l.b16 %v2902
        %v3505 = vunpack.c.h.b16 %v2902
        %v3506 = vunpack.c.l.b16 %v2903
        %v3507 = vunpack.c.h.b16 %v2903
        %v3508 = vunpack.c.l.b16 %v2904
        %v3509 = vunpack.c.h.b16 %v2904
        %v3510 = vunpack.c.l.b16 %v2905
        %v3511 = vunpack.c.h.b16 %v2905
        %v3512 = vunpack.c.l.b16 %v2906
        %v3513 = vunpack.c.h.b16 %v2906
        %v3514 = vunpack.c.l.b16 %v2907
        %v3515 = vunpack.c.h.b16 %v2907
        %v3516 = vunpack.c.l.b16 %v2908
        %v3517 = vunpack.c.h.b16 %v2908
        %v3518 = vunpack.c.l.b16 %v2909
        %v3519 = vunpack.c.h.b16 %v2909
        %v3520 = vunpack.c.l.b16 %v2910
        %v3521 = vunpack.c.h.b16 %v2910
        %v3522 = vunpack.c.l.b16 %v2911
        %v3523 = vunpack.c.h.b16 %v2911
        %v3524 = vunpack.c.l.b16 %v2912
        %v3525 = vunpack.c.h.b16 %v2912
        %v3526 = vunpack.c.l.b16 %v2913
        %v3527 = vunpack.c.h.b16 %v2913
        %v3528 = vunpack.c.l.b16 %v2914
        %v3529 = vunpack.c.h.b16 %v2914
        %v3530 = vunpack.c.l.b16 %v2915
        %v3531 = vunpack.c.h.b16 %v2915
        %v3532 = vunpack.c.l.b16 %v2916
        %v3533 = vunpack.c.h.b16 %v2916
        %v3534 = vunpack.c.l.b16 %v2917
        %v3535 = vunpack.c.h.b16 %v2917
        %v3536 = vunpack.c.l.b16 %v2918
        %v3537 = vunpack.c.h.b16 %v2918
        %v3538 = vpack.c.b16 %v3158, %v3154
        %v3539 = vpack.c.b16 %v3159, %v3155
        %v3540 = vpack.c.b16 %v3160, %v3156
        %v3541 = vpack.c.b16 %v3161, %v3157
        %v3542 = vpack.c.b16 %v3166, %v3162
        %v3543 = vpack.c.b16 %v3167, %v3163
        %v3544 = vpack.c.b16 %v3168, %v3164
        %v3545 = vpack.c.b16 %v3169, %v3165
        %v3546 = vpack.c.b16 %v3174, %v3170
        %v3547 = vpack.c.b16 %v3175, %v3171
        %v3548 = vpack.c.b16 %v3176, %v3172
        %v3549 = vpack.c.b16 %v3177, %v3173
        %v3550 = vpack.c.b16 %v3182, %v3178
        %v3551 = vpack.c.b16 %v3183, %v3179
        %v3552 = vpack.c.b16 %v3184, %v3180
        %v3553 = vpack.c.b16 %v3185, %v3181
        %v3554 = vpack.c.b16 %v3190, %v3186
        %v3555 = vpack.c.b16 %v3191, %v3187
        %v3556 = vpack.c.b16 %v3192, %v3188
        %v3557 = vpack.c.b16 %v3193, %v3189
        %v3558 = vpack.c.b16 %v3198, %v3194
        %v3559 = vpack.c.b16 %v3199, %v3195
        %v3560 = vpack.c.b16 %v3200, %v3196
        %v3561 = vpack.c.b16 %v3201, %v3197
        %v3562 = vpack.c.b16 %v3206, %v3202
        %v3563 = vpack.c.b16 %v3207, %v3203
        %v3564 = vpack.c.b16 %v3208, %v3204
        %v3565 = vpack.c.b16 %v3209, %v3205
        %v3566 = vpack.c.b16 %v3214, %v3210
        %v3567 = vpack.c.b16 %v3215, %v3211
        %v3568 = vpack.c.b16 %v3216, %v3212
        %v3569 = vpack.c.b16 %v3217, %v3213
        %v3570 = vpack.c.b16 %v3222, %v3218
        %v3571 = vpack.c.b16 %v3223, %v3219
        %v3572 = vpack.c.b16 %v3224, %v3220
        %v3573 = vpack.c.b16 %v3225, %v3221
        %v3574 = vpack.c.b16 %v3230, %v3226
        %v3575 = vpack.c.b16 %v3231, %v3227
        %v3576 = vpack.c.b16 %v3232, %v3228
        %v3577 = vpack.c.b16 %v3233, %v3229
        %v3578 = vpack.c.b16 %v3238, %v3234
        %v3579 = vpack.c.b16 %v3239, %v3235
        %v3580 = vpack.c.b16 %v3240, %v3236
        %v3581 = vpack.c.b16 %v3241, %v3237
        %v3582 = vpack.c.b16 %v3246, %v3242
        %v3583 = vpack.c.b16 %v3247, %v3243
        %v3584 = vpack.c.b16 %v3248, %v3244
        %v3585 = vpack.c.b16 %v3249, %v3245
        %v3586 = vpack.c.b16 %v3254, %v3250
        %v3587 = vpack.c.b16 %v3255, %v3251
        %v3588 = vpack.c.b16 %v3256, %v3252
        %v3589 = vpack.c.b16 %v3257, %v3253
        %v3590 = vpack.c.b16 %v3262, %v3258
        %v3591 = vpack.c.b16 %v3263, %v3259
        %v3592 = vpack.c.b16 %v3264, %v3260
        %v3593 = vpack.c.b16 %v3265, %v3261
        %v3594 = vpack.c.b16 %v3270, %v3266
        %v3595 = vpack.c.b16 %v3271, %v3267
        %v3596 = vpack.c.b16 %v3272, %v3268
        %v3597 = vpack.c.b16 %v3273, %v3269
        %v3598 = vpack.c.b16 %v3278, %v3274
        %v3599 = vpack.c.b16 %v3279, %v3275
        %v3600 = vpack.c.b16 %v3280, %v3276
        %v3601 = vpack.c.b16 %v3281, %v3277
        %v3602 = vpack.c.b16 %v3286, %v3282
        %v3603 = vpack.c.b16 %v3287, %v3283
        %v3604 = vpack.c.b16 %v3288, %v3284
        %v3605 = vpack.c.b16 %v3289, %v3285
        %v3606 = vpack.c.b16 %v3294, %v3290
        %v3607 = vpack.c.b16 %v3295, %v3291
        %v3608 = vpack.c.b16 %v3296, %v3292
        %v3609 = vpack.c.b16 %v3297, %v3293
        %v3610 = vpack.c.b16 %v3302, %v3298
        %v3611 = vpack.c.b16 %v3303, %v3299
        %v3612 = vpack.c.b16 %v3304, %v3300
        %v3613 = vpack.c.b16 %v3305, %v3301
        %v3614 = vpack.c.b16 %v3310, %v3306
        %v3615 = vpack.c.b16 %v3311, %v3307
        %v3616 = vpack.c.b16 %v3312, %v3308
        %v3617 = vpack.c.b16 %v3313, %v3309
        %v3618 = vpack.c.b16 %v3318, %v3314
        %v3619 = vpack.c.b16 %v3319, %v3315
        %v3620 = vpack.c.b16 %v3320, %v3316
        %v3621 = vpack.c.b16 %v3321, %v3317
        %v3622 = vpack.c.b16 %v3326, %v3322
        %v3623 = vpack.c.b16 %v3327, %v3323
        %v3624 = vpack.c.b16 %v3328, %v3324
        %v3625 = vpack.c.b16 %v3329, %v3325
        %v3626 = vpack.c.b16 %v3334, %v3330
        %v3627 = vpack.c.b16 %v3335, %v3331
        %v3628 = vpack.c.b16 %v3336, %v3332
        %v3629 = vpack.c.b16 %v3337, %v3333
        %v3630 = vpack.c.b16 %v3342, %v3338
        %v3631 = vpack.c.b16 %v3343, %v3339
        %v3632 = vpack.c.b16 %v3344, %v3340
        %v3633 = vpack.c.b16 %v3345, %v3341
        %v3634 = vpack.c.b16 %v3350, %v3346
        %v3635 = vpack.c.b16 %v3351, %v3347
        %v3636 = vpack.c.b16 %v3352, %v3348
        %v3637 = vpack.c.b16 %v3353, %v3349
        %v3638 = vpack.c.b16 %v3358, %v3354
        %v3639 = vpack.c.b16 %v3359, %v3355
        %v3640 = vpack.c.b16 %v3360, %v3356
        %v3641 = vpack.c.b16 %v3361, %v3357
        %v3642 = vpack.c.b16 %v3366, %v3362
        %v3643 = vpack.c.b16 %v3367, %v3363
        %v3644 = vpack.c.b16 %v3368, %v3364
        %v3645 = vpack.c.b16 %v3369, %v3365
        %v3646 = vpack.c.b16 %v3374, %v3370
        %v3647 = vpack.c.b16 %v3375, %v3371
        %v3648 = vpack.c.b16 %v3376, %v3372
        %v3649 = vpack.c.b16 %v3377, %v3373
        %v3650 = vpack.c.b16 %v3382, %v3378
        %v3651 = vpack.c.b16 %v3383, %v3379
        %v3652 = vpack.c.b16 %v3384, %v3380
        %v3653 = vpack.c.b16 %v3385, %v3381
        %v3654 = vpack.c.b16 %v3390, %v3386
        %v3655 = vpack.c.b16 %v3391, %v3387
        %v3656 = vpack.c.b16 %v3392, %v3388
        %v3657 = vpack.c.b16 %v3393, %v3389
        %v3658 = vpack.c.b16 %v3398, %v3394
        %v3659 = vpack.c.b16 %v3399, %v3395
        %v3660 = vpack.c.b16 %v3400, %v3396
        %v3661 = vpack.c.b16 %v3401, %v3397
        %v3662 = vpack.c.b16 %v3406, %v3402
        %v3663 = vpack.c.b16 %v3407, %v3403
        %v3664 = vpack.c.b16 %v3408, %v3404
        %v3665 = vpack.c.b16 %v3409, %v3405
        %v3666 = vpack.c.b16 %v3414, %v3410
        %v3667 = vpack.c.b16 %v3415, %v3411
        %v3668 = vpack.c.b16 %v3416, %v3412
        %v3669 = vpack.c.b16 %v3417, %v3413
        %v3670 = vpack.c.b16 %v3422, %v3418
        %v3671 = vpack.c.b16 %v3423, %v3419
        %v3672 = vpack.c.b16 %v3424, %v3420
        %v3673 = vpack.c.b16 %v3425, %v3421
        %v3674 = vpack.c.b16 %v3430, %v3426
        %v3675 = vpack.c.b16 %v3431, %v3427
        %v3676 = vpack.c.b16 %v3432, %v3428
        %v3677 = vpack.c.b16 %v3433, %v3429
        %v3678 = vpack.c.b16 %v3438, %v3434
        %v3679 = vpack.c.b16 %v3439, %v3435
        %v3680 = vpack.c.b16 %v3440, %v3436
        %v3681 = vpack.c.b16 %v3441, %v3437
        %v3682 = vpack.c.b16 %v3446, %v3442
        %v3683 = vpack.c.b16 %v3447, %v3443
        %v3684 = vpack.c.b16 %v3448, %v3444
        %v3685 = vpack.c.b16 %v3449, %v3445
        %v3686 = vpack.c.b16 %v3454, %v3450
        %v3687 = vpack.c.b16 %v3455, %v3451
        %v3688 = vpack.c.b16 %v3456, %v3452
        %v3689 = vpack.c.b16 %v3457, %v3453
        %v3690 = vpack.c.b16 %v3462, %v3458
        %v3691 = vpack.c.b16 %v3463, %v3459
        %v3692 = vpack.c.b16 %v3464, %v3460
        %v3693 = vpack.c.b16 %v3465, %v3461
        %v3694 = vpack.c.b16 %v3470, %v3466
        %v3695 = vpack.c.b16 %v3471, %v3467
        %v3696 = vpack.c.b16 %v3472, %v3468
        %v3697 = vpack.c.b16 %v3473, %v3469
        %v3698 = vpack.c.b16 %v3478, %v3474
        %v3699 = vpack.c.b16 %v3479, %v3475
        %v3700 = vpack.c.b16 %v3480, %v3476
        %v3701 = vpack.c.b16 %v3481, %v3477
        %v3702 = vpack.c.b16 %v3486, %v3482
        %v3703 = vpack.c.b16 %v3487, %v3483
        %v3704 = vpack.c.b16 %v3488, %v3484
        %v3705 = vpack.c.b16 %v3489, %v3485
        %v3706 = vpack.c.b16 %v3494, %v3490
        %v3707 = vpack.c.b16 %v3495, %v3491
        %v3708 = vpack.c.b16 %v3496, %v3492
        %v3709 = vpack.c.b16 %v3497, %v3493
        %v3710 = vpack.c.b16 %v3502, %v3498
        %v3711 = vpack.c.b16 %v3503, %v3499
        %v3712 = vpack.c.b16 %v3504, %v3500
        %v3713 = vpack.c.b16 %v3505, %v3501
        %v3714 = vpack.c.b16 %v3510, %v3506
        %v3715 = vpack.c.b16 %v3511, %v3507
        %v3716 = vpack.c.b16 %v3512, %v3508
        %v3717 = vpack.c.b16 %v3513, %v3509
        %v3718 = vpack.c.b16 %v3518, %v3514
        %v3719 = vpack.c.b16 %v3519, %v3515
        %v3720 = vpack.c.b16 %v3520, %v3516
        %v3721 = vpack.c.b16 %v3521, %v3517
        %v3722 = vpack.c.b16 %v3526, %v3522
        %v3723 = vpack.c.b16 %v3527, %v3523
        %v3724 = vpack.c.b16 %v3528, %v3524
        %v3725 = vpack.c.b16 %v3529, %v3525
        %v3726 = vpack.c.b16 %v3534, %v3530
        %v3727 = vpack.c.b16 %v3535, %v3531
        %v3728 = vpack.c.b16 %v3536, %v3532
        %v3729 = vpack.c.b16 %v3537, %v3533
        %3922 = vmatprep.subr.bf16.mxu0 %v3539
        %3923 = vmatpush1.bf16.msra.mxu0 %v3538
        %3924 = vmatprep.subr.bf16.mxu0 %v3543
        %3925 = vmatpush1.bf16.msra.mxu0 %v3542
        %3926 = vmatprep.subr.bf16.mxu0 %v3547
        %3927 = vmatpush1.bf16.msra.mxu0 %v3546
        %3928 = vmatprep.subr.bf16.mxu0 %v3551
        %3929 = vmatpush1.bf16.msra.mxu0 %v3550
        %3930 = vmatprep.subr.bf16.mxu0 %v3555
        %3931 = vmatpush1.bf16.msra.mxu0 %v3554
        %3932 = vmatprep.subr.bf16.mxu0 %v3559
        %3933 = vmatpush1.bf16.msra.mxu0 %v3558
        %3934 = vmatprep.subr.bf16.mxu0 %v3563
        %3935 = vmatpush1.bf16.msra.mxu0 %v3562
        %3936 = vmatprep.subr.bf16.mxu0 %v3567
        %3937 = vmatpush1.bf16.msra.mxu0 %v3566
        %3938 = vmatprep.subr.bf16.mxu0 %v3571
        %3939 = vmatpush1.bf16.msra.mxu0 %v3570
        %3940 = vmatprep.subr.bf16.mxu0 %v3575
        %3941 = vmatpush1.bf16.msra.mxu0 %v3574
        %3942 = vmatprep.subr.bf16.mxu0 %v3579
        %3943 = vmatpush1.bf16.msra.mxu0 %v3578
        %3944 = vmatprep.subr.bf16.mxu0 %v3583
        %3945 = vmatpush1.bf16.msra.mxu0 %v3582
        %3946 = vmatprep.subr.bf16.mxu0 %v3587
        %3947 = vmatpush1.bf16.msra.mxu0 %v3586
        %3948 = vmatprep.subr.bf16.mxu0 %v3591
        %3949 = vmatpush1.bf16.msra.mxu0 %v3590
        %3950 = vmatprep.subr.bf16.mxu0 %v3595
        %3951 = vmatpush1.bf16.msra.mxu0 %v3594
        %3952 = vmatprep.subr.bf16.mxu0 %v3599
        %3953 = vmatpush1.bf16.msra.mxu0 %v3598
        %3954 = vmatprep.mubr.bf16.mxu0 %v2951
        %3955 = vmatmul.mubr.bf16.gmra.mrb[0].mxu0 %v2950
        %v3956 = vpop.f32.mrb[0].mxu0
        %v3957 = vadd.f32 %v2924, %v3956
        %v3958 = vpop.f32.mrb[0].mxu0
        %v3959 = vadd.f32 %v2928, %v3958
        %v3960 = vpop.f32.mrb[0].mxu0
        %v3961 = vpop.f32.mrb[0].mxu0
        %3962 = vdwg.mxu0
        %3963 = vmatprep.subr.bf16.mxu0 %v3603
        %3964 = vmatpush1.bf16.msra.mxu0 %v3602
        %3965 = vmatprep.subr.bf16.mxu0 %v3607
        %3966 = vmatpush1.bf16.msra.mxu0 %v3606
        %3967 = vmatprep.subr.bf16.mxu0 %v3611
        %3968 = vmatpush1.bf16.msra.mxu0 %v3610
        %3969 = vmatprep.subr.bf16.mxu0 %v3615
        %3970 = vmatpush1.bf16.msra.mxu0 %v3614
        %3971 = vmatprep.subr.bf16.mxu0 %v3619
        %3972 = vmatpush1.bf16.msra.mxu0 %v3618
        %3973 = vmatprep.subr.bf16.mxu0 %v3623
        %3974 = vmatpush1.bf16.msra.mxu0 %v3622
        %3975 = vmatprep.subr.bf16.mxu0 %v3627
        %3976 = vmatpush1.bf16.msra.mxu0 %v3626
        %3977 = vmatprep.subr.bf16.mxu0 %v3631
        %3978 = vmatpush1.bf16.msra.mxu0 %v3630
        %3979 = vmatprep.subr.bf16.mxu0 %v3635
        %3980 = vmatpush1.bf16.msra.mxu0 %v3634
        %3981 = vmatprep.subr.bf16.mxu0 %v3639
        %3982 = vmatpush1.bf16.msra.mxu0 %v3638
        %3983 = vmatprep.subr.bf16.mxu0 %v3643
        %3984 = vmatpush1.bf16.msra.mxu0 %v3642
        %3985 = vmatprep.subr.bf16.mxu0 %v3647
        %3986 = vmatpush1.bf16.msra.mxu0 %v3646
        %3987 = vmatprep.subr.bf16.mxu0 %v3651
        %3988 = vmatpush1.bf16.msra.mxu0 %v3650
        %3989 = vmatprep.subr.bf16.mxu0 %v3655
        %3990 = vmatpush1.bf16.msra.mxu0 %v3654
        %3991 = vmatprep.subr.bf16.mxu0 %v3659
        %3992 = vmatpush1.bf16.msra.mxu0 %v3658
        %3993 = vmatprep.subr.bf16.mxu0 %v3663
        %3994 = vmatpush1.bf16.msra.mxu0 %v3662
        %3995 = vmatprep.mubr.bf16.mxu0 %v2953
        %3996 = vmatmul.mubr.bf16.gmra.mrb[0].mxu0 %v2952
        %v3997 = vpop.f32.mrb[0].mxu0
        %v3998 = vadd.f32 %v3957, %v3997
        %v3999 = vpop.f32.mrb[0].mxu0
        %v4000 = vadd.f32 %v3959, %v3999
        %v4001 = vpop.f32.mrb[0].mxu0
        %v4002 = vpop.f32.mrb[0].mxu0
        %4003 = vdwg.mxu0
        %4004 = vmatprep.subr.bf16.mxu0 %v3667
        %4005 = vmatpush1.bf16.msra.mxu0 %v3666
        %4006 = vmatprep.subr.bf16.mxu0 %v3671
        %4007 = vmatpush1.bf16.msra.mxu0 %v3670
        %4008 = vmatprep.subr.bf16.mxu0 %v3675
        %4009 = vmatpush1.bf16.msra.mxu0 %v3674
        %4010 = vmatprep.subr.bf16.mxu0 %v3679
        %4011 = vmatpush1.bf16.msra.mxu0 %v3678
        %4012 = vmatprep.subr.bf16.mxu0 %v3683
        %4013 = vmatpush1.bf16.msra.mxu0 %v3682
        %4014 = vmatprep.subr.bf16.mxu0 %v3687
        %4015 = vmatpush1.bf16.msra.mxu0 %v3686
        %4016 = vmatprep.subr.bf16.mxu0 %v3691
        %4017 = vmatpush1.bf16.msra.mxu0 %v3690
        %4018 = vmatprep.subr.bf16.mxu0 %v3695
        %4019 = vmatpush1.bf16.msra.mxu0 %v3694
        %4020 = vmatprep.subr.bf16.mxu0 %v3699
        %4021 = vmatpush1.bf16.msra.mxu0 %v3698
        %4022 = vmatprep.subr.bf16.mxu0 %v3703
        %4023 = vmatpush1.bf16.msra.mxu0 %v3702
        %4024 = vmatprep.subr.bf16.mxu0 %v3707
        %4025 = vmatpush1.bf16.msra.mxu0 %v3706
        %4026 = vmatprep.subr.bf16.mxu0 %v3711
        %4027 = vmatpush1.bf16.msra.mxu0 %v3710
        %4028 = vmatprep.subr.bf16.mxu0 %v3715
        %4029 = vmatpush1.bf16.msra.mxu0 %v3714
        %4030 = vmatprep.subr.bf16.mxu0 %v3719
        %4031 = vmatpush1.bf16.msra.mxu0 %v3718
        %4032 = vmatprep.subr.bf16.mxu0 %v3723
        %4033 = vmatpush1.bf16.msra.mxu0 %v3722
        %4034 = vmatprep.subr.bf16.mxu0 %v3727
        %4035 = vmatpush1.bf16.msra.mxu0 %v3726
        %4036 = vmatprep.mubr.bf16.mxu0 %v2955
        %4037 = vmatmul.mubr.bf16.gmra.mrb[0].mxu0 %v2954
        %v4038 = vpop.f32.mrb[0].mxu0
        %v4039 = vadd.f32 %v3998, %v4038
        %v4040 = vpop.f32.mrb[0].mxu0
        %v4041 = vadd.f32 %v4000, %v4040
        %v4042 = vpop.f32.mrb[0].mxu0
        %v4043 = vpop.f32.mrb[0].mxu0
        %4044 = vdwg.mxu0
        %4045 = vmatprep.subr.bf16.mxu0 %v3541
        %4046 = vmatpush1.bf16.msra.mxu0 %v3540
        %4047 = vmatprep.subr.bf16.mxu0 %v3545
        %4048 = vmatpush1.bf16.msra.mxu0 %v3544
        %4049 = vmatprep.subr.bf16.mxu0 %v3549
        %4050 = vmatpush1.bf16.msra.mxu0 %v3548
        %4051 = vmatprep.subr.bf16.mxu0 %v3553
        %4052 = vmatpush1.bf16.msra.mxu0 %v3552
        %4053 = vmatprep.subr.bf16.mxu0 %v3557
        %4054 = vmatpush1.bf16.msra.mxu0 %v3556
        %4055 = vmatprep.subr.bf16.mxu0 %v3561
        %4056 = vmatpush1.bf16.msra.mxu0 %v3560
        %4057 = vmatprep.subr.bf16.mxu0 %v3565
        %4058 = vmatpush1.bf16.msra.mxu0 %v3564
        %4059 = vmatprep.subr.bf16.mxu0 %v3569
        %4060 = vmatpush1.bf16.msra.mxu0 %v3568
        %4061 = vmatprep.subr.bf16.mxu0 %v3573
        %4062 = vmatpush1.bf16.msra.mxu0 %v3572
        %4063 = vmatprep.subr.bf16.mxu0 %v3577
        %4064 = vmatpush1.bf16.msra.mxu0 %v3576
        %4065 = vmatprep.subr.bf16.mxu0 %v3581
        %4066 = vmatpush1.bf16.msra.mxu0 %v3580
        %4067 = vmatprep.subr.bf16.mxu0 %v3585
        %4068 = vmatpush1.bf16.msra.mxu0 %v3584
        %4069 = vmatprep.subr.bf16.mxu0 %v3589
        %4070 = vmatpush1.bf16.msra.mxu0 %v3588
        %4071 = vmatprep.subr.bf16.mxu0 %v3593
        %4072 = vmatpush1.bf16.msra.mxu0 %v3592
        %4073 = vmatprep.subr.bf16.mxu0 %v3597
        %4074 = vmatpush1.bf16.msra.mxu0 %v3596
        %4075 = vmatprep.subr.bf16.mxu0 %v3601
        %4076 = vmatpush1.bf16.msra.mxu0 %v3600
        %4077 = vmatprep.mubr.bf16.mxu0 %v2951
        %4078 = vmatmul.mubr.bf16.gmra.mrb[0].mxu0 %v2950
        %v4079 = vpop.f32.mrb[0].mxu0
        %v4080 = vadd.f32 %v2932, %v4079
        %v4081 = vpop.f32.mrb[0].mxu0
        %v4082 = vadd.f32 %v2936, %v4081
        %v4083 = vpop.f32.mrb[0].mxu0
        %v4084 = vpop.f32.mrb[0].mxu0
        %4085 = vdwg.mxu0
        %4086 = vmatprep.subr.bf16.mxu0 %v3605
        %4087 = vmatpush1.bf16.msra.mxu0 %v3604
        %4088 = vmatprep.subr.bf16.mxu0 %v3609
        %4089 = vmatpush1.bf16.msra.mxu0 %v3608
        %4090 = vmatprep.subr.bf16.mxu0 %v3613
        %4091 = vmatpush1.bf16.msra.mxu0 %v3612
        %4092 = vmatprep.subr.bf16.mxu0 %v3617
        %4093 = vmatpush1.bf16.msra.mxu0 %v3616
        %4094 = vmatprep.subr.bf16.mxu0 %v3621
        %4095 = vmatpush1.bf16.msra.mxu0 %v3620
        %4096 = vmatprep.subr.bf16.mxu0 %v3625
        %4097 = vmatpush1.bf16.msra.mxu0 %v3624
        %4098 = vmatprep.subr.bf16.mxu0 %v3629
        %4099 = vmatpush1.bf16.msra.mxu0 %v3628
        %4100 = vmatprep.subr.bf16.mxu0 %v3633
        %4101 = vmatpush1.bf16.msra.mxu0 %v3632
        %4102 = vmatprep.subr.bf16.mxu0 %v3637
        %4103 = vmatpush1.bf16.msra.mxu0 %v3636
        %4104 = vmatprep.subr.bf16.mxu0 %v3641
        %4105 = vmatpush1.bf16.msra.mxu0 %v3640
        %4106 = vmatprep.subr.bf16.mxu0 %v3645
        %4107 = vmatpush1.bf16.msra.mxu0 %v3644
        %4108 = vmatprep.subr.bf16.mxu0 %v3649
        %4109 = vmatpush1.bf16.msra.mxu0 %v3648
        %4110 = vmatprep.subr.bf16.mxu0 %v3653
        %4111 = vmatpush1.bf16.msra.mxu0 %v3652
        %4112 = vmatprep.subr.bf16.mxu0 %v3657
        %4113 = vmatpush1.bf16.msra.mxu0 %v3656
        %4114 = vmatprep.subr.bf16.mxu0 %v3661
        %4115 = vmatpush1.bf16.msra.mxu0 %v3660
        %4116 = vmatprep.subr.bf16.mxu0 %v3665
        %4117 = vmatpush1.bf16.msra.mxu0 %v3664
        %4118 = vmatprep.mubr.bf16.mxu0 %v2953
        %4119 = vmatmul.mubr.bf16.gmra.mrb[0].mxu0 %v2952
        %v4120 = vpop.f32.mrb[0].mxu0
        %v4121 = vadd.f32 %v4080, %v4120
        %v4122 = vpop.f32.mrb[0].mxu0
        %v4123 = vadd.f32 %v4082, %v4122
        %v4124 = vpop.f32.mrb[0].mxu0
        %v4125 = vpop.f32.mrb[0].mxu0
        %4126 = vdwg.mxu0
        %4127 = vmatprep.subr.bf16.mxu0 %v3669
        %4128 = vmatpush1.bf16.msra.mxu0 %v3668
        %4129 = vmatprep.subr.bf16.mxu0 %v3673
        %4130 = vmatpush1.bf16.msra.mxu0 %v3672
        %4131 = vmatprep.subr.bf16.mxu0 %v3677
        %4132 = vmatpush1.bf16.msra.mxu0 %v3676
        %4133 = vmatprep.subr.bf16.mxu0 %v3681
        %4134 = vmatpush1.bf16.msra.mxu0 %v3680
        %4135 = vmatprep.subr.bf16.mxu0 %v3685
        %4136 = vmatpush1.bf16.msra.mxu0 %v3684
        %4137 = vmatprep.subr.bf16.mxu0 %v3689
        %4138 = vmatpush1.bf16.msra.mxu0 %v3688
        %4139 = vmatprep.subr.bf16.mxu0 %v3693
        %4140 = vmatpush1.bf16.msra.mxu0 %v3692
        %4141 = vmatprep.subr.bf16.mxu0 %v3697
        %4142 = vmatpush1.bf16.msra.mxu0 %v3696
        %4143 = vmatprep.subr.bf16.mxu0 %v3701
        %4144 = vmatpush1.bf16.msra.mxu0 %v3700
        %4145 = vmatprep.subr.bf16.mxu0 %v3705
        %4146 = vmatpush1.bf16.msra.mxu0 %v3704
        %4147 = vmatprep.subr.bf16.mxu0 %v3709
        %4148 = vmatpush1.bf16.msra.mxu0 %v3708
        %4149 = vmatprep.subr.bf16.mxu0 %v3713
        %4150 = vmatpush1.bf16.msra.mxu0 %v3712
        %4151 = vmatprep.subr.bf16.mxu0 %v3717
        %4152 = vmatpush1.bf16.msra.mxu0 %v3716
        %4153 = vmatprep.subr.bf16.mxu0 %v3721
        %4154 = vmatpush1.bf16.msra.mxu0 %v3720
        %4155 = vmatprep.subr.bf16.mxu0 %v3725
        %4156 = vmatpush1.bf16.msra.mxu0 %v3724
        %4157 = vmatprep.subr.bf16.mxu0 %v3729
        %4158 = vmatpush1.bf16.msra.mxu0 %v3728
        %4159 = vmatprep.mubr.bf16.mxu0 %v2955
        %4160 = vmatmul.mubr.bf16.gmra.mrb[0].mxu0 %v2954
        %v4161 = vpop.f32.mrb[0].mxu0
        %v4162 = vadd.f32 %v4121, %v4161
        %v4163 = vpop.f32.mrb[0].mxu0
        %v4164 = vadd.f32 %v4123, %v4163
        %v4165 = vpop.f32.mrb[0].mxu0
        %v4166 = vpop.f32.mrb[0].mxu0
        %4167 = vdwg.mxu0
        %4168 = vst [vmem:[%s435] sm:$0xff] %v4039
        %4169 = vst [vmem:[%s435 + $0x8] sm:$0xff] %v4041
        %4170 = vst [vmem:[%s435 + $0x10] sm:$0xff] %v4162
        %4171 = vst [vmem:[%s435 + $0x18] sm:$0xff] %v4164
        %s4172 = sand.u32 %s213, 1
        %s4173 = scalar_lea.sflag [#allocation5], %s4172
        %s4174 = sand.u32 %s213, 1
        %s4175 = smul.addr %s4174, 32
        %s4176 = scalar_lea.vmem [#allocation15], %s4175
        // Predicated region
        $region81: #{tpu_custom_call.1} parent=47 // pred_check
          %p4177 = pneg %p223
        $region82: #{tpu_custom_call.1} parent=47 // pred_check_branch
          %4179 = sbr.rel (%p4177) target = $region84
        $region83: #{tpu_custom_call.1} parent=47 // pred_region
          %s4180 = smul.u32 4, %s34
          %s4182 = ssub.s32 512, 512
          %4183 = vsyncadd %s4173, %s4182
          %s4184 = smul.addr %s33, 8
          %s4185 = sadd.s32 %s4180, %s4184
          %s4186 = smul.addr %s4185, 128
          %s4187 = scalar_lea.hbm %s7, %s4186
          %s4189 = sshll.u32 %s4176, 4
          %s4190 = int_to_ptr.vmem [resolvable:$true] %s4189
          %4192 = dma.vmem_to_hbm [thread:$0]  %s4190, 512, %s4187, %s4173
        $region84: #{tpu_custom_call.1} parent=47 // pred_fallthru
          _
      $region48: #{tpu_custom_call.1} parent=5 // pred_fallthru
        _
      %p4193 = scmp.le.s32.totalorder 2, %s24
      // Predicated region
      $region85: #{tpu_custom_call.1} parent=5 // pred_check
        %p4194 = pneg %p4193
      $region86: #{tpu_custom_call.1} parent=5 // pred_check_branch
        %4196 = sbr.rel (%p4194) target = $region88
      $region87: #{tpu_custom_call.1} parent=5 // pred_region
        %s4197 = ssub.s32 %s24, 2
        // Predicated region
        $region89: #{tpu_custom_call.1} parent=87 // pred_check
          %p4198 = pneg %p229
        $region90: #{tpu_custom_call.1} parent=87 // pred_check_branch
          %4200 = sbr.rel (%p4198) target = $region92
        $region91: #{tpu_custom_call.1} parent=87 // pred_region
          %s4201 = sand.u32 %s214, 1
          %s4202 = scalar_lea.sflag [#allocation5], %s4201
          %s4203 = sand.u32 %s214, 1
          %s4204 = smul.addr %s4203, 32
          %s4205 = scalar_lea.vmem [#allocation15], %s4204
          %4206 = dma.done %s4202, 512
        $region92: #{tpu_custom_call.1} parent=87 // pred_fallthru
          _
      $region88: #{tpu_custom_call.1} parent=5 // pred_fallthru
        _
    $region6: #{tpu_custom_call.1} parent=1 // loop_footer
      %s28 = sadd.s32 1, %s24
    $region7: #{tpu_custom_call.1} parent=1 // loop_footer_branch
      %23 = sbr.rel target = $region3
    $region8: #{tpu_custom_call.1} parent=1 // loop_exit
      _
    %4207 = vsyncpa [#allocation4], 1
    %s4208 = scalar_lea.sflag [#allocation4], 1
    %4209 = vsyncpa %s4208, 1
    %4210 = vsyncpa [#allocation7], 1
    %4211 = vsyncpa [#allocation10], 1
    %4212 = vsyncpa [#allocation13], 1
    %s4213 = scalar_lea.sflag [#allocation13], 1
    %4214 = vsyncpa %s4213, 1
    %4215 = vsyncpa [#allocation5], 1
    %s4216 = scalar_lea.sflag [#allocation5], 1
    %4217 = vsyncpa %s4216, 1

</llo_original>
